<compile_context>
chip_gen: v6e
topology: v6e:2x2x1
jax: 0.10.0
libtpu: 0.0.40
codegen_flags: <defaults>
</compile_context>

<pallas_src>
import jax
import jax.numpy as jnp
from jax.experimental import pallas as pl
from jax.experimental.pallas import tpu as pltpu

S, H, N = 384, 768, 3072
EPS = 1e-5

TN = 512                 # streamed output-column tile (multiple of 256 for v6e/v7x MXU)
N_HALF = N // 2          # each "parallel" grid index owns one half of the columns
NJ = N_HALF // TN        # inner ("arbitrary") streaming steps per half  -> grid (2, 3)


def add_ln_linear_kernel(x1_ref, x2_ref, gamma_ref, beta_ref, w_ref, b_ref,
                         o_ref, y_bf16_ref):
    # --- LayerNorm once per parallel block (j == 0), cached in VMEM scratch ---
    @pl.when(pl.program_id(1) == 0)
    def _():
        x = x1_ref[...] + x2_ref[...]                          # (S, H) f32
        mean = jnp.mean(x, axis=-1, keepdims=True)
        xc = x - mean
        var = jnp.mean(xc * xc, axis=-1, keepdims=True)
        y = xc * jax.lax.rsqrt(var + EPS) * gamma_ref[...] + beta_ref[...]
        y_bf16_ref[...] = y.astype(jnp.bfloat16)               # (S, H) bf16

    # --- Linear slab on the MXU: bf16 x bf16 -> f32 accumulate ---
    o_ref[...] = (
        jnp.dot(y_bf16_ref[...], w_ref[...], preferred_element_type=jnp.float32)
        + b_ref[...]
    )


def add_layernorm_linear(x482, x448, gamma, beta, weight_t_bf16, bias):
    # x482, x448: (1, S, H) f32;  gamma/beta: (1, H) f32;
    # weight_t_bf16: (H, N) bf16 (pre-transposed, pre-cast);  bias: (1, N) f32
    x482_2d = x482.reshape(S, H)
    x448_2d = x448.reshape(S, H)

    col_block = lambda i, j: (0, i * NJ + j)   # column-slab index across both halves

    cost = pl.CostEstimate(
        flops=2 * S * H * N,
        transcendentals=0,
        bytes_accessed=(2 * S * H * 4      # x482 + x448 (f32)
                        + 2 * H * 4        # gamma + beta
                        + H * N * 2        # weight (bf16), read once chip-wide
                        + N * 4            # bias
                        + S * N * 4),      # output (f32)
    )

    out = pl.pallas_call(
        add_ln_linear_kernel,
        out_shape=jax.ShapeDtypeStruct((S, N), jnp.float32),
        grid_spec=pltpu.PrefetchScalarGridSpec(
            num_scalar_prefetch=0,
            grid=(2, NJ),
            in_specs=[
                pl.BlockSpec((S, H), lambda i, j: (0, 0)),   # x482 (invariant, full rows)
                pl.BlockSpec((S, H), lambda i, j: (0, 0)),   # x448 (invariant, full rows)
                pl.BlockSpec((1, H), lambda i, j: (0, 0)),   # gamma (invariant)
                pl.BlockSpec((1, H), lambda i, j: (0, 0)),   # beta  (invariant)
                pl.BlockSpec((H, TN), col_block),            # weight column slab (bf16)
                pl.BlockSpec((1, TN), col_block),            # bias  column slab
            ],
            out_specs=pl.BlockSpec((S, TN), col_block),      # output column slab
            scratch_shapes=[pltpu.VMEM((S, H), jnp.bfloat16)],  # cached LN result
        ),
        compiler_params=pltpu.CompilerParams(
            dimension_semantics=("parallel", "arbitrary"),
            vmem_limit_bytes=32 << 20,   # footprint ~8 MiB; plenty of headroom
        ),
        cost_estimate=cost,
    )(x482_2d, x448_2d, gamma, beta, weight_t_bf16, bias)

    return out.reshape(1, S, N)


if __name__ == "__main__":
    key = jax.random.PRNGKey(0)
    k1, k2, k3, k4, k5, k6 = jax.random.split(key, 6)

    # inputs, shapes dictated by the module: (1, 384, 768)
    x482 = jax.random.normal(k1, (1, S, H), dtype=jnp.float32)
    x448 = jax.random.normal(k2, (1, S, H), dtype=jnp.float32)

    # deterministic parameter init
    gamma = jax.random.normal(k3, (1, H), dtype=jnp.float32) * 0.1 + 1.0
    beta = jax.random.normal(k4, (1, H), dtype=jnp.float32) * 0.1
    weight = jax.random.normal(k5, (N, H), dtype=jnp.float32) * 0.02  # PyTorch (out, in)
    bias = jax.random.normal(k6, (1, N), dtype=jnp.float32) * 0.02

    # Pre-transpose and pre-cast ONCE, outside the kernel call path.
    weight_t_bf16 = jax.block_until_ready(
        jnp.asarray(weight.T, dtype=jnp.bfloat16))   # (H, N) bf16

    out = add_layernorm_linear(x482, x448, gamma, beta, weight_t_bf16, bias)
    out = jax.block_until_ready(out)

    # --- references ---
    xs = (x482 + x448).reshape(S, H)
    mu = jnp.mean(xs, axis=-1, keepdims=True)
    var = jnp.mean((xs - mu) ** 2, axis=-1, keepdims=True)
    y_ref = ((xs - mu) * jax.lax.rsqrt(var + EPS)) * gamma + beta

    # matched-precision reference (bf16 matmul operands, f32 accumulation)
    ref_bf16 = jnp.dot(y_ref.astype(jnp.bfloat16), weight_t_bf16,
                       preferred_element_type=jnp.float32) + bias
    # full-precision reference (precision-change sanity bound)
    ref_f32 = y_ref @ weight.T + bias

    out_2d = out.reshape(S, N)
    assert out.shape == (1, S, N)
    assert jnp.allclose(out_2d, ref_bf16, atol=1e-3, rtol=1e-3)
    assert jnp.allclose(out_2d, ref_f32, atol=2e-2, rtol=2e-2)
    print("KERNEL_OK")
</pallas_src>

<mosaic_0001>
module attributes {stable_mosaic.version = 11 : i64} {
  func.func @add_ln_linear_kernel(%arg0: i32, %arg1: i32, %arg2: memref<384x768xf32, #tpu.memory_space<vmem>>, %arg3: memref<384x768xf32, #tpu.memory_space<vmem>>, %arg4: memref<1x768xf32, #tpu.memory_space<vmem>>, %arg5: memref<1x768xf32, #tpu.memory_space<vmem>>, %arg6: memref<768x512xbf16, #tpu.memory_space<vmem>>, %arg7: memref<1x512xf32, #tpu.memory_space<vmem>>, %arg8: memref<384x512xf32, #tpu.memory_space<vmem>>, %arg9: memref<384x768xbf16, #tpu.memory_space<vmem>>) attributes {dimension_semantics = [#tpu.dimension_semantics<parallel>, #tpu.dimension_semantics<arbitrary>], iteration_bounds = array<i64: 2, 3>, scalar_prefetch = 0 : i64, scratch_operands = 1 : i64, tpu.core_type = #tpu.core_type<tc>, window_params = [{pipeline_mode = #tpu.pipeline_mode<synchronous>, transform_indices = @transform_0, window_bounds = array<i64: 384, 768>}, {pipeline_mode = #tpu.pipeline_mode<synchronous>, transform_indices = @transform_1, window_bounds = array<i64: 384, 768>}, {pipeline_mode = #tpu.pipeline_mode<synchronous>, transform_indices = @transform_2, window_bounds = array<i64: 1, 768>}, {pipeline_mode = #tpu.pipeline_mode<synchronous>, transform_indices = @transform_3, window_bounds = array<i64: 1, 768>}, {transform_indices = @transform_4, window_bounds = array<i64: 768, 512>}, {transform_indices = @transform_5, window_bounds = array<i64: 1, 512>}, {transform_indices = @transform_6, window_bounds = array<i64: 384, 512>}]} {
    %c0_i32 = arith.constant 0 : i32
    %0 = arith.cmpi eq, %arg1, %c0_i32 : i32
    %1 = arith.extui %0 : i1 to i32
    %c0_i32_0 = arith.constant 0 : i32
    %2 = arith.cmpi ne, %1, %c0_i32_0 : i32
    scf.if %2 {
      %c0_8 = arith.constant 0 : index
      %c0_9 = arith.constant 0 : index
      %10 = vector.load %arg2[%c0_8, %c0_9] : memref<384x768xf32, #tpu.memory_space<vmem>>, vector<384x768xf32>
      %c0_10 = arith.constant 0 : index
      %c0_11 = arith.constant 0 : index
      %11 = vector.load %arg3[%c0_10, %c0_11] : memref<384x768xf32, #tpu.memory_space<vmem>>, vector<384x768xf32>
      %12 = arith.addf %10, %11 : vector<384x768xf32>
      %cst_12 = arith.constant dense<0.000000e+00> : vector<384xf32>
      %13 = vector.multi_reduction <add>, %12, %cst_12 [1] : vector<384x768xf32> to vector<384xf32>
      %14 = vector.shape_cast %13 : vector<384xf32> to vector<384x1xf32>
      %cst_13 = arith.constant 7.680000e+02 : f32
      %15 = vector.broadcast %cst_13 : f32 to vector<384x1xf32>
      %16 = arith.divf %14, %15 : vector<384x1xf32>
      %17 = vector.broadcast %16 : vector<384x1xf32> to vector<384x768xf32>
      %18 = arith.subf %12, %17 : vector<384x768xf32>
      %19 = arith.mulf %18, %18 : vector<384x768xf32>
      %cst_14 = arith.constant dense<0.000000e+00> : vector<384xf32>
      %20 = vector.multi_reduction <add>, %19, %cst_14 [1] : vector<384x768xf32> to vector<384xf32>
      %21 = vector.shape_cast %20 : vector<384xf32> to vector<384x1xf32>
      %cst_15 = arith.constant 7.680000e+02 : f32
      %22 = vector.broadcast %cst_15 : f32 to vector<384x1xf32>
      %23 = arith.divf %21, %22 : vector<384x1xf32>
      %cst_16 = arith.constant 9.99999974E-6 : f32
      %24 = vector.broadcast %cst_16 : f32 to vector<384x1xf32>
      %25 = arith.addf %23, %24 : vector<384x1xf32>
      %26 = math.rsqrt %25 : vector<384x1xf32>
      %27 = vector.broadcast %26 : vector<384x1xf32> to vector<384x768xf32>
      %28 = arith.mulf %18, %27 : vector<384x768xf32>
      %c0_17 = arith.constant 0 : index
      %c0_18 = arith.constant 0 : index
      %29 = vector.load %arg4[%c0_17, %c0_18] : memref<1x768xf32, #tpu.memory_space<vmem>>, vector<1x768xf32>
      %30 = vector.broadcast %29 : vector<1x768xf32> to vector<384x768xf32>
      %31 = arith.mulf %28, %30 : vector<384x768xf32>
      %c0_19 = arith.constant 0 : index
      %c0_20 = arith.constant 0 : index
      %32 = vector.load %arg5[%c0_19, %c0_20] : memref<1x768xf32, #tpu.memory_space<vmem>>, vector<1x768xf32>
      %33 = vector.broadcast %32 : vector<1x768xf32> to vector<384x768xf32>
      %34 = arith.addf %31, %33 : vector<384x768xf32>
      %35 = arith.truncf %34 : vector<384x768xf32> to vector<384x768xbf16>
      %c0_21 = arith.constant 0 : index
      %c0_22 = arith.constant 0 : index
      %36 = vector.load %arg9[%c0_21, %c0_22] : memref<384x768xbf16, #tpu.memory_space<vmem>>, vector<384x768xbf16>
      tpu.vector_store %arg9[%c0_21, %c0_22], %35 {strides = array<i32>} : memref<384x768xbf16, #tpu.memory_space<vmem>>, vector<384x768xbf16>,
    } else {
    }
    %c0 = arith.constant 0 : index
    %c0_1 = arith.constant 0 : index
    %3 = vector.load %arg9[%c0, %c0_1] : memref<384x768xbf16, #tpu.memory_space<vmem>>, vector<384x768xbf16>
    %c0_2 = arith.constant 0 : index
    %c0_3 = arith.constant 0 : index
    %4 = vector.load %arg6[%c0_2, %c0_3] : memref<768x512xbf16, #tpu.memory_space<vmem>>, vector<768x512xbf16>
    %cst = arith.constant dense<0.000000e+00> : vector<384x512xf32>
    %5 = tpu.matmul %3, %4, %cst {dimension_numbers = #tpu.dot_dimension_numbers<[1], [0], [0], [1], [0, 0, 1, 1], [], []>} : vector<384x768xbf16>, vector<768x512xbf16>, vector<384x512xf32> -> vector<384x512xf32>
    %c0_4 = arith.constant 0 : index
    %c0_5 = arith.constant 0 : index
    %6 = vector.load %arg7[%c0_4, %c0_5] : memref<1x512xf32, #tpu.memory_space<vmem>>, vector<1x512xf32>
    %7 = vector.broadcast %6 : vector<1x512xf32> to vector<384x512xf32>
    %8 = arith.addf %5, %7 : vector<384x512xf32>
    %c0_6 = arith.constant 0 : index
    %c0_7 = arith.constant 0 : index
    %9 = vector.load %arg8[%c0_6, %c0_7] : memref<384x512xf32, #tpu.memory_space<vmem>>, vector<384x512xf32>
    tpu.vector_store %arg8[%c0_6, %c0_7], %8 {strides = array<i32>} : memref<384x512xf32, #tpu.memory_space<vmem>>, vector<384x512xf32>,
    return
  }
  func.func @transform_0(%arg0: i32, %arg1: i32) -> (i32, i32) {
    %c0_i32 = arith.constant 0 : i32
    %c0_i32_0 = arith.constant 0 : i32
    %c0_i32_1 = arith.constant 0 : i32
    return %c0_i32, %c0_i32_0 : i32, i32
  }
  func.func @transform_1(%arg0: i32, %arg1: i32) -> (i32, i32) {
    %c0_i32 = arith.constant 0 : i32
    %c0_i32_0 = arith.constant 0 : i32
    %c0_i32_1 = arith.constant 0 : i32
    return %c0_i32, %c0_i32_0 : i32, i32
  }
  func.func @transform_2(%arg0: i32, %arg1: i32) -> (i32, i32) {
    %c0_i32 = arith.constant 0 : i32
    %c0_i32_0 = arith.constant 0 : i32
    %c0_i32_1 = arith.constant 0 : i32
    return %c0_i32, %c0_i32_0 : i32, i32
  }
  func.func @transform_3(%arg0: i32, %arg1: i32) -> (i32, i32) {
    %c0_i32 = arith.constant 0 : i32
    %c0_i32_0 = arith.constant 0 : i32
    %c0_i32_1 = arith.constant 0 : i32
    return %c0_i32, %c0_i32_0 : i32, i32
  }
  func.func @transform_4(%arg0: i32, %arg1: i32) -> (i32, i32) {
    %c3_i32 = arith.constant 3 : i32
    %0 = arith.muli %arg0, %c3_i32 : i32
    %1 = arith.addi %0, %arg1 : i32
    %c0_i32 = arith.constant 0 : i32
    %c0_i32_0 = arith.constant 0 : i32
    return %c0_i32, %1 : i32, i32
  }
  func.func @transform_5(%arg0: i32, %arg1: i32) -> (i32, i32) {
    %c3_i32 = arith.constant 3 : i32
    %0 = arith.muli %arg0, %c3_i32 : i32
    %1 = arith.addi %0, %arg1 : i32
    %c0_i32 = arith.constant 0 : i32
    %c0_i32_0 = arith.constant 0 : i32
    return %c0_i32, %1 : i32, i32
  }
  func.func @transform_6(%arg0: i32, %arg1: i32) -> (i32, i32) {
    %c3_i32 = arith.constant 3 : i32
    %0 = arith.muli %arg0, %c3_i32 : i32
    %1 = arith.addi %0, %arg1 : i32
    %c0_i32 = arith.constant 0 : i32
    %c0_i32_0 = arith.constant 0 : i32
    return %c0_i32, %1 : i32, i32
  }
}

</mosaic_0001>

<llo_original>
// kernel: tpu_custom_call.1
$region0: #{tpu_custom_call.1}
  #allocation0 [shape = 'u32[]', space=smem, size = 0x4, offset = 0x4, fixed_abs, tag = 'smem constant byte address 0x4 - core index']
  #allocation1 [shape = 'u32[144,128]{1,0:T(1,128)}', space=vmem, size = 0x12000, scoped, tag = 'internal scratch']
  #allocation2 [shape = 'bf16[384,768]{1,0:T(8,128)(2,1)}', space=vmem, size = 0x90000, scoped, tag = 'scratch operand']
  %s0 = inlined_call_operand.hbm [shape: f32[384,768], index: 0, kind: input, shape index: {}]
  %s1 = inlined_call_operand.hbm [shape: f32[384,768], index: 1, kind: input, shape index: {}]
  %s2 = inlined_call_operand.hbm [shape: f32[1,768], index: 2, kind: input, shape index: {}]
  %s3 = inlined_call_operand.hbm [shape: f32[1,768], index: 3, kind: input, shape index: {}]
  %s4 = inlined_call_operand.hbm [shape: bf16[768,3072], index: 4, kind: input, shape index: {}]
  %s5 = inlined_call_operand.hbm [shape: f32[1,3072], index: 5, kind: input, shape index: {}]
  %s6 = inlined_call_operand.hbm [shape: f32[384,3072], index: 6, kind: output, shape index: {}]
  %s7 = sld [smem:[#allocation0]]
  $region85: #{tpu_custom_call.1} parent=0
    _
  %s9 = ssub.s32 1, %s7
  %s10 = scalar_select 0, %s9, %s7
  $region1: #{tpu_custom_call.1} parent=0
    #allocation3 [shape = 'u8[1179648]{0}', space=vmem, size = 0x120000, scoped, tag = 'input window, operand 0, single buffered']
    #allocation4 [shape = 's32[2]{0}', space=sflag, size = 0x8, scoped, tag = 'scoped memory for tpu_custom_call.1']
    #allocation5 [shape = 's32[2]{0}', space=sflag, size = 0x8, scoped, tag = 'scoped memory for tpu_custom_call.1']
    #allocation6 [shape = 'u8[1179648]{0}', space=vmem, size = 0x120000, scoped, tag = 'input window, operand 1, single buffered']
    #allocation7 [shape = 's32[1]{0}', space=sflag, size = 0x4, scoped, tag = 'scoped memory for tpu_custom_call.1']
    #allocation8 [shape = 'u8[3072]{0}', space=vmem, size = 0xc00, scoped, tag = 'input window, operand 2, single buffered']
    #allocation9 [shape = 'u8[3072]{0}', space=vmem, size = 0xc00, scoped, tag = 'input window, operand 3, single buffered']
    #allocation10 [shape = 's32[1]{0}', space=sflag, size = 0x4, scoped, tag = 'scoped memory for tpu_custom_call.1']
    #allocation11 [shape = 'u8[1572864]{0}', space=vmem, size = 0x180000, scoped, tag = 'input window, operand 4']
    #allocation12 [shape = 'u8[4096]{0}', space=vmem, size = 0x1000, scoped, tag = 'input window, operand 5']
    #allocation13 [shape = 'u8[1572864]{0}', space=vmem, size = 0x180000, scoped, tag = 'output window, operand 0']
    %11 = vsyncpa [#allocation4], 0
    %12 = vsyncpa [#allocation7], 0
    %13 = vsyncpa [#allocation10], 0
    %14 = vsyncpa [#allocation5], 0
    %s15 = scalar_lea.sflag [#allocation5], 1
    %16 = vsyncpa %s15, 0
    loop: start=0, step=1, limit=8
    $region2: #{tpu_custom_call.1} parent=1 // loop_pre_header
      _
    $region3: #{tpu_custom_call.1} parent=1 // loop_header
      %s18 = sphi 0, %s22
      %p19 = scmp.ge.s32.totalorder %s18, 8
      %s25 = sphi 0, %s37
      %s26 = sphi 0, %s33
      %s27 = sphi 0, %s25
      %s28 = sphi 0, %s26
      %s29 = sphi 0, %s27
      %s30 = sphi 0, %s28
      %s38 = sphi 0, %s38
      %s40 = sphi 0, %s38
      %s41 = sphi 0, %s40
      %s55 = sphi 0, %s41
      %s59 = sphi 0, %s59
      %s61 = sphi 0, %s59
      %s62 = sphi 0, %s61
      %s76 = sphi 0, %s62
      %s80 = sphi 0, %s80
      %s82 = sphi 0, %s80
      %s83 = sphi 0, %s82
      %s97 = sphi 0, %s83
      %s101 = sphi 0, %s101
      %s103 = sphi 0, %s101
      %s104 = sphi 0, %s103
      %s118 = sphi 0, %s104
      %s128 = sphi 0, %s130
      %s131 = sphi 0, %s128
      %s132 = sphi 0, %s131
      %s148 = sphi 0, %s132
      %s158 = sphi 0, %s160
      %s161 = sphi 0, %s158
      %s162 = sphi 0, %s161
      %s178 = sphi 0, %s162
      %s188 = sphi 0, %s190
      %s191 = sphi 0, %s188
      %s192 = sphi 0, %s191
      %s208 = sphi 0, %s192
    $region4: #{tpu_custom_call.1} parent=1 // loop_header_branch
      %21 = sbr.rel (%p19) target = $region8
    $region5: #{tpu_custom_call.1} parent=1 // loop_body
      %s23 = ssub.s32 %s18, 1
      %s24 = ssub.s32 %s18, 2
      %s31 = sadd.s32 1, %s26
      %p32 = scmp.ge.s32.totalorder %s31, 3
      %s33 = scalar_select %p32, 0, %s31
      %s34 = sadd.s32 1, %s25
      %s35 = scalar_select %p32, %s34, %s25
      %p36 = scmp.ge.s32.totalorder %s35, 2
      %s37 = scalar_select %p36, 0, %s35
      %s39 = sadd.s32 %s38, 1
      %p42 = scmp.eq.s32.totalorder %s18, 5
      %p43 = scmp.ne.s32.totalorder %s38, %s40
      %p44 = scmp.eq.s32.totalorder %s18, 0
      %p45 = por %p43, %p44
      %p46 = scmp.ne.s32.totalorder %s38, %s40
      %p47 = scmp.eq.s32.totalorder %s23, 5
      %p48 = por %p46, %p47
      %p49 = scmp.ne.s32.totalorder %s40, %s41
      %p50 = scmp.eq.s32.totalorder %s23, 0
      %p51 = por %p49, %p50
      %p52 = scmp.ne.s32.totalorder %s40, %s41
      %p53 = scmp.eq.s32.totalorder %s24, 5
      %p54 = por %p52, %p53
      %p56 = scmp.ne.s32.totalorder %s41, %s55
      %p57 = scmp.eq.s32.totalorder %s24, 0
      %p58 = por %p56, %p57
      %s60 = sadd.s32 %s59, 1
      %p63 = scmp.eq.s32.totalorder %s18, 5
      %p64 = scmp.ne.s32.totalorder %s59, %s61
      %p65 = scmp.eq.s32.totalorder %s18, 0
      %p66 = por %p64, %p65
      %p67 = scmp.ne.s32.totalorder %s59, %s61
      %p68 = scmp.eq.s32.totalorder %s23, 5
      %p69 = por %p67, %p68
      %p70 = scmp.ne.s32.totalorder %s61, %s62
      %p71 = scmp.eq.s32.totalorder %s23, 0
      %p72 = por %p70, %p71
      %p73 = scmp.ne.s32.totalorder %s61, %s62
      %p74 = scmp.eq.s32.totalorder %s24, 5
      %p75 = por %p73, %p74
      %p77 = scmp.ne.s32.totalorder %s62, %s76
      %p78 = scmp.eq.s32.totalorder %s24, 0
      %p79 = por %p77, %p78
      %s81 = sadd.s32 %s80, 1
      %p84 = scmp.eq.s32.totalorder %s18, 5
      %p85 = scmp.ne.s32.totalorder %s80, %s82
      %p86 = scmp.eq.s32.totalorder %s18, 0
      %p87 = por %p85, %p86
      %p88 = scmp.ne.s32.totalorder %s80, %s82
      %p89 = scmp.eq.s32.totalorder %s23, 5
      %p90 = por %p88, %p89
      %p91 = scmp.ne.s32.totalorder %s82, %s83
      %p92 = scmp.eq.s32.totalorder %s23, 0
      %p93 = por %p91, %p92
      %p94 = scmp.ne.s32.totalorder %s82, %s83
      %p95 = scmp.eq.s32.totalorder %s24, 5
      %p96 = por %p94, %p95
      %p98 = scmp.ne.s32.totalorder %s83, %s97
      %p99 = scmp.eq.s32.totalorder %s24, 0
      %p100 = por %p98, %p99
      %s102 = sadd.s32 %s101, 1
      %p105 = scmp.eq.s32.totalorder %s18, 5
      %p106 = scmp.ne.s32.totalorder %s101, %s103
      %p107 = scmp.eq.s32.totalorder %s18, 0
      %p108 = por %p106, %p107
      %p109 = scmp.ne.s32.totalorder %s101, %s103
      %p110 = scmp.eq.s32.totalorder %s23, 5
      %p111 = por %p109, %p110
      %p112 = scmp.ne.s32.totalorder %s103, %s104
      %p113 = scmp.eq.s32.totalorder %s23, 0
      %p114 = por %p112, %p113
      %p115 = scmp.ne.s32.totalorder %s103, %s104
      %p116 = scmp.eq.s32.totalorder %s24, 5
      %p117 = por %p115, %p116
      %p119 = scmp.ne.s32.totalorder %s104, %s118
      %p120 = scmp.eq.s32.totalorder %s24, 0
      %p121 = por %p119, %p120
      %s122 = smul.u32 %s25, 3
      %s123 = sadd.s32 %s122, %s26
      %s124 = smul.u32 %s37, 3
      %s125 = sadd.s32 %s124, %s33
      %s126 = ssub.s32 %s123, %s125
      %p127 = scmp.eq.s32.totalorder %s126, 0
      %s129 = sadd.s32 %s128, 1
      %s130 = scalar_select %p127, %s128, %s129
      %p133 = pneg %p127
      %p134 = scmp.eq.s32.totalorder %s18, 5
      %p135 = por %p133, %p134
      %p136 = scmp.ne.s32.totalorder %s128, %s131
      %p137 = scmp.eq.s32.totalorder %s18, 0
      %p138 = por %p136, %p137
      %p139 = scmp.ne.s32.totalorder %s128, %s131
      %p140 = scmp.eq.s32.totalorder %s23, 5
      %p141 = por %p139, %p140
      %p142 = scmp.ne.s32.totalorder %s131, %s132
      %p143 = scmp.eq.s32.totalorder %s23, 0
      %p144 = por %p142, %p143
      %p145 = scmp.ne.s32.totalorder %s131, %s132
      %p146 = scmp.eq.s32.totalorder %s24, 5
      %p147 = por %p145, %p146
      %p149 = scmp.ne.s32.totalorder %s132, %s148
      %p150 = scmp.eq.s32.totalorder %s24, 0
      %p151 = por %p149, %p150
      %s152 = smul.u32 %s25, 3
      %s153 = sadd.s32 %s152, %s26
      %s154 = smul.u32 %s37, 3
      %s155 = sadd.s32 %s154, %s33
      %s156 = ssub.s32 %s153, %s155
      %p157 = scmp.eq.s32.totalorder %s156, 0
      %s159 = sadd.s32 %s158, 1
      %s160 = scalar_select %p157, %s158, %s159
      %p163 = pneg %p157
      %p164 = scmp.eq.s32.totalorder %s18, 5
      %p165 = por %p163, %p164
      %p166 = scmp.ne.s32.totalorder %s158, %s161
      %p167 = scmp.eq.s32.totalorder %s18, 0
      %p168 = por %p166, %p167
      %p169 = scmp.ne.s32.totalorder %s158, %s161
      %p170 = scmp.eq.s32.totalorder %s23, 5
      %p171 = por %p169, %p170
      %p172 = scmp.ne.s32.totalorder %s161, %s162
      %p173 = scmp.eq.s32.totalorder %s23, 0
      %p174 = por %p172, %p173
      %p175 = scmp.ne.s32.totalorder %s161, %s162
      %p176 = scmp.eq.s32.totalorder %s24, 5
      %p177 = por %p175, %p176
      %p179 = scmp.ne.s32.totalorder %s162, %s178
      %p180 = scmp.eq.s32.totalorder %s24, 0
      %p181 = por %p179, %p180
      %s182 = smul.u32 %s25, 3
      %s183 = sadd.s32 %s182, %s26
      %s184 = smul.u32 %s37, 3
      %s185 = sadd.s32 %s184, %s33
      %s186 = ssub.s32 %s183, %s185
      %p187 = scmp.eq.s32.totalorder %s186, 0
      %s189 = sadd.s32 %s188, 1
      %s190 = scalar_select %p187, %s188, %s189
      %p193 = pneg %p187
      %p194 = scmp.eq.s32.totalorder %s18, 5
      %p195 = por %p193, %p194
      %p196 = scmp.ne.s32.totalorder %s188, %s191
      %p197 = scmp.eq.s32.totalorder %s18, 0
      %p198 = por %p196, %p197
      %p199 = scmp.ne.s32.totalorder %s188, %s191
      %p200 = scmp.eq.s32.totalorder %s23, 5
      %p201 = por %p199, %p200
      %p202 = scmp.ne.s32.totalorder %s191, %s192
      %p203 = scmp.eq.s32.totalorder %s23, 0
      %p204 = por %p202, %p203
      %p205 = scmp.ne.s32.totalorder %s191, %s192
      %p206 = scmp.eq.s32.totalorder %s24, 5
      %p207 = por %p205, %p206
      %p209 = scmp.ne.s32.totalorder %s192, %s208
      %p210 = scmp.eq.s32.totalorder %s24, 0
      %p211 = por %p209, %p210
      %p212 = scmp.le.s32.totalorder 1, %s18
      %p213 = scmp.lt.s32.totalorder %s18, 7
      %p214 = pnand %p212, %p213
      %p215 = pneg %p214
      // Predicated region
      $region9: #{tpu_custom_call.1} parent=5 // pred_check
        _
      $region10: #{tpu_custom_call.1} parent=5 // pred_check_branch
        %217 = sbr.rel (%p214) target = $region12
      $region11: #{tpu_custom_call.1} parent=5 // pred_region
        %s218 = ssub.s32 %s18, 1
        // Predicated region
        $region13: #{tpu_custom_call.1} parent=11 // pred_check
          %p219 = pneg %p51
        $region14: #{tpu_custom_call.1} parent=11 // pred_check_branch
          %221 = sbr.rel (%p219) target = $region16
        $region15: #{tpu_custom_call.1} parent=11 // pred_region
          %s223 = ssub.s32 36864, 36864
          %224 = vsyncadd [#allocation4], %s223
          %s225 = sshll.u32 [#allocation3], 4
          %s226 = int_to_ptr.vmem [resolvable:$true] %s225
          %231 = dma.hbm_to_vmem [thread:$0]  %s0, 36864, %s226, [#allocation4], 768, 768, 48
        $region16: #{tpu_custom_call.1} parent=11 // pred_fallthru
          _
        // Predicated region
        $region17: #{tpu_custom_call.1} parent=11 // pred_check
          %p232 = pneg %p72
        $region18: #{tpu_custom_call.1} parent=11 // pred_check_branch
          %234 = sbr.rel (%p232) target = $region20
        $region19: #{tpu_custom_call.1} parent=11 // pred_region
          %s236 = ssub.s32 36864, 36864
          %237 = vsyncadd [#allocation7], %s236
          %s238 = sshll.u32 [#allocation6], 4
          %s239 = int_to_ptr.vmem [resolvable:$true] %s238
          %244 = dma.hbm_to_vmem [thread:$0]  %s1, 36864, %s239, [#allocation7], 768, 768, 48
        $region20: #{tpu_custom_call.1} parent=11 // pred_fallthru
          _
        // Predicated region
        $region21: #{tpu_custom_call.1} parent=11 // pred_check
          %p245 = pneg %p93
        $region22: #{tpu_custom_call.1} parent=11 // pred_check_branch
          %247 = sbr.rel (%p245) target = $region24
        $region23: #{tpu_custom_call.1} parent=11 // pred_region
          %s249 = ssub.s32 96, 96
          %250 = vsyncadd [#allocation7], %s249
          %s252 = sshll.u32 [#allocation8], 4
          %s253 = int_to_ptr.vmem [resolvable:$true] %s252
          %255 = dma.hbm_to_vmem [thread:$0]  %s2, 96, %s253, [#allocation7]
        $region24: #{tpu_custom_call.1} parent=11 // pred_fallthru
          _
        // Predicated region
        $region25: #{tpu_custom_call.1} parent=11 // pred_check
          %p256 = pneg %p114
        $region26: #{tpu_custom_call.1} parent=11 // pred_check_branch
          %258 = sbr.rel (%p256) target = $region28
        $region27: #{tpu_custom_call.1} parent=11 // pred_region
          %s260 = ssub.s32 96, 96
          %261 = vsyncadd [#allocation10], %s260
          %s263 = sshll.u32 [#allocation9], 4
          %s264 = int_to_ptr.vmem [resolvable:$true] %s263
          %266 = dma.hbm_to_vmem [thread:$0]  %s3, 96, %s264, [#allocation10]
        $region28: #{tpu_custom_call.1} parent=11 // pred_fallthru
          _
      $region12: #{tpu_custom_call.1} parent=5 // pred_fallthru
        _
      %p267 = scmp.lt.s32.totalorder %s18, 6
      // Predicated region
      $region29: #{tpu_custom_call.1} parent=5 // pred_check
        %p268 = pneg %p267
      $region30: #{tpu_custom_call.1} parent=5 // pred_check_branch
        %270 = sbr.rel (%p268) target = $region32
      $region31: #{tpu_custom_call.1} parent=5 // pred_region
        // Predicated region
        $region33: #{tpu_custom_call.1} parent=31 // pred_check
          %p271 = pneg %p138
        $region34: #{tpu_custom_call.1} parent=31 // pred_check_branch
          %273 = sbr.rel (%p271) target = $region36
        $region35: #{tpu_custom_call.1} parent=31 // pred_region
          %s274 = sand.u32 %s18, 1
          %s275 = scalar_lea.sflag [#allocation4], %s274
          %s276 = sand.u32 %s128, 1
          %s277 = smul.addr %s276, 1536
          %s278 = scalar_lea.vmem [#allocation11], %s277
          %s279 = smul.u32 %s25, 3
          %s280 = sadd.s32 %s279, %s26
          %s281 = smul.u32 4, %s280
          %s283 = ssub.s32 24576, 24576
          %284 = vsyncadd %s275, %s283
          %s285 = smul.addr %s281, 64
          %s286 = scalar_lea.hbm %s4, %s285
          %s287 = sshll.u32 %s278, 4
          %s288 = int_to_ptr.vmem [resolvable:$true] %s287
          %293 = dma.hbm_to_vmem [thread:$0]  %s286, 24576, %s288, %s275, 1536, 256, 16
        $region36: #{tpu_custom_call.1} parent=31 // pred_fallthru
          _
        // Predicated region
        $region37: #{tpu_custom_call.1} parent=31 // pred_check
          %p294 = pneg %p168
        $region38: #{tpu_custom_call.1} parent=31 // pred_check_branch
          %296 = sbr.rel (%p294) target = $region40
        $region39: #{tpu_custom_call.1} parent=31 // pred_region
          %s297 = sand.u32 %s18, 1
          %s298 = scalar_lea.sflag [#allocation4], %s297
          %s299 = sand.u32 %s158, 1
          %s300 = smul.addr %s299, 4
          %s301 = scalar_lea.vmem [#allocation12], %s300
          %s302 = smul.u32 %s25, 3
          %s303 = sadd.s32 %s302, %s26
          %s304 = smul.u32 4, %s303
          %s306 = ssub.s32 64, 64
          %307 = vsyncadd %s298, %s306
          %s308 = smul.addr %s304, 16
          %s309 = scalar_lea.hbm %s5, %s308
          %s311 = sshll.u32 %s301, 4
          %s312 = int_to_ptr.vmem [resolvable:$true] %s311
          %314 = dma.hbm_to_vmem [thread:$0]  %s309, 64, %s312, %s298
        $region40: #{tpu_custom_call.1} parent=31 // pred_fallthru
          _
      $region32: #{tpu_custom_call.1} parent=5 // pred_fallthru
        _
      %p315 = scmp.le.s32.totalorder 1, %s18
      %p316 = scmp.lt.s32.totalorder %s18, 7
      %p317 = pnand %p315, %p316
      %p318 = pneg %p317
      // Predicated region
      $region41: #{tpu_custom_call.1} parent=5 // pred_check
        _
      $region42: #{tpu_custom_call.1} parent=5 // pred_check_branch
        %320 = sbr.rel (%p317) target = $region44
      $region43: #{tpu_custom_call.1} parent=5 // pred_region
        %s321 = ssub.s32 %s18, 1
        // Predicated region
        $region45: #{tpu_custom_call.1} parent=43 // pred_check
          %p322 = pneg %p51
        $region46: #{tpu_custom_call.1} parent=43 // pred_check_branch
          %324 = sbr.rel (%p322) target = $region48
        $region47: #{tpu_custom_call.1} parent=43 // pred_region
          %325 = dma.done [#allocation4], 36864
        $region48: #{tpu_custom_call.1} parent=43 // pred_fallthru
          _
        // Predicated region
        $region49: #{tpu_custom_call.1} parent=43 // pred_check
          %p326 = pneg %p72
        $region50: #{tpu_custom_call.1} parent=43 // pred_check_branch
          %328 = sbr.rel (%p326) target = $region52
        $region51: #{tpu_custom_call.1} parent=43 // pred_region
          %329 = dma.done [#allocation7], 36864
        $region52: #{tpu_custom_call.1} parent=43 // pred_fallthru
          _
        // Predicated region
        $region53: #{tpu_custom_call.1} parent=43 // pred_check
          %p330 = pneg %p93
        $region54: #{tpu_custom_call.1} parent=43 // pred_check_branch
          %332 = sbr.rel (%p330) target = $region56
        $region55: #{tpu_custom_call.1} parent=43 // pred_region
          %333 = dma.done [#allocation7], 96
        $region56: #{tpu_custom_call.1} parent=43 // pred_fallthru
          _
        // Predicated region
        $region57: #{tpu_custom_call.1} parent=43 // pred_check
          %p334 = pneg %p114
        $region58: #{tpu_custom_call.1} parent=43 // pred_check_branch
          %336 = sbr.rel (%p334) target = $region60
        $region59: #{tpu_custom_call.1} parent=43 // pred_region
          %337 = dma.done [#allocation10], 96
        $region60: #{tpu_custom_call.1} parent=43 // pred_fallthru
          _
        %s338 = sand.u32 %s23, 1
        %s339 = scalar_lea.sflag [#allocation4], %s338
        %s340 = sand.u32 %s131, 1
        %s341 = smul.addr %s340, 1536
        %s342 = scalar_lea.vmem [#allocation11], %s341
        // Predicated region
        $region61: #{tpu_custom_call.1} parent=43 // pred_check
          %p343 = pneg %p144
        $region62: #{tpu_custom_call.1} parent=43 // pred_check_branch
          %345 = sbr.rel (%p343) target = $region64
        $region63: #{tpu_custom_call.1} parent=43 // pred_region
          %346 = dma.done %s339, 24576
        $region64: #{tpu_custom_call.1} parent=43 // pred_fallthru
          _
        %s347 = sand.u32 %s23, 1
        %s348 = scalar_lea.sflag [#allocation4], %s347
        %s349 = sand.u32 %s161, 1
        %s350 = smul.addr %s349, 4
        %s351 = scalar_lea.vmem [#allocation12], %s350
        // Predicated region
        $region65: #{tpu_custom_call.1} parent=43 // pred_check
          %p352 = pneg %p174
        $region66: #{tpu_custom_call.1} parent=43 // pred_check_branch
          %354 = sbr.rel (%p352) target = $region68
        $region67: #{tpu_custom_call.1} parent=43 // pred_region
          %355 = dma.done %s348, 64
        $region68: #{tpu_custom_call.1} parent=43 // pred_fallthru
          _
        %p356 = pneg %p51
        %p357 = pneg %p48
        %p358 = pneg %p72
        %p359 = pneg %p69
        %p360 = pneg %p93
        %p361 = pneg %p90
        %p362 = pneg %p114
        %p363 = pneg %p111
        %s364 = sand.u32 %s23, 1
        %s365 = scalar_lea.sflag [#allocation4], %s364
        %s366 = sand.u32 %s131, 1
        %s367 = smul.addr %s366, 1536
        %s368 = scalar_lea.vmem [#allocation11], %s367
        %p369 = pneg %p144
        %p370 = pneg %p141
        %s371 = sand.u32 %s23, 1
        %s372 = scalar_lea.sflag [#allocation4], %s371
        %s373 = sand.u32 %s161, 1
        %s374 = smul.addr %s373, 4
        %s375 = scalar_lea.vmem [#allocation12], %s374
        %p376 = pneg %p174
        %p377 = pneg %p171
        %p378 = pneg %p204
        %p379 = pneg %p201
        %s380 = sand.u32 %s191, 1
        %s381 = scalar_lea.sflag [#allocation5], %s380
        %s382 = sand.u32 %s191, 1
        %s383 = smul.addr %s382, 1536
        %s384 = scalar_lea.vmem [#allocation13], %s383
        %s385 = smul.u32 %s27, 3
        %s386 = sadd.s32 %s385, %s28
        %s387 = smul.u32 4, %s386
        %s388 = smul.u32 %s27, 3
        %s389 = sadd.s32 %s388, %s28
        %s390 = smul.u32 4, %s389
        %s391 = smul.u32 %s27, 3
        %s392 = sadd.s32 %s391, %s28
        %s393 = smul.u32 4, %s392
        %p394 = scmp.eq.s32.totalorder %s28, 0
        // Predicated region
        $region69: #{tpu_custom_call.1} parent=43 // pred_check
          %p395 = pneg %p394
        $region70: #{tpu_custom_call.1} parent=43 // pred_check_branch
          %397 = sbr.rel (%p395) target = $region72
        $region71: #{tpu_custom_call.1} parent=43 // pred_region
          %v398 = vld [vmem:[#allocation3] sm:$0xff]
          %v399 = vld [vmem:[#allocation3 + $0x8] sm:$0xff]
          %v400 = vld [vmem:[#allocation3 + $0x10] sm:$0xff]
          %v401 = vld [vmem:[#allocation3 + $0x18] sm:$0xff]
          %v402 = vld [vmem:[#allocation3 + $0x20] sm:$0xff]
          %v403 = vld [vmem:[#allocation3 + $0x28] sm:$0xff]
          %v404 = vld [vmem:[#allocation3 + $0x30] sm:$0xff]
          %v405 = vld [vmem:[#allocation3 + $0x38] sm:$0xff]
          %v406 = vld [vmem:[#allocation3 + $0x40] sm:$0xff]
          %v407 = vld [vmem:[#allocation3 + $0x48] sm:$0xff]
          %v408 = vld [vmem:[#allocation3 + $0x50] sm:$0xff]
          %v409 = vld [vmem:[#allocation3 + $0x58] sm:$0xff]
          %v410 = vld [vmem:[#allocation3 + $0x60] sm:$0xff]
          %v411 = vld [vmem:[#allocation3 + $0x68] sm:$0xff]
          %v412 = vld [vmem:[#allocation3 + $0x70] sm:$0xff]
          %v413 = vld [vmem:[#allocation3 + $0x78] sm:$0xff]
          %v414 = vld [vmem:[#allocation3 + $0x80] sm:$0xff]
          %v415 = vld [vmem:[#allocation3 + $0x88] sm:$0xff]
          %v416 = vld [vmem:[#allocation3 + $0x90] sm:$0xff]
          %v417 = vld [vmem:[#allocation3 + $0x98] sm:$0xff]
          %v418 = vld [vmem:[#allocation3 + $0xa0] sm:$0xff]
          %v419 = vld [vmem:[#allocation3 + $0xa8] sm:$0xff]
          %v420 = vld [vmem:[#allocation3 + $0xb0] sm:$0xff]
          %v421 = vld [vmem:[#allocation3 + $0xb8] sm:$0xff]
          %v422 = vld [vmem:[#allocation3 + $0xc0] sm:$0xff]
          %v423 = vld [vmem:[#allocation3 + $0xc8] sm:$0xff]
          %v424 = vld [vmem:[#allocation3 + $0xd0] sm:$0xff]
          %v425 = vld [vmem:[#allocation3 + $0xd8] sm:$0xff]
          %v426 = vld [vmem:[#allocation3 + $0xe0] sm:$0xff]
          %v427 = vld [vmem:[#allocation3 + $0xe8] sm:$0xff]
          %v428 = vld [vmem:[#allocation3 + $0xf0] sm:$0xff]
          %v429 = vld [vmem:[#allocation3 + $0xf8] sm:$0xff]
          %v430 = vld [vmem:[#allocation3 + $0x100] sm:$0xff]
          %v431 = vld [vmem:[#allocation3 + $0x108] sm:$0xff]
          %v432 = vld [vmem:[#allocation3 + $0x110] sm:$0xff]
          %v433 = vld [vmem:[#allocation3 + $0x118] sm:$0xff]
          %v434 = vld [vmem:[#allocation3 + $0x120] sm:$0xff]
          %v435 = vld [vmem:[#allocation3 + $0x128] sm:$0xff]
          %v436 = vld [vmem:[#allocation3 + $0x130] sm:$0xff]
          %v437 = vld [vmem:[#allocation3 + $0x138] sm:$0xff]
          %v438 = vld [vmem:[#allocation3 + $0x140] sm:$0xff]
          %v439 = vld [vmem:[#allocation3 + $0x148] sm:$0xff]
          %v440 = vld [vmem:[#allocation3 + $0x150] sm:$0xff]
          %v441 = vld [vmem:[#allocation3 + $0x158] sm:$0xff]
          %v442 = vld [vmem:[#allocation3 + $0x160] sm:$0xff]
          %v443 = vld [vmem:[#allocation3 + $0x168] sm:$0xff]
          %v444 = vld [vmem:[#allocation3 + $0x170] sm:$0xff]
          %v445 = vld [vmem:[#allocation3 + $0x178] sm:$0xff]
          %v446 = vld [vmem:[#allocation3 + $0x180] sm:$0xff]
          %v447 = vld [vmem:[#allocation3 + $0x188] sm:$0xff]
          %v448 = vld [vmem:[#allocation3 + $0x190] sm:$0xff]
          %v449 = vld [vmem:[#allocation3 + $0x198] sm:$0xff]
          %v450 = vld [vmem:[#allocation3 + $0x1a0] sm:$0xff]
          %v451 = vld [vmem:[#allocation3 + $0x1a8] sm:$0xff]
          %v452 = vld [vmem:[#allocation3 + $0x1b0] sm:$0xff]
          %v453 = vld [vmem:[#allocation3 + $0x1b8] sm:$0xff]
          %v454 = vld [vmem:[#allocation3 + $0x1c0] sm:$0xff]
          %v455 = vld [vmem:[#allocation3 + $0x1c8] sm:$0xff]
          %v456 = vld [vmem:[#allocation3 + $0x1d0] sm:$0xff]
          %v457 = vld [vmem:[#allocation3 + $0x1d8] sm:$0xff]
          %v458 = vld [vmem:[#allocation3 + $0x1e0] sm:$0xff]
          %v459 = vld [vmem:[#allocation3 + $0x1e8] sm:$0xff]
          %v460 = vld [vmem:[#allocation3 + $0x1f0] sm:$0xff]
          %v461 = vld [vmem:[#allocation3 + $0x1f8] sm:$0xff]
          %v462 = vld [vmem:[#allocation3 + $0x200] sm:$0xff]
          %v463 = vld [vmem:[#allocation3 + $0x208] sm:$0xff]
          %v464 = vld [vmem:[#allocation3 + $0x210] sm:$0xff]
          %v465 = vld [vmem:[#allocation3 + $0x218] sm:$0xff]
          %v466 = vld [vmem:[#allocation3 + $0x220] sm:$0xff]
          %v467 = vld [vmem:[#allocation3 + $0x228] sm:$0xff]
          %v468 = vld [vmem:[#allocation3 + $0x230] sm:$0xff]
          %v469 = vld [vmem:[#allocation3 + $0x238] sm:$0xff]
          %v470 = vld [vmem:[#allocation3 + $0x240] sm:$0xff]
          %v471 = vld [vmem:[#allocation3 + $0x248] sm:$0xff]
          %v472 = vld [vmem:[#allocation3 + $0x250] sm:$0xff]
          %v473 = vld [vmem:[#allocation3 + $0x258] sm:$0xff]
          %v474 = vld [vmem:[#allocation3 + $0x260] sm:$0xff]
          %v475 = vld [vmem:[#allocation3 + $0x268] sm:$0xff]
          %v476 = vld [vmem:[#allocation3 + $0x270] sm:$0xff]
          %v477 = vld [vmem:[#allocation3 + $0x278] sm:$0xff]
          %v478 = vld [vmem:[#allocation3 + $0x280] sm:$0xff]
          %v479 = vld [vmem:[#allocation3 + $0x288] sm:$0xff]
          %v480 = vld [vmem:[#allocation3 + $0x290] sm:$0xff]
          %v481 = vld [vmem:[#allocation3 + $0x298] sm:$0xff]
          %v482 = vld [vmem:[#allocation3 + $0x2a0] sm:$0xff]
          %v483 = vld [vmem:[#allocation3 + $0x2a8] sm:$0xff]
          %v484 = vld [vmem:[#allocation3 + $0x2b0] sm:$0xff]
          %v485 = vld [vmem:[#allocation3 + $0x2b8] sm:$0xff]
          %v486 = vld [vmem:[#allocation3 + $0x2c0] sm:$0xff]
          %v487 = vld [vmem:[#allocation3 + $0x2c8] sm:$0xff]
          %v488 = vld [vmem:[#allocation3 + $0x2d0] sm:$0xff]
          %v489 = vld [vmem:[#allocation3 + $0x2d8] sm:$0xff]
          %v490 = vld [vmem:[#allocation3 + $0x2e0] sm:$0xff]
          %v491 = vld [vmem:[#allocation3 + $0x2e8] sm:$0xff]
          %v492 = vld [vmem:[#allocation3 + $0x2f0] sm:$0xff]
          %v493 = vld [vmem:[#allocation3 + $0x2f8] sm:$0xff]
          %v494 = vld [vmem:[#allocation3 + $0x300] sm:$0xff]
          %v495 = vld [vmem:[#allocation3 + $0x308] sm:$0xff]
          %v496 = vld [vmem:[#allocation3 + $0x310] sm:$0xff]
          %v497 = vld [vmem:[#allocation3 + $0x318] sm:$0xff]
          %v498 = vld [vmem:[#allocation3 + $0x320] sm:$0xff]
          %v499 = vld [vmem:[#allocation3 + $0x328] sm:$0xff]
          %v500 = vld [vmem:[#allocation3 + $0x330] sm:$0xff]
          %v501 = vld [vmem:[#allocation3 + $0x338] sm:$0xff]
          %v502 = vld [vmem:[#allocation3 + $0x340] sm:$0xff]
          %v503 = vld [vmem:[#allocation3 + $0x348] sm:$0xff]
          %v504 = vld [vmem:[#allocation3 + $0x350] sm:$0xff]
          %v505 = vld [vmem:[#allocation3 + $0x358] sm:$0xff]
          %v506 = vld [vmem:[#allocation3 + $0x360] sm:$0xff]
          %v507 = vld [vmem:[#allocation3 + $0x368] sm:$0xff]
          %v508 = vld [vmem:[#allocation3 + $0x370] sm:$0xff]
          %v509 = vld [vmem:[#allocation3 + $0x378] sm:$0xff]
          %v510 = vld [vmem:[#allocation3 + $0x380] sm:$0xff]
          %v511 = vld [vmem:[#allocation3 + $0x388] sm:$0xff]
          %v512 = vld [vmem:[#allocation3 + $0x390] sm:$0xff]
          %v513 = vld [vmem:[#allocation3 + $0x398] sm:$0xff]
          %v514 = vld [vmem:[#allocation3 + $0x3a0] sm:$0xff]
          %v515 = vld [vmem:[#allocation3 + $0x3a8] sm:$0xff]
          %v516 = vld [vmem:[#allocation3 + $0x3b0] sm:$0xff]
          %v517 = vld [vmem:[#allocation3 + $0x3b8] sm:$0xff]
          %v518 = vld [vmem:[#allocation3 + $0x3c0] sm:$0xff]
          %v519 = vld [vmem:[#allocation3 + $0x3c8] sm:$0xff]
          %v520 = vld [vmem:[#allocation3 + $0x3d0] sm:$0xff]
          %v521 = vld [vmem:[#allocation3 + $0x3d8] sm:$0xff]
          %v522 = vld [vmem:[#allocation3 + $0x3e0] sm:$0xff]
          %v523 = vld [vmem:[#allocation3 + $0x3e8] sm:$0xff]
          %v524 = vld [vmem:[#allocation3 + $0x3f0] sm:$0xff]
          %v525 = vld [vmem:[#allocation3 + $0x3f8] sm:$0xff]
          %v526 = vld [vmem:[#allocation3 + $0x400] sm:$0xff]
          %v527 = vld [vmem:[#allocation3 + $0x408] sm:$0xff]
          %v528 = vld [vmem:[#allocation3 + $0x410] sm:$0xff]
          %v529 = vld [vmem:[#allocation3 + $0x418] sm:$0xff]
          %v530 = vld [vmem:[#allocation3 + $0x420] sm:$0xff]
          %v531 = vld [vmem:[#allocation3 + $0x428] sm:$0xff]
          %v532 = vld [vmem:[#allocation3 + $0x430] sm:$0xff]
          %v533 = vld [vmem:[#allocation3 + $0x438] sm:$0xff]
          %v534 = vld [vmem:[#allocation3 + $0x440] sm:$0xff]
          %v535 = vld [vmem:[#allocation3 + $0x448] sm:$0xff]
          %v536 = vld [vmem:[#allocation3 + $0x450] sm:$0xff]
          %v537 = vld [vmem:[#allocation3 + $0x458] sm:$0xff]
          %v538 = vld [vmem:[#allocation3 + $0x460] sm:$0xff]
          %v539 = vld [vmem:[#allocation3 + $0x468] sm:$0xff]
          %v540 = vld [vmem:[#allocation3 + $0x470] sm:$0xff]
          %v541 = vld [vmem:[#allocation3 + $0x478] sm:$0xff]
          %v542 = vld [vmem:[#allocation3 + $0x480] sm:$0xff]
          %v543 = vld [vmem:[#allocation3 + $0x488] sm:$0xff]
          %v544 = vld [vmem:[#allocation3 + $0x490] sm:$0xff]
          %v545 = vld [vmem:[#allocation3 + $0x498] sm:$0xff]
          %v546 = vld [vmem:[#allocation3 + $0x4a0] sm:$0xff]
          %v547 = vld [vmem:[#allocation3 + $0x4a8] sm:$0xff]
          %v548 = vld [vmem:[#allocation3 + $0x4b0] sm:$0xff]
          %v549 = vld [vmem:[#allocation3 + $0x4b8] sm:$0xff]
          %v550 = vld [vmem:[#allocation3 + $0x4c0] sm:$0xff]
          %v551 = vld [vmem:[#allocation3 + $0x4c8] sm:$0xff]
          %v552 = vld [vmem:[#allocation3 + $0x4d0] sm:$0xff]
          %v553 = vld [vmem:[#allocation3 + $0x4d8] sm:$0xff]
          %v554 = vld [vmem:[#allocation3 + $0x4e0] sm:$0xff]
          %v555 = vld [vmem:[#allocation3 + $0x4e8] sm:$0xff]
          %v556 = vld [vmem:[#allocation3 + $0x4f0] sm:$0xff]
          %v557 = vld [vmem:[#allocation3 + $0x4f8] sm:$0xff]
          %v558 = vld [vmem:[#allocation3 + $0x500] sm:$0xff]
          %v559 = vld [vmem:[#allocation3 + $0x508] sm:$0xff]
          %v560 = vld [vmem:[#allocation3 + $0x510] sm:$0xff]
          %v561 = vld [vmem:[#allocation3 + $0x518] sm:$0xff]
          %v562 = vld [vmem:[#allocation3 + $0x520] sm:$0xff]
          %v563 = vld [vmem:[#allocation3 + $0x528] sm:$0xff]
          %v564 = vld [vmem:[#allocation3 + $0x530] sm:$0xff]
          %v565 = vld [vmem:[#allocation3 + $0x538] sm:$0xff]
          %v566 = vld [vmem:[#allocation3 + $0x540] sm:$0xff]
          %v567 = vld [vmem:[#allocation3 + $0x548] sm:$0xff]
          %v568 = vld [vmem:[#allocation3 + $0x550] sm:$0xff]
          %v569 = vld [vmem:[#allocation3 + $0x558] sm:$0xff]
          %v570 = vld [vmem:[#allocation3 + $0x560] sm:$0xff]
          %v571 = vld [vmem:[#allocation3 + $0x568] sm:$0xff]
          %v572 = vld [vmem:[#allocation3 + $0x570] sm:$0xff]
          %v573 = vld [vmem:[#allocation3 + $0x578] sm:$0xff]
          %v574 = vld [vmem:[#allocation3 + $0x580] sm:$0xff]
          %v575 = vld [vmem:[#allocation3 + $0x588] sm:$0xff]
          %v576 = vld [vmem:[#allocation3 + $0x590] sm:$0xff]
          %v577 = vld [vmem:[#allocation3 + $0x598] sm:$0xff]
          %v578 = vld [vmem:[#allocation3 + $0x5a0] sm:$0xff]
          %v579 = vld [vmem:[#allocation3 + $0x5a8] sm:$0xff]
          %v580 = vld [vmem:[#allocation3 + $0x5b0] sm:$0xff]
          %v581 = vld [vmem:[#allocation3 + $0x5b8] sm:$0xff]
          %v582 = vld [vmem:[#allocation3 + $0x5c0] sm:$0xff]
          %v583 = vld [vmem:[#allocation3 + $0x5c8] sm:$0xff]
          %v584 = vld [vmem:[#allocation3 + $0x5d0] sm:$0xff]
          %v585 = vld [vmem:[#allocation3 + $0x5d8] sm:$0xff]
          %v586 = vld [vmem:[#allocation3 + $0x5e0] sm:$0xff]
          %v587 = vld [vmem:[#allocation3 + $0x5e8] sm:$0xff]
          %v588 = vld [vmem:[#allocation3 + $0x5f0] sm:$0xff]
          %v589 = vld [vmem:[#allocation3 + $0x5f8] sm:$0xff]
          %v590 = vld [vmem:[#allocation3 + $0x600] sm:$0xff]
          %v591 = vld [vmem:[#allocation3 + $0x608] sm:$0xff]
          %v592 = vld [vmem:[#allocation3 + $0x610] sm:$0xff]
          %v593 = vld [vmem:[#allocation3 + $0x618] sm:$0xff]
          %v594 = vld [vmem:[#allocation3 + $0x620] sm:$0xff]
          %v595 = vld [vmem:[#allocation3 + $0x628] sm:$0xff]
          %v596 = vld [vmem:[#allocation3 + $0x630] sm:$0xff]
          %v597 = vld [vmem:[#allocation3 + $0x638] sm:$0xff]
          %v598 = vld [vmem:[#allocation3 + $0x640] sm:$0xff]
          %v599 = vld [vmem:[#allocation3 + $0x648] sm:$0xff]
          %v600 = vld [vmem:[#allocation3 + $0x650] sm:$0xff]
          %v601 = vld [vmem:[#allocation3 + $0x658] sm:$0xff]
          %v602 = vld [vmem:[#allocation3 + $0x660] sm:$0xff]
          %v603 = vld [vmem:[#allocation3 + $0x668] sm:$0xff]
          %v604 = vld [vmem:[#allocation3 + $0x670] sm:$0xff]
          %v605 = vld [vmem:[#allocation3 + $0x678] sm:$0xff]
          %v606 = vld [vmem:[#allocation3 + $0x680] sm:$0xff]
          %v607 = vld [vmem:[#allocation3 + $0x688] sm:$0xff]
          %v608 = vld [vmem:[#allocation3 + $0x690] sm:$0xff]
          %v609 = vld [vmem:[#allocation3 + $0x698] sm:$0xff]
          %v610 = vld [vmem:[#allocation3 + $0x6a0] sm:$0xff]
          %v611 = vld [vmem:[#allocation3 + $0x6a8] sm:$0xff]
          %v612 = vld [vmem:[#allocation3 + $0x6b0] sm:$0xff]
          %v613 = vld [vmem:[#allocation3 + $0x6b8] sm:$0xff]
          %v614 = vld [vmem:[#allocation3 + $0x6c0] sm:$0xff]
          %v615 = vld [vmem:[#allocation3 + $0x6c8] sm:$0xff]
          %v616 = vld [vmem:[#allocation3 + $0x6d0] sm:$0xff]
          %v617 = vld [vmem:[#allocation3 + $0x6d8] sm:$0xff]
          %v618 = vld [vmem:[#allocation3 + $0x6e0] sm:$0xff]
          %v619 = vld [vmem:[#allocation3 + $0x6e8] sm:$0xff]
          %v620 = vld [vmem:[#allocation3 + $0x6f0] sm:$0xff]
          %v621 = vld [vmem:[#allocation3 + $0x6f8] sm:$0xff]
          %v622 = vld [vmem:[#allocation3 + $0x700] sm:$0xff]
          %v623 = vld [vmem:[#allocation3 + $0x708] sm:$0xff]
          %v624 = vld [vmem:[#allocation3 + $0x710] sm:$0xff]
          %v625 = vld [vmem:[#allocation3 + $0x718] sm:$0xff]
          %v626 = vld [vmem:[#allocation3 + $0x720] sm:$0xff]
          %v627 = vld [vmem:[#allocation3 + $0x728] sm:$0xff]
          %v628 = vld [vmem:[#allocation3 + $0x730] sm:$0xff]
          %v629 = vld [vmem:[#allocation3 + $0x738] sm:$0xff]
          %v630 = vld [vmem:[#allocation3 + $0x740] sm:$0xff]
          %v631 = vld [vmem:[#allocation3 + $0x748] sm:$0xff]
          %v632 = vld [vmem:[#allocation3 + $0x750] sm:$0xff]
          %v633 = vld [vmem:[#allocation3 + $0x758] sm:$0xff]
          %v634 = vld [vmem:[#allocation3 + $0x760] sm:$0xff]
          %v635 = vld [vmem:[#allocation3 + $0x768] sm:$0xff]
          %v636 = vld [vmem:[#allocation3 + $0x770] sm:$0xff]
          %v637 = vld [vmem:[#allocation3 + $0x778] sm:$0xff]
          %v638 = vld [vmem:[#allocation3 + $0x780] sm:$0xff]
          %v639 = vld [vmem:[#allocation3 + $0x788] sm:$0xff]
          %v640 = vld [vmem:[#allocation3 + $0x790] sm:$0xff]
          %v641 = vld [vmem:[#allocation3 + $0x798] sm:$0xff]
          %v642 = vld [vmem:[#allocation3 + $0x7a0] sm:$0xff]
          %v643 = vld [vmem:[#allocation3 + $0x7a8] sm:$0xff]
          %v644 = vld [vmem:[#allocation3 + $0x7b0] sm:$0xff]
          %v645 = vld [vmem:[#allocation3 + $0x7b8] sm:$0xff]
          %v646 = vld [vmem:[#allocation3 + $0x7c0] sm:$0xff]
          %v647 = vld [vmem:[#allocation3 + $0x7c8] sm:$0xff]
          %v648 = vld [vmem:[#allocation3 + $0x7d0] sm:$0xff]
          %v649 = vld [vmem:[#allocation3 + $0x7d8] sm:$0xff]
          %v650 = vld [vmem:[#allocation3 + $0x7e0] sm:$0xff]
          %v651 = vld [vmem:[#allocation3 + $0x7e8] sm:$0xff]
          %v652 = vld [vmem:[#allocation3 + $0x7f0] sm:$0xff]
          %v653 = vld [vmem:[#allocation3 + $0x7f8] sm:$0xff]
          %v654 = vld [vmem:[#allocation3 + $0x800] sm:$0xff]
          %v655 = vld [vmem:[#allocation3 + $0x808] sm:$0xff]
          %v656 = vld [vmem:[#allocation3 + $0x810] sm:$0xff]
          %v657 = vld [vmem:[#allocation3 + $0x818] sm:$0xff]
          %v658 = vld [vmem:[#allocation3 + $0x820] sm:$0xff]
          %v659 = vld [vmem:[#allocation3 + $0x828] sm:$0xff]
          %v660 = vld [vmem:[#allocation3 + $0x830] sm:$0xff]
          %v661 = vld [vmem:[#allocation3 + $0x838] sm:$0xff]
          %v662 = vld [vmem:[#allocation3 + $0x840] sm:$0xff]
          %v663 = vld [vmem:[#allocation3 + $0x848] sm:$0xff]
          %v664 = vld [vmem:[#allocation3 + $0x850] sm:$0xff]
          %v665 = vld [vmem:[#allocation3 + $0x858] sm:$0xff]
          %v666 = vld [vmem:[#allocation3 + $0x860] sm:$0xff]
          %v667 = vld [vmem:[#allocation3 + $0x868] sm:$0xff]
          %v668 = vld [vmem:[#allocation3 + $0x870] sm:$0xff]
          %v669 = vld [vmem:[#allocation3 + $0x878] sm:$0xff]
          %v670 = vld [vmem:[#allocation3 + $0x880] sm:$0xff]
          %v671 = vld [vmem:[#allocation3 + $0x888] sm:$0xff]
          %v672 = vld [vmem:[#allocation3 + $0x890] sm:$0xff]
          %v673 = vld [vmem:[#allocation3 + $0x898] sm:$0xff]
          %v674 = vld [vmem:[#allocation3 + $0x8a0] sm:$0xff]
          %v675 = vld [vmem:[#allocation3 + $0x8a8] sm:$0xff]
          %v676 = vld [vmem:[#allocation3 + $0x8b0] sm:$0xff]
          %v677 = vld [vmem:[#allocation3 + $0x8b8] sm:$0xff]
          %v678 = vld [vmem:[#allocation3 + $0x8c0] sm:$0xff]
          %v679 = vld [vmem:[#allocation3 + $0x8c8] sm:$0xff]
          %v680 = vld [vmem:[#allocation3 + $0x8d0] sm:$0xff]
          %v681 = vld [vmem:[#allocation3 + $0x8d8] sm:$0xff]
          %v682 = vld [vmem:[#allocation3 + $0x8e0] sm:$0xff]
          %v683 = vld [vmem:[#allocation3 + $0x8e8] sm:$0xff]
          %v684 = vld [vmem:[#allocation3 + $0x8f0] sm:$0xff]
          %v685 = vld [vmem:[#allocation3 + $0x8f8] sm:$0xff]
          %v686 = vld [vmem:[#allocation6] sm:$0xff]
          %v687 = vld [vmem:[#allocation6 + $0x8] sm:$0xff]
          %v688 = vld [vmem:[#allocation6 + $0x10] sm:$0xff]
          %v689 = vld [vmem:[#allocation6 + $0x18] sm:$0xff]
          %v690 = vld [vmem:[#allocation6 + $0x20] sm:$0xff]
          %v691 = vld [vmem:[#allocation6 + $0x28] sm:$0xff]
          %v692 = vld [vmem:[#allocation6 + $0x30] sm:$0xff]
          %v693 = vld [vmem:[#allocation6 + $0x38] sm:$0xff]
          %v694 = vld [vmem:[#allocation6 + $0x40] sm:$0xff]
          %v695 = vld [vmem:[#allocation6 + $0x48] sm:$0xff]
          %v696 = vld [vmem:[#allocation6 + $0x50] sm:$0xff]
          %v697 = vld [vmem:[#allocation6 + $0x58] sm:$0xff]
          %v698 = vld [vmem:[#allocation6 + $0x60] sm:$0xff]
          %v699 = vld [vmem:[#allocation6 + $0x68] sm:$0xff]
          %v700 = vld [vmem:[#allocation6 + $0x70] sm:$0xff]
          %v701 = vld [vmem:[#allocation6 + $0x78] sm:$0xff]
          %v702 = vld [vmem:[#allocation6 + $0x80] sm:$0xff]
          %v703 = vld [vmem:[#allocation6 + $0x88] sm:$0xff]
          %v704 = vld [vmem:[#allocation6 + $0x90] sm:$0xff]
          %v705 = vld [vmem:[#allocation6 + $0x98] sm:$0xff]
          %v706 = vld [vmem:[#allocation6 + $0xa0] sm:$0xff]
          %v707 = vld [vmem:[#allocation6 + $0xa8] sm:$0xff]
          %v708 = vld [vmem:[#allocation6 + $0xb0] sm:$0xff]
          %v709 = vld [vmem:[#allocation6 + $0xb8] sm:$0xff]
          %v710 = vld [vmem:[#allocation6 + $0xc0] sm:$0xff]
          %v711 = vld [vmem:[#allocation6 + $0xc8] sm:$0xff]
          %v712 = vld [vmem:[#allocation6 + $0xd0] sm:$0xff]
          %v713 = vld [vmem:[#allocation6 + $0xd8] sm:$0xff]
          %v714 = vld [vmem:[#allocation6 + $0xe0] sm:$0xff]
          %v715 = vld [vmem:[#allocation6 + $0xe8] sm:$0xff]
          %v716 = vld [vmem:[#allocation6 + $0xf0] sm:$0xff]
          %v717 = vld [vmem:[#allocation6 + $0xf8] sm:$0xff]
          %v718 = vld [vmem:[#allocation6 + $0x100] sm:$0xff]
          %v719 = vld [vmem:[#allocation6 + $0x108] sm:$0xff]
          %v720 = vld [vmem:[#allocation6 + $0x110] sm:$0xff]
          %v721 = vld [vmem:[#allocation6 + $0x118] sm:$0xff]
          %v722 = vld [vmem:[#allocation6 + $0x120] sm:$0xff]
          %v723 = vld [vmem:[#allocation6 + $0x128] sm:$0xff]
          %v724 = vld [vmem:[#allocation6 + $0x130] sm:$0xff]
          %v725 = vld [vmem:[#allocation6 + $0x138] sm:$0xff]
          %v726 = vld [vmem:[#allocation6 + $0x140] sm:$0xff]
          %v727 = vld [vmem:[#allocation6 + $0x148] sm:$0xff]
          %v728 = vld [vmem:[#allocation6 + $0x150] sm:$0xff]
          %v729 = vld [vmem:[#allocation6 + $0x158] sm:$0xff]
          %v730 = vld [vmem:[#allocation6 + $0x160] sm:$0xff]
          %v731 = vld [vmem:[#allocation6 + $0x168] sm:$0xff]
          %v732 = vld [vmem:[#allocation6 + $0x170] sm:$0xff]
          %v733 = vld [vmem:[#allocation6 + $0x178] sm:$0xff]
          %v734 = vld [vmem:[#allocation6 + $0x180] sm:$0xff]
          %v735 = vld [vmem:[#allocation6 + $0x188] sm:$0xff]
          %v736 = vld [vmem:[#allocation6 + $0x190] sm:$0xff]
          %v737 = vld [vmem:[#allocation6 + $0x198] sm:$0xff]
          %v738 = vld [vmem:[#allocation6 + $0x1a0] sm:$0xff]
          %v739 = vld [vmem:[#allocation6 + $0x1a8] sm:$0xff]
          %v740 = vld [vmem:[#allocation6 + $0x1b0] sm:$0xff]
          %v741 = vld [vmem:[#allocation6 + $0x1b8] sm:$0xff]
          %v742 = vld [vmem:[#allocation6 + $0x1c0] sm:$0xff]
          %v743 = vld [vmem:[#allocation6 + $0x1c8] sm:$0xff]
          %v744 = vld [vmem:[#allocation6 + $0x1d0] sm:$0xff]
          %v745 = vld [vmem:[#allocation6 + $0x1d8] sm:$0xff]
          %v746 = vld [vmem:[#allocation6 + $0x1e0] sm:$0xff]
          %v747 = vld [vmem:[#allocation6 + $0x1e8] sm:$0xff]
          %v748 = vld [vmem:[#allocation6 + $0x1f0] sm:$0xff]
          %v749 = vld [vmem:[#allocation6 + $0x1f8] sm:$0xff]
          %v750 = vld [vmem:[#allocation6 + $0x200] sm:$0xff]
          %v751 = vld [vmem:[#allocation6 + $0x208] sm:$0xff]
          %v752 = vld [vmem:[#allocation6 + $0x210] sm:$0xff]
          %v753 = vld [vmem:[#allocation6 + $0x218] sm:$0xff]
          %v754 = vld [vmem:[#allocation6 + $0x220] sm:$0xff]
          %v755 = vld [vmem:[#allocation6 + $0x228] sm:$0xff]
          %v756 = vld [vmem:[#allocation6 + $0x230] sm:$0xff]
          %v757 = vld [vmem:[#allocation6 + $0x238] sm:$0xff]
          %v758 = vld [vmem:[#allocation6 + $0x240] sm:$0xff]
          %v759 = vld [vmem:[#allocation6 + $0x248] sm:$0xff]
          %v760 = vld [vmem:[#allocation6 + $0x250] sm:$0xff]
          %v761 = vld [vmem:[#allocation6 + $0x258] sm:$0xff]
          %v762 = vld [vmem:[#allocation6 + $0x260] sm:$0xff]
          %v763 = vld [vmem:[#allocation6 + $0x268] sm:$0xff]
          %v764 = vld [vmem:[#allocation6 + $0x270] sm:$0xff]
          %v765 = vld [vmem:[#allocation6 + $0x278] sm:$0xff]
          %v766 = vld [vmem:[#allocation6 + $0x280] sm:$0xff]
          %v767 = vld [vmem:[#allocation6 + $0x288] sm:$0xff]
          %v768 = vld [vmem:[#allocation6 + $0x290] sm:$0xff]
          %v769 = vld [vmem:[#allocation6 + $0x298] sm:$0xff]
          %v770 = vld [vmem:[#allocation6 + $0x2a0] sm:$0xff]
          %v771 = vld [vmem:[#allocation6 + $0x2a8] sm:$0xff]
          %v772 = vld [vmem:[#allocation6 + $0x2b0] sm:$0xff]
          %v773 = vld [vmem:[#allocation6 + $0x2b8] sm:$0xff]
          %v774 = vld [vmem:[#allocation6 + $0x2c0] sm:$0xff]
          %v775 = vld [vmem:[#allocation6 + $0x2c8] sm:$0xff]
          %v776 = vld [vmem:[#allocation6 + $0x2d0] sm:$0xff]
          %v777 = vld [vmem:[#allocation6 + $0x2d8] sm:$0xff]
          %v778 = vld [vmem:[#allocation6 + $0x2e0] sm:$0xff]
          %v779 = vld [vmem:[#allocation6 + $0x2e8] sm:$0xff]
          %v780 = vld [vmem:[#allocation6 + $0x2f0] sm:$0xff]
          %v781 = vld [vmem:[#allocation6 + $0x2f8] sm:$0xff]
          %v782 = vld [vmem:[#allocation6 + $0x300] sm:$0xff]
          %v783 = vld [vmem:[#allocation6 + $0x308] sm:$0xff]
          %v784 = vld [vmem:[#allocation6 + $0x310] sm:$0xff]
          %v785 = vld [vmem:[#allocation6 + $0x318] sm:$0xff]
          %v786 = vld [vmem:[#allocation6 + $0x320] sm:$0xff]
          %v787 = vld [vmem:[#allocation6 + $0x328] sm:$0xff]
          %v788 = vld [vmem:[#allocation6 + $0x330] sm:$0xff]
          %v789 = vld [vmem:[#allocation6 + $0x338] sm:$0xff]
          %v790 = vld [vmem:[#allocation6 + $0x340] sm:$0xff]
          %v791 = vld [vmem:[#allocation6 + $0x348] sm:$0xff]
          %v792 = vld [vmem:[#allocation6 + $0x350] sm:$0xff]
          %v793 = vld [vmem:[#allocation6 + $0x358] sm:$0xff]
          %v794 = vld [vmem:[#allocation6 + $0x360] sm:$0xff]
          %v795 = vld [vmem:[#allocation6 + $0x368] sm:$0xff]
          %v796 = vld [vmem:[#allocation6 + $0x370] sm:$0xff]
          %v797 = vld [vmem:[#allocation6 + $0x378] sm:$0xff]
          %v798 = vld [vmem:[#allocation6 + $0x380] sm:$0xff]
          %v799 = vld [vmem:[#allocation6 + $0x388] sm:$0xff]
          %v800 = vld [vmem:[#allocation6 + $0x390] sm:$0xff]
          %v801 = vld [vmem:[#allocation6 + $0x398] sm:$0xff]
          %v802 = vld [vmem:[#allocation6 + $0x3a0] sm:$0xff]
          %v803 = vld [vmem:[#allocation6 + $0x3a8] sm:$0xff]
          %v804 = vld [vmem:[#allocation6 + $0x3b0] sm:$0xff]
          %v805 = vld [vmem:[#allocation6 + $0x3b8] sm:$0xff]
          %v806 = vld [vmem:[#allocation6 + $0x3c0] sm:$0xff]
          %v807 = vld [vmem:[#allocation6 + $0x3c8] sm:$0xff]
          %v808 = vld [vmem:[#allocation6 + $0x3d0] sm:$0xff]
          %v809 = vld [vmem:[#allocation6 + $0x3d8] sm:$0xff]
          %v810 = vld [vmem:[#allocation6 + $0x3e0] sm:$0xff]
          %v811 = vld [vmem:[#allocation6 + $0x3e8] sm:$0xff]
          %v812 = vld [vmem:[#allocation6 + $0x3f0] sm:$0xff]
          %v813 = vld [vmem:[#allocation6 + $0x3f8] sm:$0xff]
          %v814 = vld [vmem:[#allocation6 + $0x400] sm:$0xff]
          %v815 = vld [vmem:[#allocation6 + $0x408] sm:$0xff]
          %v816 = vld [vmem:[#allocation6 + $0x410] sm:$0xff]
          %v817 = vld [vmem:[#allocation6 + $0x418] sm:$0xff]
          %v818 = vld [vmem:[#allocation6 + $0x420] sm:$0xff]
          %v819 = vld [vmem:[#allocation6 + $0x428] sm:$0xff]
          %v820 = vld [vmem:[#allocation6 + $0x430] sm:$0xff]
          %v821 = vld [vmem:[#allocation6 + $0x438] sm:$0xff]
          %v822 = vld [vmem:[#allocation6 + $0x440] sm:$0xff]
          %v823 = vld [vmem:[#allocation6 + $0x448] sm:$0xff]
          %v824 = vld [vmem:[#allocation6 + $0x450] sm:$0xff]
          %v825 = vld [vmem:[#allocation6 + $0x458] sm:$0xff]
          %v826 = vld [vmem:[#allocation6 + $0x460] sm:$0xff]
          %v827 = vld [vmem:[#allocation6 + $0x468] sm:$0xff]
          %v828 = vld [vmem:[#allocation6 + $0x470] sm:$0xff]
          %v829 = vld [vmem:[#allocation6 + $0x478] sm:$0xff]
          %v830 = vld [vmem:[#allocation6 + $0x480] sm:$0xff]
          %v831 = vld [vmem:[#allocation6 + $0x488] sm:$0xff]
          %v832 = vld [vmem:[#allocation6 + $0x490] sm:$0xff]
          %v833 = vld [vmem:[#allocation6 + $0x498] sm:$0xff]
          %v834 = vld [vmem:[#allocation6 + $0x4a0] sm:$0xff]
          %v835 = vld [vmem:[#allocation6 + $0x4a8] sm:$0xff]
          %v836 = vld [vmem:[#allocation6 + $0x4b0] sm:$0xff]
          %v837 = vld [vmem:[#allocation6 + $0x4b8] sm:$0xff]
          %v838 = vld [vmem:[#allocation6 + $0x4c0] sm:$0xff]
          %v839 = vld [vmem:[#allocation6 + $0x4c8] sm:$0xff]
          %v840 = vld [vmem:[#allocation6 + $0x4d0] sm:$0xff]
          %v841 = vld [vmem:[#allocation6 + $0x4d8] sm:$0xff]
          %v842 = vld [vmem:[#allocation6 + $0x4e0] sm:$0xff]
          %v843 = vld [vmem:[#allocation6 + $0x4e8] sm:$0xff]
          %v844 = vld [vmem:[#allocation6 + $0x4f0] sm:$0xff]
          %v845 = vld [vmem:[#allocation6 + $0x4f8] sm:$0xff]
          %v846 = vld [vmem:[#allocation6 + $0x500] sm:$0xff]
          %v847 = vld [vmem:[#allocation6 + $0x508] sm:$0xff]
          %v848 = vld [vmem:[#allocation6 + $0x510] sm:$0xff]
          %v849 = vld [vmem:[#allocation6 + $0x518] sm:$0xff]
          %v850 = vld [vmem:[#allocation6 + $0x520] sm:$0xff]
          %v851 = vld [vmem:[#allocation6 + $0x528] sm:$0xff]
          %v852 = vld [vmem:[#allocation6 + $0x530] sm:$0xff]
          %v853 = vld [vmem:[#allocation6 + $0x538] sm:$0xff]
          %v854 = vld [vmem:[#allocation6 + $0x540] sm:$0xff]
          %v855 = vld [vmem:[#allocation6 + $0x548] sm:$0xff]
          %v856 = vld [vmem:[#allocation6 + $0x550] sm:$0xff]
          %v857 = vld [vmem:[#allocation6 + $0x558] sm:$0xff]
          %v858 = vld [vmem:[#allocation6 + $0x560] sm:$0xff]
          %v859 = vld [vmem:[#allocation6 + $0x568] sm:$0xff]
          %v860 = vld [vmem:[#allocation6 + $0x570] sm:$0xff]
          %v861 = vld [vmem:[#allocation6 + $0x578] sm:$0xff]
          %v862 = vld [vmem:[#allocation6 + $0x580] sm:$0xff]
          %v863 = vld [vmem:[#allocation6 + $0x588] sm:$0xff]
          %v864 = vld [vmem:[#allocation6 + $0x590] sm:$0xff]
          %v865 = vld [vmem:[#allocation6 + $0x598] sm:$0xff]
          %v866 = vld [vmem:[#allocation6 + $0x5a0] sm:$0xff]
          %v867 = vld [vmem:[#allocation6 + $0x5a8] sm:$0xff]
          %v868 = vld [vmem:[#allocation6 + $0x5b0] sm:$0xff]
          %v869 = vld [vmem:[#allocation6 + $0x5b8] sm:$0xff]
          %v870 = vld [vmem:[#allocation6 + $0x5c0] sm:$0xff]
          %v871 = vld [vmem:[#allocation6 + $0x5c8] sm:$0xff]
          %v872 = vld [vmem:[#allocation6 + $0x5d0] sm:$0xff]
          %v873 = vld [vmem:[#allocation6 + $0x5d8] sm:$0xff]
          %v874 = vld [vmem:[#allocation6 + $0x5e0] sm:$0xff]
          %v875 = vld [vmem:[#allocation6 + $0x5e8] sm:$0xff]
          %v876 = vld [vmem:[#allocation6 + $0x5f0] sm:$0xff]
          %v877 = vld [vmem:[#allocation6 + $0x5f8] sm:$0xff]
          %v878 = vld [vmem:[#allocation6 + $0x600] sm:$0xff]
          %v879 = vld [vmem:[#allocation6 + $0x608] sm:$0xff]
          %v880 = vld [vmem:[#allocation6 + $0x610] sm:$0xff]
          %v881 = vld [vmem:[#allocation6 + $0x618] sm:$0xff]
          %v882 = vld [vmem:[#allocation6 + $0x620] sm:$0xff]
          %v883 = vld [vmem:[#allocation6 + $0x628] sm:$0xff]
          %v884 = vld [vmem:[#allocation6 + $0x630] sm:$0xff]
          %v885 = vld [vmem:[#allocation6 + $0x638] sm:$0xff]
          %v886 = vld [vmem:[#allocation6 + $0x640] sm:$0xff]
          %v887 = vld [vmem:[#allocation6 + $0x648] sm:$0xff]
          %v888 = vld [vmem:[#allocation6 + $0x650] sm:$0xff]
          %v889 = vld [vmem:[#allocation6 + $0x658] sm:$0xff]
          %v890 = vld [vmem:[#allocation6 + $0x660] sm:$0xff]
          %v891 = vld [vmem:[#allocation6 + $0x668] sm:$0xff]
          %v892 = vld [vmem:[#allocation6 + $0x670] sm:$0xff]
          %v893 = vld [vmem:[#allocation6 + $0x678] sm:$0xff]
          %v894 = vld [vmem:[#allocation6 + $0x680] sm:$0xff]
          %v895 = vld [vmem:[#allocation6 + $0x688] sm:$0xff]
          %v896 = vld [vmem:[#allocation6 + $0x690] sm:$0xff]
          %v897 = vld [vmem:[#allocation6 + $0x698] sm:$0xff]
          %v898 = vld [vmem:[#allocation6 + $0x6a0] sm:$0xff]
          %v899 = vld [vmem:[#allocation6 + $0x6a8] sm:$0xff]
          %v900 = vld [vmem:[#allocation6 + $0x6b0] sm:$0xff]
          %v901 = vld [vmem:[#allocation6 + $0x6b8] sm:$0xff]
          %v902 = vld [vmem:[#allocation6 + $0x6c0] sm:$0xff]
          %v903 = vld [vmem:[#allocation6 + $0x6c8] sm:$0xff]
          %v904 = vld [vmem:[#allocation6 + $0x6d0] sm:$0xff]
          %v905 = vld [vmem:[#allocation6 + $0x6d8] sm:$0xff]
          %v906 = vld [vmem:[#allocation6 + $0x6e0] sm:$0xff]
          %v907 = vld [vmem:[#allocation6 + $0x6e8] sm:$0xff]
          %v908 = vld [vmem:[#allocation6 + $0x6f0] sm:$0xff]
          %v909 = vld [vmem:[#allocation6 + $0x6f8] sm:$0xff]
          %v910 = vld [vmem:[#allocation6 + $0x700] sm:$0xff]
          %v911 = vld [vmem:[#allocation6 + $0x708] sm:$0xff]
          %v912 = vld [vmem:[#allocation6 + $0x710] sm:$0xff]
          %v913 = vld [vmem:[#allocation6 + $0x718] sm:$0xff]
          %v914 = vld [vmem:[#allocation6 + $0x720] sm:$0xff]
          %v915 = vld [vmem:[#allocation6 + $0x728] sm:$0xff]
          %v916 = vld [vmem:[#allocation6 + $0x730] sm:$0xff]
          %v917 = vld [vmem:[#allocation6 + $0x738] sm:$0xff]
          %v918 = vld [vmem:[#allocation6 + $0x740] sm:$0xff]
          %v919 = vld [vmem:[#allocation6 + $0x748] sm:$0xff]
          %v920 = vld [vmem:[#allocation6 + $0x750] sm:$0xff]
          %v921 = vld [vmem:[#allocation6 + $0x758] sm:$0xff]
          %v922 = vld [vmem:[#allocation6 + $0x760] sm:$0xff]
          %v923 = vld [vmem:[#allocation6 + $0x768] sm:$0xff]
          %v924 = vld [vmem:[#allocation6 + $0x770] sm:$0xff]
          %v925 = vld [vmem:[#allocation6 + $0x778] sm:$0xff]
          %v926 = vld [vmem:[#allocation6 + $0x780] sm:$0xff]
          %v927 = vld [vmem:[#allocation6 + $0x788] sm:$0xff]
          %v928 = vld [vmem:[#allocation6 + $0x790] sm:$0xff]
          %v929 = vld [vmem:[#allocation6 + $0x798] sm:$0xff]
          %v930 = vld [vmem:[#allocation6 + $0x7a0] sm:$0xff]
          %v931 = vld [vmem:[#allocation6 + $0x7a8] sm:$0xff]
          %v932 = vld [vmem:[#allocation6 + $0x7b0] sm:$0xff]
          %v933 = vld [vmem:[#allocation6 + $0x7b8] sm:$0xff]
          %v934 = vld [vmem:[#allocation6 + $0x7c0] sm:$0xff]
          %v935 = vld [vmem:[#allocation6 + $0x7c8] sm:$0xff]
          %v936 = vld [vmem:[#allocation6 + $0x7d0] sm:$0xff]
          %v937 = vld [vmem:[#allocation6 + $0x7d8] sm:$0xff]
          %v938 = vld [vmem:[#allocation6 + $0x7e0] sm:$0xff]
          %v939 = vld [vmem:[#allocation6 + $0x7e8] sm:$0xff]
          %v940 = vld [vmem:[#allocation6 + $0x7f0] sm:$0xff]
          %v941 = vld [vmem:[#allocation6 + $0x7f8] sm:$0xff]
          %v942 = vld [vmem:[#allocation6 + $0x800] sm:$0xff]
          %v943 = vld [vmem:[#allocation6 + $0x808] sm:$0xff]
          %v944 = vld [vmem:[#allocation6 + $0x810] sm:$0xff]
          %v945 = vld [vmem:[#allocation6 + $0x818] sm:$0xff]
          %v946 = vld [vmem:[#allocation6 + $0x820] sm:$0xff]
          %v947 = vld [vmem:[#allocation6 + $0x828] sm:$0xff]
          %v948 = vld [vmem:[#allocation6 + $0x830] sm:$0xff]
          %v949 = vld [vmem:[#allocation6 + $0x838] sm:$0xff]
          %v950 = vld [vmem:[#allocation6 + $0x840] sm:$0xff]
          %v951 = vld [vmem:[#allocation6 + $0x848] sm:$0xff]
          %v952 = vld [vmem:[#allocation6 + $0x850] sm:$0xff]
          %v953 = vld [vmem:[#allocation6 + $0x858] sm:$0xff]
          %v954 = vld [vmem:[#allocation6 + $0x860] sm:$0xff]
          %v955 = vld [vmem:[#allocation6 + $0x868] sm:$0xff]
          %v956 = vld [vmem:[#allocation6 + $0x870] sm:$0xff]
          %v957 = vld [vmem:[#allocation6 + $0x878] sm:$0xff]
          %v958 = vld [vmem:[#allocation6 + $0x880] sm:$0xff]
          %v959 = vld [vmem:[#allocation6 + $0x888] sm:$0xff]
          %v960 = vld [vmem:[#allocation6 + $0x890] sm:$0xff]
          %v961 = vld [vmem:[#allocation6 + $0x898] sm:$0xff]
          %v962 = vld [vmem:[#allocation6 + $0x8a0] sm:$0xff]
          %v963 = vld [vmem:[#allocation6 + $0x8a8] sm:$0xff]
          %v964 = vld [vmem:[#allocation6 + $0x8b0] sm:$0xff]
          %v965 = vld [vmem:[#allocation6 + $0x8b8] sm:$0xff]
          %v966 = vld [vmem:[#allocation6 + $0x8c0] sm:$0xff]
          %v967 = vld [vmem:[#allocation6 + $0x8c8] sm:$0xff]
          %v968 = vld [vmem:[#allocation6 + $0x8d0] sm:$0xff]
          %v969 = vld [vmem:[#allocation6 + $0x8d8] sm:$0xff]
          %v970 = vld [vmem:[#allocation6 + $0x8e0] sm:$0xff]
          %v971 = vld [vmem:[#allocation6 + $0x8e8] sm:$0xff]
          %v972 = vld [vmem:[#allocation6 + $0x8f0] sm:$0xff]
          %v973 = vld [vmem:[#allocation6 + $0x8f8] sm:$0xff]
          %v974 = vadd.f32 %v398, %v686
          %v975 = vadd.f32 %v399, %v687
          %v976 = vadd.f32 %v400, %v688
          %v977 = vadd.f32 %v401, %v689
          %v978 = vadd.f32 %v402, %v690
          %v979 = vadd.f32 %v403, %v691
          %v980 = vadd.f32 %v404, %v692
          %v981 = vadd.f32 %v405, %v693
          %v982 = vadd.f32 %v406, %v694
          %v983 = vadd.f32 %v407, %v695
          %v984 = vadd.f32 %v408, %v696
          %v985 = vadd.f32 %v409, %v697
          %v986 = vadd.f32 %v410, %v698
          %v987 = vadd.f32 %v411, %v699
          %v988 = vadd.f32 %v412, %v700
          %v989 = vadd.f32 %v413, %v701
          %v990 = vadd.f32 %v414, %v702
          %v991 = vadd.f32 %v415, %v703
          %v992 = vadd.f32 %v416, %v704
          %v993 = vadd.f32 %v417, %v705
          %v994 = vadd.f32 %v418, %v706
          %v995 = vadd.f32 %v419, %v707
          %v996 = vadd.f32 %v420, %v708
          %v997 = vadd.f32 %v421, %v709
          %v998 = vadd.f32 %v422, %v710
          %v999 = vadd.f32 %v423, %v711
          %v1000 = vadd.f32 %v424, %v712
          %v1001 = vadd.f32 %v425, %v713
          %v1002 = vadd.f32 %v426, %v714
          %v1003 = vadd.f32 %v427, %v715
          %v1004 = vadd.f32 %v428, %v716
          %v1005 = vadd.f32 %v429, %v717
          %v1006 = vadd.f32 %v430, %v718
          %v1007 = vadd.f32 %v431, %v719
          %v1008 = vadd.f32 %v432, %v720
          %v1009 = vadd.f32 %v433, %v721
          %v1010 = vadd.f32 %v434, %v722
          %v1011 = vadd.f32 %v435, %v723
          %v1012 = vadd.f32 %v436, %v724
          %v1013 = vadd.f32 %v437, %v725
          %v1014 = vadd.f32 %v438, %v726
          %v1015 = vadd.f32 %v439, %v727
          %v1016 = vadd.f32 %v440, %v728
          %v1017 = vadd.f32 %v441, %v729
          %v1018 = vadd.f32 %v442, %v730
          %v1019 = vadd.f32 %v443, %v731
          %v1020 = vadd.f32 %v444, %v732
          %v1021 = vadd.f32 %v445, %v733
          %v1022 = vadd.f32 %v446, %v734
          %v1023 = vadd.f32 %v447, %v735
          %v1024 = vadd.f32 %v448, %v736
          %v1025 = vadd.f32 %v449, %v737
          %v1026 = vadd.f32 %v450, %v738
          %v1027 = vadd.f32 %v451, %v739
          %v1028 = vadd.f32 %v452, %v740
          %v1029 = vadd.f32 %v453, %v741
          %v1030 = vadd.f32 %v454, %v742
          %v1031 = vadd.f32 %v455, %v743
          %v1032 = vadd.f32 %v456, %v744
          %v1033 = vadd.f32 %v457, %v745
          %v1034 = vadd.f32 %v458, %v746
          %v1035 = vadd.f32 %v459, %v747
          %v1036 = vadd.f32 %v460, %v748
          %v1037 = vadd.f32 %v461, %v749
          %v1038 = vadd.f32 %v462, %v750
          %v1039 = vadd.f32 %v463, %v751
          %v1040 = vadd.f32 %v464, %v752
          %v1041 = vadd.f32 %v465, %v753
          %v1042 = vadd.f32 %v466, %v754
          %v1043 = vadd.f32 %v467, %v755
          %v1044 = vadd.f32 %v468, %v756
          %v1045 = vadd.f32 %v469, %v757
          %v1046 = vadd.f32 %v470, %v758
          %v1047 = vadd.f32 %v471, %v759
          %v1048 = vadd.f32 %v472, %v760
          %v1049 = vadd.f32 %v473, %v761
          %v1050 = vadd.f32 %v474, %v762
          %v1051 = vadd.f32 %v475, %v763
          %v1052 = vadd.f32 %v476, %v764
          %v1053 = vadd.f32 %v477, %v765
          %v1054 = vadd.f32 %v478, %v766
          %v1055 = vadd.f32 %v479, %v767
          %v1056 = vadd.f32 %v480, %v768
          %v1057 = vadd.f32 %v481, %v769
          %v1058 = vadd.f32 %v482, %v770
          %v1059 = vadd.f32 %v483, %v771
          %v1060 = vadd.f32 %v484, %v772
          %v1061 = vadd.f32 %v485, %v773
          %v1062 = vadd.f32 %v486, %v774
          %v1063 = vadd.f32 %v487, %v775
          %v1064 = vadd.f32 %v488, %v776
          %v1065 = vadd.f32 %v489, %v777
          %v1066 = vadd.f32 %v490, %v778
          %v1067 = vadd.f32 %v491, %v779
          %v1068 = vadd.f32 %v492, %v780
          %v1069 = vadd.f32 %v493, %v781
          %v1070 = vadd.f32 %v494, %v782
          %v1071 = vadd.f32 %v495, %v783
          %v1072 = vadd.f32 %v496, %v784
          %v1073 = vadd.f32 %v497, %v785
          %v1074 = vadd.f32 %v498, %v786
          %v1075 = vadd.f32 %v499, %v787
          %v1076 = vadd.f32 %v500, %v788
          %v1077 = vadd.f32 %v501, %v789
          %v1078 = vadd.f32 %v502, %v790
          %v1079 = vadd.f32 %v503, %v791
          %v1080 = vadd.f32 %v504, %v792
          %v1081 = vadd.f32 %v505, %v793
          %v1082 = vadd.f32 %v506, %v794
          %v1083 = vadd.f32 %v507, %v795
          %v1084 = vadd.f32 %v508, %v796
          %v1085 = vadd.f32 %v509, %v797
          %v1086 = vadd.f32 %v510, %v798
          %v1087 = vadd.f32 %v511, %v799
          %v1088 = vadd.f32 %v512, %v800
          %v1089 = vadd.f32 %v513, %v801
          %v1090 = vadd.f32 %v514, %v802
          %v1091 = vadd.f32 %v515, %v803
          %v1092 = vadd.f32 %v516, %v804
          %v1093 = vadd.f32 %v517, %v805
          %v1094 = vadd.f32 %v518, %v806
          %v1095 = vadd.f32 %v519, %v807
          %v1096 = vadd.f32 %v520, %v808
          %v1097 = vadd.f32 %v521, %v809
          %v1098 = vadd.f32 %v522, %v810
          %v1099 = vadd.f32 %v523, %v811
          %v1100 = vadd.f32 %v524, %v812
          %v1101 = vadd.f32 %v525, %v813
          %v1102 = vadd.f32 %v526, %v814
          %v1103 = vadd.f32 %v527, %v815
          %v1104 = vadd.f32 %v528, %v816
          %v1105 = vadd.f32 %v529, %v817
          %v1106 = vadd.f32 %v530, %v818
          %v1107 = vadd.f32 %v531, %v819
          %v1108 = vadd.f32 %v532, %v820
          %v1109 = vadd.f32 %v533, %v821
          %v1110 = vadd.f32 %v534, %v822
          %v1111 = vadd.f32 %v535, %v823
          %v1112 = vadd.f32 %v536, %v824
          %v1113 = vadd.f32 %v537, %v825
          %v1114 = vadd.f32 %v538, %v826
          %v1115 = vadd.f32 %v539, %v827
          %v1116 = vadd.f32 %v540, %v828
          %v1117 = vadd.f32 %v541, %v829
          %v1118 = vadd.f32 %v542, %v830
          %v1119 = vadd.f32 %v543, %v831
          %v1120 = vadd.f32 %v544, %v832
          %v1121 = vadd.f32 %v545, %v833
          %v1122 = vadd.f32 %v546, %v834
          %v1123 = vadd.f32 %v547, %v835
          %v1124 = vadd.f32 %v548, %v836
          %v1125 = vadd.f32 %v549, %v837
          %v1126 = vadd.f32 %v550, %v838
          %v1127 = vadd.f32 %v551, %v839
          %v1128 = vadd.f32 %v552, %v840
          %v1129 = vadd.f32 %v553, %v841
          %v1130 = vadd.f32 %v554, %v842
          %v1131 = vadd.f32 %v555, %v843
          %v1132 = vadd.f32 %v556, %v844
          %v1133 = vadd.f32 %v557, %v845
          %v1134 = vadd.f32 %v558, %v846
          %v1135 = vadd.f32 %v559, %v847
          %v1136 = vadd.f32 %v560, %v848
          %v1137 = vadd.f32 %v561, %v849
          %v1138 = vadd.f32 %v562, %v850
          %v1139 = vadd.f32 %v563, %v851
          %v1140 = vadd.f32 %v564, %v852
          %v1141 = vadd.f32 %v565, %v853
          %v1142 = vadd.f32 %v566, %v854
          %v1143 = vadd.f32 %v567, %v855
          %v1144 = vadd.f32 %v568, %v856
          %v1145 = vadd.f32 %v569, %v857
          %v1146 = vadd.f32 %v570, %v858
          %v1147 = vadd.f32 %v571, %v859
          %v1148 = vadd.f32 %v572, %v860
          %v1149 = vadd.f32 %v573, %v861
          %v1150 = vadd.f32 %v574, %v862
          %v1151 = vadd.f32 %v575, %v863
          %v1152 = vadd.f32 %v576, %v864
          %v1153 = vadd.f32 %v577, %v865
          %v1154 = vadd.f32 %v578, %v866
          %v1155 = vadd.f32 %v579, %v867
          %v1156 = vadd.f32 %v580, %v868
          %v1157 = vadd.f32 %v581, %v869
          %v1158 = vadd.f32 %v582, %v870
          %v1159 = vadd.f32 %v583, %v871
          %v1160 = vadd.f32 %v584, %v872
          %v1161 = vadd.f32 %v585, %v873
          %v1162 = vadd.f32 %v586, %v874
          %v1163 = vadd.f32 %v587, %v875
          %v1164 = vadd.f32 %v588, %v876
          %v1165 = vadd.f32 %v589, %v877
          %v1166 = vadd.f32 %v590, %v878
          %v1167 = vadd.f32 %v591, %v879
          %v1168 = vadd.f32 %v592, %v880
          %v1169 = vadd.f32 %v593, %v881
          %v1170 = vadd.f32 %v594, %v882
          %v1171 = vadd.f32 %v595, %v883
          %v1172 = vadd.f32 %v596, %v884
          %v1173 = vadd.f32 %v597, %v885
          %v1174 = vadd.f32 %v598, %v886
          %v1175 = vadd.f32 %v599, %v887
          %v1176 = vadd.f32 %v600, %v888
          %v1177 = vadd.f32 %v601, %v889
          %v1178 = vadd.f32 %v602, %v890
          %v1179 = vadd.f32 %v603, %v891
          %v1180 = vadd.f32 %v604, %v892
          %v1181 = vadd.f32 %v605, %v893
          %v1182 = vadd.f32 %v606, %v894
          %v1183 = vadd.f32 %v607, %v895
          %v1184 = vadd.f32 %v608, %v896
          %v1185 = vadd.f32 %v609, %v897
          %v1186 = vadd.f32 %v610, %v898
          %v1187 = vadd.f32 %v611, %v899
          %v1188 = vadd.f32 %v612, %v900
          %v1189 = vadd.f32 %v613, %v901
          %v1190 = vadd.f32 %v614, %v902
          %v1191 = vadd.f32 %v615, %v903
          %v1192 = vadd.f32 %v616, %v904
          %v1193 = vadd.f32 %v617, %v905
          %v1194 = vadd.f32 %v618, %v906
          %v1195 = vadd.f32 %v619, %v907
          %v1196 = vadd.f32 %v620, %v908
          %v1197 = vadd.f32 %v621, %v909
          %v1198 = vadd.f32 %v622, %v910
          %v1199 = vadd.f32 %v623, %v911
          %v1200 = vadd.f32 %v624, %v912
          %v1201 = vadd.f32 %v625, %v913
          %v1202 = vadd.f32 %v626, %v914
          %v1203 = vadd.f32 %v627, %v915
          %v1204 = vadd.f32 %v628, %v916
          %v1205 = vadd.f32 %v629, %v917
          %v1206 = vadd.f32 %v630, %v918
          %v1207 = vadd.f32 %v631, %v919
          %v1208 = vadd.f32 %v632, %v920
          %v1209 = vadd.f32 %v633, %v921
          %v1210 = vadd.f32 %v634, %v922
          %v1211 = vadd.f32 %v635, %v923
          %v1212 = vadd.f32 %v636, %v924
          %v1213 = vadd.f32 %v637, %v925
          %v1214 = vadd.f32 %v638, %v926
          %v1215 = vadd.f32 %v639, %v927
          %v1216 = vadd.f32 %v640, %v928
          %v1217 = vadd.f32 %v641, %v929
          %v1218 = vadd.f32 %v642, %v930
          %v1219 = vadd.f32 %v643, %v931
          %v1220 = vadd.f32 %v644, %v932
          %v1221 = vadd.f32 %v645, %v933
          %v1222 = vadd.f32 %v646, %v934
          %v1223 = vadd.f32 %v647, %v935
          %v1224 = vadd.f32 %v648, %v936
          %v1225 = vadd.f32 %v649, %v937
          %v1226 = vadd.f32 %v650, %v938
          %v1227 = vadd.f32 %v651, %v939
          %v1228 = vadd.f32 %v652, %v940
          %v1229 = vadd.f32 %v653, %v941
          %v1230 = vadd.f32 %v654, %v942
          %v1231 = vadd.f32 %v655, %v943
          %v1232 = vadd.f32 %v656, %v944
          %v1233 = vadd.f32 %v657, %v945
          %v1234 = vadd.f32 %v658, %v946
          %v1235 = vadd.f32 %v659, %v947
          %v1236 = vadd.f32 %v660, %v948
          %v1237 = vadd.f32 %v661, %v949
          %v1238 = vadd.f32 %v662, %v950
          %v1239 = vadd.f32 %v663, %v951
          %v1240 = vadd.f32 %v664, %v952
          %v1241 = vadd.f32 %v665, %v953
          %v1242 = vadd.f32 %v666, %v954
          %v1243 = vadd.f32 %v667, %v955
          %v1244 = vadd.f32 %v668, %v956
          %v1245 = vadd.f32 %v669, %v957
          %v1246 = vadd.f32 %v670, %v958
          %v1247 = vadd.f32 %v671, %v959
          %v1248 = vadd.f32 %v672, %v960
          %v1249 = vadd.f32 %v673, %v961
          %v1250 = vadd.f32 %v674, %v962
          %v1251 = vadd.f32 %v675, %v963
          %v1252 = vadd.f32 %v676, %v964
          %v1253 = vadd.f32 %v677, %v965
          %v1254 = vadd.f32 %v678, %v966
          %v1255 = vadd.f32 %v679, %v967
          %v1256 = vadd.f32 %v680, %v968
          %v1257 = vadd.f32 %v681, %v969
          %v1258 = vadd.f32 %v682, %v970
          %v1259 = vadd.f32 %v683, %v971
          %v1260 = vadd.f32 %v684, %v972
          %v1261 = vadd.f32 %v685, %v973
          %v1262 = vadd.f32 %v974, %v975
          %v1263 = vadd.f32 %v1262, %v976
          %v1264 = vadd.f32 %v1263, %v977
          %v1265 = vadd.f32 %v1264, %v978
          %v1266 = vadd.f32 %v1265, %v979
          %1267 = vadd.xlane.f32.xlu0 %v1266
          %v1268 = vpop.xlane.xlu0 %1267
          %v1269 = vadd.f32 %v980, %v981
          %v1270 = vadd.f32 %v1269, %v982
          %v1271 = vadd.f32 %v1270, %v983
          %v1272 = vadd.f32 %v1271, %v984
          %v1273 = vadd.f32 %v1272, %v985
          %1274 = vadd.xlane.f32.xlu0 %v1273
          %v1275 = vpop.xlane.xlu0 %1274
          %v1276 = vadd.f32 %v986, %v987
          %v1277 = vadd.f32 %v1276, %v988
          %v1278 = vadd.f32 %v1277, %v989
          %v1279 = vadd.f32 %v1278, %v990
          %v1280 = vadd.f32 %v1279, %v991
          %1281 = vadd.xlane.f32.xlu0 %v1280
          %v1282 = vpop.xlane.xlu0 %1281
          %v1283 = vadd.f32 %v992, %v993
          %v1284 = vadd.f32 %v1283, %v994
          %v1285 = vadd.f32 %v1284, %v995
          %v1286 = vadd.f32 %v1285, %v996
          %v1287 = vadd.f32 %v1286, %v997
          %1288 = vadd.xlane.f32.xlu0 %v1287
          %v1289 = vpop.xlane.xlu0 %1288
          %v1290 = vadd.f32 %v998, %v999
          %v1291 = vadd.f32 %v1290, %v1000
          %v1292 = vadd.f32 %v1291, %v1001
          %v1293 = vadd.f32 %v1292, %v1002
          %v1294 = vadd.f32 %v1293, %v1003
          %1295 = vadd.xlane.f32.xlu0 %v1294
          %v1296 = vpop.xlane.xlu0 %1295
          %v1297 = vadd.f32 %v1004, %v1005
          %v1298 = vadd.f32 %v1297, %v1006
          %v1299 = vadd.f32 %v1298, %v1007
          %v1300 = vadd.f32 %v1299, %v1008
          %v1301 = vadd.f32 %v1300, %v1009
          %1302 = vadd.xlane.f32.xlu0 %v1301
          %v1303 = vpop.xlane.xlu0 %1302
          %v1304 = vadd.f32 %v1010, %v1011
          %v1305 = vadd.f32 %v1304, %v1012
          %v1306 = vadd.f32 %v1305, %v1013
          %v1307 = vadd.f32 %v1306, %v1014
          %v1308 = vadd.f32 %v1307, %v1015
          %1309 = vadd.xlane.f32.xlu0 %v1308
          %v1310 = vpop.xlane.xlu0 %1309
          %v1311 = vadd.f32 %v1016, %v1017
          %v1312 = vadd.f32 %v1311, %v1018
          %v1313 = vadd.f32 %v1312, %v1019
          %v1314 = vadd.f32 %v1313, %v1020
          %v1315 = vadd.f32 %v1314, %v1021
          %1316 = vadd.xlane.f32.xlu0 %v1315
          %v1317 = vpop.xlane.xlu0 %1316
          %v1318 = vadd.f32 %v1022, %v1023
          %v1319 = vadd.f32 %v1318, %v1024
          %v1320 = vadd.f32 %v1319, %v1025
          %v1321 = vadd.f32 %v1320, %v1026
          %v1322 = vadd.f32 %v1321, %v1027
          %1323 = vadd.xlane.f32.xlu0 %v1322
          %v1324 = vpop.xlane.xlu0 %1323
          %v1325 = vadd.f32 %v1028, %v1029
          %v1326 = vadd.f32 %v1325, %v1030
          %v1327 = vadd.f32 %v1326, %v1031
          %v1328 = vadd.f32 %v1327, %v1032
          %v1329 = vadd.f32 %v1328, %v1033
          %1330 = vadd.xlane.f32.xlu0 %v1329
          %v1331 = vpop.xlane.xlu0 %1330
          %v1332 = vadd.f32 %v1034, %v1035
          %v1333 = vadd.f32 %v1332, %v1036
          %v1334 = vadd.f32 %v1333, %v1037
          %v1335 = vadd.f32 %v1334, %v1038
          %v1336 = vadd.f32 %v1335, %v1039
          %1337 = vadd.xlane.f32.xlu0 %v1336
          %v1338 = vpop.xlane.xlu0 %1337
          %v1339 = vadd.f32 %v1040, %v1041
          %v1340 = vadd.f32 %v1339, %v1042
          %v1341 = vadd.f32 %v1340, %v1043
          %v1342 = vadd.f32 %v1341, %v1044
          %v1343 = vadd.f32 %v1342, %v1045
          %1344 = vadd.xlane.f32.xlu0 %v1343
          %v1345 = vpop.xlane.xlu0 %1344
          %v1346 = vadd.f32 %v1046, %v1047
          %v1347 = vadd.f32 %v1346, %v1048
          %v1348 = vadd.f32 %v1347, %v1049
          %v1349 = vadd.f32 %v1348, %v1050
          %v1350 = vadd.f32 %v1349, %v1051
          %1351 = vadd.xlane.f32.xlu0 %v1350
          %v1352 = vpop.xlane.xlu0 %1351
          %v1353 = vadd.f32 %v1052, %v1053
          %v1354 = vadd.f32 %v1353, %v1054
          %v1355 = vadd.f32 %v1354, %v1055
          %v1356 = vadd.f32 %v1355, %v1056
          %v1357 = vadd.f32 %v1356, %v1057
          %1358 = vadd.xlane.f32.xlu0 %v1357
          %v1359 = vpop.xlane.xlu0 %1358
          %v1360 = vadd.f32 %v1058, %v1059
          %v1361 = vadd.f32 %v1360, %v1060
          %v1362 = vadd.f32 %v1361, %v1061
          %v1363 = vadd.f32 %v1362, %v1062
          %v1364 = vadd.f32 %v1363, %v1063
          %1365 = vadd.xlane.f32.xlu0 %v1364
          %v1366 = vpop.xlane.xlu0 %1365
          %v1367 = vadd.f32 %v1064, %v1065
          %v1368 = vadd.f32 %v1367, %v1066
          %v1369 = vadd.f32 %v1368, %v1067
          %v1370 = vadd.f32 %v1369, %v1068
          %v1371 = vadd.f32 %v1370, %v1069
          %1372 = vadd.xlane.f32.xlu0 %v1371
          %v1373 = vpop.xlane.xlu0 %1372
          %v1374 = vadd.f32 %v1070, %v1071
          %v1375 = vadd.f32 %v1374, %v1072
          %v1376 = vadd.f32 %v1375, %v1073
          %v1377 = vadd.f32 %v1376, %v1074
          %v1378 = vadd.f32 %v1377, %v1075
          %1379 = vadd.xlane.f32.xlu0 %v1378
          %v1380 = vpop.xlane.xlu0 %1379
          %v1381 = vadd.f32 %v1076, %v1077
          %v1382 = vadd.f32 %v1381, %v1078
          %v1383 = vadd.f32 %v1382, %v1079
          %v1384 = vadd.f32 %v1383, %v1080
          %v1385 = vadd.f32 %v1384, %v1081
          %1386 = vadd.xlane.f32.xlu0 %v1385
          %v1387 = vpop.xlane.xlu0 %1386
          %v1388 = vadd.f32 %v1082, %v1083
          %v1389 = vadd.f32 %v1388, %v1084
          %v1390 = vadd.f32 %v1389, %v1085
          %v1391 = vadd.f32 %v1390, %v1086
          %v1392 = vadd.f32 %v1391, %v1087
          %1393 = vadd.xlane.f32.xlu0 %v1392
          %v1394 = vpop.xlane.xlu0 %1393
          %v1395 = vadd.f32 %v1088, %v1089
          %v1396 = vadd.f32 %v1395, %v1090
          %v1397 = vadd.f32 %v1396, %v1091
          %v1398 = vadd.f32 %v1397, %v1092
          %v1399 = vadd.f32 %v1398, %v1093
          %1400 = vadd.xlane.f32.xlu0 %v1399
          %v1401 = vpop.xlane.xlu0 %1400
          %v1402 = vadd.f32 %v1094, %v1095
          %v1403 = vadd.f32 %v1402, %v1096
          %v1404 = vadd.f32 %v1403, %v1097
          %v1405 = vadd.f32 %v1404, %v1098
          %v1406 = vadd.f32 %v1405, %v1099
          %1407 = vadd.xlane.f32.xlu0 %v1406
          %v1408 = vpop.xlane.xlu0 %1407
          %v1409 = vadd.f32 %v1100, %v1101
          %v1410 = vadd.f32 %v1409, %v1102
          %v1411 = vadd.f32 %v1410, %v1103
          %v1412 = vadd.f32 %v1411, %v1104
          %v1413 = vadd.f32 %v1412, %v1105
          %1414 = vadd.xlane.f32.xlu0 %v1413
          %v1415 = vpop.xlane.xlu0 %1414
          %v1416 = vadd.f32 %v1106, %v1107
          %v1417 = vadd.f32 %v1416, %v1108
          %v1418 = vadd.f32 %v1417, %v1109
          %v1419 = vadd.f32 %v1418, %v1110
          %v1420 = vadd.f32 %v1419, %v1111
          %1421 = vadd.xlane.f32.xlu0 %v1420
          %v1422 = vpop.xlane.xlu0 %1421
          %v1423 = vadd.f32 %v1112, %v1113
          %v1424 = vadd.f32 %v1423, %v1114
          %v1425 = vadd.f32 %v1424, %v1115
          %v1426 = vadd.f32 %v1425, %v1116
          %v1427 = vadd.f32 %v1426, %v1117
          %1428 = vadd.xlane.f32.xlu0 %v1427
          %v1429 = vpop.xlane.xlu0 %1428
          %v1430 = vadd.f32 %v1118, %v1119
          %v1431 = vadd.f32 %v1430, %v1120
          %v1432 = vadd.f32 %v1431, %v1121
          %v1433 = vadd.f32 %v1432, %v1122
          %v1434 = vadd.f32 %v1433, %v1123
          %1435 = vadd.xlane.f32.xlu0 %v1434
          %v1436 = vpop.xlane.xlu0 %1435
          %v1437 = vadd.f32 %v1124, %v1125
          %v1438 = vadd.f32 %v1437, %v1126
          %v1439 = vadd.f32 %v1438, %v1127
          %v1440 = vadd.f32 %v1439, %v1128
          %v1441 = vadd.f32 %v1440, %v1129
          %1442 = vadd.xlane.f32.xlu0 %v1441
          %v1443 = vpop.xlane.xlu0 %1442
          %v1444 = vadd.f32 %v1130, %v1131
          %v1445 = vadd.f32 %v1444, %v1132
          %v1446 = vadd.f32 %v1445, %v1133
          %v1447 = vadd.f32 %v1446, %v1134
          %v1448 = vadd.f32 %v1447, %v1135
          %1449 = vadd.xlane.f32.xlu0 %v1448
          %v1450 = vpop.xlane.xlu0 %1449
          %v1451 = vadd.f32 %v1136, %v1137
          %v1452 = vadd.f32 %v1451, %v1138
          %v1453 = vadd.f32 %v1452, %v1139
          %v1454 = vadd.f32 %v1453, %v1140
          %v1455 = vadd.f32 %v1454, %v1141
          %1456 = vadd.xlane.f32.xlu0 %v1455
          %v1457 = vpop.xlane.xlu0 %1456
          %v1458 = vadd.f32 %v1142, %v1143
          %v1459 = vadd.f32 %v1458, %v1144
          %v1460 = vadd.f32 %v1459, %v1145
          %v1461 = vadd.f32 %v1460, %v1146
          %v1462 = vadd.f32 %v1461, %v1147
          %1463 = vadd.xlane.f32.xlu0 %v1462
          %v1464 = vpop.xlane.xlu0 %1463
          %v1465 = vadd.f32 %v1148, %v1149
          %v1466 = vadd.f32 %v1465, %v1150
          %v1467 = vadd.f32 %v1466, %v1151
          %v1468 = vadd.f32 %v1467, %v1152
          %v1469 = vadd.f32 %v1468, %v1153
          %1470 = vadd.xlane.f32.xlu0 %v1469
          %v1471 = vpop.xlane.xlu0 %1470
          %v1472 = vadd.f32 %v1154, %v1155
          %v1473 = vadd.f32 %v1472, %v1156
          %v1474 = vadd.f32 %v1473, %v1157
          %v1475 = vadd.f32 %v1474, %v1158
          %v1476 = vadd.f32 %v1475, %v1159
          %1477 = vadd.xlane.f32.xlu0 %v1476
          %v1478 = vpop.xlane.xlu0 %1477
          %v1479 = vadd.f32 %v1160, %v1161
          %v1480 = vadd.f32 %v1479, %v1162
          %v1481 = vadd.f32 %v1480, %v1163
          %v1482 = vadd.f32 %v1481, %v1164
          %v1483 = vadd.f32 %v1482, %v1165
          %1484 = vadd.xlane.f32.xlu0 %v1483
          %v1485 = vpop.xlane.xlu0 %1484
          %v1486 = vadd.f32 %v1166, %v1167
          %v1487 = vadd.f32 %v1486, %v1168
          %v1488 = vadd.f32 %v1487, %v1169
          %v1489 = vadd.f32 %v1488, %v1170
          %v1490 = vadd.f32 %v1489, %v1171
          %1491 = vadd.xlane.f32.xlu0 %v1490
          %v1492 = vpop.xlane.xlu0 %1491
          %v1493 = vadd.f32 %v1172, %v1173
          %v1494 = vadd.f32 %v1493, %v1174
          %v1495 = vadd.f32 %v1494, %v1175
          %v1496 = vadd.f32 %v1495, %v1176
          %v1497 = vadd.f32 %v1496, %v1177
          %1498 = vadd.xlane.f32.xlu0 %v1497
          %v1499 = vpop.xlane.xlu0 %1498
          %v1500 = vadd.f32 %v1178, %v1179
          %v1501 = vadd.f32 %v1500, %v1180
          %v1502 = vadd.f32 %v1501, %v1181
          %v1503 = vadd.f32 %v1502, %v1182
          %v1504 = vadd.f32 %v1503, %v1183
          %1505 = vadd.xlane.f32.xlu0 %v1504
          %v1506 = vpop.xlane.xlu0 %1505
          %v1507 = vadd.f32 %v1184, %v1185
          %v1508 = vadd.f32 %v1507, %v1186
          %v1509 = vadd.f32 %v1508, %v1187
          %v1510 = vadd.f32 %v1509, %v1188
          %v1511 = vadd.f32 %v1510, %v1189
          %1512 = vadd.xlane.f32.xlu0 %v1511
          %v1513 = vpop.xlane.xlu0 %1512
          %v1514 = vadd.f32 %v1190, %v1191
          %v1515 = vadd.f32 %v1514, %v1192
          %v1516 = vadd.f32 %v1515, %v1193
          %v1517 = vadd.f32 %v1516, %v1194
          %v1518 = vadd.f32 %v1517, %v1195
          %1519 = vadd.xlane.f32.xlu0 %v1518
          %v1520 = vpop.xlane.xlu0 %1519
          %v1521 = vadd.f32 %v1196, %v1197
          %v1522 = vadd.f32 %v1521, %v1198
          %v1523 = vadd.f32 %v1522, %v1199
          %v1524 = vadd.f32 %v1523, %v1200
          %v1525 = vadd.f32 %v1524, %v1201
          %1526 = vadd.xlane.f32.xlu0 %v1525
          %v1527 = vpop.xlane.xlu0 %1526
          %v1528 = vadd.f32 %v1202, %v1203
          %v1529 = vadd.f32 %v1528, %v1204
          %v1530 = vadd.f32 %v1529, %v1205
          %v1531 = vadd.f32 %v1530, %v1206
          %v1532 = vadd.f32 %v1531, %v1207
          %1533 = vadd.xlane.f32.xlu0 %v1532
          %v1534 = vpop.xlane.xlu0 %1533
          %v1535 = vadd.f32 %v1208, %v1209
          %v1536 = vadd.f32 %v1535, %v1210
          %v1537 = vadd.f32 %v1536, %v1211
          %v1538 = vadd.f32 %v1537, %v1212
          %v1539 = vadd.f32 %v1538, %v1213
          %1540 = vadd.xlane.f32.xlu0 %v1539
          %v1541 = vpop.xlane.xlu0 %1540
          %v1542 = vadd.f32 %v1214, %v1215
          %v1543 = vadd.f32 %v1542, %v1216
          %v1544 = vadd.f32 %v1543, %v1217
          %v1545 = vadd.f32 %v1544, %v1218
          %v1546 = vadd.f32 %v1545, %v1219
          %1547 = vadd.xlane.f32.xlu0 %v1546
          %v1548 = vpop.xlane.xlu0 %1547
          %v1549 = vadd.f32 %v1220, %v1221
          %v1550 = vadd.f32 %v1549, %v1222
          %v1551 = vadd.f32 %v1550, %v1223
          %v1552 = vadd.f32 %v1551, %v1224
          %v1553 = vadd.f32 %v1552, %v1225
          %1554 = vadd.xlane.f32.xlu0 %v1553
          %v1555 = vpop.xlane.xlu0 %1554
          %v1556 = vadd.f32 %v1226, %v1227
          %v1557 = vadd.f32 %v1556, %v1228
          %v1558 = vadd.f32 %v1557, %v1229
          %v1559 = vadd.f32 %v1558, %v1230
          %v1560 = vadd.f32 %v1559, %v1231
          %1561 = vadd.xlane.f32.xlu0 %v1560
          %v1562 = vpop.xlane.xlu0 %1561
          %v1563 = vadd.f32 %v1232, %v1233
          %v1564 = vadd.f32 %v1563, %v1234
          %v1565 = vadd.f32 %v1564, %v1235
          %v1566 = vadd.f32 %v1565, %v1236
          %v1567 = vadd.f32 %v1566, %v1237
          %1568 = vadd.xlane.f32.xlu0 %v1567
          %v1569 = vpop.xlane.xlu0 %1568
          %v1570 = vadd.f32 %v1238, %v1239
          %v1571 = vadd.f32 %v1570, %v1240
          %v1572 = vadd.f32 %v1571, %v1241
          %v1573 = vadd.f32 %v1572, %v1242
          %v1574 = vadd.f32 %v1573, %v1243
          %1575 = vadd.xlane.f32.xlu0 %v1574
          %v1576 = vpop.xlane.xlu0 %1575
          %v1577 = vadd.f32 %v1244, %v1245
          %v1578 = vadd.f32 %v1577, %v1246
          %v1579 = vadd.f32 %v1578, %v1247
          %v1580 = vadd.f32 %v1579, %v1248
          %v1581 = vadd.f32 %v1580, %v1249
          %1582 = vadd.xlane.f32.xlu0 %v1581
          %v1583 = vpop.xlane.xlu0 %1582
          %v1584 = vadd.f32 %v1250, %v1251
          %v1585 = vadd.f32 %v1584, %v1252
          %v1586 = vadd.f32 %v1585, %v1253
          %v1587 = vadd.f32 %v1586, %v1254
          %v1588 = vadd.f32 %v1587, %v1255
          %1589 = vadd.xlane.f32.xlu0 %v1588
          %v1590 = vpop.xlane.xlu0 %1589
          %v1591 = vadd.f32 %v1256, %v1257
          %v1592 = vadd.f32 %v1591, %v1258
          %v1593 = vadd.f32 %v1592, %v1259
          %v1594 = vadd.f32 %v1593, %v1260
          %v1595 = vadd.f32 %v1594, %v1261
          %1596 = vadd.xlane.f32.xlu0 %v1595
          %v1597 = vpop.xlane.xlu0 %1596
          %v1598 = vrcp.pop 768.0
          %v1599 = vmul.f32 %v1268, %v1598
          %v1600 = vmul.f32 %v1275, %v1598
          %v1601 = vmul.f32 %v1282, %v1598
          %v1602 = vmul.f32 %v1289, %v1598
          %v1603 = vmul.f32 %v1296, %v1598
          %v1604 = vmul.f32 %v1303, %v1598
          %v1605 = vmul.f32 %v1310, %v1598
          %v1606 = vmul.f32 %v1317, %v1598
          %v1607 = vmul.f32 %v1324, %v1598
          %v1608 = vmul.f32 %v1331, %v1598
          %v1609 = vmul.f32 %v1338, %v1598
          %v1610 = vmul.f32 %v1345, %v1598
          %v1611 = vmul.f32 %v1352, %v1598
          %v1612 = vmul.f32 %v1359, %v1598
          %v1613 = vmul.f32 %v1366, %v1598
          %v1614 = vmul.f32 %v1373, %v1598
          %v1615 = vmul.f32 %v1380, %v1598
          %v1616 = vmul.f32 %v1387, %v1598
          %v1617 = vmul.f32 %v1394, %v1598
          %v1618 = vmul.f32 %v1401, %v1598
          %v1619 = vmul.f32 %v1408, %v1598
          %v1620 = vmul.f32 %v1415, %v1598
          %v1621 = vmul.f32 %v1422, %v1598
          %v1622 = vmul.f32 %v1429, %v1598
          %v1623 = vmul.f32 %v1436, %v1598
          %v1624 = vmul.f32 %v1443, %v1598
          %v1625 = vmul.f32 %v1450, %v1598
          %v1626 = vmul.f32 %v1457, %v1598
          %v1627 = vmul.f32 %v1464, %v1598
          %v1628 = vmul.f32 %v1471, %v1598
          %v1629 = vmul.f32 %v1478, %v1598
          %v1630 = vmul.f32 %v1485, %v1598
          %v1631 = vmul.f32 %v1492, %v1598
          %v1632 = vmul.f32 %v1499, %v1598
          %v1633 = vmul.f32 %v1506, %v1598
          %v1634 = vmul.f32 %v1513, %v1598
          %v1635 = vmul.f32 %v1520, %v1598
          %v1636 = vmul.f32 %v1527, %v1598
          %v1637 = vmul.f32 %v1534, %v1598
          %v1638 = vmul.f32 %v1541, %v1598
          %v1639 = vmul.f32 %v1548, %v1598
          %v1640 = vmul.f32 %v1555, %v1598
          %v1641 = vmul.f32 %v1562, %v1598
          %v1642 = vmul.f32 %v1569, %v1598
          %v1643 = vmul.f32 %v1576, %v1598
          %v1644 = vmul.f32 %v1583, %v1598
          %v1645 = vmul.f32 %v1590, %v1598
          %v1646 = vmul.f32 %v1597, %v1598
          %v1647 = vsub.f32 %v974, %v1599
          %v1648 = vsub.f32 %v975, %v1599
          %v1649 = vsub.f32 %v976, %v1599
          %v1650 = vsub.f32 %v977, %v1599
          %v1651 = vsub.f32 %v978, %v1599
          %v1652 = vsub.f32 %v979, %v1599
          %v1653 = vsub.f32 %v980, %v1600
          %v1654 = vsub.f32 %v981, %v1600
          %v1655 = vsub.f32 %v982, %v1600
          %v1656 = vsub.f32 %v983, %v1600
          %v1657 = vsub.f32 %v984, %v1600
          %v1658 = vsub.f32 %v985, %v1600
          %v1659 = vsub.f32 %v986, %v1601
          %v1660 = vsub.f32 %v987, %v1601
          %v1661 = vsub.f32 %v988, %v1601
          %v1662 = vsub.f32 %v989, %v1601
          %v1663 = vsub.f32 %v990, %v1601
          %v1664 = vsub.f32 %v991, %v1601
          %v1665 = vsub.f32 %v992, %v1602
          %v1666 = vsub.f32 %v993, %v1602
          %v1667 = vsub.f32 %v994, %v1602
          %v1668 = vsub.f32 %v995, %v1602
          %v1669 = vsub.f32 %v996, %v1602
          %v1670 = vsub.f32 %v997, %v1602
          %v1671 = vsub.f32 %v998, %v1603
          %v1672 = vsub.f32 %v999, %v1603
          %v1673 = vsub.f32 %v1000, %v1603
          %v1674 = vsub.f32 %v1001, %v1603
          %v1675 = vsub.f32 %v1002, %v1603
          %v1676 = vsub.f32 %v1003, %v1603
          %v1677 = vsub.f32 %v1004, %v1604
          %v1678 = vsub.f32 %v1005, %v1604
          %v1679 = vsub.f32 %v1006, %v1604
          %v1680 = vsub.f32 %v1007, %v1604
          %v1681 = vsub.f32 %v1008, %v1604
          %v1682 = vsub.f32 %v1009, %v1604
          %v1683 = vsub.f32 %v1010, %v1605
          %v1684 = vsub.f32 %v1011, %v1605
          %v1685 = vsub.f32 %v1012, %v1605
          %v1686 = vsub.f32 %v1013, %v1605
          %v1687 = vsub.f32 %v1014, %v1605
          %v1688 = vsub.f32 %v1015, %v1605
          %v1689 = vsub.f32 %v1016, %v1606
          %v1690 = vsub.f32 %v1017, %v1606
          %v1691 = vsub.f32 %v1018, %v1606
          %v1692 = vsub.f32 %v1019, %v1606
          %v1693 = vsub.f32 %v1020, %v1606
          %v1694 = vsub.f32 %v1021, %v1606
          %v1695 = vsub.f32 %v1022, %v1607
          %v1696 = vsub.f32 %v1023, %v1607
          %v1697 = vsub.f32 %v1024, %v1607
          %v1698 = vsub.f32 %v1025, %v1607
          %v1699 = vsub.f32 %v1026, %v1607
          %v1700 = vsub.f32 %v1027, %v1607
          %v1701 = vsub.f32 %v1028, %v1608
          %v1702 = vsub.f32 %v1029, %v1608
          %v1703 = vsub.f32 %v1030, %v1608
          %v1704 = vsub.f32 %v1031, %v1608
          %v1705 = vsub.f32 %v1032, %v1608
          %v1706 = vsub.f32 %v1033, %v1608
          %v1707 = vsub.f32 %v1034, %v1609
          %v1708 = vsub.f32 %v1035, %v1609
          %v1709 = vsub.f32 %v1036, %v1609
          %v1710 = vsub.f32 %v1037, %v1609
          %v1711 = vsub.f32 %v1038, %v1609
          %v1712 = vsub.f32 %v1039, %v1609
          %v1713 = vsub.f32 %v1040, %v1610
          %v1714 = vsub.f32 %v1041, %v1610
          %v1715 = vsub.f32 %v1042, %v1610
          %v1716 = vsub.f32 %v1043, %v1610
          %v1717 = vsub.f32 %v1044, %v1610
          %v1718 = vsub.f32 %v1045, %v1610
          %v1719 = vsub.f32 %v1046, %v1611
          %v1720 = vsub.f32 %v1047, %v1611
          %v1721 = vsub.f32 %v1048, %v1611
          %v1722 = vsub.f32 %v1049, %v1611
          %v1723 = vsub.f32 %v1050, %v1611
          %v1724 = vsub.f32 %v1051, %v1611
          %v1725 = vsub.f32 %v1052, %v1612
          %v1726 = vsub.f32 %v1053, %v1612
          %v1727 = vsub.f32 %v1054, %v1612
          %v1728 = vsub.f32 %v1055, %v1612
          %v1729 = vsub.f32 %v1056, %v1612
          %v1730 = vsub.f32 %v1057, %v1612
          %v1731 = vsub.f32 %v1058, %v1613
          %v1732 = vsub.f32 %v1059, %v1613
          %v1733 = vsub.f32 %v1060, %v1613
          %v1734 = vsub.f32 %v1061, %v1613
          %v1735 = vsub.f32 %v1062, %v1613
          %v1736 = vsub.f32 %v1063, %v1613
          %v1737 = vsub.f32 %v1064, %v1614
          %v1738 = vsub.f32 %v1065, %v1614
          %v1739 = vsub.f32 %v1066, %v1614
          %v1740 = vsub.f32 %v1067, %v1614
          %v1741 = vsub.f32 %v1068, %v1614
          %v1742 = vsub.f32 %v1069, %v1614
          %v1743 = vsub.f32 %v1070, %v1615
          %v1744 = vsub.f32 %v1071, %v1615
          %v1745 = vsub.f32 %v1072, %v1615
          %v1746 = vsub.f32 %v1073, %v1615
          %v1747 = vsub.f32 %v1074, %v1615
          %v1748 = vsub.f32 %v1075, %v1615
          %v1749 = vsub.f32 %v1076, %v1616
          %v1750 = vsub.f32 %v1077, %v1616
          %v1751 = vsub.f32 %v1078, %v1616
          %v1752 = vsub.f32 %v1079, %v1616
          %v1753 = vsub.f32 %v1080, %v1616
          %v1754 = vsub.f32 %v1081, %v1616
          %v1755 = vsub.f32 %v1082, %v1617
          %v1756 = vsub.f32 %v1083, %v1617
          %v1757 = vsub.f32 %v1084, %v1617
          %v1758 = vsub.f32 %v1085, %v1617
          %v1759 = vsub.f32 %v1086, %v1617
          %v1760 = vsub.f32 %v1087, %v1617
          %v1761 = vsub.f32 %v1088, %v1618
          %v1762 = vsub.f32 %v1089, %v1618
          %v1763 = vsub.f32 %v1090, %v1618
          %v1764 = vsub.f32 %v1091, %v1618
          %v1765 = vsub.f32 %v1092, %v1618
          %v1766 = vsub.f32 %v1093, %v1618
          %v1767 = vsub.f32 %v1094, %v1619
          %v1768 = vsub.f32 %v1095, %v1619
          %v1769 = vsub.f32 %v1096, %v1619
          %v1770 = vsub.f32 %v1097, %v1619
          %v1771 = vsub.f32 %v1098, %v1619
          %v1772 = vsub.f32 %v1099, %v1619
          %v1773 = vsub.f32 %v1100, %v1620
          %v1774 = vsub.f32 %v1101, %v1620
          %v1775 = vsub.f32 %v1102, %v1620
          %v1776 = vsub.f32 %v1103, %v1620
          %v1777 = vsub.f32 %v1104, %v1620
          %v1778 = vsub.f32 %v1105, %v1620
          %v1779 = vsub.f32 %v1106, %v1621
          %v1780 = vsub.f32 %v1107, %v1621
          %v1781 = vsub.f32 %v1108, %v1621
          %v1782 = vsub.f32 %v1109, %v1621
          %v1783 = vsub.f32 %v1110, %v1621
          %v1784 = vsub.f32 %v1111, %v1621
          %v1785 = vsub.f32 %v1112, %v1622
          %v1786 = vsub.f32 %v1113, %v1622
          %v1787 = vsub.f32 %v1114, %v1622
          %v1788 = vsub.f32 %v1115, %v1622
          %v1789 = vsub.f32 %v1116, %v1622
          %v1790 = vsub.f32 %v1117, %v1622
          %v1791 = vsub.f32 %v1118, %v1623
          %v1792 = vsub.f32 %v1119, %v1623
          %v1793 = vsub.f32 %v1120, %v1623
          %v1794 = vsub.f32 %v1121, %v1623
          %v1795 = vsub.f32 %v1122, %v1623
          %v1796 = vsub.f32 %v1123, %v1623
          %v1797 = vsub.f32 %v1124, %v1624
          %v1798 = vsub.f32 %v1125, %v1624
          %v1799 = vsub.f32 %v1126, %v1624
          %v1800 = vsub.f32 %v1127, %v1624
          %v1801 = vsub.f32 %v1128, %v1624
          %v1802 = vsub.f32 %v1129, %v1624
          %v1803 = vsub.f32 %v1130, %v1625
          %v1804 = vsub.f32 %v1131, %v1625
          %v1805 = vsub.f32 %v1132, %v1625
          %v1806 = vsub.f32 %v1133, %v1625
          %v1807 = vsub.f32 %v1134, %v1625
          %v1808 = vsub.f32 %v1135, %v1625
          %v1809 = vsub.f32 %v1136, %v1626
          %v1810 = vsub.f32 %v1137, %v1626
          %v1811 = vsub.f32 %v1138, %v1626
          %v1812 = vsub.f32 %v1139, %v1626
          %v1813 = vsub.f32 %v1140, %v1626
          %v1814 = vsub.f32 %v1141, %v1626
          %v1815 = vsub.f32 %v1142, %v1627
          %v1816 = vsub.f32 %v1143, %v1627
          %v1817 = vsub.f32 %v1144, %v1627
          %v1818 = vsub.f32 %v1145, %v1627
          %v1819 = vsub.f32 %v1146, %v1627
          %v1820 = vsub.f32 %v1147, %v1627
          %v1821 = vsub.f32 %v1148, %v1628
          %v1822 = vsub.f32 %v1149, %v1628
          %v1823 = vsub.f32 %v1150, %v1628
          %v1824 = vsub.f32 %v1151, %v1628
          %v1825 = vsub.f32 %v1152, %v1628
          %v1826 = vsub.f32 %v1153, %v1628
          %v1827 = vsub.f32 %v1154, %v1629
          %v1828 = vsub.f32 %v1155, %v1629
          %v1829 = vsub.f32 %v1156, %v1629
          %v1830 = vsub.f32 %v1157, %v1629
          %v1831 = vsub.f32 %v1158, %v1629
          %v1832 = vsub.f32 %v1159, %v1629
          %v1833 = vsub.f32 %v1160, %v1630
          %v1834 = vsub.f32 %v1161, %v1630
          %v1835 = vsub.f32 %v1162, %v1630
          %v1836 = vsub.f32 %v1163, %v1630
          %v1837 = vsub.f32 %v1164, %v1630
          %v1838 = vsub.f32 %v1165, %v1630
          %v1839 = vsub.f32 %v1166, %v1631
          %v1840 = vsub.f32 %v1167, %v1631
          %v1841 = vsub.f32 %v1168, %v1631
          %v1842 = vsub.f32 %v1169, %v1631
          %v1843 = vsub.f32 %v1170, %v1631
          %v1844 = vsub.f32 %v1171, %v1631
          %v1845 = vsub.f32 %v1172, %v1632
          %v1846 = vsub.f32 %v1173, %v1632
          %v1847 = vsub.f32 %v1174, %v1632
          %v1848 = vsub.f32 %v1175, %v1632
          %v1849 = vsub.f32 %v1176, %v1632
          %v1850 = vsub.f32 %v1177, %v1632
          %v1851 = vsub.f32 %v1178, %v1633
          %v1852 = vsub.f32 %v1179, %v1633
          %v1853 = vsub.f32 %v1180, %v1633
          %v1854 = vsub.f32 %v1181, %v1633
          %v1855 = vsub.f32 %v1182, %v1633
          %v1856 = vsub.f32 %v1183, %v1633
          %v1857 = vsub.f32 %v1184, %v1634
          %v1858 = vsub.f32 %v1185, %v1634
          %v1859 = vsub.f32 %v1186, %v1634
          %v1860 = vsub.f32 %v1187, %v1634
          %v1861 = vsub.f32 %v1188, %v1634
          %v1862 = vsub.f32 %v1189, %v1634
          %v1863 = vsub.f32 %v1190, %v1635
          %v1864 = vsub.f32 %v1191, %v1635
          %v1865 = vsub.f32 %v1192, %v1635
          %v1866 = vsub.f32 %v1193, %v1635
          %v1867 = vsub.f32 %v1194, %v1635
          %v1868 = vsub.f32 %v1195, %v1635
          %v1869 = vsub.f32 %v1196, %v1636
          %v1870 = vsub.f32 %v1197, %v1636
          %v1871 = vsub.f32 %v1198, %v1636
          %v1872 = vsub.f32 %v1199, %v1636
          %v1873 = vsub.f32 %v1200, %v1636
          %v1874 = vsub.f32 %v1201, %v1636
          %v1875 = vsub.f32 %v1202, %v1637
          %v1876 = vsub.f32 %v1203, %v1637
          %v1877 = vsub.f32 %v1204, %v1637
          %v1878 = vsub.f32 %v1205, %v1637
          %v1879 = vsub.f32 %v1206, %v1637
          %v1880 = vsub.f32 %v1207, %v1637
          %v1881 = vsub.f32 %v1208, %v1638
          %v1882 = vsub.f32 %v1209, %v1638
          %v1883 = vsub.f32 %v1210, %v1638
          %v1884 = vsub.f32 %v1211, %v1638
          %v1885 = vsub.f32 %v1212, %v1638
          %v1886 = vsub.f32 %v1213, %v1638
          %v1887 = vsub.f32 %v1214, %v1639
          %v1888 = vsub.f32 %v1215, %v1639
          %v1889 = vsub.f32 %v1216, %v1639
          %v1890 = vsub.f32 %v1217, %v1639
          %v1891 = vsub.f32 %v1218, %v1639
          %v1892 = vsub.f32 %v1219, %v1639
          %v1893 = vsub.f32 %v1220, %v1640
          %v1894 = vsub.f32 %v1221, %v1640
          %v1895 = vsub.f32 %v1222, %v1640
          %v1896 = vsub.f32 %v1223, %v1640
          %v1897 = vsub.f32 %v1224, %v1640
          %v1898 = vsub.f32 %v1225, %v1640
          %v1899 = vsub.f32 %v1226, %v1641
          %v1900 = vsub.f32 %v1227, %v1641
          %v1901 = vsub.f32 %v1228, %v1641
          %v1902 = vsub.f32 %v1229, %v1641
          %v1903 = vsub.f32 %v1230, %v1641
          %v1904 = vsub.f32 %v1231, %v1641
          %v1905 = vsub.f32 %v1232, %v1642
          %v1906 = vsub.f32 %v1233, %v1642
          %v1907 = vsub.f32 %v1234, %v1642
          %v1908 = vsub.f32 %v1235, %v1642
          %v1909 = vsub.f32 %v1236, %v1642
          %v1910 = vsub.f32 %v1237, %v1642
          %v1911 = vsub.f32 %v1238, %v1643
          %v1912 = vsub.f32 %v1239, %v1643
          %v1913 = vsub.f32 %v1240, %v1643
          %v1914 = vsub.f32 %v1241, %v1643
          %v1915 = vsub.f32 %v1242, %v1643
          %v1916 = vsub.f32 %v1243, %v1643
          %v1917 = vsub.f32 %v1244, %v1644
          %v1918 = vsub.f32 %v1245, %v1644
          %v1919 = vsub.f32 %v1246, %v1644
          %v1920 = vsub.f32 %v1247, %v1644
          %v1921 = vsub.f32 %v1248, %v1644
          %v1922 = vsub.f32 %v1249, %v1644
          %v1923 = vsub.f32 %v1250, %v1645
          %v1924 = vsub.f32 %v1251, %v1645
          %v1925 = vsub.f32 %v1252, %v1645
          %v1926 = vsub.f32 %v1253, %v1645
          %v1927 = vsub.f32 %v1254, %v1645
          %v1928 = vsub.f32 %v1255, %v1645
          %v1929 = vsub.f32 %v1256, %v1646
          %v1930 = vsub.f32 %v1257, %v1646
          %v1931 = vsub.f32 %v1258, %v1646
          %v1932 = vsub.f32 %v1259, %v1646
          %v1933 = vsub.f32 %v1260, %v1646
          %v1934 = vsub.f32 %v1261, %v1646
          %v1935 = vmul.f32 %v1647, %v1647
          %v1936 = vmul.f32 %v1648, %v1648
          %v1937 = vmul.f32 %v1649, %v1649
          %v1938 = vmul.f32 %v1650, %v1650
          %v1939 = vmul.f32 %v1651, %v1651
          %v1940 = vmul.f32 %v1652, %v1652
          %v1941 = vmul.f32 %v1653, %v1653
          %v1942 = vmul.f32 %v1654, %v1654
          %v1943 = vmul.f32 %v1655, %v1655
          %v1944 = vmul.f32 %v1656, %v1656
          %v1945 = vmul.f32 %v1657, %v1657
          %v1946 = vmul.f32 %v1658, %v1658
          %v1947 = vmul.f32 %v1659, %v1659
          %v1948 = vmul.f32 %v1660, %v1660
          %v1949 = vmul.f32 %v1661, %v1661
          %v1950 = vmul.f32 %v1662, %v1662
          %v1951 = vmul.f32 %v1663, %v1663
          %v1952 = vmul.f32 %v1664, %v1664
          %v1953 = vmul.f32 %v1665, %v1665
          %v1954 = vmul.f32 %v1666, %v1666
          %v1955 = vmul.f32 %v1667, %v1667
          %v1956 = vmul.f32 %v1668, %v1668
          %v1957 = vmul.f32 %v1669, %v1669
          %v1958 = vmul.f32 %v1670, %v1670
          %v1959 = vmul.f32 %v1671, %v1671
          %v1960 = vmul.f32 %v1672, %v1672
          %v1961 = vmul.f32 %v1673, %v1673
          %v1962 = vmul.f32 %v1674, %v1674
          %v1963 = vmul.f32 %v1675, %v1675
          %v1964 = vmul.f32 %v1676, %v1676
          %v1965 = vmul.f32 %v1677, %v1677
          %v1966 = vmul.f32 %v1678, %v1678
          %v1967 = vmul.f32 %v1679, %v1679
          %v1968 = vmul.f32 %v1680, %v1680
          %v1969 = vmul.f32 %v1681, %v1681
          %v1970 = vmul.f32 %v1682, %v1682
          %v1971 = vmul.f32 %v1683, %v1683
          %v1972 = vmul.f32 %v1684, %v1684
          %v1973 = vmul.f32 %v1685, %v1685
          %v1974 = vmul.f32 %v1686, %v1686
          %v1975 = vmul.f32 %v1687, %v1687
          %v1976 = vmul.f32 %v1688, %v1688
          %v1977 = vmul.f32 %v1689, %v1689
          %v1978 = vmul.f32 %v1690, %v1690
          %v1979 = vmul.f32 %v1691, %v1691
          %v1980 = vmul.f32 %v1692, %v1692
          %v1981 = vmul.f32 %v1693, %v1693
          %v1982 = vmul.f32 %v1694, %v1694
          %v1983 = vmul.f32 %v1695, %v1695
          %v1984 = vmul.f32 %v1696, %v1696
          %v1985 = vmul.f32 %v1697, %v1697
          %v1986 = vmul.f32 %v1698, %v1698
          %v1987 = vmul.f32 %v1699, %v1699
          %v1988 = vmul.f32 %v1700, %v1700
          %v1989 = vmul.f32 %v1701, %v1701
          %v1990 = vmul.f32 %v1702, %v1702
          %v1991 = vmul.f32 %v1703, %v1703
          %v1992 = vmul.f32 %v1704, %v1704
          %v1993 = vmul.f32 %v1705, %v1705
          %v1994 = vmul.f32 %v1706, %v1706
          %v1995 = vmul.f32 %v1707, %v1707
          %v1996 = vmul.f32 %v1708, %v1708
          %v1997 = vmul.f32 %v1709, %v1709
          %v1998 = vmul.f32 %v1710, %v1710
          %v1999 = vmul.f32 %v1711, %v1711
          %v2000 = vmul.f32 %v1712, %v1712
          %v2001 = vmul.f32 %v1713, %v1713
          %v2002 = vmul.f32 %v1714, %v1714
          %v2003 = vmul.f32 %v1715, %v1715
          %v2004 = vmul.f32 %v1716, %v1716
          %v2005 = vmul.f32 %v1717, %v1717
          %v2006 = vmul.f32 %v1718, %v1718
          %v2007 = vmul.f32 %v1719, %v1719
          %v2008 = vmul.f32 %v1720, %v1720
          %v2009 = vmul.f32 %v1721, %v1721
          %v2010 = vmul.f32 %v1722, %v1722
          %v2011 = vmul.f32 %v1723, %v1723
          %v2012 = vmul.f32 %v1724, %v1724
          %v2013 = vmul.f32 %v1725, %v1725
          %v2014 = vmul.f32 %v1726, %v1726
          %v2015 = vmul.f32 %v1727, %v1727
          %v2016 = vmul.f32 %v1728, %v1728
          %v2017 = vmul.f32 %v1729, %v1729
          %v2018 = vmul.f32 %v1730, %v1730
          %v2019 = vmul.f32 %v1731, %v1731
          %v2020 = vmul.f32 %v1732, %v1732
          %v2021 = vmul.f32 %v1733, %v1733
          %v2022 = vmul.f32 %v1734, %v1734
          %v2023 = vmul.f32 %v1735, %v1735
          %v2024 = vmul.f32 %v1736, %v1736
          %v2025 = vmul.f32 %v1737, %v1737
          %v2026 = vmul.f32 %v1738, %v1738
          %v2027 = vmul.f32 %v1739, %v1739
          %v2028 = vmul.f32 %v1740, %v1740
          %v2029 = vmul.f32 %v1741, %v1741
          %v2030 = vmul.f32 %v1742, %v1742
          %v2031 = vmul.f32 %v1743, %v1743
          %v2032 = vmul.f32 %v1744, %v1744
          %v2033 = vmul.f32 %v1745, %v1745
          %v2034 = vmul.f32 %v1746, %v1746
          %v2035 = vmul.f32 %v1747, %v1747
          %v2036 = vmul.f32 %v1748, %v1748
          %v2037 = vmul.f32 %v1749, %v1749
          %v2038 = vmul.f32 %v1750, %v1750
          %v2039 = vmul.f32 %v1751, %v1751
          %v2040 = vmul.f32 %v1752, %v1752
          %v2041 = vmul.f32 %v1753, %v1753
          %v2042 = vmul.f32 %v1754, %v1754
          %v2043 = vmul.f32 %v1755, %v1755
          %v2044 = vmul.f32 %v1756, %v1756
          %v2045 = vmul.f32 %v1757, %v1757
          %v2046 = vmul.f32 %v1758, %v1758
          %v2047 = vmul.f32 %v1759, %v1759
          %v2048 = vmul.f32 %v1760, %v1760
          %v2049 = vmul.f32 %v1761, %v1761
          %v2050 = vmul.f32 %v1762, %v1762
          %v2051 = vmul.f32 %v1763, %v1763
          %v2052 = vmul.f32 %v1764, %v1764
          %v2053 = vmul.f32 %v1765, %v1765
          %v2054 = vmul.f32 %v1766, %v1766
          %v2055 = vmul.f32 %v1767, %v1767
          %v2056 = vmul.f32 %v1768, %v1768
          %v2057 = vmul.f32 %v1769, %v1769
          %v2058 = vmul.f32 %v1770, %v1770
          %v2059 = vmul.f32 %v1771, %v1771
          %v2060 = vmul.f32 %v1772, %v1772
          %v2061 = vmul.f32 %v1773, %v1773
          %v2062 = vmul.f32 %v1774, %v1774
          %v2063 = vmul.f32 %v1775, %v1775
          %v2064 = vmul.f32 %v1776, %v1776
          %v2065 = vmul.f32 %v1777, %v1777
          %v2066 = vmul.f32 %v1778, %v1778
          %v2067 = vmul.f32 %v1779, %v1779
          %v2068 = vmul.f32 %v1780, %v1780
          %v2069 = vmul.f32 %v1781, %v1781
          %v2070 = vmul.f32 %v1782, %v1782
          %v2071 = vmul.f32 %v1783, %v1783
          %v2072 = vmul.f32 %v1784, %v1784
          %v2073 = vmul.f32 %v1785, %v1785
          %v2074 = vmul.f32 %v1786, %v1786
          %v2075 = vmul.f32 %v1787, %v1787
          %v2076 = vmul.f32 %v1788, %v1788
          %v2077 = vmul.f32 %v1789, %v1789
          %v2078 = vmul.f32 %v1790, %v1790
          %v2079 = vmul.f32 %v1791, %v1791
          %v2080 = vmul.f32 %v1792, %v1792
          %v2081 = vmul.f32 %v1793, %v1793
          %v2082 = vmul.f32 %v1794, %v1794
          %v2083 = vmul.f32 %v1795, %v1795
          %v2084 = vmul.f32 %v1796, %v1796
          %v2085 = vmul.f32 %v1797, %v1797
          %v2086 = vmul.f32 %v1798, %v1798
          %v2087 = vmul.f32 %v1799, %v1799
          %v2088 = vmul.f32 %v1800, %v1800
          %v2089 = vmul.f32 %v1801, %v1801
          %v2090 = vmul.f32 %v1802, %v1802
          %v2091 = vmul.f32 %v1803, %v1803
          %v2092 = vmul.f32 %v1804, %v1804
          %v2093 = vmul.f32 %v1805, %v1805
          %v2094 = vmul.f32 %v1806, %v1806
          %v2095 = vmul.f32 %v1807, %v1807
          %v2096 = vmul.f32 %v1808, %v1808
          %v2097 = vmul.f32 %v1809, %v1809
          %v2098 = vmul.f32 %v1810, %v1810
          %v2099 = vmul.f32 %v1811, %v1811
          %v2100 = vmul.f32 %v1812, %v1812
          %v2101 = vmul.f32 %v1813, %v1813
          %v2102 = vmul.f32 %v1814, %v1814
          %v2103 = vmul.f32 %v1815, %v1815
          %v2104 = vmul.f32 %v1816, %v1816
          %v2105 = vmul.f32 %v1817, %v1817
          %v2106 = vmul.f32 %v1818, %v1818
          %v2107 = vmul.f32 %v1819, %v1819
          %v2108 = vmul.f32 %v1820, %v1820
          %v2109 = vmul.f32 %v1821, %v1821
          %v2110 = vmul.f32 %v1822, %v1822
          %v2111 = vmul.f32 %v1823, %v1823
          %v2112 = vmul.f32 %v1824, %v1824
          %v2113 = vmul.f32 %v1825, %v1825
          %v2114 = vmul.f32 %v1826, %v1826
          %v2115 = vmul.f32 %v1827, %v1827
          %v2116 = vmul.f32 %v1828, %v1828
          %v2117 = vmul.f32 %v1829, %v1829
          %v2118 = vmul.f32 %v1830, %v1830
          %v2119 = vmul.f32 %v1831, %v1831
          %v2120 = vmul.f32 %v1832, %v1832
          %v2121 = vmul.f32 %v1833, %v1833
          %v2122 = vmul.f32 %v1834, %v1834
          %v2123 = vmul.f32 %v1835, %v1835
          %v2124 = vmul.f32 %v1836, %v1836
          %v2125 = vmul.f32 %v1837, %v1837
          %v2126 = vmul.f32 %v1838, %v1838
          %v2127 = vmul.f32 %v1839, %v1839
          %v2128 = vmul.f32 %v1840, %v1840
          %v2129 = vmul.f32 %v1841, %v1841
          %v2130 = vmul.f32 %v1842, %v1842
          %v2131 = vmul.f32 %v1843, %v1843
          %v2132 = vmul.f32 %v1844, %v1844
          %v2133 = vmul.f32 %v1845, %v1845
          %v2134 = vmul.f32 %v1846, %v1846
          %v2135 = vmul.f32 %v1847, %v1847
          %v2136 = vmul.f32 %v1848, %v1848
          %v2137 = vmul.f32 %v1849, %v1849
          %v2138 = vmul.f32 %v1850, %v1850
          %v2139 = vmul.f32 %v1851, %v1851
          %v2140 = vmul.f32 %v1852, %v1852
          %v2141 = vmul.f32 %v1853, %v1853
          %v2142 = vmul.f32 %v1854, %v1854
          %v2143 = vmul.f32 %v1855, %v1855
          %v2144 = vmul.f32 %v1856, %v1856
          %v2145 = vmul.f32 %v1857, %v1857
          %v2146 = vmul.f32 %v1858, %v1858
          %v2147 = vmul.f32 %v1859, %v1859
          %v2148 = vmul.f32 %v1860, %v1860
          %v2149 = vmul.f32 %v1861, %v1861
          %v2150 = vmul.f32 %v1862, %v1862
          %v2151 = vmul.f32 %v1863, %v1863
          %v2152 = vmul.f32 %v1864, %v1864
          %v2153 = vmul.f32 %v1865, %v1865
          %v2154 = vmul.f32 %v1866, %v1866
          %v2155 = vmul.f32 %v1867, %v1867
          %v2156 = vmul.f32 %v1868, %v1868
          %v2157 = vmul.f32 %v1869, %v1869
          %v2158 = vmul.f32 %v1870, %v1870
          %v2159 = vmul.f32 %v1871, %v1871
          %v2160 = vmul.f32 %v1872, %v1872
          %v2161 = vmul.f32 %v1873, %v1873
          %v2162 = vmul.f32 %v1874, %v1874
          %v2163 = vmul.f32 %v1875, %v1875
          %v2164 = vmul.f32 %v1876, %v1876
          %v2165 = vmul.f32 %v1877, %v1877
          %v2166 = vmul.f32 %v1878, %v1878
          %v2167 = vmul.f32 %v1879, %v1879
          %v2168 = vmul.f32 %v1880, %v1880
          %v2169 = vmul.f32 %v1881, %v1881
          %v2170 = vmul.f32 %v1882, %v1882
          %v2171 = vmul.f32 %v1883, %v1883
          %v2172 = vmul.f32 %v1884, %v1884
          %v2173 = vmul.f32 %v1885, %v1885
          %v2174 = vmul.f32 %v1886, %v1886
          %v2175 = vmul.f32 %v1887, %v1887
          %v2176 = vmul.f32 %v1888, %v1888
          %v2177 = vmul.f32 %v1889, %v1889
          %v2178 = vmul.f32 %v1890, %v1890
          %v2179 = vmul.f32 %v1891, %v1891
          %v2180 = vmul.f32 %v1892, %v1892
          %v2181 = vmul.f32 %v1893, %v1893
          %v2182 = vmul.f32 %v1894, %v1894
          %v2183 = vmul.f32 %v1895, %v1895
          %v2184 = vmul.f32 %v1896, %v1896
          %v2185 = vmul.f32 %v1897, %v1897
          %v2186 = vmul.f32 %v1898, %v1898
          %v2187 = vmul.f32 %v1899, %v1899
          %v2188 = vmul.f32 %v1900, %v1900
          %v2189 = vmul.f32 %v1901, %v1901
          %v2190 = vmul.f32 %v1902, %v1902
          %v2191 = vmul.f32 %v1903, %v1903
          %v2192 = vmul.f32 %v1904, %v1904
          %v2193 = vmul.f32 %v1905, %v1905
          %v2194 = vmul.f32 %v1906, %v1906
          %v2195 = vmul.f32 %v1907, %v1907
          %v2196 = vmul.f32 %v1908, %v1908
          %v2197 = vmul.f32 %v1909, %v1909
          %v2198 = vmul.f32 %v1910, %v1910
          %v2199 = vmul.f32 %v1911, %v1911
          %v2200 = vmul.f32 %v1912, %v1912
          %v2201 = vmul.f32 %v1913, %v1913
          %v2202 = vmul.f32 %v1914, %v1914
          %v2203 = vmul.f32 %v1915, %v1915
          %v2204 = vmul.f32 %v1916, %v1916
          %v2205 = vmul.f32 %v1917, %v1917
          %v2206 = vmul.f32 %v1918, %v1918
          %v2207 = vmul.f32 %v1919, %v1919
          %v2208 = vmul.f32 %v1920, %v1920
          %v2209 = vmul.f32 %v1921, %v1921
          %v2210 = vmul.f32 %v1922, %v1922
          %v2211 = vmul.f32 %v1923, %v1923
          %v2212 = vmul.f32 %v1924, %v1924
          %v2213 = vmul.f32 %v1925, %v1925
          %v2214 = vmul.f32 %v1926, %v1926
          %v2215 = vmul.f32 %v1927, %v1927
          %v2216 = vmul.f32 %v1928, %v1928
          %v2217 = vmul.f32 %v1929, %v1929
          %v2218 = vmul.f32 %v1930, %v1930
          %v2219 = vmul.f32 %v1931, %v1931
          %v2220 = vmul.f32 %v1932, %v1932
          %v2221 = vmul.f32 %v1933, %v1933
          %v2222 = vmul.f32 %v1934, %v1934
          %v2223 = vadd.f32 %v1935, %v1936
          %v2224 = vadd.f32 %v2223, %v1937
          %v2225 = vadd.f32 %v2224, %v1938
          %v2226 = vadd.f32 %v2225, %v1939
          %v2227 = vadd.f32 %v2226, %v1940
          %2228 = vadd.xlane.f32.xlu0 %v2227
          %v2229 = vpop.xlane.xlu0 %2228
          %v2230 = vadd.f32 %v1941, %v1942
          %v2231 = vadd.f32 %v2230, %v1943
          %v2232 = vadd.f32 %v2231, %v1944
          %v2233 = vadd.f32 %v2232, %v1945
          %v2234 = vadd.f32 %v2233, %v1946
          %2235 = vadd.xlane.f32.xlu0 %v2234
          %v2236 = vpop.xlane.xlu0 %2235
          %v2237 = vadd.f32 %v1947, %v1948
          %v2238 = vadd.f32 %v2237, %v1949
          %v2239 = vadd.f32 %v2238, %v1950
          %v2240 = vadd.f32 %v2239, %v1951
          %v2241 = vadd.f32 %v2240, %v1952
          %2242 = vadd.xlane.f32.xlu0 %v2241
          %v2243 = vpop.xlane.xlu0 %2242
          %v2244 = vadd.f32 %v1953, %v1954
          %v2245 = vadd.f32 %v2244, %v1955
          %v2246 = vadd.f32 %v2245, %v1956
          %v2247 = vadd.f32 %v2246, %v1957
          %v2248 = vadd.f32 %v2247, %v1958
          %2249 = vadd.xlane.f32.xlu0 %v2248
          %v2250 = vpop.xlane.xlu0 %2249
          %v2251 = vadd.f32 %v1959, %v1960
          %v2252 = vadd.f32 %v2251, %v1961
          %v2253 = vadd.f32 %v2252, %v1962
          %v2254 = vadd.f32 %v2253, %v1963
          %v2255 = vadd.f32 %v2254, %v1964
          %2256 = vadd.xlane.f32.xlu0 %v2255
          %v2257 = vpop.xlane.xlu0 %2256
          %v2258 = vadd.f32 %v1965, %v1966
          %v2259 = vadd.f32 %v2258, %v1967
          %v2260 = vadd.f32 %v2259, %v1968
          %v2261 = vadd.f32 %v2260, %v1969
          %v2262 = vadd.f32 %v2261, %v1970
          %2263 = vadd.xlane.f32.xlu0 %v2262
          %v2264 = vpop.xlane.xlu0 %2263
          %v2265 = vadd.f32 %v1971, %v1972
          %v2266 = vadd.f32 %v2265, %v1973
          %v2267 = vadd.f32 %v2266, %v1974
          %v2268 = vadd.f32 %v2267, %v1975
          %v2269 = vadd.f32 %v2268, %v1976
          %2270 = vadd.xlane.f32.xlu0 %v2269
          %v2271 = vpop.xlane.xlu0 %2270
          %v2272 = vadd.f32 %v1977, %v1978
          %v2273 = vadd.f32 %v2272, %v1979
          %v2274 = vadd.f32 %v2273, %v1980
          %v2275 = vadd.f32 %v2274, %v1981
          %v2276 = vadd.f32 %v2275, %v1982
          %2277 = vadd.xlane.f32.xlu0 %v2276
          %v2278 = vpop.xlane.xlu0 %2277
          %v2279 = vadd.f32 %v1983, %v1984
          %v2280 = vadd.f32 %v2279, %v1985
          %v2281 = vadd.f32 %v2280, %v1986
          %v2282 = vadd.f32 %v2281, %v1987
          %v2283 = vadd.f32 %v2282, %v1988
          %2284 = vadd.xlane.f32.xlu0 %v2283
          %v2285 = vpop.xlane.xlu0 %2284
          %v2286 = vadd.f32 %v1989, %v1990
          %v2287 = vadd.f32 %v2286, %v1991
          %v2288 = vadd.f32 %v2287, %v1992
          %v2289 = vadd.f32 %v2288, %v1993
          %v2290 = vadd.f32 %v2289, %v1994
          %2291 = vadd.xlane.f32.xlu0 %v2290
          %v2292 = vpop.xlane.xlu0 %2291
          %v2293 = vadd.f32 %v1995, %v1996
          %v2294 = vadd.f32 %v2293, %v1997
          %v2295 = vadd.f32 %v2294, %v1998
          %v2296 = vadd.f32 %v2295, %v1999
          %v2297 = vadd.f32 %v2296, %v2000
          %2298 = vadd.xlane.f32.xlu0 %v2297
          %v2299 = vpop.xlane.xlu0 %2298
          %v2300 = vadd.f32 %v2001, %v2002
          %v2301 = vadd.f32 %v2300, %v2003
          %v2302 = vadd.f32 %v2301, %v2004
          %v2303 = vadd.f32 %v2302, %v2005
          %v2304 = vadd.f32 %v2303, %v2006
          %2305 = vadd.xlane.f32.xlu0 %v2304
          %v2306 = vpop.xlane.xlu0 %2305
          %v2307 = vadd.f32 %v2007, %v2008
          %v2308 = vadd.f32 %v2307, %v2009
          %v2309 = vadd.f32 %v2308, %v2010
          %v2310 = vadd.f32 %v2309, %v2011
          %v2311 = vadd.f32 %v2310, %v2012
          %2312 = vadd.xlane.f32.xlu0 %v2311
          %v2313 = vpop.xlane.xlu0 %2312
          %v2314 = vadd.f32 %v2013, %v2014
          %v2315 = vadd.f32 %v2314, %v2015
          %v2316 = vadd.f32 %v2315, %v2016
          %v2317 = vadd.f32 %v2316, %v2017
          %v2318 = vadd.f32 %v2317, %v2018
          %2319 = vadd.xlane.f32.xlu0 %v2318
          %v2320 = vpop.xlane.xlu0 %2319
          %v2321 = vadd.f32 %v2019, %v2020
          %v2322 = vadd.f32 %v2321, %v2021
          %v2323 = vadd.f32 %v2322, %v2022
          %v2324 = vadd.f32 %v2323, %v2023
          %v2325 = vadd.f32 %v2324, %v2024
          %2326 = vadd.xlane.f32.xlu0 %v2325
          %v2327 = vpop.xlane.xlu0 %2326
          %v2328 = vadd.f32 %v2025, %v2026
          %v2329 = vadd.f32 %v2328, %v2027
          %v2330 = vadd.f32 %v2329, %v2028
          %v2331 = vadd.f32 %v2330, %v2029
          %v2332 = vadd.f32 %v2331, %v2030
          %2333 = vadd.xlane.f32.xlu0 %v2332
          %v2334 = vpop.xlane.xlu0 %2333
          %v2335 = vadd.f32 %v2031, %v2032
          %v2336 = vadd.f32 %v2335, %v2033
          %v2337 = vadd.f32 %v2336, %v2034
          %v2338 = vadd.f32 %v2337, %v2035
          %v2339 = vadd.f32 %v2338, %v2036
          %2340 = vadd.xlane.f32.xlu0 %v2339
          %v2341 = vpop.xlane.xlu0 %2340
          %v2342 = vadd.f32 %v2037, %v2038
          %v2343 = vadd.f32 %v2342, %v2039
          %v2344 = vadd.f32 %v2343, %v2040
          %v2345 = vadd.f32 %v2344, %v2041
          %v2346 = vadd.f32 %v2345, %v2042
          %2347 = vadd.xlane.f32.xlu0 %v2346
          %v2348 = vpop.xlane.xlu0 %2347
          %v2349 = vadd.f32 %v2043, %v2044
          %v2350 = vadd.f32 %v2349, %v2045
          %v2351 = vadd.f32 %v2350, %v2046
          %v2352 = vadd.f32 %v2351, %v2047
          %v2353 = vadd.f32 %v2352, %v2048
          %2354 = vadd.xlane.f32.xlu0 %v2353
          %v2355 = vpop.xlane.xlu0 %2354
          %v2356 = vadd.f32 %v2049, %v2050
          %v2357 = vadd.f32 %v2356, %v2051
          %v2358 = vadd.f32 %v2357, %v2052
          %v2359 = vadd.f32 %v2358, %v2053
          %v2360 = vadd.f32 %v2359, %v2054
          %2361 = vadd.xlane.f32.xlu0 %v2360
          %v2362 = vpop.xlane.xlu0 %2361
          %v2363 = vadd.f32 %v2055, %v2056
          %v2364 = vadd.f32 %v2363, %v2057
          %v2365 = vadd.f32 %v2364, %v2058
          %v2366 = vadd.f32 %v2365, %v2059
          %v2367 = vadd.f32 %v2366, %v2060
          %2368 = vadd.xlane.f32.xlu0 %v2367
          %v2369 = vpop.xlane.xlu0 %2368
          %v2370 = vadd.f32 %v2061, %v2062
          %v2371 = vadd.f32 %v2370, %v2063
          %v2372 = vadd.f32 %v2371, %v2064
          %v2373 = vadd.f32 %v2372, %v2065
          %v2374 = vadd.f32 %v2373, %v2066
          %2375 = vadd.xlane.f32.xlu0 %v2374
          %v2376 = vpop.xlane.xlu0 %2375
          %v2377 = vadd.f32 %v2067, %v2068
          %v2378 = vadd.f32 %v2377, %v2069
          %v2379 = vadd.f32 %v2378, %v2070
          %v2380 = vadd.f32 %v2379, %v2071
          %v2381 = vadd.f32 %v2380, %v2072
          %2382 = vadd.xlane.f32.xlu0 %v2381
          %v2383 = vpop.xlane.xlu0 %2382
          %v2384 = vadd.f32 %v2073, %v2074
          %v2385 = vadd.f32 %v2384, %v2075
          %v2386 = vadd.f32 %v2385, %v2076
          %v2387 = vadd.f32 %v2386, %v2077
          %v2388 = vadd.f32 %v2387, %v2078
          %2389 = vadd.xlane.f32.xlu0 %v2388
          %v2390 = vpop.xlane.xlu0 %2389
          %v2391 = vadd.f32 %v2079, %v2080
          %v2392 = vadd.f32 %v2391, %v2081
          %v2393 = vadd.f32 %v2392, %v2082
          %v2394 = vadd.f32 %v2393, %v2083
          %v2395 = vadd.f32 %v2394, %v2084
          %2396 = vadd.xlane.f32.xlu0 %v2395
          %v2397 = vpop.xlane.xlu0 %2396
          %v2398 = vadd.f32 %v2085, %v2086
          %v2399 = vadd.f32 %v2398, %v2087
          %v2400 = vadd.f32 %v2399, %v2088
          %v2401 = vadd.f32 %v2400, %v2089
          %v2402 = vadd.f32 %v2401, %v2090
          %2403 = vadd.xlane.f32.xlu0 %v2402
          %v2404 = vpop.xlane.xlu0 %2403
          %v2405 = vadd.f32 %v2091, %v2092
          %v2406 = vadd.f32 %v2405, %v2093
          %v2407 = vadd.f32 %v2406, %v2094
          %v2408 = vadd.f32 %v2407, %v2095
          %v2409 = vadd.f32 %v2408, %v2096
          %2410 = vadd.xlane.f32.xlu0 %v2409
          %v2411 = vpop.xlane.xlu0 %2410
          %v2412 = vadd.f32 %v2097, %v2098
          %v2413 = vadd.f32 %v2412, %v2099
          %v2414 = vadd.f32 %v2413, %v2100
          %v2415 = vadd.f32 %v2414, %v2101
          %v2416 = vadd.f32 %v2415, %v2102
          %2417 = vadd.xlane.f32.xlu0 %v2416
          %v2418 = vpop.xlane.xlu0 %2417
          %v2419 = vadd.f32 %v2103, %v2104
          %v2420 = vadd.f32 %v2419, %v2105
          %v2421 = vadd.f32 %v2420, %v2106
          %v2422 = vadd.f32 %v2421, %v2107
          %v2423 = vadd.f32 %v2422, %v2108
          %2424 = vadd.xlane.f32.xlu0 %v2423
          %v2425 = vpop.xlane.xlu0 %2424
          %v2426 = vadd.f32 %v2109, %v2110
          %v2427 = vadd.f32 %v2426, %v2111
          %v2428 = vadd.f32 %v2427, %v2112
          %v2429 = vadd.f32 %v2428, %v2113
          %v2430 = vadd.f32 %v2429, %v2114
          %2431 = vadd.xlane.f32.xlu0 %v2430
          %v2432 = vpop.xlane.xlu0 %2431
          %v2433 = vadd.f32 %v2115, %v2116
          %v2434 = vadd.f32 %v2433, %v2117
          %v2435 = vadd.f32 %v2434, %v2118
          %v2436 = vadd.f32 %v2435, %v2119
          %v2437 = vadd.f32 %v2436, %v2120
          %2438 = vadd.xlane.f32.xlu0 %v2437
          %v2439 = vpop.xlane.xlu0 %2438
          %v2440 = vadd.f32 %v2121, %v2122
          %v2441 = vadd.f32 %v2440, %v2123
          %v2442 = vadd.f32 %v2441, %v2124
          %v2443 = vadd.f32 %v2442, %v2125
          %v2444 = vadd.f32 %v2443, %v2126
          %2445 = vadd.xlane.f32.xlu0 %v2444
          %v2446 = vpop.xlane.xlu0 %2445
          %v2447 = vadd.f32 %v2127, %v2128
          %v2448 = vadd.f32 %v2447, %v2129
          %v2449 = vadd.f32 %v2448, %v2130
          %v2450 = vadd.f32 %v2449, %v2131
          %v2451 = vadd.f32 %v2450, %v2132
          %2452 = vadd.xlane.f32.xlu0 %v2451
          %v2453 = vpop.xlane.xlu0 %2452
          %v2454 = vadd.f32 %v2133, %v2134
          %v2455 = vadd.f32 %v2454, %v2135
          %v2456 = vadd.f32 %v2455, %v2136
          %v2457 = vadd.f32 %v2456, %v2137
          %v2458 = vadd.f32 %v2457, %v2138
          %2459 = vadd.xlane.f32.xlu0 %v2458
          %v2460 = vpop.xlane.xlu0 %2459
          %v2461 = vadd.f32 %v2139, %v2140
          %v2462 = vadd.f32 %v2461, %v2141
          %v2463 = vadd.f32 %v2462, %v2142
          %v2464 = vadd.f32 %v2463, %v2143
          %v2465 = vadd.f32 %v2464, %v2144
          %2466 = vadd.xlane.f32.xlu0 %v2465
          %v2467 = vpop.xlane.xlu0 %2466
          %v2468 = vadd.f32 %v2145, %v2146
          %v2469 = vadd.f32 %v2468, %v2147
          %v2470 = vadd.f32 %v2469, %v2148
          %v2471 = vadd.f32 %v2470, %v2149
          %v2472 = vadd.f32 %v2471, %v2150
          %2473 = vadd.xlane.f32.xlu0 %v2472
          %v2474 = vpop.xlane.xlu0 %2473
          %v2475 = vadd.f32 %v2151, %v2152
          %v2476 = vadd.f32 %v2475, %v2153
          %v2477 = vadd.f32 %v2476, %v2154
          %v2478 = vadd.f32 %v2477, %v2155
          %v2479 = vadd.f32 %v2478, %v2156
          %2480 = vadd.xlane.f32.xlu0 %v2479
          %v2481 = vpop.xlane.xlu0 %2480
          %v2482 = vadd.f32 %v2157, %v2158
          %v2483 = vadd.f32 %v2482, %v2159
          %v2484 = vadd.f32 %v2483, %v2160
          %v2485 = vadd.f32 %v2484, %v2161
          %v2486 = vadd.f32 %v2485, %v2162
          %2487 = vadd.xlane.f32.xlu0 %v2486
          %v2488 = vpop.xlane.xlu0 %2487
          %v2489 = vadd.f32 %v2163, %v2164
          %v2490 = vadd.f32 %v2489, %v2165
          %v2491 = vadd.f32 %v2490, %v2166
          %v2492 = vadd.f32 %v2491, %v2167
          %v2493 = vadd.f32 %v2492, %v2168
          %2494 = vadd.xlane.f32.xlu0 %v2493
          %v2495 = vpop.xlane.xlu0 %2494
          %v2496 = vadd.f32 %v2169, %v2170
          %v2497 = vadd.f32 %v2496, %v2171
          %v2498 = vadd.f32 %v2497, %v2172
          %v2499 = vadd.f32 %v2498, %v2173
          %v2500 = vadd.f32 %v2499, %v2174
          %2501 = vadd.xlane.f32.xlu0 %v2500
          %v2502 = vpop.xlane.xlu0 %2501
          %v2503 = vadd.f32 %v2175, %v2176
          %v2504 = vadd.f32 %v2503, %v2177
          %v2505 = vadd.f32 %v2504, %v2178
          %v2506 = vadd.f32 %v2505, %v2179
          %v2507 = vadd.f32 %v2506, %v2180
          %2508 = vadd.xlane.f32.xlu0 %v2507
          %v2509 = vpop.xlane.xlu0 %2508
          %v2510 = vadd.f32 %v2181, %v2182
          %v2511 = vadd.f32 %v2510, %v2183
          %v2512 = vadd.f32 %v2511, %v2184
          %v2513 = vadd.f32 %v2512, %v2185
          %v2514 = vadd.f32 %v2513, %v2186
          %2515 = vadd.xlane.f32.xlu0 %v2514
          %v2516 = vpop.xlane.xlu0 %2515
          %v2517 = vadd.f32 %v2187, %v2188
          %v2518 = vadd.f32 %v2517, %v2189
          %v2519 = vadd.f32 %v2518, %v2190
          %v2520 = vadd.f32 %v2519, %v2191
          %v2521 = vadd.f32 %v2520, %v2192
          %2522 = vadd.xlane.f32.xlu0 %v2521
          %v2523 = vpop.xlane.xlu0 %2522
          %v2524 = vadd.f32 %v2193, %v2194
          %v2525 = vadd.f32 %v2524, %v2195
          %v2526 = vadd.f32 %v2525, %v2196
          %v2527 = vadd.f32 %v2526, %v2197
          %v2528 = vadd.f32 %v2527, %v2198
          %2529 = vadd.xlane.f32.xlu0 %v2528
          %v2530 = vpop.xlane.xlu0 %2529
          %v2531 = vadd.f32 %v2199, %v2200
          %v2532 = vadd.f32 %v2531, %v2201
          %v2533 = vadd.f32 %v2532, %v2202
          %v2534 = vadd.f32 %v2533, %v2203
          %v2535 = vadd.f32 %v2534, %v2204
          %2536 = vadd.xlane.f32.xlu0 %v2535
          %v2537 = vpop.xlane.xlu0 %2536
          %v2538 = vadd.f32 %v2205, %v2206
          %v2539 = vadd.f32 %v2538, %v2207
          %v2540 = vadd.f32 %v2539, %v2208
          %v2541 = vadd.f32 %v2540, %v2209
          %v2542 = vadd.f32 %v2541, %v2210
          %2543 = vadd.xlane.f32.xlu0 %v2542
          %v2544 = vpop.xlane.xlu0 %2543
          %v2545 = vadd.f32 %v2211, %v2212
          %v2546 = vadd.f32 %v2545, %v2213
          %v2547 = vadd.f32 %v2546, %v2214
          %v2548 = vadd.f32 %v2547, %v2215
          %v2549 = vadd.f32 %v2548, %v2216
          %2550 = vadd.xlane.f32.xlu0 %v2549
          %v2551 = vpop.xlane.xlu0 %2550
          %v2552 = vadd.f32 %v2217, %v2218
          %v2553 = vadd.f32 %v2552, %v2219
          %v2554 = vadd.f32 %v2553, %v2220
          %v2555 = vadd.f32 %v2554, %v2221
          %v2556 = vadd.f32 %v2555, %v2222
          %2557 = vadd.xlane.f32.xlu0 %v2556
          %v2558 = vpop.xlane.xlu0 %2557
          %v2559 = vmul.f32 %v2229, %v1598
          %v2560 = vmul.f32 %v2236, %v1598
          %v2561 = vmul.f32 %v2243, %v1598
          %v2562 = vmul.f32 %v2250, %v1598
          %v2563 = vmul.f32 %v2257, %v1598
          %v2564 = vmul.f32 %v2264, %v1598
          %v2565 = vmul.f32 %v2271, %v1598
          %v2566 = vmul.f32 %v2278, %v1598
          %v2567 = vmul.f32 %v2285, %v1598
          %v2568 = vmul.f32 %v2292, %v1598
          %v2569 = vmul.f32 %v2299, %v1598
          %v2570 = vmul.f32 %v2306, %v1598
          %v2571 = vmul.f32 %v2313, %v1598
          %v2572 = vmul.f32 %v2320, %v1598
          %v2573 = vmul.f32 %v2327, %v1598
          %v2574 = vmul.f32 %v2334, %v1598
          %v2575 = vmul.f32 %v2341, %v1598
          %v2576 = vmul.f32 %v2348, %v1598
          %v2577 = vmul.f32 %v2355, %v1598
          %v2578 = vmul.f32 %v2362, %v1598
          %v2579 = vmul.f32 %v2369, %v1598
          %v2580 = vmul.f32 %v2376, %v1598
          %v2581 = vmul.f32 %v2383, %v1598
          %v2582 = vmul.f32 %v2390, %v1598
          %v2583 = vmul.f32 %v2397, %v1598
          %v2584 = vmul.f32 %v2404, %v1598
          %v2585 = vmul.f32 %v2411, %v1598
          %v2586 = vmul.f32 %v2418, %v1598
          %v2587 = vmul.f32 %v2425, %v1598
          %v2588 = vmul.f32 %v2432, %v1598
          %v2589 = vmul.f32 %v2439, %v1598
          %v2590 = vmul.f32 %v2446, %v1598
          %v2591 = vmul.f32 %v2453, %v1598
          %v2592 = vmul.f32 %v2460, %v1598
          %v2593 = vmul.f32 %v2467, %v1598
          %v2594 = vmul.f32 %v2474, %v1598
          %v2595 = vmul.f32 %v2481, %v1598
          %v2596 = vmul.f32 %v2488, %v1598
          %v2597 = vmul.f32 %v2495, %v1598
          %v2598 = vmul.f32 %v2502, %v1598
          %v2599 = vmul.f32 %v2509, %v1598
          %v2600 = vmul.f32 %v2516, %v1598
          %v2601 = vmul.f32 %v2523, %v1598
          %v2602 = vmul.f32 %v2530, %v1598
          %v2603 = vmul.f32 %v2537, %v1598
          %v2604 = vmul.f32 %v2544, %v1598
          %v2605 = vmul.f32 %v2551, %v1598
          %v2606 = vmul.f32 %v2558, %v1598
          %v2607 = vadd.f32 %v2559, 1e-05
          %v2608 = vadd.f32 %v2560, 1e-05
          %v2609 = vadd.f32 %v2561, 1e-05
          %v2610 = vadd.f32 %v2562, 1e-05
          %v2611 = vadd.f32 %v2563, 1e-05
          %v2612 = vadd.f32 %v2564, 1e-05
          %v2613 = vadd.f32 %v2565, 1e-05
          %v2614 = vadd.f32 %v2566, 1e-05
          %v2615 = vadd.f32 %v2567, 1e-05
          %v2616 = vadd.f32 %v2568, 1e-05
          %v2617 = vadd.f32 %v2569, 1e-05
          %v2618 = vadd.f32 %v2570, 1e-05
          %v2619 = vadd.f32 %v2571, 1e-05
          %v2620 = vadd.f32 %v2572, 1e-05
          %v2621 = vadd.f32 %v2573, 1e-05
          %v2622 = vadd.f32 %v2574, 1e-05
          %v2623 = vadd.f32 %v2575, 1e-05
          %v2624 = vadd.f32 %v2576, 1e-05
          %v2625 = vadd.f32 %v2577, 1e-05
          %v2626 = vadd.f32 %v2578, 1e-05
          %v2627 = vadd.f32 %v2579, 1e-05
          %v2628 = vadd.f32 %v2580, 1e-05
          %v2629 = vadd.f32 %v2581, 1e-05
          %v2630 = vadd.f32 %v2582, 1e-05
          %v2631 = vadd.f32 %v2583, 1e-05
          %v2632 = vadd.f32 %v2584, 1e-05
          %v2633 = vadd.f32 %v2585, 1e-05
          %v2634 = vadd.f32 %v2586, 1e-05
          %v2635 = vadd.f32 %v2587, 1e-05
          %v2636 = vadd.f32 %v2588, 1e-05
          %v2637 = vadd.f32 %v2589, 1e-05
          %v2638 = vadd.f32 %v2590, 1e-05
          %v2639 = vadd.f32 %v2591, 1e-05
          %v2640 = vadd.f32 %v2592, 1e-05
          %v2641 = vadd.f32 %v2593, 1e-05
          %v2642 = vadd.f32 %v2594, 1e-05
          %v2643 = vadd.f32 %v2595, 1e-05
          %v2644 = vadd.f32 %v2596, 1e-05
          %v2645 = vadd.f32 %v2597, 1e-05
          %v2646 = vadd.f32 %v2598, 1e-05
          %v2647 = vadd.f32 %v2599, 1e-05
          %v2648 = vadd.f32 %v2600, 1e-05
          %v2649 = vadd.f32 %v2601, 1e-05
          %v2650 = vadd.f32 %v2602, 1e-05
          %v2651 = vadd.f32 %v2603, 1e-05
          %v2652 = vadd.f32 %v2604, 1e-05
          %v2653 = vadd.f32 %v2605, 1e-05
          %v2654 = vadd.f32 %v2606, 1e-05
          %v2655 = vrsqrt.pop %v2607
          %v2656 = vrsqrt.pop %v2608
          %v2657 = vrsqrt.pop %v2609
          %v2658 = vrsqrt.pop %v2610
          %v2659 = vrsqrt.pop %v2611
          %v2660 = vrsqrt.pop %v2612
          %v2661 = vrsqrt.pop %v2613
          %v2662 = vrsqrt.pop %v2614
          %v2663 = vrsqrt.pop %v2615
          %v2664 = vrsqrt.pop %v2616
          %v2665 = vrsqrt.pop %v2617
          %v2666 = vrsqrt.pop %v2618
          %v2667 = vrsqrt.pop %v2619
          %v2668 = vrsqrt.pop %v2620
          %v2669 = vrsqrt.pop %v2621
          %v2670 = vrsqrt.pop %v2622
          %v2671 = vrsqrt.pop %v2623
          %v2672 = vrsqrt.pop %v2624
          %v2673 = vrsqrt.pop %v2625
          %v2674 = vrsqrt.pop %v2626
          %v2675 = vrsqrt.pop %v2627
          %v2676 = vrsqrt.pop %v2628
          %v2677 = vrsqrt.pop %v2629
          %v2678 = vrsqrt.pop %v2630
          %v2679 = vrsqrt.pop %v2631
          %v2680 = vrsqrt.pop %v2632
          %v2681 = vrsqrt.pop %v2633
          %v2682 = vrsqrt.pop %v2634
          %v2683 = vrsqrt.pop %v2635
          %v2684 = vrsqrt.pop %v2636
          %v2685 = vrsqrt.pop %v2637
          %v2686 = vrsqrt.pop %v2638
          %v2687 = vrsqrt.pop %v2639
          %v2688 = vrsqrt.pop %v2640
          %v2689 = vrsqrt.pop %v2641
          %v2690 = vrsqrt.pop %v2642
          %v2691 = vrsqrt.pop %v2643
          %v2692 = vrsqrt.pop %v2644
          %v2693 = vrsqrt.pop %v2645
          %v2694 = vrsqrt.pop %v2646
          %v2695 = vrsqrt.pop %v2647
          %v2696 = vrsqrt.pop %v2648
          %v2697 = vrsqrt.pop %v2649
          %v2698 = vrsqrt.pop %v2650
          %v2699 = vrsqrt.pop %v2651
          %v2700 = vrsqrt.pop %v2652
          %v2701 = vrsqrt.pop %v2653
          %v2702 = vrsqrt.pop %v2654
          %v2703 = vmul.f32 %v1647, %v2655
          %v2704 = vmul.f32 %v1648, %v2655
          %v2705 = vmul.f32 %v1649, %v2655
          %v2706 = vmul.f32 %v1650, %v2655
          %v2707 = vmul.f32 %v1651, %v2655
          %v2708 = vmul.f32 %v1652, %v2655
          %v2709 = vmul.f32 %v1653, %v2656
          %v2710 = vmul.f32 %v1654, %v2656
          %v2711 = vmul.f32 %v1655, %v2656
          %v2712 = vmul.f32 %v1656, %v2656
          %v2713 = vmul.f32 %v1657, %v2656
          %v2714 = vmul.f32 %v1658, %v2656
          %v2715 = vmul.f32 %v1659, %v2657
          %v2716 = vmul.f32 %v1660, %v2657
          %v2717 = vmul.f32 %v1661, %v2657
          %v2718 = vmul.f32 %v1662, %v2657
          %v2719 = vmul.f32 %v1663, %v2657
          %v2720 = vmul.f32 %v1664, %v2657
          %v2721 = vmul.f32 %v1665, %v2658
          %v2722 = vmul.f32 %v1666, %v2658
          %v2723 = vmul.f32 %v1667, %v2658
          %v2724 = vmul.f32 %v1668, %v2658
          %v2725 = vmul.f32 %v1669, %v2658
          %v2726 = vmul.f32 %v1670, %v2658
          %v2727 = vmul.f32 %v1671, %v2659
          %v2728 = vmul.f32 %v1672, %v2659
          %v2729 = vmul.f32 %v1673, %v2659
          %v2730 = vmul.f32 %v1674, %v2659
          %v2731 = vmul.f32 %v1675, %v2659
          %v2732 = vmul.f32 %v1676, %v2659
          %v2733 = vmul.f32 %v1677, %v2660
          %v2734 = vmul.f32 %v1678, %v2660
          %v2735 = vmul.f32 %v1679, %v2660
          %v2736 = vmul.f32 %v1680, %v2660
          %v2737 = vmul.f32 %v1681, %v2660
          %v2738 = vmul.f32 %v1682, %v2660
          %v2739 = vmul.f32 %v1683, %v2661
          %v2740 = vmul.f32 %v1684, %v2661
          %v2741 = vmul.f32 %v1685, %v2661
          %v2742 = vmul.f32 %v1686, %v2661
          %v2743 = vmul.f32 %v1687, %v2661
          %v2744 = vmul.f32 %v1688, %v2661
          %v2745 = vmul.f32 %v1689, %v2662
          %v2746 = vmul.f32 %v1690, %v2662
          %v2747 = vmul.f32 %v1691, %v2662
          %v2748 = vmul.f32 %v1692, %v2662
          %v2749 = vmul.f32 %v1693, %v2662
          %v2750 = vmul.f32 %v1694, %v2662
          %v2751 = vmul.f32 %v1695, %v2663
          %v2752 = vmul.f32 %v1696, %v2663
          %v2753 = vmul.f32 %v1697, %v2663
          %v2754 = vmul.f32 %v1698, %v2663
          %v2755 = vmul.f32 %v1699, %v2663
          %v2756 = vmul.f32 %v1700, %v2663
          %v2757 = vmul.f32 %v1701, %v2664
          %v2758 = vmul.f32 %v1702, %v2664
          %v2759 = vmul.f32 %v1703, %v2664
          %v2760 = vmul.f32 %v1704, %v2664
          %v2761 = vmul.f32 %v1705, %v2664
          %v2762 = vmul.f32 %v1706, %v2664
          %v2763 = vmul.f32 %v1707, %v2665
          %v2764 = vmul.f32 %v1708, %v2665
          %v2765 = vmul.f32 %v1709, %v2665
          %v2766 = vmul.f32 %v1710, %v2665
          %v2767 = vmul.f32 %v1711, %v2665
          %v2768 = vmul.f32 %v1712, %v2665
          %v2769 = vmul.f32 %v1713, %v2666
          %v2770 = vmul.f32 %v1714, %v2666
          %v2771 = vmul.f32 %v1715, %v2666
          %v2772 = vmul.f32 %v1716, %v2666
          %v2773 = vmul.f32 %v1717, %v2666
          %v2774 = vmul.f32 %v1718, %v2666
          %v2775 = vmul.f32 %v1719, %v2667
          %v2776 = vmul.f32 %v1720, %v2667
          %v2777 = vmul.f32 %v1721, %v2667
          %v2778 = vmul.f32 %v1722, %v2667
          %v2779 = vmul.f32 %v1723, %v2667
          %v2780 = vmul.f32 %v1724, %v2667
          %v2781 = vmul.f32 %v1725, %v2668
          %v2782 = vmul.f32 %v1726, %v2668
          %v2783 = vmul.f32 %v1727, %v2668
          %v2784 = vmul.f32 %v1728, %v2668
          %v2785 = vmul.f32 %v1729, %v2668
          %v2786 = vmul.f32 %v1730, %v2668
          %v2787 = vmul.f32 %v1731, %v2669
          %v2788 = vmul.f32 %v1732, %v2669
          %v2789 = vmul.f32 %v1733, %v2669
          %v2790 = vmul.f32 %v1734, %v2669
          %v2791 = vmul.f32 %v1735, %v2669
          %v2792 = vmul.f32 %v1736, %v2669
          %v2793 = vmul.f32 %v1737, %v2670
          %v2794 = vmul.f32 %v1738, %v2670
          %v2795 = vmul.f32 %v1739, %v2670
          %v2796 = vmul.f32 %v1740, %v2670
          %v2797 = vmul.f32 %v1741, %v2670
          %v2798 = vmul.f32 %v1742, %v2670
          %v2799 = vmul.f32 %v1743, %v2671
          %v2800 = vmul.f32 %v1744, %v2671
          %v2801 = vmul.f32 %v1745, %v2671
          %v2802 = vmul.f32 %v1746, %v2671
          %v2803 = vmul.f32 %v1747, %v2671
          %v2804 = vmul.f32 %v1748, %v2671
          %v2805 = vmul.f32 %v1749, %v2672
          %v2806 = vmul.f32 %v1750, %v2672
          %v2807 = vmul.f32 %v1751, %v2672
          %v2808 = vmul.f32 %v1752, %v2672
          %v2809 = vmul.f32 %v1753, %v2672
          %v2810 = vmul.f32 %v1754, %v2672
          %v2811 = vmul.f32 %v1755, %v2673
          %v2812 = vmul.f32 %v1756, %v2673
          %v2813 = vmul.f32 %v1757, %v2673
          %v2814 = vmul.f32 %v1758, %v2673
          %v2815 = vmul.f32 %v1759, %v2673
          %v2816 = vmul.f32 %v1760, %v2673
          %v2817 = vmul.f32 %v1761, %v2674
          %v2818 = vmul.f32 %v1762, %v2674
          %v2819 = vmul.f32 %v1763, %v2674
          %v2820 = vmul.f32 %v1764, %v2674
          %v2821 = vmul.f32 %v1765, %v2674
          %v2822 = vmul.f32 %v1766, %v2674
          %v2823 = vmul.f32 %v1767, %v2675
          %v2824 = vmul.f32 %v1768, %v2675
          %v2825 = vmul.f32 %v1769, %v2675
          %v2826 = vmul.f32 %v1770, %v2675
          %v2827 = vmul.f32 %v1771, %v2675
          %v2828 = vmul.f32 %v1772, %v2675
          %v2829 = vmul.f32 %v1773, %v2676
          %v2830 = vmul.f32 %v1774, %v2676
          %v2831 = vmul.f32 %v1775, %v2676
          %v2832 = vmul.f32 %v1776, %v2676
          %v2833 = vmul.f32 %v1777, %v2676
          %v2834 = vmul.f32 %v1778, %v2676
          %v2835 = vmul.f32 %v1779, %v2677
          %v2836 = vmul.f32 %v1780, %v2677
          %v2837 = vmul.f32 %v1781, %v2677
          %v2838 = vmul.f32 %v1782, %v2677
          %v2839 = vmul.f32 %v1783, %v2677
          %v2840 = vmul.f32 %v1784, %v2677
          %v2841 = vmul.f32 %v1785, %v2678
          %v2842 = vmul.f32 %v1786, %v2678
          %v2843 = vmul.f32 %v1787, %v2678
          %v2844 = vmul.f32 %v1788, %v2678
          %v2845 = vmul.f32 %v1789, %v2678
          %v2846 = vmul.f32 %v1790, %v2678
          %v2847 = vmul.f32 %v1791, %v2679
          %v2848 = vmul.f32 %v1792, %v2679
          %v2849 = vmul.f32 %v1793, %v2679
          %v2850 = vmul.f32 %v1794, %v2679
          %v2851 = vmul.f32 %v1795, %v2679
          %v2852 = vmul.f32 %v1796, %v2679
          %v2853 = vmul.f32 %v1797, %v2680
          %v2854 = vmul.f32 %v1798, %v2680
          %v2855 = vmul.f32 %v1799, %v2680
          %v2856 = vmul.f32 %v1800, %v2680
          %v2857 = vmul.f32 %v1801, %v2680
          %v2858 = vmul.f32 %v1802, %v2680
          %v2859 = vmul.f32 %v1803, %v2681
          %v2860 = vmul.f32 %v1804, %v2681
          %v2861 = vmul.f32 %v1805, %v2681
          %v2862 = vmul.f32 %v1806, %v2681
          %v2863 = vmul.f32 %v1807, %v2681
          %v2864 = vmul.f32 %v1808, %v2681
          %v2865 = vmul.f32 %v1809, %v2682
          %v2866 = vmul.f32 %v1810, %v2682
          %v2867 = vmul.f32 %v1811, %v2682
          %v2868 = vmul.f32 %v1812, %v2682
          %v2869 = vmul.f32 %v1813, %v2682
          %v2870 = vmul.f32 %v1814, %v2682
          %v2871 = vmul.f32 %v1815, %v2683
          %v2872 = vmul.f32 %v1816, %v2683
          %v2873 = vmul.f32 %v1817, %v2683
          %v2874 = vmul.f32 %v1818, %v2683
          %v2875 = vmul.f32 %v1819, %v2683
          %v2876 = vmul.f32 %v1820, %v2683
          %v2877 = vmul.f32 %v1821, %v2684
          %v2878 = vmul.f32 %v1822, %v2684
          %v2879 = vmul.f32 %v1823, %v2684
          %v2880 = vmul.f32 %v1824, %v2684
          %v2881 = vmul.f32 %v1825, %v2684
          %v2882 = vmul.f32 %v1826, %v2684
          %v2883 = vmul.f32 %v1827, %v2685
          %v2884 = vmul.f32 %v1828, %v2685
          %v2885 = vmul.f32 %v1829, %v2685
          %v2886 = vmul.f32 %v1830, %v2685
          %v2887 = vmul.f32 %v1831, %v2685
          %v2888 = vmul.f32 %v1832, %v2685
          %v2889 = vmul.f32 %v1833, %v2686
          %v2890 = vmul.f32 %v1834, %v2686
          %v2891 = vmul.f32 %v1835, %v2686
          %v2892 = vmul.f32 %v1836, %v2686
          %v2893 = vmul.f32 %v1837, %v2686
          %v2894 = vmul.f32 %v1838, %v2686
          %v2895 = vmul.f32 %v1839, %v2687
          %v2896 = vmul.f32 %v1840, %v2687
          %v2897 = vmul.f32 %v1841, %v2687
          %v2898 = vmul.f32 %v1842, %v2687
          %v2899 = vmul.f32 %v1843, %v2687
          %v2900 = vmul.f32 %v1844, %v2687
          %v2901 = vmul.f32 %v1845, %v2688
          %v2902 = vmul.f32 %v1846, %v2688
          %v2903 = vmul.f32 %v1847, %v2688
          %v2904 = vmul.f32 %v1848, %v2688
          %v2905 = vmul.f32 %v1849, %v2688
          %v2906 = vmul.f32 %v1850, %v2688
          %v2907 = vmul.f32 %v1851, %v2689
          %v2908 = vmul.f32 %v1852, %v2689
          %v2909 = vmul.f32 %v1853, %v2689
          %v2910 = vmul.f32 %v1854, %v2689
          %v2911 = vmul.f32 %v1855, %v2689
          %v2912 = vmul.f32 %v1856, %v2689
          %v2913 = vmul.f32 %v1857, %v2690
          %v2914 = vmul.f32 %v1858, %v2690
          %v2915 = vmul.f32 %v1859, %v2690
          %v2916 = vmul.f32 %v1860, %v2690
          %v2917 = vmul.f32 %v1861, %v2690
          %v2918 = vmul.f32 %v1862, %v2690
          %v2919 = vmul.f32 %v1863, %v2691
          %v2920 = vmul.f32 %v1864, %v2691
          %v2921 = vmul.f32 %v1865, %v2691
          %v2922 = vmul.f32 %v1866, %v2691
          %v2923 = vmul.f32 %v1867, %v2691
          %v2924 = vmul.f32 %v1868, %v2691
          %v2925 = vmul.f32 %v1869, %v2692
          %v2926 = vmul.f32 %v1870, %v2692
          %v2927 = vmul.f32 %v1871, %v2692
          %v2928 = vmul.f32 %v1872, %v2692
          %v2929 = vmul.f32 %v1873, %v2692
          %v2930 = vmul.f32 %v1874, %v2692
          %v2931 = vmul.f32 %v1875, %v2693
          %v2932 = vmul.f32 %v1876, %v2693
          %v2933 = vmul.f32 %v1877, %v2693
          %v2934 = vmul.f32 %v1878, %v2693
          %v2935 = vmul.f32 %v1879, %v2693
          %v2936 = vmul.f32 %v1880, %v2693
          %v2937 = vmul.f32 %v1881, %v2694
          %v2938 = vmul.f32 %v1882, %v2694
          %v2939 = vmul.f32 %v1883, %v2694
          %v2940 = vmul.f32 %v1884, %v2694
          %v2941 = vmul.f32 %v1885, %v2694
          %v2942 = vmul.f32 %v1886, %v2694
          %v2943 = vmul.f32 %v1887, %v2695
          %v2944 = vmul.f32 %v1888, %v2695
          %v2945 = vmul.f32 %v1889, %v2695
          %v2946 = vmul.f32 %v1890, %v2695
          %v2947 = vmul.f32 %v1891, %v2695
          %v2948 = vmul.f32 %v1892, %v2695
          %v2949 = vmul.f32 %v1893, %v2696
          %v2950 = vmul.f32 %v1894, %v2696
          %v2951 = vmul.f32 %v1895, %v2696
          %v2952 = vmul.f32 %v1896, %v2696
          %v2953 = vmul.f32 %v1897, %v2696
          %v2954 = vmul.f32 %v1898, %v2696
          %v2955 = vmul.f32 %v1899, %v2697
          %v2956 = vmul.f32 %v1900, %v2697
          %v2957 = vmul.f32 %v1901, %v2697
          %v2958 = vmul.f32 %v1902, %v2697
          %v2959 = vmul.f32 %v1903, %v2697
          %v2960 = vmul.f32 %v1904, %v2697
          %v2961 = vmul.f32 %v1905, %v2698
          %v2962 = vmul.f32 %v1906, %v2698
          %v2963 = vmul.f32 %v1907, %v2698
          %v2964 = vmul.f32 %v1908, %v2698
          %v2965 = vmul.f32 %v1909, %v2698
          %v2966 = vmul.f32 %v1910, %v2698
          %v2967 = vmul.f32 %v1911, %v2699
          %v2968 = vmul.f32 %v1912, %v2699
          %v2969 = vmul.f32 %v1913, %v2699
          %v2970 = vmul.f32 %v1914, %v2699
          %v2971 = vmul.f32 %v1915, %v2699
          %v2972 = vmul.f32 %v1916, %v2699
          %v2973 = vmul.f32 %v1917, %v2700
          %v2974 = vmul.f32 %v1918, %v2700
          %v2975 = vmul.f32 %v1919, %v2700
          %v2976 = vmul.f32 %v1920, %v2700
          %v2977 = vmul.f32 %v1921, %v2700
          %v2978 = vmul.f32 %v1922, %v2700
          %v2979 = vmul.f32 %v1923, %v2701
          %v2980 = vmul.f32 %v1924, %v2701
          %v2981 = vmul.f32 %v1925, %v2701
          %v2982 = vmul.f32 %v1926, %v2701
          %v2983 = vmul.f32 %v1927, %v2701
          %v2984 = vmul.f32 %v1928, %v2701
          %v2985 = vmul.f32 %v1929, %v2702
          %v2986 = vmul.f32 %v1930, %v2702
          %v2987 = vmul.f32 %v1931, %v2702
          %v2988 = vmul.f32 %v1932, %v2702
          %v2989 = vmul.f32 %v1933, %v2702
          %v2990 = vmul.f32 %v1934, %v2702
          %v2991 = vld [vmem:[#allocation8] sm:$0x3f]
          %v2993 = vlaneseq
          %v2994 = vshrl.u32 %v2993, 7
          %v2995 = vsub.s32 0, %v2994
          %v2996 = vrot.slane %v2991, %v2995
          %v2997 = vlaneseq
          %v2998 = vshrl.u32 %v2997, 7
          %v2999 = vsub.s32 1, %v2998
          %v3000 = vrot.slane %v2991, %v2999
          %v3001 = vlaneseq
          %v3002 = vshrl.u32 %v3001, 7
          %v3003 = vsub.s32 2, %v3002
          %v3004 = vrot.slane %v2991, %v3003
          %v3005 = vlaneseq
          %v3006 = vshrl.u32 %v3005, 7
          %v3007 = vsub.s32 3, %v3006
          %v3008 = vrot.slane %v2991, %v3007
          %v3009 = vlaneseq
          %v3010 = vshrl.u32 %v3009, 7
          %v3011 = vsub.s32 4, %v3010
          %v3012 = vrot.slane %v2991, %v3011
          %v3013 = vlaneseq
          %v3014 = vshrl.u32 %v3013, 7
          %v3015 = vsub.s32 5, %v3014
          %v3016 = vrot.slane %v2991, %v3015
          %v3023 = vmul.f32 %v2703, %v2996
          %v3024 = vmul.f32 %v2704, %v3000
          %v3025 = vmul.f32 %v2705, %v3004
          %v3026 = vmul.f32 %v2706, %v3008
          %v3027 = vmul.f32 %v2707, %v3012
          %v3028 = vmul.f32 %v2708, %v3016
          %v3029 = vmul.f32 %v2709, %v2996
          %v3030 = vmul.f32 %v2710, %v3000
          %v3031 = vmul.f32 %v2711, %v3004
          %v3032 = vmul.f32 %v2712, %v3008
          %v3033 = vmul.f32 %v2713, %v3012
          %v3034 = vmul.f32 %v2714, %v3016
          %v3035 = vmul.f32 %v2715, %v2996
          %v3036 = vmul.f32 %v2716, %v3000
          %v3037 = vmul.f32 %v2717, %v3004
          %v3038 = vmul.f32 %v2718, %v3008
          %v3039 = vmul.f32 %v2719, %v3012
          %v3040 = vmul.f32 %v2720, %v3016
          %v3041 = vmul.f32 %v2721, %v2996
          %v3042 = vmul.f32 %v2722, %v3000
          %v3043 = vmul.f32 %v2723, %v3004
          %v3044 = vmul.f32 %v2724, %v3008
          %v3045 = vmul.f32 %v2725, %v3012
          %v3046 = vmul.f32 %v2726, %v3016
          %v3047 = vmul.f32 %v2727, %v2996
          %v3048 = vmul.f32 %v2728, %v3000
          %v3049 = vmul.f32 %v2729, %v3004
          %v3050 = vmul.f32 %v2730, %v3008
          %v3051 = vmul.f32 %v2731, %v3012
          %v3052 = vmul.f32 %v2732, %v3016
          %v3053 = vmul.f32 %v2733, %v2996
          %v3054 = vmul.f32 %v2734, %v3000
          %v3055 = vmul.f32 %v2735, %v3004
          %v3056 = vmul.f32 %v2736, %v3008
          %v3057 = vmul.f32 %v2737, %v3012
          %v3058 = vmul.f32 %v2738, %v3016
          %v3059 = vmul.f32 %v2739, %v2996
          %v3060 = vmul.f32 %v2740, %v3000
          %v3061 = vmul.f32 %v2741, %v3004
          %v3062 = vmul.f32 %v2742, %v3008
          %v3063 = vmul.f32 %v2743, %v3012
          %v3064 = vmul.f32 %v2744, %v3016
          %v3065 = vmul.f32 %v2745, %v2996
          %v3066 = vmul.f32 %v2746, %v3000
          %v3067 = vmul.f32 %v2747, %v3004
          %v3068 = vmul.f32 %v2748, %v3008
          %v3069 = vmul.f32 %v2749, %v3012
          %v3070 = vmul.f32 %v2750, %v3016
          %v3071 = vmul.f32 %v2751, %v2996
          %v3072 = vmul.f32 %v2752, %v3000
          %v3073 = vmul.f32 %v2753, %v3004
          %v3074 = vmul.f32 %v2754, %v3008
          %v3075 = vmul.f32 %v2755, %v3012
          %v3076 = vmul.f32 %v2756, %v3016
          %v3077 = vmul.f32 %v2757, %v2996
          %v3078 = vmul.f32 %v2758, %v3000
          %v3079 = vmul.f32 %v2759, %v3004
          %v3080 = vmul.f32 %v2760, %v3008
          %v3081 = vmul.f32 %v2761, %v3012
          %v3082 = vmul.f32 %v2762, %v3016
          %v3083 = vmul.f32 %v2763, %v2996
          %v3084 = vmul.f32 %v2764, %v3000
          %v3085 = vmul.f32 %v2765, %v3004
          %v3086 = vmul.f32 %v2766, %v3008
          %v3087 = vmul.f32 %v2767, %v3012
          %v3088 = vmul.f32 %v2768, %v3016
          %v3089 = vmul.f32 %v2769, %v2996
          %v3090 = vmul.f32 %v2770, %v3000
          %v3091 = vmul.f32 %v2771, %v3004
          %v3092 = vmul.f32 %v2772, %v3008
          %v3093 = vmul.f32 %v2773, %v3012
          %v3094 = vmul.f32 %v2774, %v3016
          %v3095 = vmul.f32 %v2775, %v2996
          %v3096 = vmul.f32 %v2776, %v3000
          %v3097 = vmul.f32 %v2777, %v3004
          %v3098 = vmul.f32 %v2778, %v3008
          %v3099 = vmul.f32 %v2779, %v3012
          %v3100 = vmul.f32 %v2780, %v3016
          %v3101 = vmul.f32 %v2781, %v2996
          %v3102 = vmul.f32 %v2782, %v3000
          %v3103 = vmul.f32 %v2783, %v3004
          %v3104 = vmul.f32 %v2784, %v3008
          %v3105 = vmul.f32 %v2785, %v3012
          %v3106 = vmul.f32 %v2786, %v3016
          %v3107 = vmul.f32 %v2787, %v2996
          %v3108 = vmul.f32 %v2788, %v3000
          %v3109 = vmul.f32 %v2789, %v3004
          %v3110 = vmul.f32 %v2790, %v3008
          %v3111 = vmul.f32 %v2791, %v3012
          %v3112 = vmul.f32 %v2792, %v3016
          %v3113 = vmul.f32 %v2793, %v2996
          %v3114 = vmul.f32 %v2794, %v3000
          %v3115 = vmul.f32 %v2795, %v3004
          %v3116 = vmul.f32 %v2796, %v3008
          %v3117 = vmul.f32 %v2797, %v3012
          %v3118 = vmul.f32 %v2798, %v3016
          %v3119 = vmul.f32 %v2799, %v2996
          %v3120 = vmul.f32 %v2800, %v3000
          %v3121 = vmul.f32 %v2801, %v3004
          %v3122 = vmul.f32 %v2802, %v3008
          %v3123 = vmul.f32 %v2803, %v3012
          %v3124 = vmul.f32 %v2804, %v3016
          %v3125 = vmul.f32 %v2805, %v2996
          %v3126 = vmul.f32 %v2806, %v3000
          %v3127 = vmul.f32 %v2807, %v3004
          %v3128 = vmul.f32 %v2808, %v3008
          %v3129 = vmul.f32 %v2809, %v3012
          %v3130 = vmul.f32 %v2810, %v3016
          %v3131 = vmul.f32 %v2811, %v2996
          %v3132 = vmul.f32 %v2812, %v3000
          %v3133 = vmul.f32 %v2813, %v3004
          %v3134 = vmul.f32 %v2814, %v3008
          %v3135 = vmul.f32 %v2815, %v3012
          %v3136 = vmul.f32 %v2816, %v3016
          %v3137 = vmul.f32 %v2817, %v2996
          %v3138 = vmul.f32 %v2818, %v3000
          %v3139 = vmul.f32 %v2819, %v3004
          %v3140 = vmul.f32 %v2820, %v3008
          %v3141 = vmul.f32 %v2821, %v3012
          %v3142 = vmul.f32 %v2822, %v3016
          %v3143 = vmul.f32 %v2823, %v2996
          %v3144 = vmul.f32 %v2824, %v3000
          %v3145 = vmul.f32 %v2825, %v3004
          %v3146 = vmul.f32 %v2826, %v3008
          %v3147 = vmul.f32 %v2827, %v3012
          %v3148 = vmul.f32 %v2828, %v3016
          %v3149 = vmul.f32 %v2829, %v2996
          %v3150 = vmul.f32 %v2830, %v3000
          %v3151 = vmul.f32 %v2831, %v3004
          %v3152 = vmul.f32 %v2832, %v3008
          %v3153 = vmul.f32 %v2833, %v3012
          %v3154 = vmul.f32 %v2834, %v3016
          %v3155 = vmul.f32 %v2835, %v2996
          %v3156 = vmul.f32 %v2836, %v3000
          %v3157 = vmul.f32 %v2837, %v3004
          %v3158 = vmul.f32 %v2838, %v3008
          %v3159 = vmul.f32 %v2839, %v3012
          %v3160 = vmul.f32 %v2840, %v3016
          %v3161 = vmul.f32 %v2841, %v2996
          %v3162 = vmul.f32 %v2842, %v3000
          %v3163 = vmul.f32 %v2843, %v3004
          %v3164 = vmul.f32 %v2844, %v3008
          %v3165 = vmul.f32 %v2845, %v3012
          %v3166 = vmul.f32 %v2846, %v3016
          %v3167 = vmul.f32 %v2847, %v2996
          %v3168 = vmul.f32 %v2848, %v3000
          %v3169 = vmul.f32 %v2849, %v3004
          %v3170 = vmul.f32 %v2850, %v3008
          %v3171 = vmul.f32 %v2851, %v3012
          %v3172 = vmul.f32 %v2852, %v3016
          %v3173 = vmul.f32 %v2853, %v2996
          %v3174 = vmul.f32 %v2854, %v3000
          %v3175 = vmul.f32 %v2855, %v3004
          %v3176 = vmul.f32 %v2856, %v3008
          %v3177 = vmul.f32 %v2857, %v3012
          %v3178 = vmul.f32 %v2858, %v3016
          %v3179 = vmul.f32 %v2859, %v2996
          %v3180 = vmul.f32 %v2860, %v3000
          %v3181 = vmul.f32 %v2861, %v3004
          %v3182 = vmul.f32 %v2862, %v3008
          %v3183 = vmul.f32 %v2863, %v3012
          %v3184 = vmul.f32 %v2864, %v3016
          %v3185 = vmul.f32 %v2865, %v2996
          %v3186 = vmul.f32 %v2866, %v3000
          %v3187 = vmul.f32 %v2867, %v3004
          %v3188 = vmul.f32 %v2868, %v3008
          %v3189 = vmul.f32 %v2869, %v3012
          %v3190 = vmul.f32 %v2870, %v3016
          %v3191 = vmul.f32 %v2871, %v2996
          %v3192 = vmul.f32 %v2872, %v3000
          %v3193 = vmul.f32 %v2873, %v3004
          %v3194 = vmul.f32 %v2874, %v3008
          %v3195 = vmul.f32 %v2875, %v3012
          %v3196 = vmul.f32 %v2876, %v3016
          %v3197 = vmul.f32 %v2877, %v2996
          %v3198 = vmul.f32 %v2878, %v3000
          %v3199 = vmul.f32 %v2879, %v3004
          %v3200 = vmul.f32 %v2880, %v3008
          %v3201 = vmul.f32 %v2881, %v3012
          %v3202 = vmul.f32 %v2882, %v3016
          %v3203 = vmul.f32 %v2883, %v2996
          %v3204 = vmul.f32 %v2884, %v3000
          %v3205 = vmul.f32 %v2885, %v3004
          %v3206 = vmul.f32 %v2886, %v3008
          %v3207 = vmul.f32 %v2887, %v3012
          %v3208 = vmul.f32 %v2888, %v3016
          %v3209 = vmul.f32 %v2889, %v2996
          %v3210 = vmul.f32 %v2890, %v3000
          %v3211 = vmul.f32 %v2891, %v3004
          %v3212 = vmul.f32 %v2892, %v3008
          %v3213 = vmul.f32 %v2893, %v3012
          %v3214 = vmul.f32 %v2894, %v3016
          %v3215 = vmul.f32 %v2895, %v2996
          %v3216 = vmul.f32 %v2896, %v3000
          %v3217 = vmul.f32 %v2897, %v3004
          %v3218 = vmul.f32 %v2898, %v3008
          %v3219 = vmul.f32 %v2899, %v3012
          %v3220 = vmul.f32 %v2900, %v3016
          %v3221 = vmul.f32 %v2901, %v2996
          %v3222 = vmul.f32 %v2902, %v3000
          %v3223 = vmul.f32 %v2903, %v3004
          %v3224 = vmul.f32 %v2904, %v3008
          %v3225 = vmul.f32 %v2905, %v3012
          %v3226 = vmul.f32 %v2906, %v3016
          %v3227 = vmul.f32 %v2907, %v2996
          %v3228 = vmul.f32 %v2908, %v3000
          %v3229 = vmul.f32 %v2909, %v3004
          %v3230 = vmul.f32 %v2910, %v3008
          %v3231 = vmul.f32 %v2911, %v3012
          %v3232 = vmul.f32 %v2912, %v3016
          %v3233 = vmul.f32 %v2913, %v2996
          %v3234 = vmul.f32 %v2914, %v3000
          %v3235 = vmul.f32 %v2915, %v3004
          %v3236 = vmul.f32 %v2916, %v3008
          %v3237 = vmul.f32 %v2917, %v3012
          %v3238 = vmul.f32 %v2918, %v3016
          %v3239 = vmul.f32 %v2919, %v2996
          %v3240 = vmul.f32 %v2920, %v3000
          %v3241 = vmul.f32 %v2921, %v3004
          %v3242 = vmul.f32 %v2922, %v3008
          %v3243 = vmul.f32 %v2923, %v3012
          %v3244 = vmul.f32 %v2924, %v3016
          %v3245 = vmul.f32 %v2925, %v2996
          %v3246 = vmul.f32 %v2926, %v3000
          %v3247 = vmul.f32 %v2927, %v3004
          %v3248 = vmul.f32 %v2928, %v3008
          %v3249 = vmul.f32 %v2929, %v3012
          %v3250 = vmul.f32 %v2930, %v3016
          %v3251 = vmul.f32 %v2931, %v2996
          %v3252 = vmul.f32 %v2932, %v3000
          %v3253 = vmul.f32 %v2933, %v3004
          %v3254 = vmul.f32 %v2934, %v3008
          %v3255 = vmul.f32 %v2935, %v3012
          %v3256 = vmul.f32 %v2936, %v3016
          %v3257 = vmul.f32 %v2937, %v2996
          %v3258 = vmul.f32 %v2938, %v3000
          %v3259 = vmul.f32 %v2939, %v3004
          %v3260 = vmul.f32 %v2940, %v3008
          %v3261 = vmul.f32 %v2941, %v3012
          %v3262 = vmul.f32 %v2942, %v3016
          %v3263 = vmul.f32 %v2943, %v2996
          %v3264 = vmul.f32 %v2944, %v3000
          %v3265 = vmul.f32 %v2945, %v3004
          %v3266 = vmul.f32 %v2946, %v3008
          %v3267 = vmul.f32 %v2947, %v3012
          %v3268 = vmul.f32 %v2948, %v3016
          %v3269 = vmul.f32 %v2949, %v2996
          %v3270 = vmul.f32 %v2950, %v3000
          %v3271 = vmul.f32 %v2951, %v3004
          %v3272 = vmul.f32 %v2952, %v3008
          %v3273 = vmul.f32 %v2953, %v3012
          %v3274 = vmul.f32 %v2954, %v3016
          %v3275 = vmul.f32 %v2955, %v2996
          %v3276 = vmul.f32 %v2956, %v3000
          %v3277 = vmul.f32 %v2957, %v3004
          %v3278 = vmul.f32 %v2958, %v3008
          %v3279 = vmul.f32 %v2959, %v3012
          %v3280 = vmul.f32 %v2960, %v3016
          %v3281 = vmul.f32 %v2961, %v2996
          %v3282 = vmul.f32 %v2962, %v3000
          %v3283 = vmul.f32 %v2963, %v3004
          %v3284 = vmul.f32 %v2964, %v3008
          %v3285 = vmul.f32 %v2965, %v3012
          %v3286 = vmul.f32 %v2966, %v3016
          %v3287 = vmul.f32 %v2967, %v2996
          %v3288 = vmul.f32 %v2968, %v3000
          %v3289 = vmul.f32 %v2969, %v3004
          %v3290 = vmul.f32 %v2970, %v3008
          %v3291 = vmul.f32 %v2971, %v3012
          %v3292 = vmul.f32 %v2972, %v3016
          %v3293 = vmul.f32 %v2973, %v2996
          %v3294 = vmul.f32 %v2974, %v3000
          %v3295 = vmul.f32 %v2975, %v3004
          %v3296 = vmul.f32 %v2976, %v3008
          %v3297 = vmul.f32 %v2977, %v3012
          %v3298 = vmul.f32 %v2978, %v3016
          %v3299 = vmul.f32 %v2979, %v2996
          %v3300 = vmul.f32 %v2980, %v3000
          %v3301 = vmul.f32 %v2981, %v3004
          %v3302 = vmul.f32 %v2982, %v3008
          %v3303 = vmul.f32 %v2983, %v3012
          %v3304 = vmul.f32 %v2984, %v3016
          %v3305 = vmul.f32 %v2985, %v2996
          %v3306 = vmul.f32 %v2986, %v3000
          %v3307 = vmul.f32 %v2987, %v3004
          %v3308 = vmul.f32 %v2988, %v3008
          %v3309 = vmul.f32 %v2989, %v3012
          %v3310 = vmul.f32 %v2990, %v3016
          %v3311 = vld [vmem:[#allocation9] sm:$0x3f]
          %v3313 = vlaneseq
          %v3314 = vshrl.u32 %v3313, 7
          %v3315 = vsub.s32 0, %v3314
          %v3316 = vrot.slane %v3311, %v3315
          %v3317 = vlaneseq
          %v3318 = vshrl.u32 %v3317, 7
          %v3319 = vsub.s32 1, %v3318
          %v3320 = vrot.slane %v3311, %v3319
          %v3321 = vlaneseq
          %v3322 = vshrl.u32 %v3321, 7
          %v3323 = vsub.s32 2, %v3322
          %v3324 = vrot.slane %v3311, %v3323
          %v3325 = vlaneseq
          %v3326 = vshrl.u32 %v3325, 7
          %v3327 = vsub.s32 3, %v3326
          %v3328 = vrot.slane %v3311, %v3327
          %v3329 = vlaneseq
          %v3330 = vshrl.u32 %v3329, 7
          %v3331 = vsub.s32 4, %v3330
          %v3332 = vrot.slane %v3311, %v3331
          %v3333 = vlaneseq
          %v3334 = vshrl.u32 %v3333, 7
          %v3335 = vsub.s32 5, %v3334
          %v3336 = vrot.slane %v3311, %v3335
          %v3343 = vadd.f32 %v3023, %v3316
          %v3344 = vadd.f32 %v3024, %v3320
          %v3345 = vadd.f32 %v3025, %v3324
          %v3346 = vadd.f32 %v3026, %v3328
          %v3347 = vadd.f32 %v3027, %v3332
          %v3348 = vadd.f32 %v3028, %v3336
          %v3349 = vadd.f32 %v3029, %v3316
          %v3350 = vadd.f32 %v3030, %v3320
          %v3351 = vadd.f32 %v3031, %v3324
          %v3352 = vadd.f32 %v3032, %v3328
          %v3353 = vadd.f32 %v3033, %v3332
          %v3354 = vadd.f32 %v3034, %v3336
          %v3355 = vadd.f32 %v3035, %v3316
          %v3356 = vadd.f32 %v3036, %v3320
          %v3357 = vadd.f32 %v3037, %v3324
          %v3358 = vadd.f32 %v3038, %v3328
          %v3359 = vadd.f32 %v3039, %v3332
          %v3360 = vadd.f32 %v3040, %v3336
          %v3361 = vadd.f32 %v3041, %v3316
          %v3362 = vadd.f32 %v3042, %v3320
          %v3363 = vadd.f32 %v3043, %v3324
          %v3364 = vadd.f32 %v3044, %v3328
          %v3365 = vadd.f32 %v3045, %v3332
          %v3366 = vadd.f32 %v3046, %v3336
          %v3367 = vadd.f32 %v3047, %v3316
          %v3368 = vadd.f32 %v3048, %v3320
          %v3369 = vadd.f32 %v3049, %v3324
          %v3370 = vadd.f32 %v3050, %v3328
          %v3371 = vadd.f32 %v3051, %v3332
          %v3372 = vadd.f32 %v3052, %v3336
          %v3373 = vadd.f32 %v3053, %v3316
          %v3374 = vadd.f32 %v3054, %v3320
          %v3375 = vadd.f32 %v3055, %v3324
          %v3376 = vadd.f32 %v3056, %v3328
          %v3377 = vadd.f32 %v3057, %v3332
          %v3378 = vadd.f32 %v3058, %v3336
          %v3379 = vadd.f32 %v3059, %v3316
          %v3380 = vadd.f32 %v3060, %v3320
          %v3381 = vadd.f32 %v3061, %v3324
          %v3382 = vadd.f32 %v3062, %v3328
          %v3383 = vadd.f32 %v3063, %v3332
          %v3384 = vadd.f32 %v3064, %v3336
          %v3385 = vadd.f32 %v3065, %v3316
          %v3386 = vadd.f32 %v3066, %v3320
          %v3387 = vadd.f32 %v3067, %v3324
          %v3388 = vadd.f32 %v3068, %v3328
          %v3389 = vadd.f32 %v3069, %v3332
          %v3390 = vadd.f32 %v3070, %v3336
          %v3391 = vadd.f32 %v3071, %v3316
          %v3392 = vadd.f32 %v3072, %v3320
          %v3393 = vadd.f32 %v3073, %v3324
          %v3394 = vadd.f32 %v3074, %v3328
          %v3395 = vadd.f32 %v3075, %v3332
          %v3396 = vadd.f32 %v3076, %v3336
          %v3397 = vadd.f32 %v3077, %v3316
          %v3398 = vadd.f32 %v3078, %v3320
          %v3399 = vadd.f32 %v3079, %v3324
          %v3400 = vadd.f32 %v3080, %v3328
          %v3401 = vadd.f32 %v3081, %v3332
          %v3402 = vadd.f32 %v3082, %v3336
          %v3403 = vadd.f32 %v3083, %v3316
          %v3404 = vadd.f32 %v3084, %v3320
          %v3405 = vadd.f32 %v3085, %v3324
          %v3406 = vadd.f32 %v3086, %v3328
          %v3407 = vadd.f32 %v3087, %v3332
          %v3408 = vadd.f32 %v3088, %v3336
          %v3409 = vadd.f32 %v3089, %v3316
          %v3410 = vadd.f32 %v3090, %v3320
          %v3411 = vadd.f32 %v3091, %v3324
          %v3412 = vadd.f32 %v3092, %v3328
          %v3413 = vadd.f32 %v3093, %v3332
          %v3414 = vadd.f32 %v3094, %v3336
          %v3415 = vadd.f32 %v3095, %v3316
          %v3416 = vadd.f32 %v3096, %v3320
          %v3417 = vadd.f32 %v3097, %v3324
          %v3418 = vadd.f32 %v3098, %v3328
          %v3419 = vadd.f32 %v3099, %v3332
          %v3420 = vadd.f32 %v3100, %v3336
          %v3421 = vadd.f32 %v3101, %v3316
          %v3422 = vadd.f32 %v3102, %v3320
          %v3423 = vadd.f32 %v3103, %v3324
          %v3424 = vadd.f32 %v3104, %v3328
          %v3425 = vadd.f32 %v3105, %v3332
          %v3426 = vadd.f32 %v3106, %v3336
          %v3427 = vadd.f32 %v3107, %v3316
          %v3428 = vadd.f32 %v3108, %v3320
          %v3429 = vadd.f32 %v3109, %v3324
          %v3430 = vadd.f32 %v3110, %v3328
          %v3431 = vadd.f32 %v3111, %v3332
          %v3432 = vadd.f32 %v3112, %v3336
          %v3433 = vadd.f32 %v3113, %v3316
          %v3434 = vadd.f32 %v3114, %v3320
          %v3435 = vadd.f32 %v3115, %v3324
          %v3436 = vadd.f32 %v3116, %v3328
          %v3437 = vadd.f32 %v3117, %v3332
          %v3438 = vadd.f32 %v3118, %v3336
          %v3439 = vadd.f32 %v3119, %v3316
          %v3440 = vadd.f32 %v3120, %v3320
          %v3441 = vadd.f32 %v3121, %v3324
          %v3442 = vadd.f32 %v3122, %v3328
          %v3443 = vadd.f32 %v3123, %v3332
          %v3444 = vadd.f32 %v3124, %v3336
          %v3445 = vadd.f32 %v3125, %v3316
          %v3446 = vadd.f32 %v3126, %v3320
          %v3447 = vadd.f32 %v3127, %v3324
          %v3448 = vadd.f32 %v3128, %v3328
          %v3449 = vadd.f32 %v3129, %v3332
          %v3450 = vadd.f32 %v3130, %v3336
          %v3451 = vadd.f32 %v3131, %v3316
          %v3452 = vadd.f32 %v3132, %v3320
          %v3453 = vadd.f32 %v3133, %v3324
          %v3454 = vadd.f32 %v3134, %v3328
          %v3455 = vadd.f32 %v3135, %v3332
          %v3456 = vadd.f32 %v3136, %v3336
          %v3457 = vadd.f32 %v3137, %v3316
          %v3458 = vadd.f32 %v3138, %v3320
          %v3459 = vadd.f32 %v3139, %v3324
          %v3460 = vadd.f32 %v3140, %v3328
          %v3461 = vadd.f32 %v3141, %v3332
          %v3462 = vadd.f32 %v3142, %v3336
          %v3463 = vadd.f32 %v3143, %v3316
          %v3464 = vadd.f32 %v3144, %v3320
          %v3465 = vadd.f32 %v3145, %v3324
          %v3466 = vadd.f32 %v3146, %v3328
          %v3467 = vadd.f32 %v3147, %v3332
          %v3468 = vadd.f32 %v3148, %v3336
          %v3469 = vadd.f32 %v3149, %v3316
          %v3470 = vadd.f32 %v3150, %v3320
          %v3471 = vadd.f32 %v3151, %v3324
          %v3472 = vadd.f32 %v3152, %v3328
          %v3473 = vadd.f32 %v3153, %v3332
          %v3474 = vadd.f32 %v3154, %v3336
          %v3475 = vadd.f32 %v3155, %v3316
          %v3476 = vadd.f32 %v3156, %v3320
          %v3477 = vadd.f32 %v3157, %v3324
          %v3478 = vadd.f32 %v3158, %v3328
          %v3479 = vadd.f32 %v3159, %v3332
          %v3480 = vadd.f32 %v3160, %v3336
          %v3481 = vadd.f32 %v3161, %v3316
          %v3482 = vadd.f32 %v3162, %v3320
          %v3483 = vadd.f32 %v3163, %v3324
          %v3484 = vadd.f32 %v3164, %v3328
          %v3485 = vadd.f32 %v3165, %v3332
          %v3486 = vadd.f32 %v3166, %v3336
          %v3487 = vadd.f32 %v3167, %v3316
          %v3488 = vadd.f32 %v3168, %v3320
          %v3489 = vadd.f32 %v3169, %v3324
          %v3490 = vadd.f32 %v3170, %v3328
          %v3491 = vadd.f32 %v3171, %v3332
          %v3492 = vadd.f32 %v3172, %v3336
          %v3493 = vadd.f32 %v3173, %v3316
          %v3494 = vadd.f32 %v3174, %v3320
          %v3495 = vadd.f32 %v3175, %v3324
          %v3496 = vadd.f32 %v3176, %v3328
          %v3497 = vadd.f32 %v3177, %v3332
          %v3498 = vadd.f32 %v3178, %v3336
          %v3499 = vadd.f32 %v3179, %v3316
          %v3500 = vadd.f32 %v3180, %v3320
          %v3501 = vadd.f32 %v3181, %v3324
          %v3502 = vadd.f32 %v3182, %v3328
          %v3503 = vadd.f32 %v3183, %v3332
          %v3504 = vadd.f32 %v3184, %v3336
          %v3505 = vadd.f32 %v3185, %v3316
          %v3506 = vadd.f32 %v3186, %v3320
          %v3507 = vadd.f32 %v3187, %v3324
          %v3508 = vadd.f32 %v3188, %v3328
          %v3509 = vadd.f32 %v3189, %v3332
          %v3510 = vadd.f32 %v3190, %v3336
          %v3511 = vadd.f32 %v3191, %v3316
          %v3512 = vadd.f32 %v3192, %v3320
          %v3513 = vadd.f32 %v3193, %v3324
          %v3514 = vadd.f32 %v3194, %v3328
          %v3515 = vadd.f32 %v3195, %v3332
          %v3516 = vadd.f32 %v3196, %v3336
          %v3517 = vadd.f32 %v3197, %v3316
          %v3518 = vadd.f32 %v3198, %v3320
          %v3519 = vadd.f32 %v3199, %v3324
          %v3520 = vadd.f32 %v3200, %v3328
          %v3521 = vadd.f32 %v3201, %v3332
          %v3522 = vadd.f32 %v3202, %v3336
          %v3523 = vadd.f32 %v3203, %v3316
          %v3524 = vadd.f32 %v3204, %v3320
          %v3525 = vadd.f32 %v3205, %v3324
          %v3526 = vadd.f32 %v3206, %v3328
          %v3527 = vadd.f32 %v3207, %v3332
          %v3528 = vadd.f32 %v3208, %v3336
          %v3529 = vadd.f32 %v3209, %v3316
          %v3530 = vadd.f32 %v3210, %v3320
          %v3531 = vadd.f32 %v3211, %v3324
          %v3532 = vadd.f32 %v3212, %v3328
          %v3533 = vadd.f32 %v3213, %v3332
          %v3534 = vadd.f32 %v3214, %v3336
          %v3535 = vadd.f32 %v3215, %v3316
          %v3536 = vadd.f32 %v3216, %v3320
          %v3537 = vadd.f32 %v3217, %v3324
          %v3538 = vadd.f32 %v3218, %v3328
          %v3539 = vadd.f32 %v3219, %v3332
          %v3540 = vadd.f32 %v3220, %v3336
          %v3541 = vadd.f32 %v3221, %v3316
          %v3542 = vadd.f32 %v3222, %v3320
          %v3543 = vadd.f32 %v3223, %v3324
          %v3544 = vadd.f32 %v3224, %v3328
          %v3545 = vadd.f32 %v3225, %v3332
          %v3546 = vadd.f32 %v3226, %v3336
          %v3547 = vadd.f32 %v3227, %v3316
          %v3548 = vadd.f32 %v3228, %v3320
          %v3549 = vadd.f32 %v3229, %v3324
          %v3550 = vadd.f32 %v3230, %v3328
          %v3551 = vadd.f32 %v3231, %v3332
          %v3552 = vadd.f32 %v3232, %v3336
          %v3553 = vadd.f32 %v3233, %v3316
          %v3554 = vadd.f32 %v3234, %v3320
          %v3555 = vadd.f32 %v3235, %v3324
          %v3556 = vadd.f32 %v3236, %v3328
          %v3557 = vadd.f32 %v3237, %v3332
          %v3558 = vadd.f32 %v3238, %v3336
          %v3559 = vadd.f32 %v3239, %v3316
          %v3560 = vadd.f32 %v3240, %v3320
          %v3561 = vadd.f32 %v3241, %v3324
          %v3562 = vadd.f32 %v3242, %v3328
          %v3563 = vadd.f32 %v3243, %v3332
          %v3564 = vadd.f32 %v3244, %v3336
          %v3565 = vadd.f32 %v3245, %v3316
          %v3566 = vadd.f32 %v3246, %v3320
          %v3567 = vadd.f32 %v3247, %v3324
          %v3568 = vadd.f32 %v3248, %v3328
          %v3569 = vadd.f32 %v3249, %v3332
          %v3570 = vadd.f32 %v3250, %v3336
          %v3571 = vadd.f32 %v3251, %v3316
          %v3572 = vadd.f32 %v3252, %v3320
          %v3573 = vadd.f32 %v3253, %v3324
          %v3574 = vadd.f32 %v3254, %v3328
          %v3575 = vadd.f32 %v3255, %v3332
          %v3576 = vadd.f32 %v3256, %v3336
          %v3577 = vadd.f32 %v3257, %v3316
          %v3578 = vadd.f32 %v3258, %v3320
          %v3579 = vadd.f32 %v3259, %v3324
          %v3580 = vadd.f32 %v3260, %v3328
          %v3581 = vadd.f32 %v3261, %v3332
          %v3582 = vadd.f32 %v3262, %v3336
          %v3583 = vadd.f32 %v3263, %v3316
          %v3584 = vadd.f32 %v3264, %v3320
          %v3585 = vadd.f32 %v3265, %v3324
          %v3586 = vadd.f32 %v3266, %v3328
          %v3587 = vadd.f32 %v3267, %v3332
          %v3588 = vadd.f32 %v3268, %v3336
          %v3589 = vadd.f32 %v3269, %v3316
          %v3590 = vadd.f32 %v3270, %v3320
          %v3591 = vadd.f32 %v3271, %v3324
          %v3592 = vadd.f32 %v3272, %v3328
          %v3593 = vadd.f32 %v3273, %v3332
          %v3594 = vadd.f32 %v3274, %v3336
          %v3595 = vadd.f32 %v3275, %v3316
          %v3596 = vadd.f32 %v3276, %v3320
          %v3597 = vadd.f32 %v3277, %v3324
          %v3598 = vadd.f32 %v3278, %v3328
          %v3599 = vadd.f32 %v3279, %v3332
          %v3600 = vadd.f32 %v3280, %v3336
          %v3601 = vadd.f32 %v3281, %v3316
          %v3602 = vadd.f32 %v3282, %v3320
          %v3603 = vadd.f32 %v3283, %v3324
          %v3604 = vadd.f32 %v3284, %v3328
          %v3605 = vadd.f32 %v3285, %v3332
          %v3606 = vadd.f32 %v3286, %v3336
          %v3607 = vadd.f32 %v3287, %v3316
          %v3608 = vadd.f32 %v3288, %v3320
          %v3609 = vadd.f32 %v3289, %v3324
          %v3610 = vadd.f32 %v3290, %v3328
          %v3611 = vadd.f32 %v3291, %v3332
          %v3612 = vadd.f32 %v3292, %v3336
          %v3613 = vadd.f32 %v3293, %v3316
          %v3614 = vadd.f32 %v3294, %v3320
          %v3615 = vadd.f32 %v3295, %v3324
          %v3616 = vadd.f32 %v3296, %v3328
          %v3617 = vadd.f32 %v3297, %v3332
          %v3618 = vadd.f32 %v3298, %v3336
          %v3619 = vadd.f32 %v3299, %v3316
          %v3620 = vadd.f32 %v3300, %v3320
          %v3621 = vadd.f32 %v3301, %v3324
          %v3622 = vadd.f32 %v3302, %v3328
          %v3623 = vadd.f32 %v3303, %v3332
          %v3624 = vadd.f32 %v3304, %v3336
          %v3625 = vadd.f32 %v3305, %v3316
          %v3626 = vadd.f32 %v3306, %v3320
          %v3627 = vadd.f32 %v3307, %v3324
          %v3628 = vadd.f32 %v3308, %v3328
          %v3629 = vadd.f32 %v3309, %v3332
          %v3630 = vadd.f32 %v3310, %v3336
          %v3631 = vpack.c.bf16 %v3349, %v3343
          %v3632 = vpack.c.bf16 %v3350, %v3344
          %v3633 = vpack.c.bf16 %v3351, %v3345
          %v3634 = vpack.c.bf16 %v3352, %v3346
          %v3635 = vpack.c.bf16 %v3353, %v3347
          %v3636 = vpack.c.bf16 %v3354, %v3348
          %v3637 = vpack.c.bf16 %v3361, %v3355
          %v3638 = vpack.c.bf16 %v3362, %v3356
          %v3639 = vpack.c.bf16 %v3363, %v3357
          %v3640 = vpack.c.bf16 %v3364, %v3358
          %v3641 = vpack.c.bf16 %v3365, %v3359
          %v3642 = vpack.c.bf16 %v3366, %v3360
          %v3643 = vpack.c.bf16 %v3373, %v3367
          %v3644 = vpack.c.bf16 %v3374, %v3368
          %v3645 = vpack.c.bf16 %v3375, %v3369
          %v3646 = vpack.c.bf16 %v3376, %v3370
          %v3647 = vpack.c.bf16 %v3377, %v3371
          %v3648 = vpack.c.bf16 %v3378, %v3372
          %v3649 = vpack.c.bf16 %v3385, %v3379
          %v3650 = vpack.c.bf16 %v3386, %v3380
          %v3651 = vpack.c.bf16 %v3387, %v3381
          %v3652 = vpack.c.bf16 %v3388, %v3382
          %v3653 = vpack.c.bf16 %v3389, %v3383
          %v3654 = vpack.c.bf16 %v3390, %v3384
          %v3655 = vpack.c.bf16 %v3397, %v3391
          %v3656 = vpack.c.bf16 %v3398, %v3392
          %v3657 = vpack.c.bf16 %v3399, %v3393
          %v3658 = vpack.c.bf16 %v3400, %v3394
          %v3659 = vpack.c.bf16 %v3401, %v3395
          %v3660 = vpack.c.bf16 %v3402, %v3396
          %v3661 = vpack.c.bf16 %v3409, %v3403
          %v3662 = vpack.c.bf16 %v3410, %v3404
          %v3663 = vpack.c.bf16 %v3411, %v3405
          %v3664 = vpack.c.bf16 %v3412, %v3406
          %v3665 = vpack.c.bf16 %v3413, %v3407
          %v3666 = vpack.c.bf16 %v3414, %v3408
          %v3667 = vpack.c.bf16 %v3421, %v3415
          %v3668 = vpack.c.bf16 %v3422, %v3416
          %v3669 = vpack.c.bf16 %v3423, %v3417
          %v3670 = vpack.c.bf16 %v3424, %v3418
          %v3671 = vpack.c.bf16 %v3425, %v3419
          %v3672 = vpack.c.bf16 %v3426, %v3420
          %v3673 = vpack.c.bf16 %v3433, %v3427
          %v3674 = vpack.c.bf16 %v3434, %v3428
          %v3675 = vpack.c.bf16 %v3435, %v3429
          %v3676 = vpack.c.bf16 %v3436, %v3430
          %v3677 = vpack.c.bf16 %v3437, %v3431
          %v3678 = vpack.c.bf16 %v3438, %v3432
          %v3679 = vpack.c.bf16 %v3445, %v3439
          %v3680 = vpack.c.bf16 %v3446, %v3440
          %v3681 = vpack.c.bf16 %v3447, %v3441
          %v3682 = vpack.c.bf16 %v3448, %v3442
          %v3683 = vpack.c.bf16 %v3449, %v3443
          %v3684 = vpack.c.bf16 %v3450, %v3444
          %v3685 = vpack.c.bf16 %v3457, %v3451
          %v3686 = vpack.c.bf16 %v3458, %v3452
          %v3687 = vpack.c.bf16 %v3459, %v3453
          %v3688 = vpack.c.bf16 %v3460, %v3454
          %v3689 = vpack.c.bf16 %v3461, %v3455
          %v3690 = vpack.c.bf16 %v3462, %v3456
          %v3691 = vpack.c.bf16 %v3469, %v3463
          %v3692 = vpack.c.bf16 %v3470, %v3464
          %v3693 = vpack.c.bf16 %v3471, %v3465
          %v3694 = vpack.c.bf16 %v3472, %v3466
          %v3695 = vpack.c.bf16 %v3473, %v3467
          %v3696 = vpack.c.bf16 %v3474, %v3468
          %v3697 = vpack.c.bf16 %v3481, %v3475
          %v3698 = vpack.c.bf16 %v3482, %v3476
          %v3699 = vpack.c.bf16 %v3483, %v3477
          %v3700 = vpack.c.bf16 %v3484, %v3478
          %v3701 = vpack.c.bf16 %v3485, %v3479
          %v3702 = vpack.c.bf16 %v3486, %v3480
          %v3703 = vpack.c.bf16 %v3493, %v3487
          %v3704 = vpack.c.bf16 %v3494, %v3488
          %v3705 = vpack.c.bf16 %v3495, %v3489
          %v3706 = vpack.c.bf16 %v3496, %v3490
          %v3707 = vpack.c.bf16 %v3497, %v3491
          %v3708 = vpack.c.bf16 %v3498, %v3492
          %v3709 = vpack.c.bf16 %v3505, %v3499
          %v3710 = vpack.c.bf16 %v3506, %v3500
          %v3711 = vpack.c.bf16 %v3507, %v3501
          %v3712 = vpack.c.bf16 %v3508, %v3502
          %v3713 = vpack.c.bf16 %v3509, %v3503
          %v3714 = vpack.c.bf16 %v3510, %v3504
          %v3715 = vpack.c.bf16 %v3517, %v3511
          %v3716 = vpack.c.bf16 %v3518, %v3512
          %v3717 = vpack.c.bf16 %v3519, %v3513
          %v3718 = vpack.c.bf16 %v3520, %v3514
          %v3719 = vpack.c.bf16 %v3521, %v3515
          %v3720 = vpack.c.bf16 %v3522, %v3516
          %v3721 = vpack.c.bf16 %v3529, %v3523
          %v3722 = vpack.c.bf16 %v3530, %v3524
          %v3723 = vpack.c.bf16 %v3531, %v3525
          %v3724 = vpack.c.bf16 %v3532, %v3526
          %v3725 = vpack.c.bf16 %v3533, %v3527
          %v3726 = vpack.c.bf16 %v3534, %v3528
          %v3727 = vpack.c.bf16 %v3541, %v3535
          %v3728 = vpack.c.bf16 %v3542, %v3536
          %v3729 = vpack.c.bf16 %v3543, %v3537
          %v3730 = vpack.c.bf16 %v3544, %v3538
          %v3731 = vpack.c.bf16 %v3545, %v3539
          %v3732 = vpack.c.bf16 %v3546, %v3540
          %v3733 = vpack.c.bf16 %v3553, %v3547
          %v3734 = vpack.c.bf16 %v3554, %v3548
          %v3735 = vpack.c.bf16 %v3555, %v3549
          %v3736 = vpack.c.bf16 %v3556, %v3550
          %v3737 = vpack.c.bf16 %v3557, %v3551
          %v3738 = vpack.c.bf16 %v3558, %v3552
          %v3739 = vpack.c.bf16 %v3565, %v3559
          %v3740 = vpack.c.bf16 %v3566, %v3560
          %v3741 = vpack.c.bf16 %v3567, %v3561
          %v3742 = vpack.c.bf16 %v3568, %v3562
          %v3743 = vpack.c.bf16 %v3569, %v3563
          %v3744 = vpack.c.bf16 %v3570, %v3564
          %v3745 = vpack.c.bf16 %v3577, %v3571
          %v3746 = vpack.c.bf16 %v3578, %v3572
          %v3747 = vpack.c.bf16 %v3579, %v3573
          %v3748 = vpack.c.bf16 %v3580, %v3574
          %v3749 = vpack.c.bf16 %v3581, %v3575
          %v3750 = vpack.c.bf16 %v3582, %v3576
          %v3751 = vpack.c.bf16 %v3589, %v3583
          %v3752 = vpack.c.bf16 %v3590, %v3584
          %v3753 = vpack.c.bf16 %v3591, %v3585
          %v3754 = vpack.c.bf16 %v3592, %v3586
          %v3755 = vpack.c.bf16 %v3593, %v3587
          %v3756 = vpack.c.bf16 %v3594, %v3588
          %v3757 = vpack.c.bf16 %v3601, %v3595
          %v3758 = vpack.c.bf16 %v3602, %v3596
          %v3759 = vpack.c.bf16 %v3603, %v3597
          %v3760 = vpack.c.bf16 %v3604, %v3598
          %v3761 = vpack.c.bf16 %v3605, %v3599
          %v3762 = vpack.c.bf16 %v3606, %v3600
          %v3763 = vpack.c.bf16 %v3613, %v3607
          %v3764 = vpack.c.bf16 %v3614, %v3608
          %v3765 = vpack.c.bf16 %v3615, %v3609
          %v3766 = vpack.c.bf16 %v3616, %v3610
          %v3767 = vpack.c.bf16 %v3617, %v3611
          %v3768 = vpack.c.bf16 %v3618, %v3612
          %v3769 = vpack.c.bf16 %v3625, %v3619
          %v3770 = vpack.c.bf16 %v3626, %v3620
          %v3771 = vpack.c.bf16 %v3627, %v3621
          %v3772 = vpack.c.bf16 %v3628, %v3622
          %v3773 = vpack.c.bf16 %v3629, %v3623
          %v3774 = vpack.c.bf16 %v3630, %v3624
          %v3919 = vunpack.c.l.b16 %v3631
          %v3920 = vunpack.c.l.b16 %v3632
          %v3921 = vunpack.c.l.b16 %v3633
          %v3922 = vunpack.c.l.b16 %v3634
          %v3923 = vunpack.c.l.b16 %v3635
          %v3924 = vunpack.c.l.b16 %v3636
          %v3925 = vunpack.c.h.b16 %v3631
          %v3926 = vunpack.c.h.b16 %v3632
          %v3927 = vunpack.c.h.b16 %v3633
          %v3928 = vunpack.c.h.b16 %v3634
          %v3929 = vunpack.c.h.b16 %v3635
          %v3930 = vunpack.c.h.b16 %v3636
          %v3931 = vunpack.c.l.b16 %v3637
          %v3932 = vunpack.c.l.b16 %v3638
          %v3933 = vunpack.c.l.b16 %v3639
          %v3934 = vunpack.c.l.b16 %v3640
          %v3935 = vunpack.c.l.b16 %v3641
          %v3936 = vunpack.c.l.b16 %v3642
          %v3937 = vunpack.c.h.b16 %v3637
          %v3938 = vunpack.c.h.b16 %v3638
          %v3939 = vunpack.c.h.b16 %v3639
          %v3940 = vunpack.c.h.b16 %v3640
          %v3941 = vunpack.c.h.b16 %v3641
          %v3942 = vunpack.c.h.b16 %v3642
          %v3943 = vunpack.c.l.b16 %v3643
          %v3944 = vunpack.c.l.b16 %v3644
          %v3945 = vunpack.c.l.b16 %v3645
          %v3946 = vunpack.c.l.b16 %v3646
          %v3947 = vunpack.c.l.b16 %v3647
          %v3948 = vunpack.c.l.b16 %v3648
          %v3949 = vunpack.c.h.b16 %v3643
          %v3950 = vunpack.c.h.b16 %v3644
          %v3951 = vunpack.c.h.b16 %v3645
          %v3952 = vunpack.c.h.b16 %v3646
          %v3953 = vunpack.c.h.b16 %v3647
          %v3954 = vunpack.c.h.b16 %v3648
          %v3955 = vunpack.c.l.b16 %v3649
          %v3956 = vunpack.c.l.b16 %v3650
          %v3957 = vunpack.c.l.b16 %v3651
          %v3958 = vunpack.c.l.b16 %v3652
          %v3959 = vunpack.c.l.b16 %v3653
          %v3960 = vunpack.c.l.b16 %v3654
          %v3961 = vunpack.c.h.b16 %v3649
          %v3962 = vunpack.c.h.b16 %v3650
          %v3963 = vunpack.c.h.b16 %v3651
          %v3964 = vunpack.c.h.b16 %v3652
          %v3965 = vunpack.c.h.b16 %v3653
          %v3966 = vunpack.c.h.b16 %v3654
          %v3967 = vunpack.c.l.b16 %v3655
          %v3968 = vunpack.c.l.b16 %v3656
          %v3969 = vunpack.c.l.b16 %v3657
          %v3970 = vunpack.c.l.b16 %v3658
          %v3971 = vunpack.c.l.b16 %v3659
          %v3972 = vunpack.c.l.b16 %v3660
          %v3973 = vunpack.c.h.b16 %v3655
          %v3974 = vunpack.c.h.b16 %v3656
          %v3975 = vunpack.c.h.b16 %v3657
          %v3976 = vunpack.c.h.b16 %v3658
          %v3977 = vunpack.c.h.b16 %v3659
          %v3978 = vunpack.c.h.b16 %v3660
          %v3979 = vunpack.c.l.b16 %v3661
          %v3980 = vunpack.c.l.b16 %v3662
          %v3981 = vunpack.c.l.b16 %v3663
          %v3982 = vunpack.c.l.b16 %v3664
          %v3983 = vunpack.c.l.b16 %v3665
          %v3984 = vunpack.c.l.b16 %v3666
          %v3985 = vunpack.c.h.b16 %v3661
          %v3986 = vunpack.c.h.b16 %v3662
          %v3987 = vunpack.c.h.b16 %v3663
          %v3988 = vunpack.c.h.b16 %v3664
          %v3989 = vunpack.c.h.b16 %v3665
          %v3990 = vunpack.c.h.b16 %v3666
          %v3991 = vunpack.c.l.b16 %v3667
          %v3992 = vunpack.c.l.b16 %v3668
          %v3993 = vunpack.c.l.b16 %v3669
          %v3994 = vunpack.c.l.b16 %v3670
          %v3995 = vunpack.c.l.b16 %v3671
          %v3996 = vunpack.c.l.b16 %v3672
          %v3997 = vunpack.c.h.b16 %v3667
          %v3998 = vunpack.c.h.b16 %v3668
          %v3999 = vunpack.c.h.b16 %v3669
          %v4000 = vunpack.c.h.b16 %v3670
          %v4001 = vunpack.c.h.b16 %v3671
          %v4002 = vunpack.c.h.b16 %v3672
          %v4003 = vunpack.c.l.b16 %v3673
          %v4004 = vunpack.c.l.b16 %v3674
          %v4005 = vunpack.c.l.b16 %v3675
          %v4006 = vunpack.c.l.b16 %v3676
          %v4007 = vunpack.c.l.b16 %v3677
          %v4008 = vunpack.c.l.b16 %v3678
          %v4009 = vunpack.c.h.b16 %v3673
          %v4010 = vunpack.c.h.b16 %v3674
          %v4011 = vunpack.c.h.b16 %v3675
          %v4012 = vunpack.c.h.b16 %v3676
          %v4013 = vunpack.c.h.b16 %v3677
          %v4014 = vunpack.c.h.b16 %v3678
          %v4015 = vunpack.c.l.b16 %v3679
          %v4016 = vunpack.c.l.b16 %v3680
          %v4017 = vunpack.c.l.b16 %v3681
          %v4018 = vunpack.c.l.b16 %v3682
          %v4019 = vunpack.c.l.b16 %v3683
          %v4020 = vunpack.c.l.b16 %v3684
          %v4021 = vunpack.c.h.b16 %v3679
          %v4022 = vunpack.c.h.b16 %v3680
          %v4023 = vunpack.c.h.b16 %v3681
          %v4024 = vunpack.c.h.b16 %v3682
          %v4025 = vunpack.c.h.b16 %v3683
          %v4026 = vunpack.c.h.b16 %v3684
          %v4027 = vunpack.c.l.b16 %v3685
          %v4028 = vunpack.c.l.b16 %v3686
          %v4029 = vunpack.c.l.b16 %v3687
          %v4030 = vunpack.c.l.b16 %v3688
          %v4031 = vunpack.c.l.b16 %v3689
          %v4032 = vunpack.c.l.b16 %v3690
          %v4033 = vunpack.c.h.b16 %v3685
          %v4034 = vunpack.c.h.b16 %v3686
          %v4035 = vunpack.c.h.b16 %v3687
          %v4036 = vunpack.c.h.b16 %v3688
          %v4037 = vunpack.c.h.b16 %v3689
          %v4038 = vunpack.c.h.b16 %v3690
          %v4039 = vunpack.c.l.b16 %v3691
          %v4040 = vunpack.c.l.b16 %v3692
          %v4041 = vunpack.c.l.b16 %v3693
          %v4042 = vunpack.c.l.b16 %v3694
          %v4043 = vunpack.c.l.b16 %v3695
          %v4044 = vunpack.c.l.b16 %v3696
          %v4045 = vunpack.c.h.b16 %v3691
          %v4046 = vunpack.c.h.b16 %v3692
          %v4047 = vunpack.c.h.b16 %v3693
          %v4048 = vunpack.c.h.b16 %v3694
          %v4049 = vunpack.c.h.b16 %v3695
          %v4050 = vunpack.c.h.b16 %v3696
          %v4051 = vunpack.c.l.b16 %v3697
          %v4052 = vunpack.c.l.b16 %v3698
          %v4053 = vunpack.c.l.b16 %v3699
          %v4054 = vunpack.c.l.b16 %v3700
          %v4055 = vunpack.c.l.b16 %v3701
          %v4056 = vunpack.c.l.b16 %v3702
          %v4057 = vunpack.c.h.b16 %v3697
          %v4058 = vunpack.c.h.b16 %v3698
          %v4059 = vunpack.c.h.b16 %v3699
          %v4060 = vunpack.c.h.b16 %v3700
          %v4061 = vunpack.c.h.b16 %v3701
          %v4062 = vunpack.c.h.b16 %v3702
          %v4063 = vunpack.c.l.b16 %v3703
          %v4064 = vunpack.c.l.b16 %v3704
          %v4065 = vunpack.c.l.b16 %v3705
          %v4066 = vunpack.c.l.b16 %v3706
          %v4067 = vunpack.c.l.b16 %v3707
          %v4068 = vunpack.c.l.b16 %v3708
          %v4069 = vunpack.c.h.b16 %v3703
          %v4070 = vunpack.c.h.b16 %v3704
          %v4071 = vunpack.c.h.b16 %v3705
          %v4072 = vunpack.c.h.b16 %v3706
          %v4073 = vunpack.c.h.b16 %v3707
          %v4074 = vunpack.c.h.b16 %v3708
          %v4075 = vunpack.c.l.b16 %v3709
          %v4076 = vunpack.c.l.b16 %v3710
          %v4077 = vunpack.c.l.b16 %v3711
          %v4078 = vunpack.c.l.b16 %v3712
          %v4079 = vunpack.c.l.b16 %v3713
          %v4080 = vunpack.c.l.b16 %v3714
          %v4081 = vunpack.c.h.b16 %v3709
          %v4082 = vunpack.c.h.b16 %v3710
          %v4083 = vunpack.c.h.b16 %v3711
          %v4084 = vunpack.c.h.b16 %v3712
          %v4085 = vunpack.c.h.b16 %v3713
          %v4086 = vunpack.c.h.b16 %v3714
          %v4087 = vunpack.c.l.b16 %v3715
          %v4088 = vunpack.c.l.b16 %v3716
          %v4089 = vunpack.c.l.b16 %v3717
          %v4090 = vunpack.c.l.b16 %v3718
          %v4091 = vunpack.c.l.b16 %v3719
          %v4092 = vunpack.c.l.b16 %v3720
          %v4093 = vunpack.c.h.b16 %v3715
          %v4094 = vunpack.c.h.b16 %v3716
          %v4095 = vunpack.c.h.b16 %v3717
          %v4096 = vunpack.c.h.b16 %v3718
          %v4097 = vunpack.c.h.b16 %v3719
          %v4098 = vunpack.c.h.b16 %v3720
          %v4099 = vunpack.c.l.b16 %v3721
          %v4100 = vunpack.c.l.b16 %v3722
          %v4101 = vunpack.c.l.b16 %v3723
          %v4102 = vunpack.c.l.b16 %v3724
          %v4103 = vunpack.c.l.b16 %v3725
          %v4104 = vunpack.c.l.b16 %v3726
          %v4105 = vunpack.c.h.b16 %v3721
          %v4106 = vunpack.c.h.b16 %v3722
          %v4107 = vunpack.c.h.b16 %v3723
          %v4108 = vunpack.c.h.b16 %v3724
          %v4109 = vunpack.c.h.b16 %v3725
          %v4110 = vunpack.c.h.b16 %v3726
          %v4111 = vunpack.c.l.b16 %v3727
          %v4112 = vunpack.c.l.b16 %v3728
          %v4113 = vunpack.c.l.b16 %v3729
          %v4114 = vunpack.c.l.b16 %v3730
          %v4115 = vunpack.c.l.b16 %v3731
          %v4116 = vunpack.c.l.b16 %v3732
          %v4117 = vunpack.c.h.b16 %v3727
          %v4118 = vunpack.c.h.b16 %v3728
          %v4119 = vunpack.c.h.b16 %v3729
          %v4120 = vunpack.c.h.b16 %v3730
          %v4121 = vunpack.c.h.b16 %v3731
          %v4122 = vunpack.c.h.b16 %v3732
          %v4123 = vunpack.c.l.b16 %v3733
          %v4124 = vunpack.c.l.b16 %v3734
          %v4125 = vunpack.c.l.b16 %v3735
          %v4126 = vunpack.c.l.b16 %v3736
          %v4127 = vunpack.c.l.b16 %v3737
          %v4128 = vunpack.c.l.b16 %v3738
          %v4129 = vunpack.c.h.b16 %v3733
          %v4130 = vunpack.c.h.b16 %v3734
          %v4131 = vunpack.c.h.b16 %v3735
          %v4132 = vunpack.c.h.b16 %v3736
          %v4133 = vunpack.c.h.b16 %v3737
          %v4134 = vunpack.c.h.b16 %v3738
          %v4135 = vunpack.c.l.b16 %v3739
          %v4136 = vunpack.c.l.b16 %v3740
          %v4137 = vunpack.c.l.b16 %v3741
          %v4138 = vunpack.c.l.b16 %v3742
          %v4139 = vunpack.c.l.b16 %v3743
          %v4140 = vunpack.c.l.b16 %v3744
          %v4141 = vunpack.c.h.b16 %v3739
          %v4142 = vunpack.c.h.b16 %v3740
          %v4143 = vunpack.c.h.b16 %v3741
          %v4144 = vunpack.c.h.b16 %v3742
          %v4145 = vunpack.c.h.b16 %v3743
          %v4146 = vunpack.c.h.b16 %v3744
          %v4147 = vunpack.c.l.b16 %v3745
          %v4148 = vunpack.c.l.b16 %v3746
          %v4149 = vunpack.c.l.b16 %v3747
          %v4150 = vunpack.c.l.b16 %v3748
          %v4151 = vunpack.c.l.b16 %v3749
          %v4152 = vunpack.c.l.b16 %v3750
          %v4153 = vunpack.c.h.b16 %v3745
          %v4154 = vunpack.c.h.b16 %v3746
          %v4155 = vunpack.c.h.b16 %v3747
          %v4156 = vunpack.c.h.b16 %v3748
          %v4157 = vunpack.c.h.b16 %v3749
          %v4158 = vunpack.c.h.b16 %v3750
          %v4159 = vunpack.c.l.b16 %v3751
          %v4160 = vunpack.c.l.b16 %v3752
          %v4161 = vunpack.c.l.b16 %v3753
          %v4162 = vunpack.c.l.b16 %v3754
          %v4163 = vunpack.c.l.b16 %v3755
          %v4164 = vunpack.c.l.b16 %v3756
          %v4165 = vunpack.c.h.b16 %v3751
          %v4166 = vunpack.c.h.b16 %v3752
          %v4167 = vunpack.c.h.b16 %v3753
          %v4168 = vunpack.c.h.b16 %v3754
          %v4169 = vunpack.c.h.b16 %v3755
          %v4170 = vunpack.c.h.b16 %v3756
          %v4171 = vunpack.c.l.b16 %v3757
          %v4172 = vunpack.c.l.b16 %v3758
          %v4173 = vunpack.c.l.b16 %v3759
          %v4174 = vunpack.c.l.b16 %v3760
          %v4175 = vunpack.c.l.b16 %v3761
          %v4176 = vunpack.c.l.b16 %v3762
          %v4177 = vunpack.c.h.b16 %v3757
          %v4178 = vunpack.c.h.b16 %v3758
          %v4179 = vunpack.c.h.b16 %v3759
          %v4180 = vunpack.c.h.b16 %v3760
          %v4181 = vunpack.c.h.b16 %v3761
          %v4182 = vunpack.c.h.b16 %v3762
          %v4183 = vunpack.c.l.b16 %v3763
          %v4184 = vunpack.c.l.b16 %v3764
          %v4185 = vunpack.c.l.b16 %v3765
          %v4186 = vunpack.c.l.b16 %v3766
          %v4187 = vunpack.c.l.b16 %v3767
          %v4188 = vunpack.c.l.b16 %v3768
          %v4189 = vunpack.c.h.b16 %v3763
          %v4190 = vunpack.c.h.b16 %v3764
          %v4191 = vunpack.c.h.b16 %v3765
          %v4192 = vunpack.c.h.b16 %v3766
          %v4193 = vunpack.c.h.b16 %v3767
          %v4194 = vunpack.c.h.b16 %v3768
          %v4195 = vunpack.c.l.b16 %v3769
          %v4196 = vunpack.c.l.b16 %v3770
          %v4197 = vunpack.c.l.b16 %v3771
          %v4198 = vunpack.c.l.b16 %v3772
          %v4199 = vunpack.c.l.b16 %v3773
          %v4200 = vunpack.c.l.b16 %v3774
          %v4201 = vunpack.c.h.b16 %v3769
          %v4202 = vunpack.c.h.b16 %v3770
          %v4203 = vunpack.c.h.b16 %v3771
          %v4204 = vunpack.c.h.b16 %v3772
          %v4205 = vunpack.c.h.b16 %v3773
          %v4206 = vunpack.c.h.b16 %v3774
          %v4207 = vpack.c.b16 %v3920, %v3919
          %v4208 = vpack.c.b16 %v3922, %v3921
          %v4209 = vpack.c.b16 %v3924, %v3923
          %v4210 = vpack.c.b16 %v3926, %v3925
          %v4211 = vpack.c.b16 %v3928, %v3927
          %v4212 = vpack.c.b16 %v3930, %v3929
          %v4213 = vpack.c.b16 %v3932, %v3931
          %v4214 = vpack.c.b16 %v3934, %v3933
          %v4215 = vpack.c.b16 %v3936, %v3935
          %v4216 = vpack.c.b16 %v3938, %v3937
          %v4217 = vpack.c.b16 %v3940, %v3939
          %v4218 = vpack.c.b16 %v3942, %v3941
          %v4219 = vpack.c.b16 %v3944, %v3943
          %v4220 = vpack.c.b16 %v3946, %v3945
          %v4221 = vpack.c.b16 %v3948, %v3947
          %v4222 = vpack.c.b16 %v3950, %v3949
          %v4223 = vpack.c.b16 %v3952, %v3951
          %v4224 = vpack.c.b16 %v3954, %v3953
          %v4225 = vpack.c.b16 %v3956, %v3955
          %v4226 = vpack.c.b16 %v3958, %v3957
          %v4227 = vpack.c.b16 %v3960, %v3959
          %v4228 = vpack.c.b16 %v3962, %v3961
          %v4229 = vpack.c.b16 %v3964, %v3963
          %v4230 = vpack.c.b16 %v3966, %v3965
          %v4231 = vpack.c.b16 %v3968, %v3967
          %v4232 = vpack.c.b16 %v3970, %v3969
          %v4233 = vpack.c.b16 %v3972, %v3971
          %v4234 = vpack.c.b16 %v3974, %v3973
          %v4235 = vpack.c.b16 %v3976, %v3975
          %v4236 = vpack.c.b16 %v3978, %v3977
          %v4237 = vpack.c.b16 %v3980, %v3979
          %v4238 = vpack.c.b16 %v3982, %v3981
          %v4239 = vpack.c.b16 %v3984, %v3983
          %v4240 = vpack.c.b16 %v3986, %v3985
          %v4241 = vpack.c.b16 %v3988, %v3987
          %v4242 = vpack.c.b16 %v3990, %v3989
          %v4243 = vpack.c.b16 %v3992, %v3991
          %v4244 = vpack.c.b16 %v3994, %v3993
          %v4245 = vpack.c.b16 %v3996, %v3995
          %v4246 = vpack.c.b16 %v3998, %v3997
          %v4247 = vpack.c.b16 %v4000, %v3999
          %v4248 = vpack.c.b16 %v4002, %v4001
          %v4249 = vpack.c.b16 %v4004, %v4003
          %v4250 = vpack.c.b16 %v4006, %v4005
          %v4251 = vpack.c.b16 %v4008, %v4007
          %v4252 = vpack.c.b16 %v4010, %v4009
          %v4253 = vpack.c.b16 %v4012, %v4011
          %v4254 = vpack.c.b16 %v4014, %v4013
          %v4255 = vpack.c.b16 %v4016, %v4015
          %v4256 = vpack.c.b16 %v4018, %v4017
          %v4257 = vpack.c.b16 %v4020, %v4019
          %v4258 = vpack.c.b16 %v4022, %v4021
          %v4259 = vpack.c.b16 %v4024, %v4023
          %v4260 = vpack.c.b16 %v4026, %v4025
          %v4261 = vpack.c.b16 %v4028, %v4027
          %v4262 = vpack.c.b16 %v4030, %v4029
          %v4263 = vpack.c.b16 %v4032, %v4031
          %v4264 = vpack.c.b16 %v4034, %v4033
          %v4265 = vpack.c.b16 %v4036, %v4035
          %v4266 = vpack.c.b16 %v4038, %v4037
          %v4267 = vpack.c.b16 %v4040, %v4039
          %v4268 = vpack.c.b16 %v4042, %v4041
          %v4269 = vpack.c.b16 %v4044, %v4043
          %v4270 = vpack.c.b16 %v4046, %v4045
          %v4271 = vpack.c.b16 %v4048, %v4047
          %v4272 = vpack.c.b16 %v4050, %v4049
          %v4273 = vpack.c.b16 %v4052, %v4051
          %v4274 = vpack.c.b16 %v4054, %v4053
          %v4275 = vpack.c.b16 %v4056, %v4055
          %v4276 = vpack.c.b16 %v4058, %v4057
          %v4277 = vpack.c.b16 %v4060, %v4059
          %v4278 = vpack.c.b16 %v4062, %v4061
          %v4279 = vpack.c.b16 %v4064, %v4063
          %v4280 = vpack.c.b16 %v4066, %v4065
          %v4281 = vpack.c.b16 %v4068, %v4067
          %v4282 = vpack.c.b16 %v4070, %v4069
          %v4283 = vpack.c.b16 %v4072, %v4071
          %v4284 = vpack.c.b16 %v4074, %v4073
          %v4285 = vpack.c.b16 %v4076, %v4075
          %v4286 = vpack.c.b16 %v4078, %v4077
          %v4287 = vpack.c.b16 %v4080, %v4079
          %v4288 = vpack.c.b16 %v4082, %v4081
          %v4289 = vpack.c.b16 %v4084, %v4083
          %v4290 = vpack.c.b16 %v4086, %v4085
          %v4291 = vpack.c.b16 %v4088, %v4087
          %v4292 = vpack.c.b16 %v4090, %v4089
          %v4293 = vpack.c.b16 %v4092, %v4091
          %v4294 = vpack.c.b16 %v4094, %v4093
          %v4295 = vpack.c.b16 %v4096, %v4095
          %v4296 = vpack.c.b16 %v4098, %v4097
          %v4297 = vpack.c.b16 %v4100, %v4099
          %v4298 = vpack.c.b16 %v4102, %v4101
          %v4299 = vpack.c.b16 %v4104, %v4103
          %v4300 = vpack.c.b16 %v4106, %v4105
          %v4301 = vpack.c.b16 %v4108, %v4107
          %v4302 = vpack.c.b16 %v4110, %v4109
          %v4303 = vpack.c.b16 %v4112, %v4111
          %v4304 = vpack.c.b16 %v4114, %v4113
          %v4305 = vpack.c.b16 %v4116, %v4115
          %v4306 = vpack.c.b16 %v4118, %v4117
          %v4307 = vpack.c.b16 %v4120, %v4119
          %v4308 = vpack.c.b16 %v4122, %v4121
          %v4309 = vpack.c.b16 %v4124, %v4123
          %v4310 = vpack.c.b16 %v4126, %v4125
          %v4311 = vpack.c.b16 %v4128, %v4127
          %v4312 = vpack.c.b16 %v4130, %v4129
          %v4313 = vpack.c.b16 %v4132, %v4131
          %v4314 = vpack.c.b16 %v4134, %v4133
          %v4315 = vpack.c.b16 %v4136, %v4135
          %v4316 = vpack.c.b16 %v4138, %v4137
          %v4317 = vpack.c.b16 %v4140, %v4139
          %v4318 = vpack.c.b16 %v4142, %v4141
          %v4319 = vpack.c.b16 %v4144, %v4143
          %v4320 = vpack.c.b16 %v4146, %v4145
          %v4321 = vpack.c.b16 %v4148, %v4147
          %v4322 = vpack.c.b16 %v4150, %v4149
          %v4323 = vpack.c.b16 %v4152, %v4151
          %v4324 = vpack.c.b16 %v4154, %v4153
          %v4325 = vpack.c.b16 %v4156, %v4155
          %v4326 = vpack.c.b16 %v4158, %v4157
          %v4327 = vpack.c.b16 %v4160, %v4159
          %v4328 = vpack.c.b16 %v4162, %v4161
          %v4329 = vpack.c.b16 %v4164, %v4163
          %v4330 = vpack.c.b16 %v4166, %v4165
          %v4331 = vpack.c.b16 %v4168, %v4167
          %v4332 = vpack.c.b16 %v4170, %v4169
          %v4333 = vpack.c.b16 %v4172, %v4171
          %v4334 = vpack.c.b16 %v4174, %v4173
          %v4335 = vpack.c.b16 %v4176, %v4175
          %v4336 = vpack.c.b16 %v4178, %v4177
          %v4337 = vpack.c.b16 %v4180, %v4179
          %v4338 = vpack.c.b16 %v4182, %v4181
          %v4339 = vpack.c.b16 %v4184, %v4183
          %v4340 = vpack.c.b16 %v4186, %v4185
          %v4341 = vpack.c.b16 %v4188, %v4187
          %v4342 = vpack.c.b16 %v4190, %v4189
          %v4343 = vpack.c.b16 %v4192, %v4191
          %v4344 = vpack.c.b16 %v4194, %v4193
          %v4345 = vpack.c.b16 %v4196, %v4195
          %v4346 = vpack.c.b16 %v4198, %v4197
          %v4347 = vpack.c.b16 %v4200, %v4199
          %v4348 = vpack.c.b16 %v4202, %v4201
          %v4349 = vpack.c.b16 %v4204, %v4203
          %v4350 = vpack.c.b16 %v4206, %v4205
          %4495 = vst [vmem:[#allocation2] sm:$0xff] %v4207
          %4496 = vst [vmem:[#allocation2 + $0x8] sm:$0xff] %v4208
          %4497 = vst [vmem:[#allocation2 + $0x10] sm:$0xff] %v4209
          %4498 = vst [vmem:[#allocation2 + $0x18] sm:$0xff] %v4210
          %4499 = vst [vmem:[#allocation2 + $0x20] sm:$0xff] %v4211
          %4500 = vst [vmem:[#allocation2 + $0x28] sm:$0xff] %v4212
          %4501 = vst [vmem:[#allocation2 + $0x30] sm:$0xff] %v4213
          %4502 = vst [vmem:[#allocation2 + $0x38] sm:$0xff] %v4214
          %4503 = vst [vmem:[#allocation2 + $0x40] sm:$0xff] %v4215
          %4504 = vst [vmem:[#allocation2 + $0x48] sm:$0xff] %v4216
          %4505 = vst [vmem:[#allocation2 + $0x50] sm:$0xff] %v4217
          %4506 = vst [vmem:[#allocation2 + $0x58] sm:$0xff] %v4218
          %4507 = vst [vmem:[#allocation2 + $0x60] sm:$0xff] %v4219
          %4508 = vst [vmem:[#allocation2 + $0x68] sm:$0xff] %v4220
          %4509 = vst [vmem:[#allocation2 + $0x70] sm:$0xff] %v4221
          %4510 = vst [vmem:[#allocation2 + $0x78] sm:$0xff] %v4222
          %4511 = vst [vmem:[#allocation2 + $0x80] sm:$0xff] %v4223
          %4512 = vst [vmem:[#allocation2 + $0x88] sm:$0xff] %v4224
          %4513 = vst [vmem:[#allocation2 + $0x90] sm:$0xff] %v4225
          %4514 = vst [vmem:[#allocation2 + $0x98] sm:$0xff] %v4226
          %4515 = vst [vmem:[#allocation2 + $0xa0] sm:$0xff] %v4227
          %4516 = vst [vmem:[#allocation2 + $0xa8] sm:$0xff] %v4228
          %4517 = vst [vmem:[#allocation2 + $0xb0] sm:$0xff] %v4229
          %4518 = vst [vmem:[#allocation2 + $0xb8] sm:$0xff] %v4230
          %4519 = vst [vmem:[#allocation2 + $0xc0] sm:$0xff] %v4231
          %4520 = vst [vmem:[#allocation2 + $0xc8] sm:$0xff] %v4232
          %4521 = vst [vmem:[#allocation2 + $0xd0] sm:$0xff] %v4233
          %4522 = vst [vmem:[#allocation2 + $0xd8] sm:$0xff] %v4234
          %4523 = vst [vmem:[#allocation2 + $0xe0] sm:$0xff] %v4235
          %4524 = vst [vmem:[#allocation2 + $0xe8] sm:$0xff] %v4236
          %4525 = vst [vmem:[#allocation2 + $0xf0] sm:$0xff] %v4237
          %4526 = vst [vmem:[#allocation2 + $0xf8] sm:$0xff] %v4238
          %4527 = vst [vmem:[#allocation2 + $0x100] sm:$0xff] %v4239
          %4528 = vst [vmem:[#allocation2 + $0x108] sm:$0xff] %v4240
          %4529 = vst [vmem:[#allocation2 + $0x110] sm:$0xff] %v4241
          %4530 = vst [vmem:[#allocation2 + $0x118] sm:$0xff] %v4242
          %4531 = vst [vmem:[#allocation2 + $0x120] sm:$0xff] %v4243
          %4532 = vst [vmem:[#allocation2 + $0x128] sm:$0xff] %v4244
          %4533 = vst [vmem:[#allocation2 + $0x130] sm:$0xff] %v4245
          %4534 = vst [vmem:[#allocation2 + $0x138] sm:$0xff] %v4246
          %4535 = vst [vmem:[#allocation2 + $0x140] sm:$0xff] %v4247
          %4536 = vst [vmem:[#allocation2 + $0x148] sm:$0xff] %v4248
          %4537 = vst [vmem:[#allocation2 + $0x150] sm:$0xff] %v4249
          %4538 = vst [vmem:[#allocation2 + $0x158] sm:$0xff] %v4250
          %4539 = vst [vmem:[#allocation2 + $0x160] sm:$0xff] %v4251
          %4540 = vst [vmem:[#allocation2 + $0x168] sm:$0xff] %v4252
          %4541 = vst [vmem:[#allocation2 + $0x170] sm:$0xff] %v4253
          %4542 = vst [vmem:[#allocation2 + $0x178] sm:$0xff] %v4254
          %4543 = vst [vmem:[#allocation2 + $0x180] sm:$0xff] %v4255
          %4544 = vst [vmem:[#allocation2 + $0x188] sm:$0xff] %v4256
          %4545 = vst [vmem:[#allocation2 + $0x190] sm:$0xff] %v4257
          %4546 = vst [vmem:[#allocation2 + $0x198] sm:$0xff] %v4258
          %4547 = vst [vmem:[#allocation2 + $0x1a0] sm:$0xff] %v4259
          %4548 = vst [vmem:[#allocation2 + $0x1a8] sm:$0xff] %v4260
          %4549 = vst [vmem:[#allocation2 + $0x1b0] sm:$0xff] %v4261
          %4550 = vst [vmem:[#allocation2 + $0x1b8] sm:$0xff] %v4262
          %4551 = vst [vmem:[#allocation2 + $0x1c0] sm:$0xff] %v4263
          %4552 = vst [vmem:[#allocation2 + $0x1c8] sm:$0xff] %v4264
          %4553 = vst [vmem:[#allocation2 + $0x1d0] sm:$0xff] %v4265
          %4554 = vst [vmem:[#allocation2 + $0x1d8] sm:$0xff] %v4266
          %4555 = vst [vmem:[#allocation2 + $0x1e0] sm:$0xff] %v4267
          %4556 = vst [vmem:[#allocation2 + $0x1e8] sm:$0xff] %v4268
          %4557 = vst [vmem:[#allocation2 + $0x1f0] sm:$0xff] %v4269
          %4558 = vst [vmem:[#allocation2 + $0x1f8] sm:$0xff] %v4270
          %4559 = vst [vmem:[#allocation2 + $0x200] sm:$0xff] %v4271
          %4560 = vst [vmem:[#allocation2 + $0x208] sm:$0xff] %v4272
          %4561 = vst [vmem:[#allocation2 + $0x210] sm:$0xff] %v4273
          %4562 = vst [vmem:[#allocation2 + $0x218] sm:$0xff] %v4274
          %4563 = vst [vmem:[#allocation2 + $0x220] sm:$0xff] %v4275
          %4564 = vst [vmem:[#allocation2 + $0x228] sm:$0xff] %v4276
          %4565 = vst [vmem:[#allocation2 + $0x230] sm:$0xff] %v4277
          %4566 = vst [vmem:[#allocation2 + $0x238] sm:$0xff] %v4278
          %4567 = vst [vmem:[#allocation2 + $0x240] sm:$0xff] %v4279
          %4568 = vst [vmem:[#allocation2 + $0x248] sm:$0xff] %v4280
          %4569 = vst [vmem:[#allocation2 + $0x250] sm:$0xff] %v4281
          %4570 = vst [vmem:[#allocation2 + $0x258] sm:$0xff] %v4282
          %4571 = vst [vmem:[#allocation2 + $0x260] sm:$0xff] %v4283
          %4572 = vst [vmem:[#allocation2 + $0x268] sm:$0xff] %v4284
          %4573 = vst [vmem:[#allocation2 + $0x270] sm:$0xff] %v4285
          %4574 = vst [vmem:[#allocation2 + $0x278] sm:$0xff] %v4286
          %4575 = vst [vmem:[#allocation2 + $0x280] sm:$0xff] %v4287
          %4576 = vst [vmem:[#allocation2 + $0x288] sm:$0xff] %v4288
          %4577 = vst [vmem:[#allocation2 + $0x290] sm:$0xff] %v4289
          %4578 = vst [vmem:[#allocation2 + $0x298] sm:$0xff] %v4290
          %4579 = vst [vmem:[#allocation2 + $0x2a0] sm:$0xff] %v4291
          %4580 = vst [vmem:[#allocation2 + $0x2a8] sm:$0xff] %v4292
          %4581 = vst [vmem:[#allocation2 + $0x2b0] sm:$0xff] %v4293
          %4582 = vst [vmem:[#allocation2 + $0x2b8] sm:$0xff] %v4294
          %4583 = vst [vmem:[#allocation2 + $0x2c0] sm:$0xff] %v4295
          %4584 = vst [vmem:[#allocation2 + $0x2c8] sm:$0xff] %v4296
          %4585 = vst [vmem:[#allocation2 + $0x2d0] sm:$0xff] %v4297
          %4586 = vst [vmem:[#allocation2 + $0x2d8] sm:$0xff] %v4298
          %4587 = vst [vmem:[#allocation2 + $0x2e0] sm:$0xff] %v4299
          %4588 = vst [vmem:[#allocation2 + $0x2e8] sm:$0xff] %v4300
          %4589 = vst [vmem:[#allocation2 + $0x2f0] sm:$0xff] %v4301
          %4590 = vst [vmem:[#allocation2 + $0x2f8] sm:$0xff] %v4302
          %4591 = vst [vmem:[#allocation2 + $0x300] sm:$0xff] %v4303
          %4592 = vst [vmem:[#allocation2 + $0x308] sm:$0xff] %v4304
          %4593 = vst [vmem:[#allocation2 + $0x310] sm:$0xff] %v4305
          %4594 = vst [vmem:[#allocation2 + $0x318] sm:$0xff] %v4306
          %4595 = vst [vmem:[#allocation2 + $0x320] sm:$0xff] %v4307
          %4596 = vst [vmem:[#allocation2 + $0x328] sm:$0xff] %v4308
          %4597 = vst [vmem:[#allocation2 + $0x330] sm:$0xff] %v4309
          %4598 = vst [vmem:[#allocation2 + $0x338] sm:$0xff] %v4310
          %4599 = vst [vmem:[#allocation2 + $0x340] sm:$0xff] %v4311
          %4600 = vst [vmem:[#allocation2 + $0x348] sm:$0xff] %v4312
          %4601 = vst [vmem:[#allocation2 + $0x350] sm:$0xff] %v4313
          %4602 = vst [vmem:[#allocation2 + $0x358] sm:$0xff] %v4314
          %4603 = vst [vmem:[#allocation2 + $0x360] sm:$0xff] %v4315
          %4604 = vst [vmem:[#allocation2 + $0x368] sm:$0xff] %v4316
          %4605 = vst [vmem:[#allocation2 + $0x370] sm:$0xff] %v4317
          %4606 = vst [vmem:[#allocation2 + $0x378] sm:$0xff] %v4318
          %4607 = vst [vmem:[#allocation2 + $0x380] sm:$0xff] %v4319
          %4608 = vst [vmem:[#allocation2 + $0x388] sm:$0xff] %v4320
          %4609 = vst [vmem:[#allocation2 + $0x390] sm:$0xff] %v4321
          %4610 = vst [vmem:[#allocation2 + $0x398] sm:$0xff] %v4322
          %4611 = vst [vmem:[#allocation2 + $0x3a0] sm:$0xff] %v4323
          %4612 = vst [vmem:[#allocation2 + $0x3a8] sm:$0xff] %v4324
          %4613 = vst [vmem:[#allocation2 + $0x3b0] sm:$0xff] %v4325
          %4614 = vst [vmem:[#allocation2 + $0x3b8] sm:$0xff] %v4326
          %4615 = vst [vmem:[#allocation2 + $0x3c0] sm:$0xff] %v4327
          %4616 = vst [vmem:[#allocation2 + $0x3c8] sm:$0xff] %v4328
          %4617 = vst [vmem:[#allocation2 + $0x3d0] sm:$0xff] %v4329
          %4618 = vst [vmem:[#allocation2 + $0x3d8] sm:$0xff] %v4330
          %4619 = vst [vmem:[#allocation2 + $0x3e0] sm:$0xff] %v4331
          %4620 = vst [vmem:[#allocation2 + $0x3e8] sm:$0xff] %v4332
          %4621 = vst [vmem:[#allocation2 + $0x3f0] sm:$0xff] %v4333
          %4622 = vst [vmem:[#allocation2 + $0x3f8] sm:$0xff] %v4334
          %4623 = vst [vmem:[#allocation2 + $0x400] sm:$0xff] %v4335
          %4624 = vst [vmem:[#allocation2 + $0x408] sm:$0xff] %v4336
          %4625 = vst [vmem:[#allocation2 + $0x410] sm:$0xff] %v4337
          %4626 = vst [vmem:[#allocation2 + $0x418] sm:$0xff] %v4338
          %4627 = vst [vmem:[#allocation2 + $0x420] sm:$0xff] %v4339
          %4628 = vst [vmem:[#allocation2 + $0x428] sm:$0xff] %v4340
          %4629 = vst [vmem:[#allocation2 + $0x430] sm:$0xff] %v4341
          %4630 = vst [vmem:[#allocation2 + $0x438] sm:$0xff] %v4342
          %4631 = vst [vmem:[#allocation2 + $0x440] sm:$0xff] %v4343
          %4632 = vst [vmem:[#allocation2 + $0x448] sm:$0xff] %v4344
          %4633 = vst [vmem:[#allocation2 + $0x450] sm:$0xff] %v4345
          %4634 = vst [vmem:[#allocation2 + $0x458] sm:$0xff] %v4346
          %4635 = vst [vmem:[#allocation2 + $0x460] sm:$0xff] %v4347
          %4636 = vst [vmem:[#allocation2 + $0x468] sm:$0xff] %v4348
          %4637 = vst [vmem:[#allocation2 + $0x470] sm:$0xff] %v4349
          %4638 = vst [vmem:[#allocation2 + $0x478] sm:$0xff] %v4350
        $region72: #{tpu_custom_call.1} parent=43 // pred_fallthru
          _
        %v4639 = vld [vmem:[#allocation2] sm:$0xff]
        %v4640 = vld [vmem:[#allocation2 + $0x8] sm:$0xff]
        %v4641 = vld [vmem:[#allocation2 + $0x10] sm:$0xff]
        %v4642 = vld [vmem:[#allocation2 + $0x18] sm:$0xff]
        %v4643 = vld [vmem:[#allocation2 + $0x20] sm:$0xff]
        %v4644 = vld [vmem:[#allocation2 + $0x28] sm:$0xff]
        %v4645 = vld [vmem:[#allocation2 + $0x30] sm:$0xff]
        %v4646 = vld [vmem:[#allocation2 + $0x38] sm:$0xff]
        %v4647 = vld [vmem:[#allocation2 + $0x40] sm:$0xff]
        %v4648 = vld [vmem:[#allocation2 + $0x48] sm:$0xff]
        %v4649 = vld [vmem:[#allocation2 + $0x50] sm:$0xff]
        %v4650 = vld [vmem:[#allocation2 + $0x58] sm:$0xff]
        %v4651 = vld [vmem:[#allocation2 + $0x60] sm:$0xff]
        %v4652 = vld [vmem:[#allocation2 + $0x68] sm:$0xff]
        %v4653 = vld [vmem:[#allocation2 + $0x70] sm:$0xff]
        %v4654 = vld [vmem:[#allocation2 + $0x78] sm:$0xff]
        %v4655 = vld [vmem:[#allocation2 + $0x80] sm:$0xff]
        %v4656 = vld [vmem:[#allocation2 + $0x88] sm:$0xff]
        %v4657 = vld [vmem:[#allocation2 + $0x90] sm:$0xff]
        %v4658 = vld [vmem:[#allocation2 + $0x98] sm:$0xff]
        %v4659 = vld [vmem:[#allocation2 + $0xa0] sm:$0xff]
        %v4660 = vld [vmem:[#allocation2 + $0xa8] sm:$0xff]
        %v4661 = vld [vmem:[#allocation2 + $0xb0] sm:$0xff]
        %v4662 = vld [vmem:[#allocation2 + $0xb8] sm:$0xff]
        %v4663 = vld [vmem:[#allocation2 + $0xc0] sm:$0xff]
        %v4664 = vld [vmem:[#allocation2 + $0xc8] sm:$0xff]
        %v4665 = vld [vmem:[#allocation2 + $0xd0] sm:$0xff]
        %v4666 = vld [vmem:[#allocation2 + $0xd8] sm:$0xff]
        %v4667 = vld [vmem:[#allocation2 + $0xe0] sm:$0xff]
        %v4668 = vld [vmem:[#allocation2 + $0xe8] sm:$0xff]
        %v4669 = vld [vmem:[#allocation2 + $0xf0] sm:$0xff]
        %v4670 = vld [vmem:[#allocation2 + $0xf8] sm:$0xff]
        %v4671 = vld [vmem:[#allocation2 + $0x100] sm:$0xff]
        %v4672 = vld [vmem:[#allocation2 + $0x108] sm:$0xff]
        %v4673 = vld [vmem:[#allocation2 + $0x110] sm:$0xff]
        %v4674 = vld [vmem:[#allocation2 + $0x118] sm:$0xff]
        %v4675 = vld [vmem:[#allocation2 + $0x120] sm:$0xff]
        %v4676 = vld [vmem:[#allocation2 + $0x128] sm:$0xff]
        %v4677 = vld [vmem:[#allocation2 + $0x130] sm:$0xff]
        %v4678 = vld [vmem:[#allocation2 + $0x138] sm:$0xff]
        %v4679 = vld [vmem:[#allocation2 + $0x140] sm:$0xff]
        %v4680 = vld [vmem:[#allocation2 + $0x148] sm:$0xff]
        %v4681 = vld [vmem:[#allocation2 + $0x150] sm:$0xff]
        %v4682 = vld [vmem:[#allocation2 + $0x158] sm:$0xff]
        %v4683 = vld [vmem:[#allocation2 + $0x160] sm:$0xff]
        %v4684 = vld [vmem:[#allocation2 + $0x168] sm:$0xff]
        %v4685 = vld [vmem:[#allocation2 + $0x170] sm:$0xff]
        %v4686 = vld [vmem:[#allocation2 + $0x178] sm:$0xff]
        %v4687 = vld [vmem:[#allocation2 + $0x180] sm:$0xff]
        %v4688 = vld [vmem:[#allocation2 + $0x188] sm:$0xff]
        %v4689 = vld [vmem:[#allocation2 + $0x190] sm:$0xff]
        %v4690 = vld [vmem:[#allocation2 + $0x198] sm:$0xff]
        %v4691 = vld [vmem:[#allocation2 + $0x1a0] sm:$0xff]
        %v4692 = vld [vmem:[#allocation2 + $0x1a8] sm:$0xff]
        %v4693 = vld [vmem:[#allocation2 + $0x1b0] sm:$0xff]
        %v4694 = vld [vmem:[#allocation2 + $0x1b8] sm:$0xff]
        %v4695 = vld [vmem:[#allocation2 + $0x1c0] sm:$0xff]
        %v4696 = vld [vmem:[#allocation2 + $0x1c8] sm:$0xff]
        %v4697 = vld [vmem:[#allocation2 + $0x1d0] sm:$0xff]
        %v4698 = vld [vmem:[#allocation2 + $0x1d8] sm:$0xff]
        %v4699 = vld [vmem:[#allocation2 + $0x1e0] sm:$0xff]
        %v4700 = vld [vmem:[#allocation2 + $0x1e8] sm:$0xff]
        %v4701 = vld [vmem:[#allocation2 + $0x1f0] sm:$0xff]
        %v4702 = vld [vmem:[#allocation2 + $0x1f8] sm:$0xff]
        %v4703 = vld [vmem:[#allocation2 + $0x200] sm:$0xff]
        %v4704 = vld [vmem:[#allocation2 + $0x208] sm:$0xff]
        %v4705 = vld [vmem:[#allocation2 + $0x210] sm:$0xff]
        %v4706 = vld [vmem:[#allocation2 + $0x218] sm:$0xff]
        %v4707 = vld [vmem:[#allocation2 + $0x220] sm:$0xff]
        %v4708 = vld [vmem:[#allocation2 + $0x228] sm:$0xff]
        %v4709 = vld [vmem:[#allocation2 + $0x230] sm:$0xff]
        %v4710 = vld [vmem:[#allocation2 + $0x238] sm:$0xff]
        %v4711 = vld [vmem:[#allocation2 + $0x240] sm:$0xff]
        %v4712 = vld [vmem:[#allocation2 + $0x248] sm:$0xff]
        %v4713 = vld [vmem:[#allocation2 + $0x250] sm:$0xff]
        %v4714 = vld [vmem:[#allocation2 + $0x258] sm:$0xff]
        %v4715 = vld [vmem:[#allocation2 + $0x260] sm:$0xff]
        %v4716 = vld [vmem:[#allocation2 + $0x268] sm:$0xff]
        %v4717 = vld [vmem:[#allocation2 + $0x270] sm:$0xff]
        %v4718 = vld [vmem:[#allocation2 + $0x278] sm:$0xff]
        %v4719 = vld [vmem:[#allocation2 + $0x280] sm:$0xff]
        %v4720 = vld [vmem:[#allocation2 + $0x288] sm:$0xff]
        %v4721 = vld [vmem:[#allocation2 + $0x290] sm:$0xff]
        %v4722 = vld [vmem:[#allocation2 + $0x298] sm:$0xff]
        %v4723 = vld [vmem:[#allocation2 + $0x2a0] sm:$0xff]
        %v4724 = vld [vmem:[#allocation2 + $0x2a8] sm:$0xff]
        %v4725 = vld [vmem:[#allocation2 + $0x2b0] sm:$0xff]
        %v4726 = vld [vmem:[#allocation2 + $0x2b8] sm:$0xff]
        %v4727 = vld [vmem:[#allocation2 + $0x2c0] sm:$0xff]
        %v4728 = vld [vmem:[#allocation2 + $0x2c8] sm:$0xff]
        %v4729 = vld [vmem:[#allocation2 + $0x2d0] sm:$0xff]
        %v4730 = vld [vmem:[#allocation2 + $0x2d8] sm:$0xff]
        %v4731 = vld [vmem:[#allocation2 + $0x2e0] sm:$0xff]
        %v4732 = vld [vmem:[#allocation2 + $0x2e8] sm:$0xff]
        %v4733 = vld [vmem:[#allocation2 + $0x2f0] sm:$0xff]
        %v4734 = vld [vmem:[#allocation2 + $0x2f8] sm:$0xff]
        %v4735 = vld [vmem:[#allocation2 + $0x300] sm:$0xff]
        %v4736 = vld [vmem:[#allocation2 + $0x308] sm:$0xff]
        %v4737 = vld [vmem:[#allocation2 + $0x310] sm:$0xff]
        %v4738 = vld [vmem:[#allocation2 + $0x318] sm:$0xff]
        %v4739 = vld [vmem:[#allocation2 + $0x320] sm:$0xff]
        %v4740 = vld [vmem:[#allocation2 + $0x328] sm:$0xff]
        %v4741 = vld [vmem:[#allocation2 + $0x330] sm:$0xff]
        %v4742 = vld [vmem:[#allocation2 + $0x338] sm:$0xff]
        %v4743 = vld [vmem:[#allocation2 + $0x340] sm:$0xff]
        %v4744 = vld [vmem:[#allocation2 + $0x348] sm:$0xff]
        %v4745 = vld [vmem:[#allocation2 + $0x350] sm:$0xff]
        %v4746 = vld [vmem:[#allocation2 + $0x358] sm:$0xff]
        %v4747 = vld [vmem:[#allocation2 + $0x360] sm:$0xff]
        %v4748 = vld [vmem:[#allocation2 + $0x368] sm:$0xff]
        %v4749 = vld [vmem:[#allocation2 + $0x370] sm:$0xff]
        %v4750 = vld [vmem:[#allocation2 + $0x378] sm:$0xff]
        %v4751 = vld [vmem:[#allocation2 + $0x380] sm:$0xff]
        %v4752 = vld [vmem:[#allocation2 + $0x388] sm:$0xff]
        %v4753 = vld [vmem:[#allocation2 + $0x390] sm:$0xff]
        %v4754 = vld [vmem:[#allocation2 + $0x398] sm:$0xff]
        %v4755 = vld [vmem:[#allocation2 + $0x3a0] sm:$0xff]
        %v4756 = vld [vmem:[#allocation2 + $0x3a8] sm:$0xff]
        %v4757 = vld [vmem:[#allocation2 + $0x3b0] sm:$0xff]
        %v4758 = vld [vmem:[#allocation2 + $0x3b8] sm:$0xff]
        %v4759 = vld [vmem:[#allocation2 + $0x3c0] sm:$0xff]
        %v4760 = vld [vmem:[#allocation2 + $0x3c8] sm:$0xff]
        %v4761 = vld [vmem:[#allocation2 + $0x3d0] sm:$0xff]
        %v4762 = vld [vmem:[#allocation2 + $0x3d8] sm:$0xff]
        %v4763 = vld [vmem:[#allocation2 + $0x3e0] sm:$0xff]
        %v4764 = vld [vmem:[#allocation2 + $0x3e8] sm:$0xff]
        %v4765 = vld [vmem:[#allocation2 + $0x3f0] sm:$0xff]
        %v4766 = vld [vmem:[#allocation2 + $0x3f8] sm:$0xff]
        %v4767 = vld [vmem:[#allocation2 + $0x400] sm:$0xff]
        %v4768 = vld [vmem:[#allocation2 + $0x408] sm:$0xff]
        %v4769 = vld [vmem:[#allocation2 + $0x410] sm:$0xff]
        %v4770 = vld [vmem:[#allocation2 + $0x418] sm:$0xff]
        %v4771 = vld [vmem:[#allocation2 + $0x420] sm:$0xff]
        %v4772 = vld [vmem:[#allocation2 + $0x428] sm:$0xff]
        %v4773 = vld [vmem:[#allocation2 + $0x430] sm:$0xff]
        %v4774 = vld [vmem:[#allocation2 + $0x438] sm:$0xff]
        %v4775 = vld [vmem:[#allocation2 + $0x440] sm:$0xff]
        %v4776 = vld [vmem:[#allocation2 + $0x448] sm:$0xff]
        %v4777 = vld [vmem:[#allocation2 + $0x450] sm:$0xff]
        %v4778 = vld [vmem:[#allocation2 + $0x458] sm:$0xff]
        %v4779 = vld [vmem:[#allocation2 + $0x460] sm:$0xff]
        %v4780 = vld [vmem:[#allocation2 + $0x468] sm:$0xff]
        %v4781 = vld [vmem:[#allocation2 + $0x470] sm:$0xff]
        %v4782 = vld [vmem:[#allocation2 + $0x478] sm:$0xff]
        %v4783 = vld [vmem:[%s342] sm:$0xff]
        %v4784 = vld [vmem:[%s342 + $0x8] sm:$0xff]
        %v4785 = vld [vmem:[%s342 + $0x10] sm:$0xff]
        %v4786 = vld [vmem:[%s342 + $0x18] sm:$0xff]
        %v4787 = vld [vmem:[%s342 + $0x20] sm:$0xff]
        %v4788 = vld [vmem:[%s342 + $0x28] sm:$0xff]
        %v4789 = vld [vmem:[%s342 + $0x30] sm:$0xff]
        %v4790 = vld [vmem:[%s342 + $0x38] sm:$0xff]
        %v4791 = vld [vmem:[%s342 + $0x40] sm:$0xff]
        %v4792 = vld [vmem:[%s342 + $0x48] sm:$0xff]
        %v4793 = vld [vmem:[%s342 + $0x50] sm:$0xff]
        %v4794 = vld [vmem:[%s342 + $0x58] sm:$0xff]
        %v4795 = vld [vmem:[%s342 + $0x60] sm:$0xff]
        %v4796 = vld [vmem:[%s342 + $0x68] sm:$0xff]
        %v4797 = vld [vmem:[%s342 + $0x70] sm:$0xff]
        %v4798 = vld [vmem:[%s342 + $0x78] sm:$0xff]
        %v4799 = vld [vmem:[%s342 + $0x80] sm:$0xff]
        %v4800 = vld [vmem:[%s342 + $0x88] sm:$0xff]
        %v4801 = vld [vmem:[%s342 + $0x90] sm:$0xff]
        %v4802 = vld [vmem:[%s342 + $0x98] sm:$0xff]
        %v4803 = vld [vmem:[%s342 + $0xa0] sm:$0xff]
        %v4804 = vld [vmem:[%s342 + $0xa8] sm:$0xff]
        %v4805 = vld [vmem:[%s342 + $0xb0] sm:$0xff]
        %v4806 = vld [vmem:[%s342 + $0xb8] sm:$0xff]
        %v4807 = vld [vmem:[%s342 + $0xc0] sm:$0xff]
        %v4808 = vld [vmem:[%s342 + $0xc8] sm:$0xff]
        %v4809 = vld [vmem:[%s342 + $0xd0] sm:$0xff]
        %v4810 = vld [vmem:[%s342 + $0xd8] sm:$0xff]
        %v4811 = vld [vmem:[%s342 + $0xe0] sm:$0xff]
        %v4812 = vld [vmem:[%s342 + $0xe8] sm:$0xff]
        %v4813 = vld [vmem:[%s342 + $0xf0] sm:$0xff]
        %v4814 = vld [vmem:[%s342 + $0xf8] sm:$0xff]
        %v4815 = vld [vmem:[%s342 + $0x100] sm:$0xff]
        %v4816 = vld [vmem:[%s342 + $0x108] sm:$0xff]
        %v4817 = vld [vmem:[%s342 + $0x110] sm:$0xff]
        %v4818 = vld [vmem:[%s342 + $0x118] sm:$0xff]
        %v4819 = vld [vmem:[%s342 + $0x120] sm:$0xff]
        %v4820 = vld [vmem:[%s342 + $0x128] sm:$0xff]
        %v4821 = vld [vmem:[%s342 + $0x130] sm:$0xff]
        %v4822 = vld [vmem:[%s342 + $0x138] sm:$0xff]
        %v4823 = vld [vmem:[%s342 + $0x140] sm:$0xff]
        %v4824 = vld [vmem:[%s342 + $0x148] sm:$0xff]
        %v4825 = vld [vmem:[%s342 + $0x150] sm:$0xff]
        %v4826 = vld [vmem:[%s342 + $0x158] sm:$0xff]
        %v4827 = vld [vmem:[%s342 + $0x160] sm:$0xff]
        %v4828 = vld [vmem:[%s342 + $0x168] sm:$0xff]
        %v4829 = vld [vmem:[%s342 + $0x170] sm:$0xff]
        %v4830 = vld [vmem:[%s342 + $0x178] sm:$0xff]
        %v4831 = vld [vmem:[%s342 + $0x180] sm:$0xff]
        %v4832 = vld [vmem:[%s342 + $0x188] sm:$0xff]
        %v4833 = vld [vmem:[%s342 + $0x190] sm:$0xff]
        %v4834 = vld [vmem:[%s342 + $0x198] sm:$0xff]
        %v4835 = vld [vmem:[%s342 + $0x1a0] sm:$0xff]
        %v4836 = vld [vmem:[%s342 + $0x1a8] sm:$0xff]
        %v4837 = vld [vmem:[%s342 + $0x1b0] sm:$0xff]
        %v4838 = vld [vmem:[%s342 + $0x1b8] sm:$0xff]
        %v4839 = vld [vmem:[%s342 + $0x1c0] sm:$0xff]
        %v4840 = vld [vmem:[%s342 + $0x1c8] sm:$0xff]
        %v4841 = vld [vmem:[%s342 + $0x1d0] sm:$0xff]
        %v4842 = vld [vmem:[%s342 + $0x1d8] sm:$0xff]
        %v4843 = vld [vmem:[%s342 + $0x1e0] sm:$0xff]
        %v4844 = vld [vmem:[%s342 + $0x1e8] sm:$0xff]
        %v4845 = vld [vmem:[%s342 + $0x1f0] sm:$0xff]
        %v4846 = vld [vmem:[%s342 + $0x1f8] sm:$0xff]
        %v4847 = vld [vmem:[%s342 + $0x200] sm:$0xff]
        %v4848 = vld [vmem:[%s342 + $0x208] sm:$0xff]
        %v4849 = vld [vmem:[%s342 + $0x210] sm:$0xff]
        %v4850 = vld [vmem:[%s342 + $0x218] sm:$0xff]
        %v4851 = vld [vmem:[%s342 + $0x220] sm:$0xff]
        %v4852 = vld [vmem:[%s342 + $0x228] sm:$0xff]
        %v4853 = vld [vmem:[%s342 + $0x230] sm:$0xff]
        %v4854 = vld [vmem:[%s342 + $0x238] sm:$0xff]
        %v4855 = vld [vmem:[%s342 + $0x240] sm:$0xff]
        %v4856 = vld [vmem:[%s342 + $0x248] sm:$0xff]
        %v4857 = vld [vmem:[%s342 + $0x250] sm:$0xff]
        %v4858 = vld [vmem:[%s342 + $0x258] sm:$0xff]
        %v4859 = vld [vmem:[%s342 + $0x260] sm:$0xff]
        %v4860 = vld [vmem:[%s342 + $0x268] sm:$0xff]
        %v4861 = vld [vmem:[%s342 + $0x270] sm:$0xff]
        %v4862 = vld [vmem:[%s342 + $0x278] sm:$0xff]
        %v4863 = vld [vmem:[%s342 + $0x280] sm:$0xff]
        %v4864 = vld [vmem:[%s342 + $0x288] sm:$0xff]
        %v4865 = vld [vmem:[%s342 + $0x290] sm:$0xff]
        %v4866 = vld [vmem:[%s342 + $0x298] sm:$0xff]
        %v4867 = vld [vmem:[%s342 + $0x2a0] sm:$0xff]
        %v4868 = vld [vmem:[%s342 + $0x2a8] sm:$0xff]
        %v4869 = vld [vmem:[%s342 + $0x2b0] sm:$0xff]
        %v4870 = vld [vmem:[%s342 + $0x2b8] sm:$0xff]
        %v4871 = vld [vmem:[%s342 + $0x2c0] sm:$0xff]
        %v4872 = vld [vmem:[%s342 + $0x2c8] sm:$0xff]
        %v4873 = vld [vmem:[%s342 + $0x2d0] sm:$0xff]
        %v4874 = vld [vmem:[%s342 + $0x2d8] sm:$0xff]
        %v4875 = vld [vmem:[%s342 + $0x2e0] sm:$0xff]
        %v4876 = vld [vmem:[%s342 + $0x2e8] sm:$0xff]
        %v4877 = vld [vmem:[%s342 + $0x2f0] sm:$0xff]
        %v4878 = vld [vmem:[%s342 + $0x2f8] sm:$0xff]
        %v4879 = vld [vmem:[%s342 + $0x300] sm:$0xff]
        %v4880 = vld [vmem:[%s342 + $0x308] sm:$0xff]
        %v4881 = vld [vmem:[%s342 + $0x310] sm:$0xff]
        %v4882 = vld [vmem:[%s342 + $0x318] sm:$0xff]
        %v4883 = vld [vmem:[%s342 + $0x320] sm:$0xff]
        %v4884 = vld [vmem:[%s342 + $0x328] sm:$0xff]
        %v4885 = vld [vmem:[%s342 + $0x330] sm:$0xff]
        %v4886 = vld [vmem:[%s342 + $0x338] sm:$0xff]
        %v4887 = vld [vmem:[%s342 + $0x340] sm:$0xff]
        %v4888 = vld [vmem:[%s342 + $0x348] sm:$0xff]
        %v4889 = vld [vmem:[%s342 + $0x350] sm:$0xff]
        %v4890 = vld [vmem:[%s342 + $0x358] sm:$0xff]
        %v4891 = vld [vmem:[%s342 + $0x360] sm:$0xff]
        %v4892 = vld [vmem:[%s342 + $0x368] sm:$0xff]
        %v4893 = vld [vmem:[%s342 + $0x370] sm:$0xff]
        %v4894 = vld [vmem:[%s342 + $0x378] sm:$0xff]
        %v4895 = vld [vmem:[%s342 + $0x380] sm:$0xff]
        %v4896 = vld [vmem:[%s342 + $0x388] sm:$0xff]
        %v4897 = vld [vmem:[%s342 + $0x390] sm:$0xff]
        %v4898 = vld [vmem:[%s342 + $0x398] sm:$0xff]
        %v4899 = vld [vmem:[%s342 + $0x3a0] sm:$0xff]
        %v4900 = vld [vmem:[%s342 + $0x3a8] sm:$0xff]
        %v4901 = vld [vmem:[%s342 + $0x3b0] sm:$0xff]
        %v4902 = vld [vmem:[%s342 + $0x3b8] sm:$0xff]
        %v4903 = vld [vmem:[%s342 + $0x3c0] sm:$0xff]
        %v4904 = vld [vmem:[%s342 + $0x3c8] sm:$0xff]
        %v4905 = vld [vmem:[%s342 + $0x3d0] sm:$0xff]
        %v4906 = vld [vmem:[%s342 + $0x3d8] sm:$0xff]
        %v4907 = vld [vmem:[%s342 + $0x3e0] sm:$0xff]
        %v4908 = vld [vmem:[%s342 + $0x3e8] sm:$0xff]
        %v4909 = vld [vmem:[%s342 + $0x3f0] sm:$0xff]
        %v4910 = vld [vmem:[%s342 + $0x3f8] sm:$0xff]
        %v4911 = vld [vmem:[%s342 + $0x400] sm:$0xff]
        %v4912 = vld [vmem:[%s342 + $0x408] sm:$0xff]
        %v4913 = vld [vmem:[%s342 + $0x410] sm:$0xff]
        %v4914 = vld [vmem:[%s342 + $0x418] sm:$0xff]
        %v4915 = vld [vmem:[%s342 + $0x420] sm:$0xff]
        %v4916 = vld [vmem:[%s342 + $0x428] sm:$0xff]
        %v4917 = vld [vmem:[%s342 + $0x430] sm:$0xff]
        %v4918 = vld [vmem:[%s342 + $0x438] sm:$0xff]
        %v4919 = vld [vmem:[%s342 + $0x440] sm:$0xff]
        %v4920 = vld [vmem:[%s342 + $0x448] sm:$0xff]
        %v4921 = vld [vmem:[%s342 + $0x450] sm:$0xff]
        %v4922 = vld [vmem:[%s342 + $0x458] sm:$0xff]
        %v4923 = vld [vmem:[%s342 + $0x460] sm:$0xff]
        %v4924 = vld [vmem:[%s342 + $0x468] sm:$0xff]
        %v4925 = vld [vmem:[%s342 + $0x470] sm:$0xff]
        %v4926 = vld [vmem:[%s342 + $0x478] sm:$0xff]
        %v4927 = vld [vmem:[%s342 + $0x480] sm:$0xff]
        %v4928 = vld [vmem:[%s342 + $0x488] sm:$0xff]
        %v4929 = vld [vmem:[%s342 + $0x490] sm:$0xff]
        %v4930 = vld [vmem:[%s342 + $0x498] sm:$0xff]
        %v4931 = vld [vmem:[%s342 + $0x4a0] sm:$0xff]
        %v4932 = vld [vmem:[%s342 + $0x4a8] sm:$0xff]
        %v4933 = vld [vmem:[%s342 + $0x4b0] sm:$0xff]
        %v4934 = vld [vmem:[%s342 + $0x4b8] sm:$0xff]
        %v4935 = vld [vmem:[%s342 + $0x4c0] sm:$0xff]
        %v4936 = vld [vmem:[%s342 + $0x4c8] sm:$0xff]
        %v4937 = vld [vmem:[%s342 + $0x4d0] sm:$0xff]
        %v4938 = vld [vmem:[%s342 + $0x4d8] sm:$0xff]
        %v4939 = vld [vmem:[%s342 + $0x4e0] sm:$0xff]
        %v4940 = vld [vmem:[%s342 + $0x4e8] sm:$0xff]
        %v4941 = vld [vmem:[%s342 + $0x4f0] sm:$0xff]
        %v4942 = vld [vmem:[%s342 + $0x4f8] sm:$0xff]
        %v4943 = vld [vmem:[%s342 + $0x500] sm:$0xff]
        %v4944 = vld [vmem:[%s342 + $0x508] sm:$0xff]
        %v4945 = vld [vmem:[%s342 + $0x510] sm:$0xff]
        %v4946 = vld [vmem:[%s342 + $0x518] sm:$0xff]
        %v4947 = vld [vmem:[%s342 + $0x520] sm:$0xff]
        %v4948 = vld [vmem:[%s342 + $0x528] sm:$0xff]
        %v4949 = vld [vmem:[%s342 + $0x530] sm:$0xff]
        %v4950 = vld [vmem:[%s342 + $0x538] sm:$0xff]
        %v4951 = vld [vmem:[%s342 + $0x540] sm:$0xff]
        %v4952 = vld [vmem:[%s342 + $0x548] sm:$0xff]
        %v4953 = vld [vmem:[%s342 + $0x550] sm:$0xff]
        %v4954 = vld [vmem:[%s342 + $0x558] sm:$0xff]
        %v4955 = vld [vmem:[%s342 + $0x560] sm:$0xff]
        %v4956 = vld [vmem:[%s342 + $0x568] sm:$0xff]
        %v4957 = vld [vmem:[%s342 + $0x570] sm:$0xff]
        %v4958 = vld [vmem:[%s342 + $0x578] sm:$0xff]
        %v4959 = vld [vmem:[%s342 + $0x580] sm:$0xff]
        %v4960 = vld [vmem:[%s342 + $0x588] sm:$0xff]
        %v4961 = vld [vmem:[%s342 + $0x590] sm:$0xff]
        %v4962 = vld [vmem:[%s342 + $0x598] sm:$0xff]
        %v4963 = vld [vmem:[%s342 + $0x5a0] sm:$0xff]
        %v4964 = vld [vmem:[%s342 + $0x5a8] sm:$0xff]
        %v4965 = vld [vmem:[%s342 + $0x5b0] sm:$0xff]
        %v4966 = vld [vmem:[%s342 + $0x5b8] sm:$0xff]
        %v4967 = vld [vmem:[%s342 + $0x5c0] sm:$0xff]
        %v4968 = vld [vmem:[%s342 + $0x5c8] sm:$0xff]
        %v4969 = vld [vmem:[%s342 + $0x5d0] sm:$0xff]
        %v4970 = vld [vmem:[%s342 + $0x5d8] sm:$0xff]
        %v4971 = vld [vmem:[%s342 + $0x5e0] sm:$0xff]
        %v4972 = vld [vmem:[%s342 + $0x5e8] sm:$0xff]
        %v4973 = vld [vmem:[%s342 + $0x5f0] sm:$0xff]
        %v4974 = vld [vmem:[%s342 + $0x5f8] sm:$0xff]
        %v4975 = vld [vmem:[%s351] sm:$0xf]
        %v4977 = vlaneseq
        %v4978 = vshrl.u32 %v4977, 7
        %v4979 = vsub.s32 0, %v4978
        %v4980 = vrot.slane %v4975, %v4979
        %v4981 = vlaneseq
        %v4982 = vshrl.u32 %v4981, 7
        %v4983 = vsub.s32 1, %v4982
        %v4984 = vrot.slane %v4975, %v4983
        %v4985 = vlaneseq
        %v4986 = vshrl.u32 %v4985, 7
        %v4987 = vsub.s32 2, %v4986
        %v4988 = vrot.slane %v4975, %v4987
        %v4989 = vlaneseq
        %v4990 = vshrl.u32 %v4989, 7
        %v4991 = vsub.s32 3, %v4990
        %v4992 = vrot.slane %v4975, %v4991
        %v5141 = vunpack.c.l.b16 %v4639
        %v5142 = vunpack.c.h.b16 %v4639
        %v5143 = vunpack.c.l.b16 %v4640
        %v5144 = vunpack.c.h.b16 %v4640
        %v5145 = vunpack.c.l.b16 %v4641
        %v5146 = vunpack.c.h.b16 %v4641
        %v5147 = vunpack.c.l.b16 %v4642
        %v5148 = vunpack.c.h.b16 %v4642
        %v5149 = vunpack.c.l.b16 %v4643
        %v5150 = vunpack.c.h.b16 %v4643
        %v5151 = vunpack.c.l.b16 %v4644
        %v5152 = vunpack.c.h.b16 %v4644
        %v5153 = vunpack.c.l.b16 %v4645
        %v5154 = vunpack.c.h.b16 %v4645
        %v5155 = vunpack.c.l.b16 %v4646
        %v5156 = vunpack.c.h.b16 %v4646
        %v5157 = vunpack.c.l.b16 %v4647
        %v5158 = vunpack.c.h.b16 %v4647
        %v5159 = vunpack.c.l.b16 %v4648
        %v5160 = vunpack.c.h.b16 %v4648
        %v5161 = vunpack.c.l.b16 %v4649
        %v5162 = vunpack.c.h.b16 %v4649
        %v5163 = vunpack.c.l.b16 %v4650
        %v5164 = vunpack.c.h.b16 %v4650
        %v5165 = vunpack.c.l.b16 %v4651
        %v5166 = vunpack.c.h.b16 %v4651
        %v5167 = vunpack.c.l.b16 %v4652
        %v5168 = vunpack.c.h.b16 %v4652
        %v5169 = vunpack.c.l.b16 %v4653
        %v5170 = vunpack.c.h.b16 %v4653
        %v5171 = vunpack.c.l.b16 %v4654
        %v5172 = vunpack.c.h.b16 %v4654
        %v5173 = vunpack.c.l.b16 %v4655
        %v5174 = vunpack.c.h.b16 %v4655
        %v5175 = vunpack.c.l.b16 %v4656
        %v5176 = vunpack.c.h.b16 %v4656
        %v5177 = vunpack.c.l.b16 %v4657
        %v5178 = vunpack.c.h.b16 %v4657
        %v5179 = vunpack.c.l.b16 %v4658
        %v5180 = vunpack.c.h.b16 %v4658
        %v5181 = vunpack.c.l.b16 %v4659
        %v5182 = vunpack.c.h.b16 %v4659
        %v5183 = vunpack.c.l.b16 %v4660
        %v5184 = vunpack.c.h.b16 %v4660
        %v5185 = vunpack.c.l.b16 %v4661
        %v5186 = vunpack.c.h.b16 %v4661
        %v5187 = vunpack.c.l.b16 %v4662
        %v5188 = vunpack.c.h.b16 %v4662
        %v5189 = vunpack.c.l.b16 %v4663
        %v5190 = vunpack.c.h.b16 %v4663
        %v5191 = vunpack.c.l.b16 %v4664
        %v5192 = vunpack.c.h.b16 %v4664
        %v5193 = vunpack.c.l.b16 %v4665
        %v5194 = vunpack.c.h.b16 %v4665
        %v5195 = vunpack.c.l.b16 %v4666
        %v5196 = vunpack.c.h.b16 %v4666
        %v5197 = vunpack.c.l.b16 %v4667
        %v5198 = vunpack.c.h.b16 %v4667
        %v5199 = vunpack.c.l.b16 %v4668
        %v5200 = vunpack.c.h.b16 %v4668
        %v5201 = vunpack.c.l.b16 %v4669
        %v5202 = vunpack.c.h.b16 %v4669
        %v5203 = vunpack.c.l.b16 %v4670
        %v5204 = vunpack.c.h.b16 %v4670
        %v5205 = vunpack.c.l.b16 %v4671
        %v5206 = vunpack.c.h.b16 %v4671
        %v5207 = vunpack.c.l.b16 %v4672
        %v5208 = vunpack.c.h.b16 %v4672
        %v5209 = vunpack.c.l.b16 %v4673
        %v5210 = vunpack.c.h.b16 %v4673
        %v5211 = vunpack.c.l.b16 %v4674
        %v5212 = vunpack.c.h.b16 %v4674
        %v5213 = vunpack.c.l.b16 %v4675
        %v5214 = vunpack.c.h.b16 %v4675
        %v5215 = vunpack.c.l.b16 %v4676
        %v5216 = vunpack.c.h.b16 %v4676
        %v5217 = vunpack.c.l.b16 %v4677
        %v5218 = vunpack.c.h.b16 %v4677
        %v5219 = vunpack.c.l.b16 %v4678
        %v5220 = vunpack.c.h.b16 %v4678
        %v5221 = vunpack.c.l.b16 %v4679
        %v5222 = vunpack.c.h.b16 %v4679
        %v5223 = vunpack.c.l.b16 %v4680
        %v5224 = vunpack.c.h.b16 %v4680
        %v5225 = vunpack.c.l.b16 %v4681
        %v5226 = vunpack.c.h.b16 %v4681
        %v5227 = vunpack.c.l.b16 %v4682
        %v5228 = vunpack.c.h.b16 %v4682
        %v5229 = vunpack.c.l.b16 %v4683
        %v5230 = vunpack.c.h.b16 %v4683
        %v5231 = vunpack.c.l.b16 %v4684
        %v5232 = vunpack.c.h.b16 %v4684
        %v5233 = vunpack.c.l.b16 %v4685
        %v5234 = vunpack.c.h.b16 %v4685
        %v5235 = vunpack.c.l.b16 %v4686
        %v5236 = vunpack.c.h.b16 %v4686
        %v5237 = vunpack.c.l.b16 %v4687
        %v5238 = vunpack.c.h.b16 %v4687
        %v5239 = vunpack.c.l.b16 %v4688
        %v5240 = vunpack.c.h.b16 %v4688
        %v5241 = vunpack.c.l.b16 %v4689
        %v5242 = vunpack.c.h.b16 %v4689
        %v5243 = vunpack.c.l.b16 %v4690
        %v5244 = vunpack.c.h.b16 %v4690
        %v5245 = vunpack.c.l.b16 %v4691
        %v5246 = vunpack.c.h.b16 %v4691
        %v5247 = vunpack.c.l.b16 %v4692
        %v5248 = vunpack.c.h.b16 %v4692
        %v5249 = vunpack.c.l.b16 %v4693
        %v5250 = vunpack.c.h.b16 %v4693
        %v5251 = vunpack.c.l.b16 %v4694
        %v5252 = vunpack.c.h.b16 %v4694
        %v5253 = vunpack.c.l.b16 %v4695
        %v5254 = vunpack.c.h.b16 %v4695
        %v5255 = vunpack.c.l.b16 %v4696
        %v5256 = vunpack.c.h.b16 %v4696
        %v5257 = vunpack.c.l.b16 %v4697
        %v5258 = vunpack.c.h.b16 %v4697
        %v5259 = vunpack.c.l.b16 %v4698
        %v5260 = vunpack.c.h.b16 %v4698
        %v5261 = vunpack.c.l.b16 %v4699
        %v5262 = vunpack.c.h.b16 %v4699
        %v5263 = vunpack.c.l.b16 %v4700
        %v5264 = vunpack.c.h.b16 %v4700
        %v5265 = vunpack.c.l.b16 %v4701
        %v5266 = vunpack.c.h.b16 %v4701
        %v5267 = vunpack.c.l.b16 %v4702
        %v5268 = vunpack.c.h.b16 %v4702
        %v5269 = vunpack.c.l.b16 %v4703
        %v5270 = vunpack.c.h.b16 %v4703
        %v5271 = vunpack.c.l.b16 %v4704
        %v5272 = vunpack.c.h.b16 %v4704
        %v5273 = vunpack.c.l.b16 %v4705
        %v5274 = vunpack.c.h.b16 %v4705
        %v5275 = vunpack.c.l.b16 %v4706
        %v5276 = vunpack.c.h.b16 %v4706
        %v5277 = vunpack.c.l.b16 %v4707
        %v5278 = vunpack.c.h.b16 %v4707
        %v5279 = vunpack.c.l.b16 %v4708
        %v5280 = vunpack.c.h.b16 %v4708
        %v5281 = vunpack.c.l.b16 %v4709
        %v5282 = vunpack.c.h.b16 %v4709
        %v5283 = vunpack.c.l.b16 %v4710
        %v5284 = vunpack.c.h.b16 %v4710
        %v5285 = vunpack.c.l.b16 %v4711
        %v5286 = vunpack.c.h.b16 %v4711
        %v5287 = vunpack.c.l.b16 %v4712
        %v5288 = vunpack.c.h.b16 %v4712
        %v5289 = vunpack.c.l.b16 %v4713
        %v5290 = vunpack.c.h.b16 %v4713
        %v5291 = vunpack.c.l.b16 %v4714
        %v5292 = vunpack.c.h.b16 %v4714
        %v5293 = vunpack.c.l.b16 %v4715
        %v5294 = vunpack.c.h.b16 %v4715
        %v5295 = vunpack.c.l.b16 %v4716
        %v5296 = vunpack.c.h.b16 %v4716
        %v5297 = vunpack.c.l.b16 %v4717
        %v5298 = vunpack.c.h.b16 %v4717
        %v5299 = vunpack.c.l.b16 %v4718
        %v5300 = vunpack.c.h.b16 %v4718
        %v5301 = vunpack.c.l.b16 %v4719
        %v5302 = vunpack.c.h.b16 %v4719
        %v5303 = vunpack.c.l.b16 %v4720
        %v5304 = vunpack.c.h.b16 %v4720
        %v5305 = vunpack.c.l.b16 %v4721
        %v5306 = vunpack.c.h.b16 %v4721
        %v5307 = vunpack.c.l.b16 %v4722
        %v5308 = vunpack.c.h.b16 %v4722
        %v5309 = vunpack.c.l.b16 %v4723
        %v5310 = vunpack.c.h.b16 %v4723
        %v5311 = vunpack.c.l.b16 %v4724
        %v5312 = vunpack.c.h.b16 %v4724
        %v5313 = vunpack.c.l.b16 %v4725
        %v5314 = vunpack.c.h.b16 %v4725
        %v5315 = vunpack.c.l.b16 %v4726
        %v5316 = vunpack.c.h.b16 %v4726
        %v5317 = vunpack.c.l.b16 %v4727
        %v5318 = vunpack.c.h.b16 %v4727
        %v5319 = vunpack.c.l.b16 %v4728
        %v5320 = vunpack.c.h.b16 %v4728
        %v5321 = vunpack.c.l.b16 %v4729
        %v5322 = vunpack.c.h.b16 %v4729
        %v5323 = vunpack.c.l.b16 %v4730
        %v5324 = vunpack.c.h.b16 %v4730
        %v5325 = vunpack.c.l.b16 %v4731
        %v5326 = vunpack.c.h.b16 %v4731
        %v5327 = vunpack.c.l.b16 %v4732
        %v5328 = vunpack.c.h.b16 %v4732
        %v5329 = vunpack.c.l.b16 %v4733
        %v5330 = vunpack.c.h.b16 %v4733
        %v5331 = vunpack.c.l.b16 %v4734
        %v5332 = vunpack.c.h.b16 %v4734
        %v5333 = vunpack.c.l.b16 %v4735
        %v5334 = vunpack.c.h.b16 %v4735
        %v5335 = vunpack.c.l.b16 %v4736
        %v5336 = vunpack.c.h.b16 %v4736
        %v5337 = vunpack.c.l.b16 %v4737
        %v5338 = vunpack.c.h.b16 %v4737
        %v5339 = vunpack.c.l.b16 %v4738
        %v5340 = vunpack.c.h.b16 %v4738
        %v5341 = vunpack.c.l.b16 %v4739
        %v5342 = vunpack.c.h.b16 %v4739
        %v5343 = vunpack.c.l.b16 %v4740
        %v5344 = vunpack.c.h.b16 %v4740
        %v5345 = vunpack.c.l.b16 %v4741
        %v5346 = vunpack.c.h.b16 %v4741
        %v5347 = vunpack.c.l.b16 %v4742
        %v5348 = vunpack.c.h.b16 %v4742
        %v5349 = vunpack.c.l.b16 %v4743
        %v5350 = vunpack.c.h.b16 %v4743
        %v5351 = vunpack.c.l.b16 %v4744
        %v5352 = vunpack.c.h.b16 %v4744
        %v5353 = vunpack.c.l.b16 %v4745
        %v5354 = vunpack.c.h.b16 %v4745
        %v5355 = vunpack.c.l.b16 %v4746
        %v5356 = vunpack.c.h.b16 %v4746
        %v5357 = vunpack.c.l.b16 %v4747
        %v5358 = vunpack.c.h.b16 %v4747
        %v5359 = vunpack.c.l.b16 %v4748
        %v5360 = vunpack.c.h.b16 %v4748
        %v5361 = vunpack.c.l.b16 %v4749
        %v5362 = vunpack.c.h.b16 %v4749
        %v5363 = vunpack.c.l.b16 %v4750
        %v5364 = vunpack.c.h.b16 %v4750
        %v5365 = vunpack.c.l.b16 %v4751
        %v5366 = vunpack.c.h.b16 %v4751
        %v5367 = vunpack.c.l.b16 %v4752
        %v5368 = vunpack.c.h.b16 %v4752
        %v5369 = vunpack.c.l.b16 %v4753
        %v5370 = vunpack.c.h.b16 %v4753
        %v5371 = vunpack.c.l.b16 %v4754
        %v5372 = vunpack.c.h.b16 %v4754
        %v5373 = vunpack.c.l.b16 %v4755
        %v5374 = vunpack.c.h.b16 %v4755
        %v5375 = vunpack.c.l.b16 %v4756
        %v5376 = vunpack.c.h.b16 %v4756
        %v5377 = vunpack.c.l.b16 %v4757
        %v5378 = vunpack.c.h.b16 %v4757
        %v5379 = vunpack.c.l.b16 %v4758
        %v5380 = vunpack.c.h.b16 %v4758
        %v5381 = vunpack.c.l.b16 %v4759
        %v5382 = vunpack.c.h.b16 %v4759
        %v5383 = vunpack.c.l.b16 %v4760
        %v5384 = vunpack.c.h.b16 %v4760
        %v5385 = vunpack.c.l.b16 %v4761
        %v5386 = vunpack.c.h.b16 %v4761
        %v5387 = vunpack.c.l.b16 %v4762
        %v5388 = vunpack.c.h.b16 %v4762
        %v5389 = vunpack.c.l.b16 %v4763
        %v5390 = vunpack.c.h.b16 %v4763
        %v5391 = vunpack.c.l.b16 %v4764
        %v5392 = vunpack.c.h.b16 %v4764
        %v5393 = vunpack.c.l.b16 %v4765
        %v5394 = vunpack.c.h.b16 %v4765
        %v5395 = vunpack.c.l.b16 %v4766
        %v5396 = vunpack.c.h.b16 %v4766
        %v5397 = vunpack.c.l.b16 %v4767
        %v5398 = vunpack.c.h.b16 %v4767
        %v5399 = vunpack.c.l.b16 %v4768
        %v5400 = vunpack.c.h.b16 %v4768
        %v5401 = vunpack.c.l.b16 %v4769
        %v5402 = vunpack.c.h.b16 %v4769
        %v5403 = vunpack.c.l.b16 %v4770
        %v5404 = vunpack.c.h.b16 %v4770
        %v5405 = vunpack.c.l.b16 %v4771
        %v5406 = vunpack.c.h.b16 %v4771
        %v5407 = vunpack.c.l.b16 %v4772
        %v5408 = vunpack.c.h.b16 %v4772
        %v5409 = vunpack.c.l.b16 %v4773
        %v5410 = vunpack.c.h.b16 %v4773
        %v5411 = vunpack.c.l.b16 %v4774
        %v5412 = vunpack.c.h.b16 %v4774
        %v5413 = vunpack.c.l.b16 %v4775
        %v5414 = vunpack.c.h.b16 %v4775
        %v5415 = vunpack.c.l.b16 %v4776
        %v5416 = vunpack.c.h.b16 %v4776
        %v5417 = vunpack.c.l.b16 %v4777
        %v5418 = vunpack.c.h.b16 %v4777
        %v5419 = vunpack.c.l.b16 %v4778
        %v5420 = vunpack.c.h.b16 %v4778
        %v5421 = vunpack.c.l.b16 %v4779
        %v5422 = vunpack.c.h.b16 %v4779
        %v5423 = vunpack.c.l.b16 %v4780
        %v5424 = vunpack.c.h.b16 %v4780
        %v5425 = vunpack.c.l.b16 %v4781
        %v5426 = vunpack.c.h.b16 %v4781
        %v5427 = vunpack.c.l.b16 %v4782
        %v5428 = vunpack.c.h.b16 %v4782
        %v5429 = vpack.c.b16 %v5147, %v5141
        %v5430 = vpack.c.b16 %v5148, %v5142
        %v5431 = vpack.c.b16 %v5149, %v5143
        %v5432 = vpack.c.b16 %v5150, %v5144
        %v5433 = vpack.c.b16 %v5151, %v5145
        %v5434 = vpack.c.b16 %v5152, %v5146
        %v5435 = vpack.c.b16 %v5159, %v5153
        %v5436 = vpack.c.b16 %v5160, %v5154
        %v5437 = vpack.c.b16 %v5161, %v5155
        %v5438 = vpack.c.b16 %v5162, %v5156
        %v5439 = vpack.c.b16 %v5163, %v5157
        %v5440 = vpack.c.b16 %v5164, %v5158
        %v5441 = vpack.c.b16 %v5171, %v5165
        %v5442 = vpack.c.b16 %v5172, %v5166
        %v5443 = vpack.c.b16 %v5173, %v5167
        %v5444 = vpack.c.b16 %v5174, %v5168
        %v5445 = vpack.c.b16 %v5175, %v5169
        %v5446 = vpack.c.b16 %v5176, %v5170
        %v5447 = vpack.c.b16 %v5183, %v5177
        %v5448 = vpack.c.b16 %v5184, %v5178
        %v5449 = vpack.c.b16 %v5185, %v5179
        %v5450 = vpack.c.b16 %v5186, %v5180
        %v5451 = vpack.c.b16 %v5187, %v5181
        %v5452 = vpack.c.b16 %v5188, %v5182
        %v5453 = vpack.c.b16 %v5195, %v5189
        %v5454 = vpack.c.b16 %v5196, %v5190
        %v5455 = vpack.c.b16 %v5197, %v5191
        %v5456 = vpack.c.b16 %v5198, %v5192
        %v5457 = vpack.c.b16 %v5199, %v5193
        %v5458 = vpack.c.b16 %v5200, %v5194
        %v5459 = vpack.c.b16 %v5207, %v5201
        %v5460 = vpack.c.b16 %v5208, %v5202
        %v5461 = vpack.c.b16 %v5209, %v5203
        %v5462 = vpack.c.b16 %v5210, %v5204
        %v5463 = vpack.c.b16 %v5211, %v5205
        %v5464 = vpack.c.b16 %v5212, %v5206
        %v5465 = vpack.c.b16 %v5219, %v5213
        %v5466 = vpack.c.b16 %v5220, %v5214
        %v5467 = vpack.c.b16 %v5221, %v5215
        %v5468 = vpack.c.b16 %v5222, %v5216
        %v5469 = vpack.c.b16 %v5223, %v5217
        %v5470 = vpack.c.b16 %v5224, %v5218
        %v5471 = vpack.c.b16 %v5231, %v5225
        %v5472 = vpack.c.b16 %v5232, %v5226
        %v5473 = vpack.c.b16 %v5233, %v5227
        %v5474 = vpack.c.b16 %v5234, %v5228
        %v5475 = vpack.c.b16 %v5235, %v5229
        %v5476 = vpack.c.b16 %v5236, %v5230
        %v5477 = vpack.c.b16 %v5243, %v5237
        %v5478 = vpack.c.b16 %v5244, %v5238
        %v5479 = vpack.c.b16 %v5245, %v5239
        %v5480 = vpack.c.b16 %v5246, %v5240
        %v5481 = vpack.c.b16 %v5247, %v5241
        %v5482 = vpack.c.b16 %v5248, %v5242
        %v5483 = vpack.c.b16 %v5255, %v5249
        %v5484 = vpack.c.b16 %v5256, %v5250
        %v5485 = vpack.c.b16 %v5257, %v5251
        %v5486 = vpack.c.b16 %v5258, %v5252
        %v5487 = vpack.c.b16 %v5259, %v5253
        %v5488 = vpack.c.b16 %v5260, %v5254
        %v5489 = vpack.c.b16 %v5267, %v5261
        %v5490 = vpack.c.b16 %v5268, %v5262
        %v5491 = vpack.c.b16 %v5269, %v5263
        %v5492 = vpack.c.b16 %v5270, %v5264
        %v5493 = vpack.c.b16 %v5271, %v5265
        %v5494 = vpack.c.b16 %v5272, %v5266
        %v5495 = vpack.c.b16 %v5279, %v5273
        %v5496 = vpack.c.b16 %v5280, %v5274
        %v5497 = vpack.c.b16 %v5281, %v5275
        %v5498 = vpack.c.b16 %v5282, %v5276
        %v5499 = vpack.c.b16 %v5283, %v5277
        %v5500 = vpack.c.b16 %v5284, %v5278
        %v5501 = vpack.c.b16 %v5291, %v5285
        %v5502 = vpack.c.b16 %v5292, %v5286
        %v5503 = vpack.c.b16 %v5293, %v5287
        %v5504 = vpack.c.b16 %v5294, %v5288
        %v5505 = vpack.c.b16 %v5295, %v5289
        %v5506 = vpack.c.b16 %v5296, %v5290
        %v5507 = vpack.c.b16 %v5303, %v5297
        %v5508 = vpack.c.b16 %v5304, %v5298
        %v5509 = vpack.c.b16 %v5305, %v5299
        %v5510 = vpack.c.b16 %v5306, %v5300
        %v5511 = vpack.c.b16 %v5307, %v5301
        %v5512 = vpack.c.b16 %v5308, %v5302
        %v5513 = vpack.c.b16 %v5315, %v5309
        %v5514 = vpack.c.b16 %v5316, %v5310
        %v5515 = vpack.c.b16 %v5317, %v5311
        %v5516 = vpack.c.b16 %v5318, %v5312
        %v5517 = vpack.c.b16 %v5319, %v5313
        %v5518 = vpack.c.b16 %v5320, %v5314
        %v5519 = vpack.c.b16 %v5327, %v5321
        %v5520 = vpack.c.b16 %v5328, %v5322
        %v5521 = vpack.c.b16 %v5329, %v5323
        %v5522 = vpack.c.b16 %v5330, %v5324
        %v5523 = vpack.c.b16 %v5331, %v5325
        %v5524 = vpack.c.b16 %v5332, %v5326
        %v5525 = vpack.c.b16 %v5339, %v5333
        %v5526 = vpack.c.b16 %v5340, %v5334
        %v5527 = vpack.c.b16 %v5341, %v5335
        %v5528 = vpack.c.b16 %v5342, %v5336
        %v5529 = vpack.c.b16 %v5343, %v5337
        %v5530 = vpack.c.b16 %v5344, %v5338
        %v5531 = vpack.c.b16 %v5351, %v5345
        %v5532 = vpack.c.b16 %v5352, %v5346
        %v5533 = vpack.c.b16 %v5353, %v5347
        %v5534 = vpack.c.b16 %v5354, %v5348
        %v5535 = vpack.c.b16 %v5355, %v5349
        %v5536 = vpack.c.b16 %v5356, %v5350
        %v5537 = vpack.c.b16 %v5363, %v5357
        %v5538 = vpack.c.b16 %v5364, %v5358
        %v5539 = vpack.c.b16 %v5365, %v5359
        %v5540 = vpack.c.b16 %v5366, %v5360
        %v5541 = vpack.c.b16 %v5367, %v5361
        %v5542 = vpack.c.b16 %v5368, %v5362
        %v5543 = vpack.c.b16 %v5375, %v5369
        %v5544 = vpack.c.b16 %v5376, %v5370
        %v5545 = vpack.c.b16 %v5377, %v5371
        %v5546 = vpack.c.b16 %v5378, %v5372
        %v5547 = vpack.c.b16 %v5379, %v5373
        %v5548 = vpack.c.b16 %v5380, %v5374
        %v5549 = vpack.c.b16 %v5387, %v5381
        %v5550 = vpack.c.b16 %v5388, %v5382
        %v5551 = vpack.c.b16 %v5389, %v5383
        %v5552 = vpack.c.b16 %v5390, %v5384
        %v5553 = vpack.c.b16 %v5391, %v5385
        %v5554 = vpack.c.b16 %v5392, %v5386
        %v5555 = vpack.c.b16 %v5399, %v5393
        %v5556 = vpack.c.b16 %v5400, %v5394
        %v5557 = vpack.c.b16 %v5401, %v5395
        %v5558 = vpack.c.b16 %v5402, %v5396
        %v5559 = vpack.c.b16 %v5403, %v5397
        %v5560 = vpack.c.b16 %v5404, %v5398
        %v5561 = vpack.c.b16 %v5411, %v5405
        %v5562 = vpack.c.b16 %v5412, %v5406
        %v5563 = vpack.c.b16 %v5413, %v5407
        %v5564 = vpack.c.b16 %v5414, %v5408
        %v5565 = vpack.c.b16 %v5415, %v5409
        %v5566 = vpack.c.b16 %v5416, %v5410
        %v5567 = vpack.c.b16 %v5423, %v5417
        %v5568 = vpack.c.b16 %v5424, %v5418
        %v5569 = vpack.c.b16 %v5425, %v5419
        %v5570 = vpack.c.b16 %v5426, %v5420
        %v5571 = vpack.c.b16 %v5427, %v5421
        %v5572 = vpack.c.b16 %v5428, %v5422
        %v5909 = vunpack.c.l.b16 %v4783
        %v5910 = vunpack.c.h.b16 %v4783
        %v5911 = vunpack.c.l.b16 %v4784
        %v5912 = vunpack.c.h.b16 %v4784
        %v5913 = vunpack.c.l.b16 %v4785
        %v5914 = vunpack.c.h.b16 %v4785
        %v5915 = vunpack.c.l.b16 %v4786
        %v5916 = vunpack.c.h.b16 %v4786
        %v5917 = vunpack.c.l.b16 %v4787
        %v5918 = vunpack.c.h.b16 %v4787
        %v5919 = vunpack.c.l.b16 %v4788
        %v5920 = vunpack.c.h.b16 %v4788
        %v5921 = vunpack.c.l.b16 %v4789
        %v5922 = vunpack.c.h.b16 %v4789
        %v5923 = vunpack.c.l.b16 %v4790
        %v5924 = vunpack.c.h.b16 %v4790
        %v5925 = vunpack.c.l.b16 %v4791
        %v5926 = vunpack.c.h.b16 %v4791
        %v5927 = vunpack.c.l.b16 %v4792
        %v5928 = vunpack.c.h.b16 %v4792
        %v5929 = vunpack.c.l.b16 %v4793
        %v5930 = vunpack.c.h.b16 %v4793
        %v5931 = vunpack.c.l.b16 %v4794
        %v5932 = vunpack.c.h.b16 %v4794
        %v5933 = vunpack.c.l.b16 %v4795
        %v5934 = vunpack.c.h.b16 %v4795
        %v5935 = vunpack.c.l.b16 %v4796
        %v5936 = vunpack.c.h.b16 %v4796
        %v5937 = vunpack.c.l.b16 %v4797
        %v5938 = vunpack.c.h.b16 %v4797
        %v5939 = vunpack.c.l.b16 %v4798
        %v5940 = vunpack.c.h.b16 %v4798
        %v5941 = vunpack.c.l.b16 %v4799
        %v5942 = vunpack.c.h.b16 %v4799
        %v5943 = vunpack.c.l.b16 %v4800
        %v5944 = vunpack.c.h.b16 %v4800
        %v5945 = vunpack.c.l.b16 %v4801
        %v5946 = vunpack.c.h.b16 %v4801
        %v5947 = vunpack.c.l.b16 %v4802
        %v5948 = vunpack.c.h.b16 %v4802
        %v5949 = vunpack.c.l.b16 %v4803
        %v5950 = vunpack.c.h.b16 %v4803
        %v5951 = vunpack.c.l.b16 %v4804
        %v5952 = vunpack.c.h.b16 %v4804
        %v5953 = vunpack.c.l.b16 %v4805
        %v5954 = vunpack.c.h.b16 %v4805
        %v5955 = vunpack.c.l.b16 %v4806
        %v5956 = vunpack.c.h.b16 %v4806
        %v5957 = vunpack.c.l.b16 %v4807
        %v5958 = vunpack.c.h.b16 %v4807
        %v5959 = vunpack.c.l.b16 %v4808
        %v5960 = vunpack.c.h.b16 %v4808
        %v5961 = vunpack.c.l.b16 %v4809
        %v5962 = vunpack.c.h.b16 %v4809
        %v5963 = vunpack.c.l.b16 %v4810
        %v5964 = vunpack.c.h.b16 %v4810
        %v5965 = vunpack.c.l.b16 %v4811
        %v5966 = vunpack.c.h.b16 %v4811
        %v5967 = vunpack.c.l.b16 %v4812
        %v5968 = vunpack.c.h.b16 %v4812
        %v5969 = vunpack.c.l.b16 %v4813
        %v5970 = vunpack.c.h.b16 %v4813
        %v5971 = vunpack.c.l.b16 %v4814
        %v5972 = vunpack.c.h.b16 %v4814
        %v5973 = vunpack.c.l.b16 %v4815
        %v5974 = vunpack.c.h.b16 %v4815
        %v5975 = vunpack.c.l.b16 %v4816
        %v5976 = vunpack.c.h.b16 %v4816
        %v5977 = vunpack.c.l.b16 %v4817
        %v5978 = vunpack.c.h.b16 %v4817
        %v5979 = vunpack.c.l.b16 %v4818
        %v5980 = vunpack.c.h.b16 %v4818
        %v5981 = vunpack.c.l.b16 %v4819
        %v5982 = vunpack.c.h.b16 %v4819
        %v5983 = vunpack.c.l.b16 %v4820
        %v5984 = vunpack.c.h.b16 %v4820
        %v5985 = vunpack.c.l.b16 %v4821
        %v5986 = vunpack.c.h.b16 %v4821
        %v5987 = vunpack.c.l.b16 %v4822
        %v5988 = vunpack.c.h.b16 %v4822
        %v5989 = vunpack.c.l.b16 %v4823
        %v5990 = vunpack.c.h.b16 %v4823
        %v5991 = vunpack.c.l.b16 %v4824
        %v5992 = vunpack.c.h.b16 %v4824
        %v5993 = vunpack.c.l.b16 %v4825
        %v5994 = vunpack.c.h.b16 %v4825
        %v5995 = vunpack.c.l.b16 %v4826
        %v5996 = vunpack.c.h.b16 %v4826
        %v5997 = vunpack.c.l.b16 %v4827
        %v5998 = vunpack.c.h.b16 %v4827
        %v5999 = vunpack.c.l.b16 %v4828
        %v6000 = vunpack.c.h.b16 %v4828
        %v6001 = vunpack.c.l.b16 %v4829
        %v6002 = vunpack.c.h.b16 %v4829
        %v6003 = vunpack.c.l.b16 %v4830
        %v6004 = vunpack.c.h.b16 %v4830
        %v6005 = vunpack.c.l.b16 %v4831
        %v6006 = vunpack.c.h.b16 %v4831
        %v6007 = vunpack.c.l.b16 %v4832
        %v6008 = vunpack.c.h.b16 %v4832
        %v6009 = vunpack.c.l.b16 %v4833
        %v6010 = vunpack.c.h.b16 %v4833
        %v6011 = vunpack.c.l.b16 %v4834
        %v6012 = vunpack.c.h.b16 %v4834
        %v6013 = vunpack.c.l.b16 %v4835
        %v6014 = vunpack.c.h.b16 %v4835
        %v6015 = vunpack.c.l.b16 %v4836
        %v6016 = vunpack.c.h.b16 %v4836
        %v6017 = vunpack.c.l.b16 %v4837
        %v6018 = vunpack.c.h.b16 %v4837
        %v6019 = vunpack.c.l.b16 %v4838
        %v6020 = vunpack.c.h.b16 %v4838
        %v6021 = vunpack.c.l.b16 %v4839
        %v6022 = vunpack.c.h.b16 %v4839
        %v6023 = vunpack.c.l.b16 %v4840
        %v6024 = vunpack.c.h.b16 %v4840
        %v6025 = vunpack.c.l.b16 %v4841
        %v6026 = vunpack.c.h.b16 %v4841
        %v6027 = vunpack.c.l.b16 %v4842
        %v6028 = vunpack.c.h.b16 %v4842
        %v6029 = vunpack.c.l.b16 %v4843
        %v6030 = vunpack.c.h.b16 %v4843
        %v6031 = vunpack.c.l.b16 %v4844
        %v6032 = vunpack.c.h.b16 %v4844
        %v6033 = vunpack.c.l.b16 %v4845
        %v6034 = vunpack.c.h.b16 %v4845
        %v6035 = vunpack.c.l.b16 %v4846
        %v6036 = vunpack.c.h.b16 %v4846
        %v6037 = vunpack.c.l.b16 %v4847
        %v6038 = vunpack.c.h.b16 %v4847
        %v6039 = vunpack.c.l.b16 %v4848
        %v6040 = vunpack.c.h.b16 %v4848
        %v6041 = vunpack.c.l.b16 %v4849
        %v6042 = vunpack.c.h.b16 %v4849
        %v6043 = vunpack.c.l.b16 %v4850
        %v6044 = vunpack.c.h.b16 %v4850
        %v6045 = vunpack.c.l.b16 %v4851
        %v6046 = vunpack.c.h.b16 %v4851
        %v6047 = vunpack.c.l.b16 %v4852
        %v6048 = vunpack.c.h.b16 %v4852
        %v6049 = vunpack.c.l.b16 %v4853
        %v6050 = vunpack.c.h.b16 %v4853
        %v6051 = vunpack.c.l.b16 %v4854
        %v6052 = vunpack.c.h.b16 %v4854
        %v6053 = vunpack.c.l.b16 %v4855
        %v6054 = vunpack.c.h.b16 %v4855
        %v6055 = vunpack.c.l.b16 %v4856
        %v6056 = vunpack.c.h.b16 %v4856
        %v6057 = vunpack.c.l.b16 %v4857
        %v6058 = vunpack.c.h.b16 %v4857
        %v6059 = vunpack.c.l.b16 %v4858
        %v6060 = vunpack.c.h.b16 %v4858
        %v6061 = vunpack.c.l.b16 %v4859
        %v6062 = vunpack.c.h.b16 %v4859
        %v6063 = vunpack.c.l.b16 %v4860
        %v6064 = vunpack.c.h.b16 %v4860
        %v6065 = vunpack.c.l.b16 %v4861
        %v6066 = vunpack.c.h.b16 %v4861
        %v6067 = vunpack.c.l.b16 %v4862
        %v6068 = vunpack.c.h.b16 %v4862
        %v6069 = vunpack.c.l.b16 %v4863
        %v6070 = vunpack.c.h.b16 %v4863
        %v6071 = vunpack.c.l.b16 %v4864
        %v6072 = vunpack.c.h.b16 %v4864
        %v6073 = vunpack.c.l.b16 %v4865
        %v6074 = vunpack.c.h.b16 %v4865
        %v6075 = vunpack.c.l.b16 %v4866
        %v6076 = vunpack.c.h.b16 %v4866
        %v6077 = vunpack.c.l.b16 %v4867
        %v6078 = vunpack.c.h.b16 %v4867
        %v6079 = vunpack.c.l.b16 %v4868
        %v6080 = vunpack.c.h.b16 %v4868
        %v6081 = vunpack.c.l.b16 %v4869
        %v6082 = vunpack.c.h.b16 %v4869
        %v6083 = vunpack.c.l.b16 %v4870
        %v6084 = vunpack.c.h.b16 %v4870
        %v6085 = vunpack.c.l.b16 %v4871
        %v6086 = vunpack.c.h.b16 %v4871
        %v6087 = vunpack.c.l.b16 %v4872
        %v6088 = vunpack.c.h.b16 %v4872
        %v6089 = vunpack.c.l.b16 %v4873
        %v6090 = vunpack.c.h.b16 %v4873
        %v6091 = vunpack.c.l.b16 %v4874
        %v6092 = vunpack.c.h.b16 %v4874
        %v6093 = vunpack.c.l.b16 %v4875
        %v6094 = vunpack.c.h.b16 %v4875
        %v6095 = vunpack.c.l.b16 %v4876
        %v6096 = vunpack.c.h.b16 %v4876
        %v6097 = vunpack.c.l.b16 %v4877
        %v6098 = vunpack.c.h.b16 %v4877
        %v6099 = vunpack.c.l.b16 %v4878
        %v6100 = vunpack.c.h.b16 %v4878
        %v6101 = vunpack.c.l.b16 %v4879
        %v6102 = vunpack.c.h.b16 %v4879
        %v6103 = vunpack.c.l.b16 %v4880
        %v6104 = vunpack.c.h.b16 %v4880
        %v6105 = vunpack.c.l.b16 %v4881
        %v6106 = vunpack.c.h.b16 %v4881
        %v6107 = vunpack.c.l.b16 %v4882
        %v6108 = vunpack.c.h.b16 %v4882
        %v6109 = vunpack.c.l.b16 %v4883
        %v6110 = vunpack.c.h.b16 %v4883
        %v6111 = vunpack.c.l.b16 %v4884
        %v6112 = vunpack.c.h.b16 %v4884
        %v6113 = vunpack.c.l.b16 %v4885
        %v6114 = vunpack.c.h.b16 %v4885
        %v6115 = vunpack.c.l.b16 %v4886
        %v6116 = vunpack.c.h.b16 %v4886
        %v6117 = vunpack.c.l.b16 %v4887
        %v6118 = vunpack.c.h.b16 %v4887
        %v6119 = vunpack.c.l.b16 %v4888
        %v6120 = vunpack.c.h.b16 %v4888
        %v6121 = vunpack.c.l.b16 %v4889
        %v6122 = vunpack.c.h.b16 %v4889
        %v6123 = vunpack.c.l.b16 %v4890
        %v6124 = vunpack.c.h.b16 %v4890
        %v6125 = vunpack.c.l.b16 %v4891
        %v6126 = vunpack.c.h.b16 %v4891
        %v6127 = vunpack.c.l.b16 %v4892
        %v6128 = vunpack.c.h.b16 %v4892
        %v6129 = vunpack.c.l.b16 %v4893
        %v6130 = vunpack.c.h.b16 %v4893
        %v6131 = vunpack.c.l.b16 %v4894
        %v6132 = vunpack.c.h.b16 %v4894
        %v6133 = vunpack.c.l.b16 %v4895
        %v6134 = vunpack.c.h.b16 %v4895
        %v6135 = vunpack.c.l.b16 %v4896
        %v6136 = vunpack.c.h.b16 %v4896
        %v6137 = vunpack.c.l.b16 %v4897
        %v6138 = vunpack.c.h.b16 %v4897
        %v6139 = vunpack.c.l.b16 %v4898
        %v6140 = vunpack.c.h.b16 %v4898
        %v6141 = vunpack.c.l.b16 %v4899
        %v6142 = vunpack.c.h.b16 %v4899
        %v6143 = vunpack.c.l.b16 %v4900
        %v6144 = vunpack.c.h.b16 %v4900
        %v6145 = vunpack.c.l.b16 %v4901
        %v6146 = vunpack.c.h.b16 %v4901
        %v6147 = vunpack.c.l.b16 %v4902
        %v6148 = vunpack.c.h.b16 %v4902
        %v6149 = vunpack.c.l.b16 %v4903
        %v6150 = vunpack.c.h.b16 %v4903
        %v6151 = vunpack.c.l.b16 %v4904
        %v6152 = vunpack.c.h.b16 %v4904
        %v6153 = vunpack.c.l.b16 %v4905
        %v6154 = vunpack.c.h.b16 %v4905
        %v6155 = vunpack.c.l.b16 %v4906
        %v6156 = vunpack.c.h.b16 %v4906
        %v6157 = vunpack.c.l.b16 %v4907
        %v6158 = vunpack.c.h.b16 %v4907
        %v6159 = vunpack.c.l.b16 %v4908
        %v6160 = vunpack.c.h.b16 %v4908
        %v6161 = vunpack.c.l.b16 %v4909
        %v6162 = vunpack.c.h.b16 %v4909
        %v6163 = vunpack.c.l.b16 %v4910
        %v6164 = vunpack.c.h.b16 %v4910
        %v6165 = vunpack.c.l.b16 %v4911
        %v6166 = vunpack.c.h.b16 %v4911
        %v6167 = vunpack.c.l.b16 %v4912
        %v6168 = vunpack.c.h.b16 %v4912
        %v6169 = vunpack.c.l.b16 %v4913
        %v6170 = vunpack.c.h.b16 %v4913
        %v6171 = vunpack.c.l.b16 %v4914
        %v6172 = vunpack.c.h.b16 %v4914
        %v6173 = vunpack.c.l.b16 %v4915
        %v6174 = vunpack.c.h.b16 %v4915
        %v6175 = vunpack.c.l.b16 %v4916
        %v6176 = vunpack.c.h.b16 %v4916
        %v6177 = vunpack.c.l.b16 %v4917
        %v6178 = vunpack.c.h.b16 %v4917
        %v6179 = vunpack.c.l.b16 %v4918
        %v6180 = vunpack.c.h.b16 %v4918
        %v6181 = vunpack.c.l.b16 %v4919
        %v6182 = vunpack.c.h.b16 %v4919
        %v6183 = vunpack.c.l.b16 %v4920
        %v6184 = vunpack.c.h.b16 %v4920
        %v6185 = vunpack.c.l.b16 %v4921
        %v6186 = vunpack.c.h.b16 %v4921
        %v6187 = vunpack.c.l.b16 %v4922
        %v6188 = vunpack.c.h.b16 %v4922
        %v6189 = vunpack.c.l.b16 %v4923
        %v6190 = vunpack.c.h.b16 %v4923
        %v6191 = vunpack.c.l.b16 %v4924
        %v6192 = vunpack.c.h.b16 %v4924
        %v6193 = vunpack.c.l.b16 %v4925
        %v6194 = vunpack.c.h.b16 %v4925
        %v6195 = vunpack.c.l.b16 %v4926
        %v6196 = vunpack.c.h.b16 %v4926
        %v6197 = vunpack.c.l.b16 %v4927
        %v6198 = vunpack.c.h.b16 %v4927
        %v6199 = vunpack.c.l.b16 %v4928
        %v6200 = vunpack.c.h.b16 %v4928
        %v6201 = vunpack.c.l.b16 %v4929
        %v6202 = vunpack.c.h.b16 %v4929
        %v6203 = vunpack.c.l.b16 %v4930
        %v6204 = vunpack.c.h.b16 %v4930
        %v6205 = vunpack.c.l.b16 %v4931
        %v6206 = vunpack.c.h.b16 %v4931
        %v6207 = vunpack.c.l.b16 %v4932
        %v6208 = vunpack.c.h.b16 %v4932
        %v6209 = vunpack.c.l.b16 %v4933
        %v6210 = vunpack.c.h.b16 %v4933
        %v6211 = vunpack.c.l.b16 %v4934
        %v6212 = vunpack.c.h.b16 %v4934
        %v6213 = vunpack.c.l.b16 %v4935
        %v6214 = vunpack.c.h.b16 %v4935
        %v6215 = vunpack.c.l.b16 %v4936
        %v6216 = vunpack.c.h.b16 %v4936
        %v6217 = vunpack.c.l.b16 %v4937
        %v6218 = vunpack.c.h.b16 %v4937
        %v6219 = vunpack.c.l.b16 %v4938
        %v6220 = vunpack.c.h.b16 %v4938
        %v6221 = vunpack.c.l.b16 %v4939
        %v6222 = vunpack.c.h.b16 %v4939
        %v6223 = vunpack.c.l.b16 %v4940
        %v6224 = vunpack.c.h.b16 %v4940
        %v6225 = vunpack.c.l.b16 %v4941
        %v6226 = vunpack.c.h.b16 %v4941
        %v6227 = vunpack.c.l.b16 %v4942
        %v6228 = vunpack.c.h.b16 %v4942
        %v6229 = vunpack.c.l.b16 %v4943
        %v6230 = vunpack.c.h.b16 %v4943
        %v6231 = vunpack.c.l.b16 %v4944
        %v6232 = vunpack.c.h.b16 %v4944
        %v6233 = vunpack.c.l.b16 %v4945
        %v6234 = vunpack.c.h.b16 %v4945
        %v6235 = vunpack.c.l.b16 %v4946
        %v6236 = vunpack.c.h.b16 %v4946
        %v6237 = vunpack.c.l.b16 %v4947
        %v6238 = vunpack.c.h.b16 %v4947
        %v6239 = vunpack.c.l.b16 %v4948
        %v6240 = vunpack.c.h.b16 %v4948
        %v6241 = vunpack.c.l.b16 %v4949
        %v6242 = vunpack.c.h.b16 %v4949
        %v6243 = vunpack.c.l.b16 %v4950
        %v6244 = vunpack.c.h.b16 %v4950
        %v6245 = vunpack.c.l.b16 %v4951
        %v6246 = vunpack.c.h.b16 %v4951
        %v6247 = vunpack.c.l.b16 %v4952
        %v6248 = vunpack.c.h.b16 %v4952
        %v6249 = vunpack.c.l.b16 %v4953
        %v6250 = vunpack.c.h.b16 %v4953
        %v6251 = vunpack.c.l.b16 %v4954
        %v6252 = vunpack.c.h.b16 %v4954
        %v6253 = vunpack.c.l.b16 %v4955
        %v6254 = vunpack.c.h.b16 %v4955
        %v6255 = vunpack.c.l.b16 %v4956
        %v6256 = vunpack.c.h.b16 %v4956
        %v6257 = vunpack.c.l.b16 %v4957
        %v6258 = vunpack.c.h.b16 %v4957
        %v6259 = vunpack.c.l.b16 %v4958
        %v6260 = vunpack.c.h.b16 %v4958
        %v6261 = vunpack.c.l.b16 %v4959
        %v6262 = vunpack.c.h.b16 %v4959
        %v6263 = vunpack.c.l.b16 %v4960
        %v6264 = vunpack.c.h.b16 %v4960
        %v6265 = vunpack.c.l.b16 %v4961
        %v6266 = vunpack.c.h.b16 %v4961
        %v6267 = vunpack.c.l.b16 %v4962
        %v6268 = vunpack.c.h.b16 %v4962
        %v6269 = vunpack.c.l.b16 %v4963
        %v6270 = vunpack.c.h.b16 %v4963
        %v6271 = vunpack.c.l.b16 %v4964
        %v6272 = vunpack.c.h.b16 %v4964
        %v6273 = vunpack.c.l.b16 %v4965
        %v6274 = vunpack.c.h.b16 %v4965
        %v6275 = vunpack.c.l.b16 %v4966
        %v6276 = vunpack.c.h.b16 %v4966
        %v6277 = vunpack.c.l.b16 %v4967
        %v6278 = vunpack.c.h.b16 %v4967
        %v6279 = vunpack.c.l.b16 %v4968
        %v6280 = vunpack.c.h.b16 %v4968
        %v6281 = vunpack.c.l.b16 %v4969
        %v6282 = vunpack.c.h.b16 %v4969
        %v6283 = vunpack.c.l.b16 %v4970
        %v6284 = vunpack.c.h.b16 %v4970
        %v6285 = vunpack.c.l.b16 %v4971
        %v6286 = vunpack.c.h.b16 %v4971
        %v6287 = vunpack.c.l.b16 %v4972
        %v6288 = vunpack.c.h.b16 %v4972
        %v6289 = vunpack.c.l.b16 %v4973
        %v6290 = vunpack.c.h.b16 %v4973
        %v6291 = vunpack.c.l.b16 %v4974
        %v6292 = vunpack.c.h.b16 %v4974
        %v6293 = vpack.c.b16 %v5913, %v5909
        %v6294 = vpack.c.b16 %v5914, %v5910
        %v6295 = vpack.c.b16 %v5915, %v5911
        %v6296 = vpack.c.b16 %v5916, %v5912
        %v6297 = vpack.c.b16 %v5921, %v5917
        %v6298 = vpack.c.b16 %v5922, %v5918
        %v6299 = vpack.c.b16 %v5923, %v5919
        %v6300 = vpack.c.b16 %v5924, %v5920
        %v6301 = vpack.c.b16 %v5929, %v5925
        %v6302 = vpack.c.b16 %v5930, %v5926
        %v6303 = vpack.c.b16 %v5931, %v5927
        %v6304 = vpack.c.b16 %v5932, %v5928
        %v6305 = vpack.c.b16 %v5937, %v5933
        %v6306 = vpack.c.b16 %v5938, %v5934
        %v6307 = vpack.c.b16 %v5939, %v5935
        %v6308 = vpack.c.b16 %v5940, %v5936
        %v6309 = vpack.c.b16 %v5945, %v5941
        %v6310 = vpack.c.b16 %v5946, %v5942
        %v6311 = vpack.c.b16 %v5947, %v5943
        %v6312 = vpack.c.b16 %v5948, %v5944
        %v6313 = vpack.c.b16 %v5953, %v5949
        %v6314 = vpack.c.b16 %v5954, %v5950
        %v6315 = vpack.c.b16 %v5955, %v5951
        %v6316 = vpack.c.b16 %v5956, %v5952
        %v6317 = vpack.c.b16 %v5961, %v5957
        %v6318 = vpack.c.b16 %v5962, %v5958
        %v6319 = vpack.c.b16 %v5963, %v5959
        %v6320 = vpack.c.b16 %v5964, %v5960
        %v6321 = vpack.c.b16 %v5969, %v5965
        %v6322 = vpack.c.b16 %v5970, %v5966
        %v6323 = vpack.c.b16 %v5971, %v5967
        %v6324 = vpack.c.b16 %v5972, %v5968
        %v6325 = vpack.c.b16 %v5977, %v5973
        %v6326 = vpack.c.b16 %v5978, %v5974
        %v6327 = vpack.c.b16 %v5979, %v5975
        %v6328 = vpack.c.b16 %v5980, %v5976
        %v6329 = vpack.c.b16 %v5985, %v5981
        %v6330 = vpack.c.b16 %v5986, %v5982
        %v6331 = vpack.c.b16 %v5987, %v5983
        %v6332 = vpack.c.b16 %v5988, %v5984
        %v6333 = vpack.c.b16 %v5993, %v5989
        %v6334 = vpack.c.b16 %v5994, %v5990
        %v6335 = vpack.c.b16 %v5995, %v5991
        %v6336 = vpack.c.b16 %v5996, %v5992
        %v6337 = vpack.c.b16 %v6001, %v5997
        %v6338 = vpack.c.b16 %v6002, %v5998
        %v6339 = vpack.c.b16 %v6003, %v5999
        %v6340 = vpack.c.b16 %v6004, %v6000
        %v6341 = vpack.c.b16 %v6009, %v6005
        %v6342 = vpack.c.b16 %v6010, %v6006
        %v6343 = vpack.c.b16 %v6011, %v6007
        %v6344 = vpack.c.b16 %v6012, %v6008
        %v6345 = vpack.c.b16 %v6017, %v6013
        %v6346 = vpack.c.b16 %v6018, %v6014
        %v6347 = vpack.c.b16 %v6019, %v6015
        %v6348 = vpack.c.b16 %v6020, %v6016
        %v6349 = vpack.c.b16 %v6025, %v6021
        %v6350 = vpack.c.b16 %v6026, %v6022
        %v6351 = vpack.c.b16 %v6027, %v6023
        %v6352 = vpack.c.b16 %v6028, %v6024
        %v6353 = vpack.c.b16 %v6033, %v6029
        %v6354 = vpack.c.b16 %v6034, %v6030
        %v6355 = vpack.c.b16 %v6035, %v6031
        %v6356 = vpack.c.b16 %v6036, %v6032
        %v6357 = vpack.c.b16 %v6041, %v6037
        %v6358 = vpack.c.b16 %v6042, %v6038
        %v6359 = vpack.c.b16 %v6043, %v6039
        %v6360 = vpack.c.b16 %v6044, %v6040
        %v6361 = vpack.c.b16 %v6049, %v6045
        %v6362 = vpack.c.b16 %v6050, %v6046
        %v6363 = vpack.c.b16 %v6051, %v6047
        %v6364 = vpack.c.b16 %v6052, %v6048
        %v6365 = vpack.c.b16 %v6057, %v6053
        %v6366 = vpack.c.b16 %v6058, %v6054
        %v6367 = vpack.c.b16 %v6059, %v6055
        %v6368 = vpack.c.b16 %v6060, %v6056
        %v6369 = vpack.c.b16 %v6065, %v6061
        %v6370 = vpack.c.b16 %v6066, %v6062
        %v6371 = vpack.c.b16 %v6067, %v6063
        %v6372 = vpack.c.b16 %v6068, %v6064
        %v6373 = vpack.c.b16 %v6073, %v6069
        %v6374 = vpack.c.b16 %v6074, %v6070
        %v6375 = vpack.c.b16 %v6075, %v6071
        %v6376 = vpack.c.b16 %v6076, %v6072
        %v6377 = vpack.c.b16 %v6081, %v6077
        %v6378 = vpack.c.b16 %v6082, %v6078
        %v6379 = vpack.c.b16 %v6083, %v6079
        %v6380 = vpack.c.b16 %v6084, %v6080
        %v6381 = vpack.c.b16 %v6089, %v6085
        %v6382 = vpack.c.b16 %v6090, %v6086
        %v6383 = vpack.c.b16 %v6091, %v6087
        %v6384 = vpack.c.b16 %v6092, %v6088
        %v6385 = vpack.c.b16 %v6097, %v6093
        %v6386 = vpack.c.b16 %v6098, %v6094
        %v6387 = vpack.c.b16 %v6099, %v6095
        %v6388 = vpack.c.b16 %v6100, %v6096
        %v6389 = vpack.c.b16 %v6105, %v6101
        %v6390 = vpack.c.b16 %v6106, %v6102
        %v6391 = vpack.c.b16 %v6107, %v6103
        %v6392 = vpack.c.b16 %v6108, %v6104
        %v6393 = vpack.c.b16 %v6113, %v6109
        %v6394 = vpack.c.b16 %v6114, %v6110
        %v6395 = vpack.c.b16 %v6115, %v6111
        %v6396 = vpack.c.b16 %v6116, %v6112
        %v6397 = vpack.c.b16 %v6121, %v6117
        %v6398 = vpack.c.b16 %v6122, %v6118
        %v6399 = vpack.c.b16 %v6123, %v6119
        %v6400 = vpack.c.b16 %v6124, %v6120
        %v6401 = vpack.c.b16 %v6129, %v6125
        %v6402 = vpack.c.b16 %v6130, %v6126
        %v6403 = vpack.c.b16 %v6131, %v6127
        %v6404 = vpack.c.b16 %v6132, %v6128
        %v6405 = vpack.c.b16 %v6137, %v6133
        %v6406 = vpack.c.b16 %v6138, %v6134
        %v6407 = vpack.c.b16 %v6139, %v6135
        %v6408 = vpack.c.b16 %v6140, %v6136
        %v6409 = vpack.c.b16 %v6145, %v6141
        %v6410 = vpack.c.b16 %v6146, %v6142
        %v6411 = vpack.c.b16 %v6147, %v6143
        %v6412 = vpack.c.b16 %v6148, %v6144
        %v6413 = vpack.c.b16 %v6153, %v6149
        %v6414 = vpack.c.b16 %v6154, %v6150
        %v6415 = vpack.c.b16 %v6155, %v6151
        %v6416 = vpack.c.b16 %v6156, %v6152
        %v6417 = vpack.c.b16 %v6161, %v6157
        %v6418 = vpack.c.b16 %v6162, %v6158
        %v6419 = vpack.c.b16 %v6163, %v6159
        %v6420 = vpack.c.b16 %v6164, %v6160
        %v6421 = vpack.c.b16 %v6169, %v6165
        %v6422 = vpack.c.b16 %v6170, %v6166
        %v6423 = vpack.c.b16 %v6171, %v6167
        %v6424 = vpack.c.b16 %v6172, %v6168
        %v6425 = vpack.c.b16 %v6177, %v6173
        %v6426 = vpack.c.b16 %v6178, %v6174
        %v6427 = vpack.c.b16 %v6179, %v6175
        %v6428 = vpack.c.b16 %v6180, %v6176
        %v6429 = vpack.c.b16 %v6185, %v6181
        %v6430 = vpack.c.b16 %v6186, %v6182
        %v6431 = vpack.c.b16 %v6187, %v6183
        %v6432 = vpack.c.b16 %v6188, %v6184
        %v6433 = vpack.c.b16 %v6193, %v6189
        %v6434 = vpack.c.b16 %v6194, %v6190
        %v6435 = vpack.c.b16 %v6195, %v6191
        %v6436 = vpack.c.b16 %v6196, %v6192
        %v6437 = vpack.c.b16 %v6201, %v6197
        %v6438 = vpack.c.b16 %v6202, %v6198
        %v6439 = vpack.c.b16 %v6203, %v6199
        %v6440 = vpack.c.b16 %v6204, %v6200
        %v6441 = vpack.c.b16 %v6209, %v6205
        %v6442 = vpack.c.b16 %v6210, %v6206
        %v6443 = vpack.c.b16 %v6211, %v6207
        %v6444 = vpack.c.b16 %v6212, %v6208
        %v6445 = vpack.c.b16 %v6217, %v6213
        %v6446 = vpack.c.b16 %v6218, %v6214
        %v6447 = vpack.c.b16 %v6219, %v6215
        %v6448 = vpack.c.b16 %v6220, %v6216
        %v6449 = vpack.c.b16 %v6225, %v6221
        %v6450 = vpack.c.b16 %v6226, %v6222
        %v6451 = vpack.c.b16 %v6227, %v6223
        %v6452 = vpack.c.b16 %v6228, %v6224
        %v6453 = vpack.c.b16 %v6233, %v6229
        %v6454 = vpack.c.b16 %v6234, %v6230
        %v6455 = vpack.c.b16 %v6235, %v6231
        %v6456 = vpack.c.b16 %v6236, %v6232
        %v6457 = vpack.c.b16 %v6241, %v6237
        %v6458 = vpack.c.b16 %v6242, %v6238
        %v6459 = vpack.c.b16 %v6243, %v6239
        %v6460 = vpack.c.b16 %v6244, %v6240
        %v6461 = vpack.c.b16 %v6249, %v6245
        %v6462 = vpack.c.b16 %v6250, %v6246
        %v6463 = vpack.c.b16 %v6251, %v6247
        %v6464 = vpack.c.b16 %v6252, %v6248
        %v6465 = vpack.c.b16 %v6257, %v6253
        %v6466 = vpack.c.b16 %v6258, %v6254
        %v6467 = vpack.c.b16 %v6259, %v6255
        %v6468 = vpack.c.b16 %v6260, %v6256
        %v6469 = vpack.c.b16 %v6265, %v6261
        %v6470 = vpack.c.b16 %v6266, %v6262
        %v6471 = vpack.c.b16 %v6267, %v6263
        %v6472 = vpack.c.b16 %v6268, %v6264
        %v6473 = vpack.c.b16 %v6273, %v6269
        %v6474 = vpack.c.b16 %v6274, %v6270
        %v6475 = vpack.c.b16 %v6275, %v6271
        %v6476 = vpack.c.b16 %v6276, %v6272
        %v6477 = vpack.c.b16 %v6281, %v6277
        %v6478 = vpack.c.b16 %v6282, %v6278
        %v6479 = vpack.c.b16 %v6283, %v6279
        %v6480 = vpack.c.b16 %v6284, %v6280
        %v6481 = vpack.c.b16 %v6289, %v6285
        %v6482 = vpack.c.b16 %v6290, %v6286
        %v6483 = vpack.c.b16 %v6291, %v6287
        %v6484 = vpack.c.b16 %v6292, %v6288
        %6677 = vmatprep.subr.bf16.mxu0 %v6322
        %6678 = vmatpush1.bf16.msra.mxu0 %v6321
        %6679 = vmatprep.subr.bf16.mxu0 %v6318
        %6680 = vmatpush1.bf16.msra.mxu0 %v6317
        %6681 = vmatprep.subr.bf16.mxu0 %v6314
        %6682 = vmatpush1.bf16.msra.mxu0 %v6313
        %6683 = vmatprep.subr.bf16.mxu0 %v6310
        %6684 = vmatpush1.bf16.msra.mxu0 %v6309
        %6685 = vmatprep.subr.bf16.mxu0 %v6306
        %6686 = vmatpush1.bf16.msra.mxu0 %v6305
        %6687 = vmatprep.subr.bf16.mxu0 %v6302
        %6688 = vmatpush1.bf16.msra.mxu0 %v6301
        %6689 = vmatprep.subr.bf16.mxu0 %v6298
        %6690 = vmatpush1.bf16.msra.mxu0 %v6297
        %6691 = vmatprep.subr.bf16.mxu0 %v6294
        %6692 = vmatpush1.bf16.msra.mxu0 %v6293
        %6693 = vmatprep.subr.bf16.mxu0 %v6354
        %6694 = vmatpush2.bf16.msra.mxu0 %v6353
        %6695 = vmatprep.subr.bf16.mxu0 %v6350
        %6696 = vmatpush2.bf16.msra.mxu0 %v6349
        %6697 = vmatprep.subr.bf16.mxu0 %v6346
        %6698 = vmatpush2.bf16.msra.mxu0 %v6345
        %6699 = vmatprep.subr.bf16.mxu0 %v6342
        %6700 = vmatpush2.bf16.msra.mxu0 %v6341
        %6701 = vmatprep.subr.bf16.mxu0 %v6338
        %6702 = vmatpush2.bf16.msra.mxu0 %v6337
        %6703 = vmatprep.subr.bf16.mxu0 %v6334
        %6704 = vmatpush2.bf16.msra.mxu0 %v6333
        %6705 = vmatprep.subr.bf16.mxu0 %v6330
        %6706 = vmatpush2.bf16.msra.mxu0 %v6329
        %6707 = vmatprep.subr.bf16.mxu0 %v6326
        %6708 = vmatpush2.bf16.msra.mxu0 %v6325
        %6709 = vmatprep.mubr.bf16.mxu0 %v5430
        %6710 = vmatmul.mubr.bf16.gmra.mxu0 %v5429
        %v6711 = vpop.f32.mrf.mxu0
        %v6712 = vadd.f32 %v4980, %v6711
        %v6713 = vpop.f32.mrf.mxu0
        %v6714 = vadd.f32 %v4984, %v6713
        %v6715 = vpop.f32.mrf.mxu0
        %v6716 = vadd.f32 %v4980, %v6715
        %v6717 = vpop.f32.mrf.mxu0
        %v6718 = vadd.f32 %v4984, %v6717
        %6719 = vmatprep.mubr.bf16.mxu0 %v5436
        %6720 = vmatmul.mubr.bf16.gmra.mxu0 %v5435
        %v6721 = vpop.f32.mrf.mxu0
        %v6722 = vadd.f32 %v4980, %v6721
        %v6723 = vpop.f32.mrf.mxu0
        %v6724 = vadd.f32 %v4984, %v6723
        %v6725 = vpop.f32.mrf.mxu0
        %v6726 = vadd.f32 %v4980, %v6725
        %v6727 = vpop.f32.mrf.mxu0
        %v6728 = vadd.f32 %v4984, %v6727
        %6729 = vmatprep.mubr.bf16.mxu0 %v5442
        %6730 = vmatmul.mubr.bf16.gmra.mxu0 %v5441
        %v6731 = vpop.f32.mrf.mxu0
        %v6732 = vadd.f32 %v4980, %v6731
        %v6733 = vpop.f32.mrf.mxu0
        %v6734 = vadd.f32 %v4984, %v6733
        %v6735 = vpop.f32.mrf.mxu0
        %v6736 = vadd.f32 %v4980, %v6735
        %v6737 = vpop.f32.mrf.mxu0
        %v6738 = vadd.f32 %v4984, %v6737
        %6739 = vmatprep.mubr.bf16.mxu0 %v5448
        %6740 = vmatmul.mubr.bf16.gmra.mxu0 %v5447
        %v6741 = vpop.f32.mrf.mxu0
        %v6742 = vadd.f32 %v4980, %v6741
        %v6743 = vpop.f32.mrf.mxu0
        %v6744 = vadd.f32 %v4984, %v6743
        %v6745 = vpop.f32.mrf.mxu0
        %v6746 = vadd.f32 %v4980, %v6745
        %v6747 = vpop.f32.mrf.mxu0
        %v6748 = vadd.f32 %v4984, %v6747
        %6749 = vmatprep.mubr.bf16.mxu0 %v5454
        %6750 = vmatmul.mubr.bf16.gmra.mxu0 %v5453
        %v6751 = vpop.f32.mrf.mxu0
        %v6752 = vadd.f32 %v4980, %v6751
        %v6753 = vpop.f32.mrf.mxu0
        %v6754 = vadd.f32 %v4984, %v6753
        %v6755 = vpop.f32.mrf.mxu0
        %v6756 = vadd.f32 %v4980, %v6755
        %v6757 = vpop.f32.mrf.mxu0
        %v6758 = vadd.f32 %v4984, %v6757
        %6759 = vmatprep.mubr.bf16.mxu0 %v5460
        %6760 = vmatmul.mubr.bf16.gmra.mxu0 %v5459
        %v6761 = vpop.f32.mrf.mxu0
        %v6762 = vadd.f32 %v4980, %v6761
        %v6763 = vpop.f32.mrf.mxu0
        %v6764 = vadd.f32 %v4984, %v6763
        %v6765 = vpop.f32.mrf.mxu0
        %v6766 = vadd.f32 %v4980, %v6765
        %v6767 = vpop.f32.mrf.mxu0
        %v6768 = vadd.f32 %v4984, %v6767
        %6769 = vmatprep.mubr.bf16.mxu0 %v5466
        %6770 = vmatmul.mubr.bf16.gmra.mxu0 %v5465
        %v6771 = vpop.f32.mrf.mxu0
        %v6772 = vadd.f32 %v4980, %v6771
        %v6773 = vpop.f32.mrf.mxu0
        %v6774 = vadd.f32 %v4984, %v6773
        %v6775 = vpop.f32.mrf.mxu0
        %v6776 = vadd.f32 %v4980, %v6775
        %v6777 = vpop.f32.mrf.mxu0
        %v6778 = vadd.f32 %v4984, %v6777
        %6779 = vmatprep.mubr.bf16.mxu0 %v5472
        %6780 = vmatmul.mubr.bf16.gmra.mxu0 %v5471
        %v6781 = vpop.f32.mrf.mxu0
        %v6782 = vadd.f32 %v4980, %v6781
        %v6783 = vpop.f32.mrf.mxu0
        %v6784 = vadd.f32 %v4984, %v6783
        %v6785 = vpop.f32.mrf.mxu0
        %v6786 = vadd.f32 %v4980, %v6785
        %v6787 = vpop.f32.mrf.mxu0
        %v6788 = vadd.f32 %v4984, %v6787
        %6789 = vmatprep.mubr.bf16.mxu0 %v5478
        %6790 = vmatmul.mubr.bf16.gmra.mxu0 %v5477
        %v6791 = vpop.f32.mrf.mxu0
        %v6792 = vadd.f32 %v4980, %v6791
        %v6793 = vpop.f32.mrf.mxu0
        %v6794 = vadd.f32 %v4984, %v6793
        %v6795 = vpop.f32.mrf.mxu0
        %v6796 = vadd.f32 %v4980, %v6795
        %v6797 = vpop.f32.mrf.mxu0
        %v6798 = vadd.f32 %v4984, %v6797
        %6799 = vmatprep.mubr.bf16.mxu0 %v5484
        %6800 = vmatmul.mubr.bf16.gmra.mxu0 %v5483
        %v6801 = vpop.f32.mrf.mxu0
        %v6802 = vadd.f32 %v4980, %v6801
        %v6803 = vpop.f32.mrf.mxu0
        %v6804 = vadd.f32 %v4984, %v6803
        %v6805 = vpop.f32.mrf.mxu0
        %v6806 = vadd.f32 %v4980, %v6805
        %v6807 = vpop.f32.mrf.mxu0
        %v6808 = vadd.f32 %v4984, %v6807
        %6809 = vmatprep.mubr.bf16.mxu0 %v5490
        %6810 = vmatmul.mubr.bf16.gmra.mxu0 %v5489
        %v6811 = vpop.f32.mrf.mxu0
        %v6812 = vadd.f32 %v4980, %v6811
        %v6813 = vpop.f32.mrf.mxu0
        %v6814 = vadd.f32 %v4984, %v6813
        %v6815 = vpop.f32.mrf.mxu0
        %v6816 = vadd.f32 %v4980, %v6815
        %v6817 = vpop.f32.mrf.mxu0
        %v6818 = vadd.f32 %v4984, %v6817
        %6819 = vmatprep.mubr.bf16.mxu0 %v5496
        %6820 = vmatmul.mubr.bf16.gmra.mxu0 %v5495
        %v6821 = vpop.f32.mrf.mxu0
        %v6822 = vadd.f32 %v4980, %v6821
        %v6823 = vpop.f32.mrf.mxu0
        %v6824 = vadd.f32 %v4984, %v6823
        %v6825 = vpop.f32.mrf.mxu0
        %v6826 = vadd.f32 %v4980, %v6825
        %v6827 = vpop.f32.mrf.mxu0
        %v6828 = vadd.f32 %v4984, %v6827
        %6829 = vmatprep.mubr.bf16.mxu0 %v5502
        %6830 = vmatmul.mubr.bf16.gmra.mxu0 %v5501
        %v6831 = vpop.f32.mrf.mxu0
        %v6832 = vadd.f32 %v4980, %v6831
        %v6833 = vpop.f32.mrf.mxu0
        %v6834 = vadd.f32 %v4984, %v6833
        %v6835 = vpop.f32.mrf.mxu0
        %v6836 = vadd.f32 %v4980, %v6835
        %v6837 = vpop.f32.mrf.mxu0
        %v6838 = vadd.f32 %v4984, %v6837
        %6839 = vmatprep.mubr.bf16.mxu0 %v5508
        %6840 = vmatmul.mubr.bf16.gmra.mxu0 %v5507
        %v6841 = vpop.f32.mrf.mxu0
        %v6842 = vadd.f32 %v4980, %v6841
        %v6843 = vpop.f32.mrf.mxu0
        %v6844 = vadd.f32 %v4984, %v6843
        %v6845 = vpop.f32.mrf.mxu0
        %v6846 = vadd.f32 %v4980, %v6845
        %v6847 = vpop.f32.mrf.mxu0
        %v6848 = vadd.f32 %v4984, %v6847
        %6849 = vmatprep.mubr.bf16.mxu0 %v5514
        %6850 = vmatmul.mubr.bf16.gmra.mxu0 %v5513
        %v6851 = vpop.f32.mrf.mxu0
        %v6852 = vadd.f32 %v4980, %v6851
        %v6853 = vpop.f32.mrf.mxu0
        %v6854 = vadd.f32 %v4984, %v6853
        %v6855 = vpop.f32.mrf.mxu0
        %v6856 = vadd.f32 %v4980, %v6855
        %v6857 = vpop.f32.mrf.mxu0
        %v6858 = vadd.f32 %v4984, %v6857
        %6859 = vmatprep.mubr.bf16.mxu0 %v5520
        %6860 = vmatmul.mubr.bf16.gmra.mxu0 %v5519
        %v6861 = vpop.f32.mrf.mxu0
        %v6862 = vadd.f32 %v4980, %v6861
        %v6863 = vpop.f32.mrf.mxu0
        %v6864 = vadd.f32 %v4984, %v6863
        %v6865 = vpop.f32.mrf.mxu0
        %v6866 = vadd.f32 %v4980, %v6865
        %v6867 = vpop.f32.mrf.mxu0
        %v6868 = vadd.f32 %v4984, %v6867
        %6869 = vmatprep.mubr.bf16.mxu0 %v5526
        %6870 = vmatmul.mubr.bf16.gmra.mxu0 %v5525
        %v6871 = vpop.f32.mrf.mxu0
        %v6872 = vadd.f32 %v4980, %v6871
        %v6873 = vpop.f32.mrf.mxu0
        %v6874 = vadd.f32 %v4984, %v6873
        %v6875 = vpop.f32.mrf.mxu0
        %v6876 = vadd.f32 %v4980, %v6875
        %v6877 = vpop.f32.mrf.mxu0
        %v6878 = vadd.f32 %v4984, %v6877
        %6879 = vmatprep.mubr.bf16.mxu0 %v5532
        %6880 = vmatmul.mubr.bf16.gmra.mxu0 %v5531
        %v6881 = vpop.f32.mrf.mxu0
        %v6882 = vadd.f32 %v4980, %v6881
        %v6883 = vpop.f32.mrf.mxu0
        %v6884 = vadd.f32 %v4984, %v6883
        %v6885 = vpop.f32.mrf.mxu0
        %v6886 = vadd.f32 %v4980, %v6885
        %v6887 = vpop.f32.mrf.mxu0
        %v6888 = vadd.f32 %v4984, %v6887
        %6889 = vmatprep.mubr.bf16.mxu0 %v5538
        %6890 = vmatmul.mubr.bf16.gmra.mxu0 %v5537
        %v6891 = vpop.f32.mrf.mxu0
        %v6892 = vadd.f32 %v4980, %v6891
        %v6893 = vpop.f32.mrf.mxu0
        %v6894 = vadd.f32 %v4984, %v6893
        %v6895 = vpop.f32.mrf.mxu0
        %v6896 = vadd.f32 %v4980, %v6895
        %v6897 = vpop.f32.mrf.mxu0
        %v6898 = vadd.f32 %v4984, %v6897
        %6899 = vmatprep.mubr.bf16.mxu0 %v5544
        %6900 = vmatmul.mubr.bf16.gmra.mxu0 %v5543
        %v6901 = vpop.f32.mrf.mxu0
        %v6902 = vadd.f32 %v4980, %v6901
        %v6903 = vpop.f32.mrf.mxu0
        %v6904 = vadd.f32 %v4984, %v6903
        %v6905 = vpop.f32.mrf.mxu0
        %v6906 = vadd.f32 %v4980, %v6905
        %v6907 = vpop.f32.mrf.mxu0
        %v6908 = vadd.f32 %v4984, %v6907
        %6909 = vmatprep.mubr.bf16.mxu0 %v5550
        %6910 = vmatmul.mubr.bf16.gmra.mxu0 %v5549
        %v6911 = vpop.f32.mrf.mxu0
        %v6912 = vadd.f32 %v4980, %v6911
        %v6913 = vpop.f32.mrf.mxu0
        %v6914 = vadd.f32 %v4984, %v6913
        %v6915 = vpop.f32.mrf.mxu0
        %v6916 = vadd.f32 %v4980, %v6915
        %v6917 = vpop.f32.mrf.mxu0
        %v6918 = vadd.f32 %v4984, %v6917
        %6919 = vmatprep.mubr.bf16.mxu0 %v5556
        %6920 = vmatmul.mubr.bf16.gmra.mxu0 %v5555
        %v6921 = vpop.f32.mrf.mxu0
        %v6922 = vadd.f32 %v4980, %v6921
        %v6923 = vpop.f32.mrf.mxu0
        %v6924 = vadd.f32 %v4984, %v6923
        %v6925 = vpop.f32.mrf.mxu0
        %v6926 = vadd.f32 %v4980, %v6925
        %v6927 = vpop.f32.mrf.mxu0
        %v6928 = vadd.f32 %v4984, %v6927
        %6929 = vmatprep.mubr.bf16.mxu0 %v5562
        %6930 = vmatmul.mubr.bf16.gmra.mxu0 %v5561
        %v6931 = vpop.f32.mrf.mxu0
        %v6932 = vadd.f32 %v4980, %v6931
        %v6933 = vpop.f32.mrf.mxu0
        %v6934 = vadd.f32 %v4984, %v6933
        %v6935 = vpop.f32.mrf.mxu0
        %v6936 = vadd.f32 %v4980, %v6935
        %v6937 = vpop.f32.mrf.mxu0
        %v6938 = vadd.f32 %v4984, %v6937
        %6939 = vmatprep.mubr.bf16.mxu0 %v5568
        %6940 = vmatmul.mubr.bf16.gmra.mxu0 %v5567
        %v6941 = vpop.f32.mrf.mxu0
        %v6942 = vadd.f32 %v4980, %v6941
        %v6943 = vpop.f32.mrf.mxu0
        %v6944 = vadd.f32 %v4984, %v6943
        %v6945 = vpop.f32.mrf.mxu0
        %v6946 = vadd.f32 %v4980, %v6945
        %v6947 = vpop.f32.mrf.mxu0
        %v6948 = vadd.f32 %v4984, %v6947
        %6949 = vdwg.mxu0
        %6950 = vmatprep.subr.bf16.mxu0 %v6386
        %6951 = vmatpush1.bf16.msra.mxu0 %v6385
        %6952 = vmatprep.subr.bf16.mxu0 %v6382
        %6953 = vmatpush1.bf16.msra.mxu0 %v6381
        %6954 = vmatprep.subr.bf16.mxu0 %v6378
        %6955 = vmatpush1.bf16.msra.mxu0 %v6377
        %6956 = vmatprep.subr.bf16.mxu0 %v6374
        %6957 = vmatpush1.bf16.msra.mxu0 %v6373
        %6958 = vmatprep.subr.bf16.mxu0 %v6370
        %6959 = vmatpush1.bf16.msra.mxu0 %v6369
        %6960 = vmatprep.subr.bf16.mxu0 %v6366
        %6961 = vmatpush1.bf16.msra.mxu0 %v6365
        %6962 = vmatprep.subr.bf16.mxu0 %v6362
        %6963 = vmatpush1.bf16.msra.mxu0 %v6361
        %6964 = vmatprep.subr.bf16.mxu0 %v6358
        %6965 = vmatpush1.bf16.msra.mxu0 %v6357
        %6966 = vmatprep.subr.bf16.mxu0 %v6418
        %6967 = vmatpush2.bf16.msra.mxu0 %v6417
        %6968 = vmatprep.subr.bf16.mxu0 %v6414
        %6969 = vmatpush2.bf16.msra.mxu0 %v6413
        %6970 = vmatprep.subr.bf16.mxu0 %v6410
        %6971 = vmatpush2.bf16.msra.mxu0 %v6409
        %6972 = vmatprep.subr.bf16.mxu0 %v6406
        %6973 = vmatpush2.bf16.msra.mxu0 %v6405
        %6974 = vmatprep.subr.bf16.mxu0 %v6402
        %6975 = vmatpush2.bf16.msra.mxu0 %v6401
        %6976 = vmatprep.subr.bf16.mxu0 %v6398
        %6977 = vmatpush2.bf16.msra.mxu0 %v6397
        %6978 = vmatprep.subr.bf16.mxu0 %v6394
        %6979 = vmatpush2.bf16.msra.mxu0 %v6393
        %6980 = vmatprep.subr.bf16.mxu0 %v6390
        %6981 = vmatpush2.bf16.msra.mxu0 %v6389
        %6982 = vmatprep.mubr.bf16.mxu0 %v5432
        %6983 = vmatmul.mubr.bf16.gmra.mxu0 %v5431
        %v6984 = vpop.f32.mrf.mxu0
        %v6985 = vadd.f32 %v6712, %v6984
        %v6986 = vpop.f32.mrf.mxu0
        %v6987 = vadd.f32 %v6714, %v6986
        %v6988 = vpop.f32.mrf.mxu0
        %v6989 = vadd.f32 %v6716, %v6988
        %v6990 = vpop.f32.mrf.mxu0
        %v6991 = vadd.f32 %v6718, %v6990
        %6992 = vmatprep.mubr.bf16.mxu0 %v5438
        %6993 = vmatmul.mubr.bf16.gmra.mxu0 %v5437
        %v6994 = vpop.f32.mrf.mxu0
        %v6995 = vadd.f32 %v6722, %v6994
        %v6996 = vpop.f32.mrf.mxu0
        %v6997 = vadd.f32 %v6724, %v6996
        %v6998 = vpop.f32.mrf.mxu0
        %v6999 = vadd.f32 %v6726, %v6998
        %v7000 = vpop.f32.mrf.mxu0
        %v7001 = vadd.f32 %v6728, %v7000
        %7002 = vmatprep.mubr.bf16.mxu0 %v5444
        %7003 = vmatmul.mubr.bf16.gmra.mxu0 %v5443
        %v7004 = vpop.f32.mrf.mxu0
        %v7005 = vadd.f32 %v6732, %v7004
        %v7006 = vpop.f32.mrf.mxu0
        %v7007 = vadd.f32 %v6734, %v7006
        %v7008 = vpop.f32.mrf.mxu0
        %v7009 = vadd.f32 %v6736, %v7008
        %v7010 = vpop.f32.mrf.mxu0
        %v7011 = vadd.f32 %v6738, %v7010
        %7012 = vmatprep.mubr.bf16.mxu0 %v5450
        %7013 = vmatmul.mubr.bf16.gmra.mxu0 %v5449
        %v7014 = vpop.f32.mrf.mxu0
        %v7015 = vadd.f32 %v6742, %v7014
        %v7016 = vpop.f32.mrf.mxu0
        %v7017 = vadd.f32 %v6744, %v7016
        %v7018 = vpop.f32.mrf.mxu0
        %v7019 = vadd.f32 %v6746, %v7018
        %v7020 = vpop.f32.mrf.mxu0
        %v7021 = vadd.f32 %v6748, %v7020
        %7022 = vmatprep.mubr.bf16.mxu0 %v5456
        %7023 = vmatmul.mubr.bf16.gmra.mxu0 %v5455
        %v7024 = vpop.f32.mrf.mxu0
        %v7025 = vadd.f32 %v6752, %v7024
        %v7026 = vpop.f32.mrf.mxu0
        %v7027 = vadd.f32 %v6754, %v7026
        %v7028 = vpop.f32.mrf.mxu0
        %v7029 = vadd.f32 %v6756, %v7028
        %v7030 = vpop.f32.mrf.mxu0
        %v7031 = vadd.f32 %v6758, %v7030
        %7032 = vmatprep.mubr.bf16.mxu0 %v5462
        %7033 = vmatmul.mubr.bf16.gmra.mxu0 %v5461
        %v7034 = vpop.f32.mrf.mxu0
        %v7035 = vadd.f32 %v6762, %v7034
        %v7036 = vpop.f32.mrf.mxu0
        %v7037 = vadd.f32 %v6764, %v7036
        %v7038 = vpop.f32.mrf.mxu0
        %v7039 = vadd.f32 %v6766, %v7038
        %v7040 = vpop.f32.mrf.mxu0
        %v7041 = vadd.f32 %v6768, %v7040
        %7042 = vmatprep.mubr.bf16.mxu0 %v5468
        %7043 = vmatmul.mubr.bf16.gmra.mxu0 %v5467
        %v7044 = vpop.f32.mrf.mxu0
        %v7045 = vadd.f32 %v6772, %v7044
        %v7046 = vpop.f32.mrf.mxu0
        %v7047 = vadd.f32 %v6774, %v7046
        %v7048 = vpop.f32.mrf.mxu0
        %v7049 = vadd.f32 %v6776, %v7048
        %v7050 = vpop.f32.mrf.mxu0
        %v7051 = vadd.f32 %v6778, %v7050
        %7052 = vmatprep.mubr.bf16.mxu0 %v5474
        %7053 = vmatmul.mubr.bf16.gmra.mxu0 %v5473
        %v7054 = vpop.f32.mrf.mxu0
        %v7055 = vadd.f32 %v6782, %v7054
        %v7056 = vpop.f32.mrf.mxu0
        %v7057 = vadd.f32 %v6784, %v7056
        %v7058 = vpop.f32.mrf.mxu0
        %v7059 = vadd.f32 %v6786, %v7058
        %v7060 = vpop.f32.mrf.mxu0
        %v7061 = vadd.f32 %v6788, %v7060
        %7062 = vmatprep.mubr.bf16.mxu0 %v5480
        %7063 = vmatmul.mubr.bf16.gmra.mxu0 %v5479
        %v7064 = vpop.f32.mrf.mxu0
        %v7065 = vadd.f32 %v6792, %v7064
        %v7066 = vpop.f32.mrf.mxu0
        %v7067 = vadd.f32 %v6794, %v7066
        %v7068 = vpop.f32.mrf.mxu0
        %v7069 = vadd.f32 %v6796, %v7068
        %v7070 = vpop.f32.mrf.mxu0
        %v7071 = vadd.f32 %v6798, %v7070
        %7072 = vmatprep.mubr.bf16.mxu0 %v5486
        %7073 = vmatmul.mubr.bf16.gmra.mxu0 %v5485
        %v7074 = vpop.f32.mrf.mxu0
        %v7075 = vadd.f32 %v6802, %v7074
        %v7076 = vpop.f32.mrf.mxu0
        %v7077 = vadd.f32 %v6804, %v7076
        %v7078 = vpop.f32.mrf.mxu0
        %v7079 = vadd.f32 %v6806, %v7078
        %v7080 = vpop.f32.mrf.mxu0
        %v7081 = vadd.f32 %v6808, %v7080
        %7082 = vmatprep.mubr.bf16.mxu0 %v5492
        %7083 = vmatmul.mubr.bf16.gmra.mxu0 %v5491
        %v7084 = vpop.f32.mrf.mxu0
        %v7085 = vadd.f32 %v6812, %v7084
        %v7086 = vpop.f32.mrf.mxu0
        %v7087 = vadd.f32 %v6814, %v7086
        %v7088 = vpop.f32.mrf.mxu0
        %v7089 = vadd.f32 %v6816, %v7088
        %v7090 = vpop.f32.mrf.mxu0
        %v7091 = vadd.f32 %v6818, %v7090
        %7092 = vmatprep.mubr.bf16.mxu0 %v5498
        %7093 = vmatmul.mubr.bf16.gmra.mxu0 %v5497
        %v7094 = vpop.f32.mrf.mxu0
        %v7095 = vadd.f32 %v6822, %v7094
        %v7096 = vpop.f32.mrf.mxu0
        %v7097 = vadd.f32 %v6824, %v7096
        %v7098 = vpop.f32.mrf.mxu0
        %v7099 = vadd.f32 %v6826, %v7098
        %v7100 = vpop.f32.mrf.mxu0
        %v7101 = vadd.f32 %v6828, %v7100
        %7102 = vmatprep.mubr.bf16.mxu0 %v5504
        %7103 = vmatmul.mubr.bf16.gmra.mxu0 %v5503
        %v7104 = vpop.f32.mrf.mxu0
        %v7105 = vadd.f32 %v6832, %v7104
        %v7106 = vpop.f32.mrf.mxu0
        %v7107 = vadd.f32 %v6834, %v7106
        %v7108 = vpop.f32.mrf.mxu0
        %v7109 = vadd.f32 %v6836, %v7108
        %v7110 = vpop.f32.mrf.mxu0
        %v7111 = vadd.f32 %v6838, %v7110
        %7112 = vmatprep.mubr.bf16.mxu0 %v5510
        %7113 = vmatmul.mubr.bf16.gmra.mxu0 %v5509
        %v7114 = vpop.f32.mrf.mxu0
        %v7115 = vadd.f32 %v6842, %v7114
        %v7116 = vpop.f32.mrf.mxu0
        %v7117 = vadd.f32 %v6844, %v7116
        %v7118 = vpop.f32.mrf.mxu0
        %v7119 = vadd.f32 %v6846, %v7118
        %v7120 = vpop.f32.mrf.mxu0
        %v7121 = vadd.f32 %v6848, %v7120
        %7122 = vmatprep.mubr.bf16.mxu0 %v5516
        %7123 = vmatmul.mubr.bf16.gmra.mxu0 %v5515
        %v7124 = vpop.f32.mrf.mxu0
        %v7125 = vadd.f32 %v6852, %v7124
        %v7126 = vpop.f32.mrf.mxu0
        %v7127 = vadd.f32 %v6854, %v7126
        %v7128 = vpop.f32.mrf.mxu0
        %v7129 = vadd.f32 %v6856, %v7128
        %v7130 = vpop.f32.mrf.mxu0
        %v7131 = vadd.f32 %v6858, %v7130
        %7132 = vmatprep.mubr.bf16.mxu0 %v5522
        %7133 = vmatmul.mubr.bf16.gmra.mxu0 %v5521
        %v7134 = vpop.f32.mrf.mxu0
        %v7135 = vadd.f32 %v6862, %v7134
        %v7136 = vpop.f32.mrf.mxu0
        %v7137 = vadd.f32 %v6864, %v7136
        %v7138 = vpop.f32.mrf.mxu0
        %v7139 = vadd.f32 %v6866, %v7138
        %v7140 = vpop.f32.mrf.mxu0
        %v7141 = vadd.f32 %v6868, %v7140
        %7142 = vmatprep.mubr.bf16.mxu0 %v5528
        %7143 = vmatmul.mubr.bf16.gmra.mxu0 %v5527
        %v7144 = vpop.f32.mrf.mxu0
        %v7145 = vadd.f32 %v6872, %v7144
        %v7146 = vpop.f32.mrf.mxu0
        %v7147 = vadd.f32 %v6874, %v7146
        %v7148 = vpop.f32.mrf.mxu0
        %v7149 = vadd.f32 %v6876, %v7148
        %v7150 = vpop.f32.mrf.mxu0
        %v7151 = vadd.f32 %v6878, %v7150
        %7152 = vmatprep.mubr.bf16.mxu0 %v5534
        %7153 = vmatmul.mubr.bf16.gmra.mxu0 %v5533
        %v7154 = vpop.f32.mrf.mxu0
        %v7155 = vadd.f32 %v6882, %v7154
        %v7156 = vpop.f32.mrf.mxu0
        %v7157 = vadd.f32 %v6884, %v7156
        %v7158 = vpop.f32.mrf.mxu0
        %v7159 = vadd.f32 %v6886, %v7158
        %v7160 = vpop.f32.mrf.mxu0
        %v7161 = vadd.f32 %v6888, %v7160
        %7162 = vmatprep.mubr.bf16.mxu0 %v5540
        %7163 = vmatmul.mubr.bf16.gmra.mxu0 %v5539
        %v7164 = vpop.f32.mrf.mxu0
        %v7165 = vadd.f32 %v6892, %v7164
        %v7166 = vpop.f32.mrf.mxu0
        %v7167 = vadd.f32 %v6894, %v7166
        %v7168 = vpop.f32.mrf.mxu0
        %v7169 = vadd.f32 %v6896, %v7168
        %v7170 = vpop.f32.mrf.mxu0
        %v7171 = vadd.f32 %v6898, %v7170
        %7172 = vmatprep.mubr.bf16.mxu0 %v5546
        %7173 = vmatmul.mubr.bf16.gmra.mxu0 %v5545
        %v7174 = vpop.f32.mrf.mxu0
        %v7175 = vadd.f32 %v6902, %v7174
        %v7176 = vpop.f32.mrf.mxu0
        %v7177 = vadd.f32 %v6904, %v7176
        %v7178 = vpop.f32.mrf.mxu0
        %v7179 = vadd.f32 %v6906, %v7178
        %v7180 = vpop.f32.mrf.mxu0
        %v7181 = vadd.f32 %v6908, %v7180
        %7182 = vmatprep.mubr.bf16.mxu0 %v5552
        %7183 = vmatmul.mubr.bf16.gmra.mxu0 %v5551
        %v7184 = vpop.f32.mrf.mxu0
        %v7185 = vadd.f32 %v6912, %v7184
        %v7186 = vpop.f32.mrf.mxu0
        %v7187 = vadd.f32 %v6914, %v7186
        %v7188 = vpop.f32.mrf.mxu0
        %v7189 = vadd.f32 %v6916, %v7188
        %v7190 = vpop.f32.mrf.mxu0
        %v7191 = vadd.f32 %v6918, %v7190
        %7192 = vmatprep.mubr.bf16.mxu0 %v5558
        %7193 = vmatmul.mubr.bf16.gmra.mxu0 %v5557
        %v7194 = vpop.f32.mrf.mxu0
        %v7195 = vadd.f32 %v6922, %v7194
        %v7196 = vpop.f32.mrf.mxu0
        %v7197 = vadd.f32 %v6924, %v7196
        %v7198 = vpop.f32.mrf.mxu0
        %v7199 = vadd.f32 %v6926, %v7198
        %v7200 = vpop.f32.mrf.mxu0
        %v7201 = vadd.f32 %v6928, %v7200
        %7202 = vmatprep.mubr.bf16.mxu0 %v5564
        %7203 = vmatmul.mubr.bf16.gmra.mxu0 %v5563
        %v7204 = vpop.f32.mrf.mxu0
        %v7205 = vadd.f32 %v6932, %v7204
        %v7206 = vpop.f32.mrf.mxu0
        %v7207 = vadd.f32 %v6934, %v7206
        %v7208 = vpop.f32.mrf.mxu0
        %v7209 = vadd.f32 %v6936, %v7208
        %v7210 = vpop.f32.mrf.mxu0
        %v7211 = vadd.f32 %v6938, %v7210
        %7212 = vmatprep.mubr.bf16.mxu0 %v5570
        %7213 = vmatmul.mubr.bf16.gmra.mxu0 %v5569
        %v7214 = vpop.f32.mrf.mxu0
        %v7215 = vadd.f32 %v6942, %v7214
        %v7216 = vpop.f32.mrf.mxu0
        %v7217 = vadd.f32 %v6944, %v7216
        %v7218 = vpop.f32.mrf.mxu0
        %v7219 = vadd.f32 %v6946, %v7218
        %v7220 = vpop.f32.mrf.mxu0
        %v7221 = vadd.f32 %v6948, %v7220
        %7222 = vdwg.mxu0
        %7223 = vmatprep.subr.bf16.mxu0 %v6450
        %7224 = vmatpush1.bf16.msra.mxu0 %v6449
        %7225 = vmatprep.subr.bf16.mxu0 %v6446
        %7226 = vmatpush1.bf16.msra.mxu0 %v6445
        %7227 = vmatprep.subr.bf16.mxu0 %v6442
        %7228 = vmatpush1.bf16.msra.mxu0 %v6441
        %7229 = vmatprep.subr.bf16.mxu0 %v6438
        %7230 = vmatpush1.bf16.msra.mxu0 %v6437
        %7231 = vmatprep.subr.bf16.mxu0 %v6434
        %7232 = vmatpush1.bf16.msra.mxu0 %v6433
        %7233 = vmatprep.subr.bf16.mxu0 %v6430
        %7234 = vmatpush1.bf16.msra.mxu0 %v6429
        %7235 = vmatprep.subr.bf16.mxu0 %v6426
        %7236 = vmatpush1.bf16.msra.mxu0 %v6425
        %7237 = vmatprep.subr.bf16.mxu0 %v6422
        %7238 = vmatpush1.bf16.msra.mxu0 %v6421
        %7239 = vmatprep.subr.bf16.mxu0 %v6482
        %7240 = vmatpush2.bf16.msra.mxu0 %v6481
        %7241 = vmatprep.subr.bf16.mxu0 %v6478
        %7242 = vmatpush2.bf16.msra.mxu0 %v6477
        %7243 = vmatprep.subr.bf16.mxu0 %v6474
        %7244 = vmatpush2.bf16.msra.mxu0 %v6473
        %7245 = vmatprep.subr.bf16.mxu0 %v6470
        %7246 = vmatpush2.bf16.msra.mxu0 %v6469
        %7247 = vmatprep.subr.bf16.mxu0 %v6466
        %7248 = vmatpush2.bf16.msra.mxu0 %v6465
        %7249 = vmatprep.subr.bf16.mxu0 %v6462
        %7250 = vmatpush2.bf16.msra.mxu0 %v6461
        %7251 = vmatprep.subr.bf16.mxu0 %v6458
        %7252 = vmatpush2.bf16.msra.mxu0 %v6457
        %7253 = vmatprep.subr.bf16.mxu0 %v6454
        %7254 = vmatpush2.bf16.msra.mxu0 %v6453
        %7255 = vmatprep.mubr.bf16.mxu0 %v5434
        %7256 = vmatmul.mubr.bf16.gmra.mxu0 %v5433
        %v7257 = vpop.f32.mrf.mxu0
        %v7258 = vadd.f32 %v6985, %v7257
        %v7259 = vpop.f32.mrf.mxu0
        %v7260 = vadd.f32 %v6987, %v7259
        %v7261 = vpop.f32.mrf.mxu0
        %v7262 = vadd.f32 %v6989, %v7261
        %v7263 = vpop.f32.mrf.mxu0
        %v7264 = vadd.f32 %v6991, %v7263
        %7265 = vmatprep.mubr.bf16.mxu0 %v5440
        %7266 = vmatmul.mubr.bf16.gmra.mxu0 %v5439
        %v7267 = vpop.f32.mrf.mxu0
        %v7268 = vadd.f32 %v6995, %v7267
        %v7269 = vpop.f32.mrf.mxu0
        %v7270 = vadd.f32 %v6997, %v7269
        %v7271 = vpop.f32.mrf.mxu0
        %v7272 = vadd.f32 %v6999, %v7271
        %v7273 = vpop.f32.mrf.mxu0
        %v7274 = vadd.f32 %v7001, %v7273
        %7275 = vmatprep.mubr.bf16.mxu0 %v5446
        %7276 = vmatmul.mubr.bf16.gmra.mxu0 %v5445
        %v7277 = vpop.f32.mrf.mxu0
        %v7278 = vadd.f32 %v7005, %v7277
        %v7279 = vpop.f32.mrf.mxu0
        %v7280 = vadd.f32 %v7007, %v7279
        %v7281 = vpop.f32.mrf.mxu0
        %v7282 = vadd.f32 %v7009, %v7281
        %v7283 = vpop.f32.mrf.mxu0
        %v7284 = vadd.f32 %v7011, %v7283
        %7285 = vmatprep.mubr.bf16.mxu0 %v5452
        %7286 = vmatmul.mubr.bf16.gmra.mxu0 %v5451
        %v7287 = vpop.f32.mrf.mxu0
        %v7288 = vadd.f32 %v7015, %v7287
        %v7289 = vpop.f32.mrf.mxu0
        %v7290 = vadd.f32 %v7017, %v7289
        %v7291 = vpop.f32.mrf.mxu0
        %v7292 = vadd.f32 %v7019, %v7291
        %v7293 = vpop.f32.mrf.mxu0
        %v7294 = vadd.f32 %v7021, %v7293
        %7295 = vmatprep.mubr.bf16.mxu0 %v5458
        %7296 = vmatmul.mubr.bf16.gmra.mxu0 %v5457
        %v7297 = vpop.f32.mrf.mxu0
        %v7298 = vadd.f32 %v7025, %v7297
        %v7299 = vpop.f32.mrf.mxu0
        %v7300 = vadd.f32 %v7027, %v7299
        %v7301 = vpop.f32.mrf.mxu0
        %v7302 = vadd.f32 %v7029, %v7301
        %v7303 = vpop.f32.mrf.mxu0
        %v7304 = vadd.f32 %v7031, %v7303
        %7305 = vmatprep.mubr.bf16.mxu0 %v5464
        %7306 = vmatmul.mubr.bf16.gmra.mxu0 %v5463
        %v7307 = vpop.f32.mrf.mxu0
        %v7308 = vadd.f32 %v7035, %v7307
        %v7309 = vpop.f32.mrf.mxu0
        %v7310 = vadd.f32 %v7037, %v7309
        %v7311 = vpop.f32.mrf.mxu0
        %v7312 = vadd.f32 %v7039, %v7311
        %v7313 = vpop.f32.mrf.mxu0
        %v7314 = vadd.f32 %v7041, %v7313
        %7315 = vmatprep.mubr.bf16.mxu0 %v5470
        %7316 = vmatmul.mubr.bf16.gmra.mxu0 %v5469
        %v7317 = vpop.f32.mrf.mxu0
        %v7318 = vadd.f32 %v7045, %v7317
        %v7319 = vpop.f32.mrf.mxu0
        %v7320 = vadd.f32 %v7047, %v7319
        %v7321 = vpop.f32.mrf.mxu0
        %v7322 = vadd.f32 %v7049, %v7321
        %v7323 = vpop.f32.mrf.mxu0
        %v7324 = vadd.f32 %v7051, %v7323
        %7325 = vmatprep.mubr.bf16.mxu0 %v5476
        %7326 = vmatmul.mubr.bf16.gmra.mxu0 %v5475
        %v7327 = vpop.f32.mrf.mxu0
        %v7328 = vadd.f32 %v7055, %v7327
        %v7329 = vpop.f32.mrf.mxu0
        %v7330 = vadd.f32 %v7057, %v7329
        %v7331 = vpop.f32.mrf.mxu0
        %v7332 = vadd.f32 %v7059, %v7331
        %v7333 = vpop.f32.mrf.mxu0
        %v7334 = vadd.f32 %v7061, %v7333
        %7335 = vmatprep.mubr.bf16.mxu0 %v5482
        %7336 = vmatmul.mubr.bf16.gmra.mxu0 %v5481
        %v7337 = vpop.f32.mrf.mxu0
        %v7338 = vadd.f32 %v7065, %v7337
        %v7339 = vpop.f32.mrf.mxu0
        %v7340 = vadd.f32 %v7067, %v7339
        %v7341 = vpop.f32.mrf.mxu0
        %v7342 = vadd.f32 %v7069, %v7341
        %v7343 = vpop.f32.mrf.mxu0
        %v7344 = vadd.f32 %v7071, %v7343
        %7345 = vmatprep.mubr.bf16.mxu0 %v5488
        %7346 = vmatmul.mubr.bf16.gmra.mxu0 %v5487
        %v7347 = vpop.f32.mrf.mxu0
        %v7348 = vadd.f32 %v7075, %v7347
        %v7349 = vpop.f32.mrf.mxu0
        %v7350 = vadd.f32 %v7077, %v7349
        %v7351 = vpop.f32.mrf.mxu0
        %v7352 = vadd.f32 %v7079, %v7351
        %v7353 = vpop.f32.mrf.mxu0
        %v7354 = vadd.f32 %v7081, %v7353
        %7355 = vmatprep.mubr.bf16.mxu0 %v5494
        %7356 = vmatmul.mubr.bf16.gmra.mxu0 %v5493
        %v7357 = vpop.f32.mrf.mxu0
        %v7358 = vadd.f32 %v7085, %v7357
        %v7359 = vpop.f32.mrf.mxu0
        %v7360 = vadd.f32 %v7087, %v7359
        %v7361 = vpop.f32.mrf.mxu0
        %v7362 = vadd.f32 %v7089, %v7361
        %v7363 = vpop.f32.mrf.mxu0
        %v7364 = vadd.f32 %v7091, %v7363
        %7365 = vmatprep.mubr.bf16.mxu0 %v5500
        %7366 = vmatmul.mubr.bf16.gmra.mxu0 %v5499
        %v7367 = vpop.f32.mrf.mxu0
        %v7368 = vadd.f32 %v7095, %v7367
        %v7369 = vpop.f32.mrf.mxu0
        %v7370 = vadd.f32 %v7097, %v7369
        %v7371 = vpop.f32.mrf.mxu0
        %v7372 = vadd.f32 %v7099, %v7371
        %v7373 = vpop.f32.mrf.mxu0
        %v7374 = vadd.f32 %v7101, %v7373
        %7375 = vmatprep.mubr.bf16.mxu0 %v5506
        %7376 = vmatmul.mubr.bf16.gmra.mxu0 %v5505
        %v7377 = vpop.f32.mrf.mxu0
        %v7378 = vadd.f32 %v7105, %v7377
        %v7379 = vpop.f32.mrf.mxu0
        %v7380 = vadd.f32 %v7107, %v7379
        %v7381 = vpop.f32.mrf.mxu0
        %v7382 = vadd.f32 %v7109, %v7381
        %v7383 = vpop.f32.mrf.mxu0
        %v7384 = vadd.f32 %v7111, %v7383
        %7385 = vmatprep.mubr.bf16.mxu0 %v5512
        %7386 = vmatmul.mubr.bf16.gmra.mxu0 %v5511
        %v7387 = vpop.f32.mrf.mxu0
        %v7388 = vadd.f32 %v7115, %v7387
        %v7389 = vpop.f32.mrf.mxu0
        %v7390 = vadd.f32 %v7117, %v7389
        %v7391 = vpop.f32.mrf.mxu0
        %v7392 = vadd.f32 %v7119, %v7391
        %v7393 = vpop.f32.mrf.mxu0
        %v7394 = vadd.f32 %v7121, %v7393
        %7395 = vmatprep.mubr.bf16.mxu0 %v5518
        %7396 = vmatmul.mubr.bf16.gmra.mxu0 %v5517
        %v7397 = vpop.f32.mrf.mxu0
        %v7398 = vadd.f32 %v7125, %v7397
        %v7399 = vpop.f32.mrf.mxu0
        %v7400 = vadd.f32 %v7127, %v7399
        %v7401 = vpop.f32.mrf.mxu0
        %v7402 = vadd.f32 %v7129, %v7401
        %v7403 = vpop.f32.mrf.mxu0
        %v7404 = vadd.f32 %v7131, %v7403
        %7405 = vmatprep.mubr.bf16.mxu0 %v5524
        %7406 = vmatmul.mubr.bf16.gmra.mxu0 %v5523
        %v7407 = vpop.f32.mrf.mxu0
        %v7408 = vadd.f32 %v7135, %v7407
        %v7409 = vpop.f32.mrf.mxu0
        %v7410 = vadd.f32 %v7137, %v7409
        %v7411 = vpop.f32.mrf.mxu0
        %v7412 = vadd.f32 %v7139, %v7411
        %v7413 = vpop.f32.mrf.mxu0
        %v7414 = vadd.f32 %v7141, %v7413
        %7415 = vmatprep.mubr.bf16.mxu0 %v5530
        %7416 = vmatmul.mubr.bf16.gmra.mxu0 %v5529
        %v7417 = vpop.f32.mrf.mxu0
        %v7418 = vadd.f32 %v7145, %v7417
        %v7419 = vpop.f32.mrf.mxu0
        %v7420 = vadd.f32 %v7147, %v7419
        %v7421 = vpop.f32.mrf.mxu0
        %v7422 = vadd.f32 %v7149, %v7421
        %v7423 = vpop.f32.mrf.mxu0
        %v7424 = vadd.f32 %v7151, %v7423
        %7425 = vmatprep.mubr.bf16.mxu0 %v5536
        %7426 = vmatmul.mubr.bf16.gmra.mxu0 %v5535
        %v7427 = vpop.f32.mrf.mxu0
        %v7428 = vadd.f32 %v7155, %v7427
        %v7429 = vpop.f32.mrf.mxu0
        %v7430 = vadd.f32 %v7157, %v7429
        %v7431 = vpop.f32.mrf.mxu0
        %v7432 = vadd.f32 %v7159, %v7431
        %v7433 = vpop.f32.mrf.mxu0
        %v7434 = vadd.f32 %v7161, %v7433
        %7435 = vmatprep.mubr.bf16.mxu0 %v5542
        %7436 = vmatmul.mubr.bf16.gmra.mxu0 %v5541
        %v7437 = vpop.f32.mrf.mxu0
        %v7438 = vadd.f32 %v7165, %v7437
        %v7439 = vpop.f32.mrf.mxu0
        %v7440 = vadd.f32 %v7167, %v7439
        %v7441 = vpop.f32.mrf.mxu0
        %v7442 = vadd.f32 %v7169, %v7441
        %v7443 = vpop.f32.mrf.mxu0
        %v7444 = vadd.f32 %v7171, %v7443
        %7445 = vmatprep.mubr.bf16.mxu0 %v5548
        %7446 = vmatmul.mubr.bf16.gmra.mxu0 %v5547
        %v7447 = vpop.f32.mrf.mxu0
        %v7448 = vadd.f32 %v7175, %v7447
        %v7449 = vpop.f32.mrf.mxu0
        %v7450 = vadd.f32 %v7177, %v7449
        %v7451 = vpop.f32.mrf.mxu0
        %v7452 = vadd.f32 %v7179, %v7451
        %v7453 = vpop.f32.mrf.mxu0
        %v7454 = vadd.f32 %v7181, %v7453
        %7455 = vmatprep.mubr.bf16.mxu0 %v5554
        %7456 = vmatmul.mubr.bf16.gmra.mxu0 %v5553
        %v7457 = vpop.f32.mrf.mxu0
        %v7458 = vadd.f32 %v7185, %v7457
        %v7459 = vpop.f32.mrf.mxu0
        %v7460 = vadd.f32 %v7187, %v7459
        %v7461 = vpop.f32.mrf.mxu0
        %v7462 = vadd.f32 %v7189, %v7461
        %v7463 = vpop.f32.mrf.mxu0
        %v7464 = vadd.f32 %v7191, %v7463
        %7465 = vmatprep.mubr.bf16.mxu0 %v5560
        %7466 = vmatmul.mubr.bf16.gmra.mxu0 %v5559
        %v7467 = vpop.f32.mrf.mxu0
        %v7468 = vadd.f32 %v7195, %v7467
        %v7469 = vpop.f32.mrf.mxu0
        %v7470 = vadd.f32 %v7197, %v7469
        %v7471 = vpop.f32.mrf.mxu0
        %v7472 = vadd.f32 %v7199, %v7471
        %v7473 = vpop.f32.mrf.mxu0
        %v7474 = vadd.f32 %v7201, %v7473
        %7475 = vmatprep.mubr.bf16.mxu0 %v5566
        %7476 = vmatmul.mubr.bf16.gmra.mxu0 %v5565
        %v7477 = vpop.f32.mrf.mxu0
        %v7478 = vadd.f32 %v7205, %v7477
        %v7479 = vpop.f32.mrf.mxu0
        %v7480 = vadd.f32 %v7207, %v7479
        %v7481 = vpop.f32.mrf.mxu0
        %v7482 = vadd.f32 %v7209, %v7481
        %v7483 = vpop.f32.mrf.mxu0
        %v7484 = vadd.f32 %v7211, %v7483
        %7485 = vmatprep.mubr.bf16.mxu0 %v5572
        %7486 = vmatmul.mubr.bf16.gmra.mxu0 %v5571
        %v7487 = vpop.f32.mrf.mxu0
        %v7488 = vadd.f32 %v7215, %v7487
        %v7489 = vpop.f32.mrf.mxu0
        %v7490 = vadd.f32 %v7217, %v7489
        %v7491 = vpop.f32.mrf.mxu0
        %v7492 = vadd.f32 %v7219, %v7491
        %v7493 = vpop.f32.mrf.mxu0
        %v7494 = vadd.f32 %v7221, %v7493
        %7495 = vdwg.mxu0
        %7496 = vmatprep.subr.bf16.mxu0 %v6324
        %7497 = vmatpush1.bf16.msra.mxu0 %v6323
        %7498 = vmatprep.subr.bf16.mxu0 %v6320
        %7499 = vmatpush1.bf16.msra.mxu0 %v6319
        %7500 = vmatprep.subr.bf16.mxu0 %v6316
        %7501 = vmatpush1.bf16.msra.mxu0 %v6315
        %7502 = vmatprep.subr.bf16.mxu0 %v6312
        %7503 = vmatpush1.bf16.msra.mxu0 %v6311
        %7504 = vmatprep.subr.bf16.mxu0 %v6308
        %7505 = vmatpush1.bf16.msra.mxu0 %v6307
        %7506 = vmatprep.subr.bf16.mxu0 %v6304
        %7507 = vmatpush1.bf16.msra.mxu0 %v6303
        %7508 = vmatprep.subr.bf16.mxu0 %v6300
        %7509 = vmatpush1.bf16.msra.mxu0 %v6299
        %7510 = vmatprep.subr.bf16.mxu0 %v6296
        %7511 = vmatpush1.bf16.msra.mxu0 %v6295
        %7512 = vmatprep.subr.bf16.mxu0 %v6356
        %7513 = vmatpush2.bf16.msra.mxu0 %v6355
        %7514 = vmatprep.subr.bf16.mxu0 %v6352
        %7515 = vmatpush2.bf16.msra.mxu0 %v6351
        %7516 = vmatprep.subr.bf16.mxu0 %v6348
        %7517 = vmatpush2.bf16.msra.mxu0 %v6347
        %7518 = vmatprep.subr.bf16.mxu0 %v6344
        %7519 = vmatpush2.bf16.msra.mxu0 %v6343
        %7520 = vmatprep.subr.bf16.mxu0 %v6340
        %7521 = vmatpush2.bf16.msra.mxu0 %v6339
        %7522 = vmatprep.subr.bf16.mxu0 %v6336
        %7523 = vmatpush2.bf16.msra.mxu0 %v6335
        %7524 = vmatprep.subr.bf16.mxu0 %v6332
        %7525 = vmatpush2.bf16.msra.mxu0 %v6331
        %7526 = vmatprep.subr.bf16.mxu0 %v6328
        %7527 = vmatpush2.bf16.msra.mxu0 %v6327
        %7528 = vmatprep.mubr.bf16.mxu0 %v5430
        %7529 = vmatmul.mubr.bf16.gmra.mxu0 %v5429
        %v7530 = vpop.f32.mrf.mxu0
        %v7531 = vadd.f32 %v4988, %v7530
        %v7532 = vpop.f32.mrf.mxu0
        %v7533 = vadd.f32 %v4992, %v7532
        %v7534 = vpop.f32.mrf.mxu0
        %v7535 = vadd.f32 %v4988, %v7534
        %v7536 = vpop.f32.mrf.mxu0
        %v7537 = vadd.f32 %v4992, %v7536
        %7538 = vmatprep.mubr.bf16.mxu0 %v5436
        %7539 = vmatmul.mubr.bf16.gmra.mxu0 %v5435
        %v7540 = vpop.f32.mrf.mxu0
        %v7541 = vadd.f32 %v4988, %v7540
        %v7542 = vpop.f32.mrf.mxu0
        %v7543 = vadd.f32 %v4992, %v7542
        %v7544 = vpop.f32.mrf.mxu0
        %v7545 = vadd.f32 %v4988, %v7544
        %v7546 = vpop.f32.mrf.mxu0
        %v7547 = vadd.f32 %v4992, %v7546
        %7548 = vmatprep.mubr.bf16.mxu0 %v5442
        %7549 = vmatmul.mubr.bf16.gmra.mxu0 %v5441
        %v7550 = vpop.f32.mrf.mxu0
        %v7551 = vadd.f32 %v4988, %v7550
        %v7552 = vpop.f32.mrf.mxu0
        %v7553 = vadd.f32 %v4992, %v7552
        %v7554 = vpop.f32.mrf.mxu0
        %v7555 = vadd.f32 %v4988, %v7554
        %v7556 = vpop.f32.mrf.mxu0
        %v7557 = vadd.f32 %v4992, %v7556
        %7558 = vmatprep.mubr.bf16.mxu0 %v5448
        %7559 = vmatmul.mubr.bf16.gmra.mxu0 %v5447
        %v7560 = vpop.f32.mrf.mxu0
        %v7561 = vadd.f32 %v4988, %v7560
        %v7562 = vpop.f32.mrf.mxu0
        %v7563 = vadd.f32 %v4992, %v7562
        %v7564 = vpop.f32.mrf.mxu0
        %v7565 = vadd.f32 %v4988, %v7564
        %v7566 = vpop.f32.mrf.mxu0
        %v7567 = vadd.f32 %v4992, %v7566
        %7568 = vmatprep.mubr.bf16.mxu0 %v5454
        %7569 = vmatmul.mubr.bf16.gmra.mxu0 %v5453
        %v7570 = vpop.f32.mrf.mxu0
        %v7571 = vadd.f32 %v4988, %v7570
        %v7572 = vpop.f32.mrf.mxu0
        %v7573 = vadd.f32 %v4992, %v7572
        %v7574 = vpop.f32.mrf.mxu0
        %v7575 = vadd.f32 %v4988, %v7574
        %v7576 = vpop.f32.mrf.mxu0
        %v7577 = vadd.f32 %v4992, %v7576
        %7578 = vmatprep.mubr.bf16.mxu0 %v5460
        %7579 = vmatmul.mubr.bf16.gmra.mxu0 %v5459
        %v7580 = vpop.f32.mrf.mxu0
        %v7581 = vadd.f32 %v4988, %v7580
        %v7582 = vpop.f32.mrf.mxu0
        %v7583 = vadd.f32 %v4992, %v7582
        %v7584 = vpop.f32.mrf.mxu0
        %v7585 = vadd.f32 %v4988, %v7584
        %v7586 = vpop.f32.mrf.mxu0
        %v7587 = vadd.f32 %v4992, %v7586
        %7588 = vmatprep.mubr.bf16.mxu0 %v5466
        %7589 = vmatmul.mubr.bf16.gmra.mxu0 %v5465
        %v7590 = vpop.f32.mrf.mxu0
        %v7591 = vadd.f32 %v4988, %v7590
        %v7592 = vpop.f32.mrf.mxu0
        %v7593 = vadd.f32 %v4992, %v7592
        %v7594 = vpop.f32.mrf.mxu0
        %v7595 = vadd.f32 %v4988, %v7594
        %v7596 = vpop.f32.mrf.mxu0
        %v7597 = vadd.f32 %v4992, %v7596
        %7598 = vmatprep.mubr.bf16.mxu0 %v5472
        %7599 = vmatmul.mubr.bf16.gmra.mxu0 %v5471
        %v7600 = vpop.f32.mrf.mxu0
        %v7601 = vadd.f32 %v4988, %v7600
        %v7602 = vpop.f32.mrf.mxu0
        %v7603 = vadd.f32 %v4992, %v7602
        %v7604 = vpop.f32.mrf.mxu0
        %v7605 = vadd.f32 %v4988, %v7604
        %v7606 = vpop.f32.mrf.mxu0
        %v7607 = vadd.f32 %v4992, %v7606
        %7608 = vmatprep.mubr.bf16.mxu0 %v5478
        %7609 = vmatmul.mubr.bf16.gmra.mxu0 %v5477
        %v7610 = vpop.f32.mrf.mxu0
        %v7611 = vadd.f32 %v4988, %v7610
        %v7612 = vpop.f32.mrf.mxu0
        %v7613 = vadd.f32 %v4992, %v7612
        %v7614 = vpop.f32.mrf.mxu0
        %v7615 = vadd.f32 %v4988, %v7614
        %v7616 = vpop.f32.mrf.mxu0
        %v7617 = vadd.f32 %v4992, %v7616
        %7618 = vmatprep.mubr.bf16.mxu0 %v5484
        %7619 = vmatmul.mubr.bf16.gmra.mxu0 %v5483
        %v7620 = vpop.f32.mrf.mxu0
        %v7621 = vadd.f32 %v4988, %v7620
        %v7622 = vpop.f32.mrf.mxu0
        %v7623 = vadd.f32 %v4992, %v7622
        %v7624 = vpop.f32.mrf.mxu0
        %v7625 = vadd.f32 %v4988, %v7624
        %v7626 = vpop.f32.mrf.mxu0
        %v7627 = vadd.f32 %v4992, %v7626
        %7628 = vmatprep.mubr.bf16.mxu0 %v5490
        %7629 = vmatmul.mubr.bf16.gmra.mxu0 %v5489
        %v7630 = vpop.f32.mrf.mxu0
        %v7631 = vadd.f32 %v4988, %v7630
        %v7632 = vpop.f32.mrf.mxu0
        %v7633 = vadd.f32 %v4992, %v7632
        %v7634 = vpop.f32.mrf.mxu0
        %v7635 = vadd.f32 %v4988, %v7634
        %v7636 = vpop.f32.mrf.mxu0
        %v7637 = vadd.f32 %v4992, %v7636
        %7638 = vmatprep.mubr.bf16.mxu0 %v5496
        %7639 = vmatmul.mubr.bf16.gmra.mxu0 %v5495
        %v7640 = vpop.f32.mrf.mxu0
        %v7641 = vadd.f32 %v4988, %v7640
        %v7642 = vpop.f32.mrf.mxu0
        %v7643 = vadd.f32 %v4992, %v7642
        %v7644 = vpop.f32.mrf.mxu0
        %v7645 = vadd.f32 %v4988, %v7644
        %v7646 = vpop.f32.mrf.mxu0
        %v7647 = vadd.f32 %v4992, %v7646
        %7648 = vmatprep.mubr.bf16.mxu0 %v5502
        %7649 = vmatmul.mubr.bf16.gmra.mxu0 %v5501
        %v7650 = vpop.f32.mrf.mxu0
        %v7651 = vadd.f32 %v4988, %v7650
        %v7652 = vpop.f32.mrf.mxu0
        %v7653 = vadd.f32 %v4992, %v7652
        %v7654 = vpop.f32.mrf.mxu0
        %v7655 = vadd.f32 %v4988, %v7654
        %v7656 = vpop.f32.mrf.mxu0
        %v7657 = vadd.f32 %v4992, %v7656
        %7658 = vmatprep.mubr.bf16.mxu0 %v5508
        %7659 = vmatmul.mubr.bf16.gmra.mxu0 %v5507
        %v7660 = vpop.f32.mrf.mxu0
        %v7661 = vadd.f32 %v4988, %v7660
        %v7662 = vpop.f32.mrf.mxu0
        %v7663 = vadd.f32 %v4992, %v7662
        %v7664 = vpop.f32.mrf.mxu0
        %v7665 = vadd.f32 %v4988, %v7664
        %v7666 = vpop.f32.mrf.mxu0
        %v7667 = vadd.f32 %v4992, %v7666
        %7668 = vmatprep.mubr.bf16.mxu0 %v5514
        %7669 = vmatmul.mubr.bf16.gmra.mxu0 %v5513
        %v7670 = vpop.f32.mrf.mxu0
        %v7671 = vadd.f32 %v4988, %v7670
        %v7672 = vpop.f32.mrf.mxu0
        %v7673 = vadd.f32 %v4992, %v7672
        %v7674 = vpop.f32.mrf.mxu0
        %v7675 = vadd.f32 %v4988, %v7674
        %v7676 = vpop.f32.mrf.mxu0
        %v7677 = vadd.f32 %v4992, %v7676
        %7678 = vmatprep.mubr.bf16.mxu0 %v5520
        %7679 = vmatmul.mubr.bf16.gmra.mxu0 %v5519
        %v7680 = vpop.f32.mrf.mxu0
        %v7681 = vadd.f32 %v4988, %v7680
        %v7682 = vpop.f32.mrf.mxu0
        %v7683 = vadd.f32 %v4992, %v7682
        %v7684 = vpop.f32.mrf.mxu0
        %v7685 = vadd.f32 %v4988, %v7684
        %v7686 = vpop.f32.mrf.mxu0
        %v7687 = vadd.f32 %v4992, %v7686
        %7688 = vmatprep.mubr.bf16.mxu0 %v5526
        %7689 = vmatmul.mubr.bf16.gmra.mxu0 %v5525
        %v7690 = vpop.f32.mrf.mxu0
        %v7691 = vadd.f32 %v4988, %v7690
        %v7692 = vpop.f32.mrf.mxu0
        %v7693 = vadd.f32 %v4992, %v7692
        %v7694 = vpop.f32.mrf.mxu0
        %v7695 = vadd.f32 %v4988, %v7694
        %v7696 = vpop.f32.mrf.mxu0
        %v7697 = vadd.f32 %v4992, %v7696
        %7698 = vmatprep.mubr.bf16.mxu0 %v5532
        %7699 = vmatmul.mubr.bf16.gmra.mxu0 %v5531
        %v7700 = vpop.f32.mrf.mxu0
        %v7701 = vadd.f32 %v4988, %v7700
        %v7702 = vpop.f32.mrf.mxu0
        %v7703 = vadd.f32 %v4992, %v7702
        %v7704 = vpop.f32.mrf.mxu0
        %v7705 = vadd.f32 %v4988, %v7704
        %v7706 = vpop.f32.mrf.mxu0
        %v7707 = vadd.f32 %v4992, %v7706
        %7708 = vmatprep.mubr.bf16.mxu0 %v5538
        %7709 = vmatmul.mubr.bf16.gmra.mxu0 %v5537
        %v7710 = vpop.f32.mrf.mxu0
        %v7711 = vadd.f32 %v4988, %v7710
        %v7712 = vpop.f32.mrf.mxu0
        %v7713 = vadd.f32 %v4992, %v7712
        %v7714 = vpop.f32.mrf.mxu0
        %v7715 = vadd.f32 %v4988, %v7714
        %v7716 = vpop.f32.mrf.mxu0
        %v7717 = vadd.f32 %v4992, %v7716
        %7718 = vmatprep.mubr.bf16.mxu0 %v5544
        %7719 = vmatmul.mubr.bf16.gmra.mxu0 %v5543
        %v7720 = vpop.f32.mrf.mxu0
        %v7721 = vadd.f32 %v4988, %v7720
        %v7722 = vpop.f32.mrf.mxu0
        %v7723 = vadd.f32 %v4992, %v7722
        %v7724 = vpop.f32.mrf.mxu0
        %v7725 = vadd.f32 %v4988, %v7724
        %v7726 = vpop.f32.mrf.mxu0
        %v7727 = vadd.f32 %v4992, %v7726
        %7728 = vmatprep.mubr.bf16.mxu0 %v5550
        %7729 = vmatmul.mubr.bf16.gmra.mxu0 %v5549
        %v7730 = vpop.f32.mrf.mxu0
        %v7731 = vadd.f32 %v4988, %v7730
        %v7732 = vpop.f32.mrf.mxu0
        %v7733 = vadd.f32 %v4992, %v7732
        %v7734 = vpop.f32.mrf.mxu0
        %v7735 = vadd.f32 %v4988, %v7734
        %v7736 = vpop.f32.mrf.mxu0
        %v7737 = vadd.f32 %v4992, %v7736
        %7738 = vmatprep.mubr.bf16.mxu0 %v5556
        %7739 = vmatmul.mubr.bf16.gmra.mxu0 %v5555
        %v7740 = vpop.f32.mrf.mxu0
        %v7741 = vadd.f32 %v4988, %v7740
        %v7742 = vpop.f32.mrf.mxu0
        %v7743 = vadd.f32 %v4992, %v7742
        %v7744 = vpop.f32.mrf.mxu0
        %v7745 = vadd.f32 %v4988, %v7744
        %v7746 = vpop.f32.mrf.mxu0
        %v7747 = vadd.f32 %v4992, %v7746
        %7748 = vmatprep.mubr.bf16.mxu0 %v5562
        %7749 = vmatmul.mubr.bf16.gmra.mxu0 %v5561
        %v7750 = vpop.f32.mrf.mxu0
        %v7751 = vadd.f32 %v4988, %v7750
        %v7752 = vpop.f32.mrf.mxu0
        %v7753 = vadd.f32 %v4992, %v7752
        %v7754 = vpop.f32.mrf.mxu0
        %v7755 = vadd.f32 %v4988, %v7754
        %v7756 = vpop.f32.mrf.mxu0
        %v7757 = vadd.f32 %v4992, %v7756
        %7758 = vmatprep.mubr.bf16.mxu0 %v5568
        %7759 = vmatmul.mubr.bf16.gmra.mxu0 %v5567
        %v7760 = vpop.f32.mrf.mxu0
        %v7761 = vadd.f32 %v4988, %v7760
        %v7762 = vpop.f32.mrf.mxu0
        %v7763 = vadd.f32 %v4992, %v7762
        %v7764 = vpop.f32.mrf.mxu0
        %v7765 = vadd.f32 %v4988, %v7764
        %v7766 = vpop.f32.mrf.mxu0
        %v7767 = vadd.f32 %v4992, %v7766
        %7768 = vdwg.mxu0
        %7769 = vmatprep.subr.bf16.mxu0 %v6388
        %7770 = vmatpush1.bf16.msra.mxu0 %v6387
        %7771 = vmatprep.subr.bf16.mxu0 %v6384
        %7772 = vmatpush1.bf16.msra.mxu0 %v6383
        %7773 = vmatprep.subr.bf16.mxu0 %v6380
        %7774 = vmatpush1.bf16.msra.mxu0 %v6379
        %7775 = vmatprep.subr.bf16.mxu0 %v6376
        %7776 = vmatpush1.bf16.msra.mxu0 %v6375
        %7777 = vmatprep.subr.bf16.mxu0 %v6372
        %7778 = vmatpush1.bf16.msra.mxu0 %v6371
        %7779 = vmatprep.subr.bf16.mxu0 %v6368
        %7780 = vmatpush1.bf16.msra.mxu0 %v6367
        %7781 = vmatprep.subr.bf16.mxu0 %v6364
        %7782 = vmatpush1.bf16.msra.mxu0 %v6363
        %7783 = vmatprep.subr.bf16.mxu0 %v6360
        %7784 = vmatpush1.bf16.msra.mxu0 %v6359
        %7785 = vmatprep.subr.bf16.mxu0 %v6420
        %7786 = vmatpush2.bf16.msra.mxu0 %v6419
        %7787 = vmatprep.subr.bf16.mxu0 %v6416
        %7788 = vmatpush2.bf16.msra.mxu0 %v6415
        %7789 = vmatprep.subr.bf16.mxu0 %v6412
        %7790 = vmatpush2.bf16.msra.mxu0 %v6411
        %7791 = vmatprep.subr.bf16.mxu0 %v6408
        %7792 = vmatpush2.bf16.msra.mxu0 %v6407
        %7793 = vmatprep.subr.bf16.mxu0 %v6404
        %7794 = vmatpush2.bf16.msra.mxu0 %v6403
        %7795 = vmatprep.subr.bf16.mxu0 %v6400
        %7796 = vmatpush2.bf16.msra.mxu0 %v6399
        %7797 = vmatprep.subr.bf16.mxu0 %v6396
        %7798 = vmatpush2.bf16.msra.mxu0 %v6395
        %7799 = vmatprep.subr.bf16.mxu0 %v6392
        %7800 = vmatpush2.bf16.msra.mxu0 %v6391
        %7801 = vmatprep.mubr.bf16.mxu0 %v5432
        %7802 = vmatmul.mubr.bf16.gmra.mxu0 %v5431
        %v7803 = vpop.f32.mrf.mxu0
        %v7804 = vadd.f32 %v7531, %v7803
        %v7805 = vpop.f32.mrf.mxu0
        %v7806 = vadd.f32 %v7533, %v7805
        %v7807 = vpop.f32.mrf.mxu0
        %v7808 = vadd.f32 %v7535, %v7807
        %v7809 = vpop.f32.mrf.mxu0
        %v7810 = vadd.f32 %v7537, %v7809
        %7811 = vmatprep.mubr.bf16.mxu0 %v5438
        %7812 = vmatmul.mubr.bf16.gmra.mxu0 %v5437
        %v7813 = vpop.f32.mrf.mxu0
        %v7814 = vadd.f32 %v7541, %v7813
        %v7815 = vpop.f32.mrf.mxu0
        %v7816 = vadd.f32 %v7543, %v7815
        %v7817 = vpop.f32.mrf.mxu0
        %v7818 = vadd.f32 %v7545, %v7817
        %v7819 = vpop.f32.mrf.mxu0
        %v7820 = vadd.f32 %v7547, %v7819
        %7821 = vmatprep.mubr.bf16.mxu0 %v5444
        %7822 = vmatmul.mubr.bf16.gmra.mxu0 %v5443
        %v7823 = vpop.f32.mrf.mxu0
        %v7824 = vadd.f32 %v7551, %v7823
        %v7825 = vpop.f32.mrf.mxu0
        %v7826 = vadd.f32 %v7553, %v7825
        %v7827 = vpop.f32.mrf.mxu0
        %v7828 = vadd.f32 %v7555, %v7827
        %v7829 = vpop.f32.mrf.mxu0
        %v7830 = vadd.f32 %v7557, %v7829
        %7831 = vmatprep.mubr.bf16.mxu0 %v5450
        %7832 = vmatmul.mubr.bf16.gmra.mxu0 %v5449
        %v7833 = vpop.f32.mrf.mxu0
        %v7834 = vadd.f32 %v7561, %v7833
        %v7835 = vpop.f32.mrf.mxu0
        %v7836 = vadd.f32 %v7563, %v7835
        %v7837 = vpop.f32.mrf.mxu0
        %v7838 = vadd.f32 %v7565, %v7837
        %v7839 = vpop.f32.mrf.mxu0
        %v7840 = vadd.f32 %v7567, %v7839
        %7841 = vmatprep.mubr.bf16.mxu0 %v5456
        %7842 = vmatmul.mubr.bf16.gmra.mxu0 %v5455
        %v7843 = vpop.f32.mrf.mxu0
        %v7844 = vadd.f32 %v7571, %v7843
        %v7845 = vpop.f32.mrf.mxu0
        %v7846 = vadd.f32 %v7573, %v7845
        %v7847 = vpop.f32.mrf.mxu0
        %v7848 = vadd.f32 %v7575, %v7847
        %v7849 = vpop.f32.mrf.mxu0
        %v7850 = vadd.f32 %v7577, %v7849
        %7851 = vmatprep.mubr.bf16.mxu0 %v5462
        %7852 = vmatmul.mubr.bf16.gmra.mxu0 %v5461
        %v7853 = vpop.f32.mrf.mxu0
        %v7854 = vadd.f32 %v7581, %v7853
        %v7855 = vpop.f32.mrf.mxu0
        %v7856 = vadd.f32 %v7583, %v7855
        %v7857 = vpop.f32.mrf.mxu0
        %v7858 = vadd.f32 %v7585, %v7857
        %v7859 = vpop.f32.mrf.mxu0
        %v7860 = vadd.f32 %v7587, %v7859
        %7861 = vmatprep.mubr.bf16.mxu0 %v5468
        %7862 = vmatmul.mubr.bf16.gmra.mxu0 %v5467
        %v7863 = vpop.f32.mrf.mxu0
        %v7864 = vadd.f32 %v7591, %v7863
        %v7865 = vpop.f32.mrf.mxu0
        %v7866 = vadd.f32 %v7593, %v7865
        %v7867 = vpop.f32.mrf.mxu0
        %v7868 = vadd.f32 %v7595, %v7867
        %v7869 = vpop.f32.mrf.mxu0
        %v7870 = vadd.f32 %v7597, %v7869
        %7871 = vmatprep.mubr.bf16.mxu0 %v5474
        %7872 = vmatmul.mubr.bf16.gmra.mxu0 %v5473
        %v7873 = vpop.f32.mrf.mxu0
        %v7874 = vadd.f32 %v7601, %v7873
        %v7875 = vpop.f32.mrf.mxu0
        %v7876 = vadd.f32 %v7603, %v7875
        %v7877 = vpop.f32.mrf.mxu0
        %v7878 = vadd.f32 %v7605, %v7877
        %v7879 = vpop.f32.mrf.mxu0
        %v7880 = vadd.f32 %v7607, %v7879
        %7881 = vmatprep.mubr.bf16.mxu0 %v5480
        %7882 = vmatmul.mubr.bf16.gmra.mxu0 %v5479
        %v7883 = vpop.f32.mrf.mxu0
        %v7884 = vadd.f32 %v7611, %v7883
        %v7885 = vpop.f32.mrf.mxu0
        %v7886 = vadd.f32 %v7613, %v7885
        %v7887 = vpop.f32.mrf.mxu0
        %v7888 = vadd.f32 %v7615, %v7887
        %v7889 = vpop.f32.mrf.mxu0
        %v7890 = vadd.f32 %v7617, %v7889
        %7891 = vmatprep.mubr.bf16.mxu0 %v5486
        %7892 = vmatmul.mubr.bf16.gmra.mxu0 %v5485
        %v7893 = vpop.f32.mrf.mxu0
        %v7894 = vadd.f32 %v7621, %v7893
        %v7895 = vpop.f32.mrf.mxu0
        %v7896 = vadd.f32 %v7623, %v7895
        %v7897 = vpop.f32.mrf.mxu0
        %v7898 = vadd.f32 %v7625, %v7897
        %v7899 = vpop.f32.mrf.mxu0
        %v7900 = vadd.f32 %v7627, %v7899
        %7901 = vmatprep.mubr.bf16.mxu0 %v5492
        %7902 = vmatmul.mubr.bf16.gmra.mxu0 %v5491
        %v7903 = vpop.f32.mrf.mxu0
        %v7904 = vadd.f32 %v7631, %v7903
        %v7905 = vpop.f32.mrf.mxu0
        %v7906 = vadd.f32 %v7633, %v7905
        %v7907 = vpop.f32.mrf.mxu0
        %v7908 = vadd.f32 %v7635, %v7907
        %v7909 = vpop.f32.mrf.mxu0
        %v7910 = vadd.f32 %v7637, %v7909
        %7911 = vmatprep.mubr.bf16.mxu0 %v5498
        %7912 = vmatmul.mubr.bf16.gmra.mxu0 %v5497
        %v7913 = vpop.f32.mrf.mxu0
        %v7914 = vadd.f32 %v7641, %v7913
        %v7915 = vpop.f32.mrf.mxu0
        %v7916 = vadd.f32 %v7643, %v7915
        %v7917 = vpop.f32.mrf.mxu0
        %v7918 = vadd.f32 %v7645, %v7917
        %v7919 = vpop.f32.mrf.mxu0
        %v7920 = vadd.f32 %v7647, %v7919
        %7921 = vmatprep.mubr.bf16.mxu0 %v5504
        %7922 = vmatmul.mubr.bf16.gmra.mxu0 %v5503
        %v7923 = vpop.f32.mrf.mxu0
        %v7924 = vadd.f32 %v7651, %v7923
        %v7925 = vpop.f32.mrf.mxu0
        %v7926 = vadd.f32 %v7653, %v7925
        %v7927 = vpop.f32.mrf.mxu0
        %v7928 = vadd.f32 %v7655, %v7927
        %v7929 = vpop.f32.mrf.mxu0
        %v7930 = vadd.f32 %v7657, %v7929
        %7931 = vmatprep.mubr.bf16.mxu0 %v5510
        %7932 = vmatmul.mubr.bf16.gmra.mxu0 %v5509
        %v7933 = vpop.f32.mrf.mxu0
        %v7934 = vadd.f32 %v7661, %v7933
        %v7935 = vpop.f32.mrf.mxu0
        %v7936 = vadd.f32 %v7663, %v7935
        %v7937 = vpop.f32.mrf.mxu0
        %v7938 = vadd.f32 %v7665, %v7937
        %v7939 = vpop.f32.mrf.mxu0
        %v7940 = vadd.f32 %v7667, %v7939
        %7941 = vmatprep.mubr.bf16.mxu0 %v5516
        %7942 = vmatmul.mubr.bf16.gmra.mxu0 %v5515
        %v7943 = vpop.f32.mrf.mxu0
        %v7944 = vadd.f32 %v7671, %v7943
        %v7945 = vpop.f32.mrf.mxu0
        %v7946 = vadd.f32 %v7673, %v7945
        %v7947 = vpop.f32.mrf.mxu0
        %v7948 = vadd.f32 %v7675, %v7947
        %v7949 = vpop.f32.mrf.mxu0
        %v7950 = vadd.f32 %v7677, %v7949
        %7951 = vmatprep.mubr.bf16.mxu0 %v5522
        %7952 = vmatmul.mubr.bf16.gmra.mxu0 %v5521
        %v7953 = vpop.f32.mrf.mxu0
        %v7954 = vadd.f32 %v7681, %v7953
        %v7955 = vpop.f32.mrf.mxu0
        %v7956 = vadd.f32 %v7683, %v7955
        %v7957 = vpop.f32.mrf.mxu0
        %v7958 = vadd.f32 %v7685, %v7957
        %v7959 = vpop.f32.mrf.mxu0
        %v7960 = vadd.f32 %v7687, %v7959
        %7961 = vmatprep.mubr.bf16.mxu0 %v5528
        %7962 = vmatmul.mubr.bf16.gmra.mxu0 %v5527
        %v7963 = vpop.f32.mrf.mxu0
        %v7964 = vadd.f32 %v7691, %v7963
        %v7965 = vpop.f32.mrf.mxu0
        %v7966 = vadd.f32 %v7693, %v7965
        %v7967 = vpop.f32.mrf.mxu0
        %v7968 = vadd.f32 %v7695, %v7967
        %v7969 = vpop.f32.mrf.mxu0
        %v7970 = vadd.f32 %v7697, %v7969
        %7971 = vmatprep.mubr.bf16.mxu0 %v5534
        %7972 = vmatmul.mubr.bf16.gmra.mxu0 %v5533
        %v7973 = vpop.f32.mrf.mxu0
        %v7974 = vadd.f32 %v7701, %v7973
        %v7975 = vpop.f32.mrf.mxu0
        %v7976 = vadd.f32 %v7703, %v7975
        %v7977 = vpop.f32.mrf.mxu0
        %v7978 = vadd.f32 %v7705, %v7977
        %v7979 = vpop.f32.mrf.mxu0
        %v7980 = vadd.f32 %v7707, %v7979
        %7981 = vmatprep.mubr.bf16.mxu0 %v5540
        %7982 = vmatmul.mubr.bf16.gmra.mxu0 %v5539
        %v7983 = vpop.f32.mrf.mxu0
        %v7984 = vadd.f32 %v7711, %v7983
        %v7985 = vpop.f32.mrf.mxu0
        %v7986 = vadd.f32 %v7713, %v7985
        %v7987 = vpop.f32.mrf.mxu0
        %v7988 = vadd.f32 %v7715, %v7987
        %v7989 = vpop.f32.mrf.mxu0
        %v7990 = vadd.f32 %v7717, %v7989
        %7991 = vmatprep.mubr.bf16.mxu0 %v5546
        %7992 = vmatmul.mubr.bf16.gmra.mxu0 %v5545
        %v7993 = vpop.f32.mrf.mxu0
        %v7994 = vadd.f32 %v7721, %v7993
        %v7995 = vpop.f32.mrf.mxu0
        %v7996 = vadd.f32 %v7723, %v7995
        %v7997 = vpop.f32.mrf.mxu0
        %v7998 = vadd.f32 %v7725, %v7997
        %v7999 = vpop.f32.mrf.mxu0
        %v8000 = vadd.f32 %v7727, %v7999
        %8001 = vmatprep.mubr.bf16.mxu0 %v5552
        %8002 = vmatmul.mubr.bf16.gmra.mxu0 %v5551
        %v8003 = vpop.f32.mrf.mxu0
        %v8004 = vadd.f32 %v7731, %v8003
        %v8005 = vpop.f32.mrf.mxu0
        %v8006 = vadd.f32 %v7733, %v8005
        %v8007 = vpop.f32.mrf.mxu0
        %v8008 = vadd.f32 %v7735, %v8007
        %v8009 = vpop.f32.mrf.mxu0
        %v8010 = vadd.f32 %v7737, %v8009
        %8011 = vmatprep.mubr.bf16.mxu0 %v5558
        %8012 = vmatmul.mubr.bf16.gmra.mxu0 %v5557
        %v8013 = vpop.f32.mrf.mxu0
        %v8014 = vadd.f32 %v7741, %v8013
        %v8015 = vpop.f32.mrf.mxu0
        %v8016 = vadd.f32 %v7743, %v8015
        %v8017 = vpop.f32.mrf.mxu0
        %v8018 = vadd.f32 %v7745, %v8017
        %v8019 = vpop.f32.mrf.mxu0
        %v8020 = vadd.f32 %v7747, %v8019
        %8021 = vmatprep.mubr.bf16.mxu0 %v5564
        %8022 = vmatmul.mubr.bf16.gmra.mxu0 %v5563
        %v8023 = vpop.f32.mrf.mxu0
        %v8024 = vadd.f32 %v7751, %v8023
        %v8025 = vpop.f32.mrf.mxu0
        %v8026 = vadd.f32 %v7753, %v8025
        %v8027 = vpop.f32.mrf.mxu0
        %v8028 = vadd.f32 %v7755, %v8027
        %v8029 = vpop.f32.mrf.mxu0
        %v8030 = vadd.f32 %v7757, %v8029
        %8031 = vmatprep.mubr.bf16.mxu0 %v5570
        %8032 = vmatmul.mubr.bf16.gmra.mxu0 %v5569
        %v8033 = vpop.f32.mrf.mxu0
        %v8034 = vadd.f32 %v7761, %v8033
        %v8035 = vpop.f32.mrf.mxu0
        %v8036 = vadd.f32 %v7763, %v8035
        %v8037 = vpop.f32.mrf.mxu0
        %v8038 = vadd.f32 %v7765, %v8037
        %v8039 = vpop.f32.mrf.mxu0
        %v8040 = vadd.f32 %v7767, %v8039
        %8041 = vdwg.mxu0
        %8042 = vmatprep.subr.bf16.mxu0 %v6452
        %8043 = vmatpush1.bf16.msra.mxu0 %v6451
        %8044 = vmatprep.subr.bf16.mxu0 %v6448
        %8045 = vmatpush1.bf16.msra.mxu0 %v6447
        %8046 = vmatprep.subr.bf16.mxu0 %v6444
        %8047 = vmatpush1.bf16.msra.mxu0 %v6443
        %8048 = vmatprep.subr.bf16.mxu0 %v6440
        %8049 = vmatpush1.bf16.msra.mxu0 %v6439
        %8050 = vmatprep.subr.bf16.mxu0 %v6436
        %8051 = vmatpush1.bf16.msra.mxu0 %v6435
        %8052 = vmatprep.subr.bf16.mxu0 %v6432
        %8053 = vmatpush1.bf16.msra.mxu0 %v6431
        %8054 = vmatprep.subr.bf16.mxu0 %v6428
        %8055 = vmatpush1.bf16.msra.mxu0 %v6427
        %8056 = vmatprep.subr.bf16.mxu0 %v6424
        %8057 = vmatpush1.bf16.msra.mxu0 %v6423
        %8058 = vmatprep.subr.bf16.mxu0 %v6484
        %8059 = vmatpush2.bf16.msra.mxu0 %v6483
        %8060 = vmatprep.subr.bf16.mxu0 %v6480
        %8061 = vmatpush2.bf16.msra.mxu0 %v6479
        %8062 = vmatprep.subr.bf16.mxu0 %v6476
        %8063 = vmatpush2.bf16.msra.mxu0 %v6475
        %8064 = vmatprep.subr.bf16.mxu0 %v6472
        %8065 = vmatpush2.bf16.msra.mxu0 %v6471
        %8066 = vmatprep.subr.bf16.mxu0 %v6468
        %8067 = vmatpush2.bf16.msra.mxu0 %v6467
        %8068 = vmatprep.subr.bf16.mxu0 %v6464
        %8069 = vmatpush2.bf16.msra.mxu0 %v6463
        %8070 = vmatprep.subr.bf16.mxu0 %v6460
        %8071 = vmatpush2.bf16.msra.mxu0 %v6459
        %8072 = vmatprep.subr.bf16.mxu0 %v6456
        %8073 = vmatpush2.bf16.msra.mxu0 %v6455
        %8074 = vmatprep.mubr.bf16.mxu0 %v5434
        %8075 = vmatmul.mubr.bf16.gmra.mxu0 %v5433
        %v8076 = vpop.f32.mrf.mxu0
        %v8077 = vadd.f32 %v7804, %v8076
        %v8078 = vpop.f32.mrf.mxu0
        %v8079 = vadd.f32 %v7806, %v8078
        %v8080 = vpop.f32.mrf.mxu0
        %v8081 = vadd.f32 %v7808, %v8080
        %v8082 = vpop.f32.mrf.mxu0
        %v8083 = vadd.f32 %v7810, %v8082
        %8084 = vmatprep.mubr.bf16.mxu0 %v5440
        %8085 = vmatmul.mubr.bf16.gmra.mxu0 %v5439
        %v8086 = vpop.f32.mrf.mxu0
        %v8087 = vadd.f32 %v7814, %v8086
        %v8088 = vpop.f32.mrf.mxu0
        %v8089 = vadd.f32 %v7816, %v8088
        %v8090 = vpop.f32.mrf.mxu0
        %v8091 = vadd.f32 %v7818, %v8090
        %v8092 = vpop.f32.mrf.mxu0
        %v8093 = vadd.f32 %v7820, %v8092
        %8094 = vmatprep.mubr.bf16.mxu0 %v5446
        %8095 = vmatmul.mubr.bf16.gmra.mxu0 %v5445
        %v8096 = vpop.f32.mrf.mxu0
        %v8097 = vadd.f32 %v7824, %v8096
        %v8098 = vpop.f32.mrf.mxu0
        %v8099 = vadd.f32 %v7826, %v8098
        %v8100 = vpop.f32.mrf.mxu0
        %v8101 = vadd.f32 %v7828, %v8100
        %v8102 = vpop.f32.mrf.mxu0
        %v8103 = vadd.f32 %v7830, %v8102
        %8104 = vmatprep.mubr.bf16.mxu0 %v5452
        %8105 = vmatmul.mubr.bf16.gmra.mxu0 %v5451
        %v8106 = vpop.f32.mrf.mxu0
        %v8107 = vadd.f32 %v7834, %v8106
        %v8108 = vpop.f32.mrf.mxu0
        %v8109 = vadd.f32 %v7836, %v8108
        %v8110 = vpop.f32.mrf.mxu0
        %v8111 = vadd.f32 %v7838, %v8110
        %v8112 = vpop.f32.mrf.mxu0
        %v8113 = vadd.f32 %v7840, %v8112
        %8114 = vmatprep.mubr.bf16.mxu0 %v5458
        %8115 = vmatmul.mubr.bf16.gmra.mxu0 %v5457
        %v8116 = vpop.f32.mrf.mxu0
        %v8117 = vadd.f32 %v7844, %v8116
        %v8118 = vpop.f32.mrf.mxu0
        %v8119 = vadd.f32 %v7846, %v8118
        %v8120 = vpop.f32.mrf.mxu0
        %v8121 = vadd.f32 %v7848, %v8120
        %v8122 = vpop.f32.mrf.mxu0
        %v8123 = vadd.f32 %v7850, %v8122
        %8124 = vmatprep.mubr.bf16.mxu0 %v5464
        %8125 = vmatmul.mubr.bf16.gmra.mxu0 %v5463
        %v8126 = vpop.f32.mrf.mxu0
        %v8127 = vadd.f32 %v7854, %v8126
        %v8128 = vpop.f32.mrf.mxu0
        %v8129 = vadd.f32 %v7856, %v8128
        %v8130 = vpop.f32.mrf.mxu0
        %v8131 = vadd.f32 %v7858, %v8130
        %v8132 = vpop.f32.mrf.mxu0
        %v8133 = vadd.f32 %v7860, %v8132
        %8134 = vmatprep.mubr.bf16.mxu0 %v5470
        %8135 = vmatmul.mubr.bf16.gmra.mxu0 %v5469
        %v8136 = vpop.f32.mrf.mxu0
        %v8137 = vadd.f32 %v7864, %v8136
        %v8138 = vpop.f32.mrf.mxu0
        %v8139 = vadd.f32 %v7866, %v8138
        %v8140 = vpop.f32.mrf.mxu0
        %v8141 = vadd.f32 %v7868, %v8140
        %v8142 = vpop.f32.mrf.mxu0
        %v8143 = vadd.f32 %v7870, %v8142
        %8144 = vmatprep.mubr.bf16.mxu0 %v5476
        %8145 = vmatmul.mubr.bf16.gmra.mxu0 %v5475
        %v8146 = vpop.f32.mrf.mxu0
        %v8147 = vadd.f32 %v7874, %v8146
        %v8148 = vpop.f32.mrf.mxu0
        %v8149 = vadd.f32 %v7876, %v8148
        %v8150 = vpop.f32.mrf.mxu0
        %v8151 = vadd.f32 %v7878, %v8150
        %v8152 = vpop.f32.mrf.mxu0
        %v8153 = vadd.f32 %v7880, %v8152
        %8154 = vmatprep.mubr.bf16.mxu0 %v5482
        %8155 = vmatmul.mubr.bf16.gmra.mxu0 %v5481
        %v8156 = vpop.f32.mrf.mxu0
        %v8157 = vadd.f32 %v7884, %v8156
        %v8158 = vpop.f32.mrf.mxu0
        %v8159 = vadd.f32 %v7886, %v8158
        %v8160 = vpop.f32.mrf.mxu0
        %v8161 = vadd.f32 %v7888, %v8160
        %v8162 = vpop.f32.mrf.mxu0
        %v8163 = vadd.f32 %v7890, %v8162
        %8164 = vmatprep.mubr.bf16.mxu0 %v5488
        %8165 = vmatmul.mubr.bf16.gmra.mxu0 %v5487
        %v8166 = vpop.f32.mrf.mxu0
        %v8167 = vadd.f32 %v7894, %v8166
        %v8168 = vpop.f32.mrf.mxu0
        %v8169 = vadd.f32 %v7896, %v8168
        %v8170 = vpop.f32.mrf.mxu0
        %v8171 = vadd.f32 %v7898, %v8170
        %v8172 = vpop.f32.mrf.mxu0
        %v8173 = vadd.f32 %v7900, %v8172
        %8174 = vmatprep.mubr.bf16.mxu0 %v5494
        %8175 = vmatmul.mubr.bf16.gmra.mxu0 %v5493
        %v8176 = vpop.f32.mrf.mxu0
        %v8177 = vadd.f32 %v7904, %v8176
        %v8178 = vpop.f32.mrf.mxu0
        %v8179 = vadd.f32 %v7906, %v8178
        %v8180 = vpop.f32.mrf.mxu0
        %v8181 = vadd.f32 %v7908, %v8180
        %v8182 = vpop.f32.mrf.mxu0
        %v8183 = vadd.f32 %v7910, %v8182
        %8184 = vmatprep.mubr.bf16.mxu0 %v5500
        %8185 = vmatmul.mubr.bf16.gmra.mxu0 %v5499
        %v8186 = vpop.f32.mrf.mxu0
        %v8187 = vadd.f32 %v7914, %v8186
        %v8188 = vpop.f32.mrf.mxu0
        %v8189 = vadd.f32 %v7916, %v8188
        %v8190 = vpop.f32.mrf.mxu0
        %v8191 = vadd.f32 %v7918, %v8190
        %v8192 = vpop.f32.mrf.mxu0
        %v8193 = vadd.f32 %v7920, %v8192
        %8194 = vmatprep.mubr.bf16.mxu0 %v5506
        %8195 = vmatmul.mubr.bf16.gmra.mxu0 %v5505
        %v8196 = vpop.f32.mrf.mxu0
        %v8197 = vadd.f32 %v7924, %v8196
        %v8198 = vpop.f32.mrf.mxu0
        %v8199 = vadd.f32 %v7926, %v8198
        %v8200 = vpop.f32.mrf.mxu0
        %v8201 = vadd.f32 %v7928, %v8200
        %v8202 = vpop.f32.mrf.mxu0
        %v8203 = vadd.f32 %v7930, %v8202
        %8204 = vmatprep.mubr.bf16.mxu0 %v5512
        %8205 = vmatmul.mubr.bf16.gmra.mxu0 %v5511
        %v8206 = vpop.f32.mrf.mxu0
        %v8207 = vadd.f32 %v7934, %v8206
        %v8208 = vpop.f32.mrf.mxu0
        %v8209 = vadd.f32 %v7936, %v8208
        %v8210 = vpop.f32.mrf.mxu0
        %v8211 = vadd.f32 %v7938, %v8210
        %v8212 = vpop.f32.mrf.mxu0
        %v8213 = vadd.f32 %v7940, %v8212
        %8214 = vmatprep.mubr.bf16.mxu0 %v5518
        %8215 = vmatmul.mubr.bf16.gmra.mxu0 %v5517
        %v8216 = vpop.f32.mrf.mxu0
        %v8217 = vadd.f32 %v7944, %v8216
        %v8218 = vpop.f32.mrf.mxu0
        %v8219 = vadd.f32 %v7946, %v8218
        %v8220 = vpop.f32.mrf.mxu0
        %v8221 = vadd.f32 %v7948, %v8220
        %v8222 = vpop.f32.mrf.mxu0
        %v8223 = vadd.f32 %v7950, %v8222
        %8224 = vmatprep.mubr.bf16.mxu0 %v5524
        %8225 = vmatmul.mubr.bf16.gmra.mxu0 %v5523
        %v8226 = vpop.f32.mrf.mxu0
        %v8227 = vadd.f32 %v7954, %v8226
        %v8228 = vpop.f32.mrf.mxu0
        %v8229 = vadd.f32 %v7956, %v8228
        %v8230 = vpop.f32.mrf.mxu0
        %v8231 = vadd.f32 %v7958, %v8230
        %v8232 = vpop.f32.mrf.mxu0
        %v8233 = vadd.f32 %v7960, %v8232
        %8234 = vmatprep.mubr.bf16.mxu0 %v5530
        %8235 = vmatmul.mubr.bf16.gmra.mxu0 %v5529
        %v8236 = vpop.f32.mrf.mxu0
        %v8237 = vadd.f32 %v7964, %v8236
        %v8238 = vpop.f32.mrf.mxu0
        %v8239 = vadd.f32 %v7966, %v8238
        %v8240 = vpop.f32.mrf.mxu0
        %v8241 = vadd.f32 %v7968, %v8240
        %v8242 = vpop.f32.mrf.mxu0
        %v8243 = vadd.f32 %v7970, %v8242
        %8244 = vmatprep.mubr.bf16.mxu0 %v5536
        %8245 = vmatmul.mubr.bf16.gmra.mxu0 %v5535
        %v8246 = vpop.f32.mrf.mxu0
        %v8247 = vadd.f32 %v7974, %v8246
        %v8248 = vpop.f32.mrf.mxu0
        %v8249 = vadd.f32 %v7976, %v8248
        %v8250 = vpop.f32.mrf.mxu0
        %v8251 = vadd.f32 %v7978, %v8250
        %v8252 = vpop.f32.mrf.mxu0
        %v8253 = vadd.f32 %v7980, %v8252
        %8254 = vmatprep.mubr.bf16.mxu0 %v5542
        %8255 = vmatmul.mubr.bf16.gmra.mxu0 %v5541
        %v8256 = vpop.f32.mrf.mxu0
        %v8257 = vadd.f32 %v7984, %v8256
        %v8258 = vpop.f32.mrf.mxu0
        %v8259 = vadd.f32 %v7986, %v8258
        %v8260 = vpop.f32.mrf.mxu0
        %v8261 = vadd.f32 %v7988, %v8260
        %v8262 = vpop.f32.mrf.mxu0
        %v8263 = vadd.f32 %v7990, %v8262
        %8264 = vmatprep.mubr.bf16.mxu0 %v5548
        %8265 = vmatmul.mubr.bf16.gmra.mxu0 %v5547
        %v8266 = vpop.f32.mrf.mxu0
        %v8267 = vadd.f32 %v7994, %v8266
        %v8268 = vpop.f32.mrf.mxu0
        %v8269 = vadd.f32 %v7996, %v8268
        %v8270 = vpop.f32.mrf.mxu0
        %v8271 = vadd.f32 %v7998, %v8270
        %v8272 = vpop.f32.mrf.mxu0
        %v8273 = vadd.f32 %v8000, %v8272
        %8274 = vmatprep.mubr.bf16.mxu0 %v5554
        %8275 = vmatmul.mubr.bf16.gmra.mxu0 %v5553
        %v8276 = vpop.f32.mrf.mxu0
        %v8277 = vadd.f32 %v8004, %v8276
        %v8278 = vpop.f32.mrf.mxu0
        %v8279 = vadd.f32 %v8006, %v8278
        %v8280 = vpop.f32.mrf.mxu0
        %v8281 = vadd.f32 %v8008, %v8280
        %v8282 = vpop.f32.mrf.mxu0
        %v8283 = vadd.f32 %v8010, %v8282
        %8284 = vmatprep.mubr.bf16.mxu0 %v5560
        %8285 = vmatmul.mubr.bf16.gmra.mxu0 %v5559
        %v8286 = vpop.f32.mrf.mxu0
        %v8287 = vadd.f32 %v8014, %v8286
        %v8288 = vpop.f32.mrf.mxu0
        %v8289 = vadd.f32 %v8016, %v8288
        %v8290 = vpop.f32.mrf.mxu0
        %v8291 = vadd.f32 %v8018, %v8290
        %v8292 = vpop.f32.mrf.mxu0
        %v8293 = vadd.f32 %v8020, %v8292
        %8294 = vmatprep.mubr.bf16.mxu0 %v5566
        %8295 = vmatmul.mubr.bf16.gmra.mxu0 %v5565
        %v8296 = vpop.f32.mrf.mxu0
        %v8297 = vadd.f32 %v8024, %v8296
        %v8298 = vpop.f32.mrf.mxu0
        %v8299 = vadd.f32 %v8026, %v8298
        %v8300 = vpop.f32.mrf.mxu0
        %v8301 = vadd.f32 %v8028, %v8300
        %v8302 = vpop.f32.mrf.mxu0
        %v8303 = vadd.f32 %v8030, %v8302
        %8304 = vmatprep.mubr.bf16.mxu0 %v5572
        %8305 = vmatmul.mubr.bf16.gmra.mxu0 %v5571
        %v8306 = vpop.f32.mrf.mxu0
        %v8307 = vadd.f32 %v8034, %v8306
        %v8308 = vpop.f32.mrf.mxu0
        %v8309 = vadd.f32 %v8036, %v8308
        %v8310 = vpop.f32.mrf.mxu0
        %v8311 = vadd.f32 %v8038, %v8310
        %v8312 = vpop.f32.mrf.mxu0
        %v8313 = vadd.f32 %v8040, %v8312
        %8314 = vdwg.mxu0
        %8315 = vst [vmem:[%s384] sm:$0xff] %v7258
        %8316 = vst [vmem:[%s384 + $0x8] sm:$0xff] %v7260
        %8317 = vst [vmem:[%s384 + $0x10] sm:$0xff] %v8077
        %8318 = vst [vmem:[%s384 + $0x18] sm:$0xff] %v8079
        %8319 = vst [vmem:[%s384 + $0x20] sm:$0xff] %v7262
        %8320 = vst [vmem:[%s384 + $0x28] sm:$0xff] %v7264
        %8321 = vst [vmem:[%s384 + $0x30] sm:$0xff] %v8081
        %8322 = vst [vmem:[%s384 + $0x38] sm:$0xff] %v8083
        %8323 = vst [vmem:[%s384 + $0x40] sm:$0xff] %v7268
        %8324 = vst [vmem:[%s384 + $0x48] sm:$0xff] %v7270
        %8325 = vst [vmem:[%s384 + $0x50] sm:$0xff] %v8087
        %8326 = vst [vmem:[%s384 + $0x58] sm:$0xff] %v8089
        %8327 = vst [vmem:[%s384 + $0x60] sm:$0xff] %v7272
        %8328 = vst [vmem:[%s384 + $0x68] sm:$0xff] %v7274
        %8329 = vst [vmem:[%s384 + $0x70] sm:$0xff] %v8091
        %8330 = vst [vmem:[%s384 + $0x78] sm:$0xff] %v8093
        %8331 = vst [vmem:[%s384 + $0x80] sm:$0xff] %v7278
        %8332 = vst [vmem:[%s384 + $0x88] sm:$0xff] %v7280
        %8333 = vst [vmem:[%s384 + $0x90] sm:$0xff] %v8097
        %8334 = vst [vmem:[%s384 + $0x98] sm:$0xff] %v8099
        %8335 = vst [vmem:[%s384 + $0xa0] sm:$0xff] %v7282
        %8336 = vst [vmem:[%s384 + $0xa8] sm:$0xff] %v7284
        %8337 = vst [vmem:[%s384 + $0xb0] sm:$0xff] %v8101
        %8338 = vst [vmem:[%s384 + $0xb8] sm:$0xff] %v8103
        %8339 = vst [vmem:[%s384 + $0xc0] sm:$0xff] %v7288
        %8340 = vst [vmem:[%s384 + $0xc8] sm:$0xff] %v7290
        %8341 = vst [vmem:[%s384 + $0xd0] sm:$0xff] %v8107
        %8342 = vst [vmem:[%s384 + $0xd8] sm:$0xff] %v8109
        %8343 = vst [vmem:[%s384 + $0xe0] sm:$0xff] %v7292
        %8344 = vst [vmem:[%s384 + $0xe8] sm:$0xff] %v7294
        %8345 = vst [vmem:[%s384 + $0xf0] sm:$0xff] %v8111
        %8346 = vst [vmem:[%s384 + $0xf8] sm:$0xff] %v8113
        %8347 = vst [vmem:[%s384 + $0x100] sm:$0xff] %v7298
        %8348 = vst [vmem:[%s384 + $0x108] sm:$0xff] %v7300
        %8349 = vst [vmem:[%s384 + $0x110] sm:$0xff] %v8117
        %8350 = vst [vmem:[%s384 + $0x118] sm:$0xff] %v8119
        %8351 = vst [vmem:[%s384 + $0x120] sm:$0xff] %v7302
        %8352 = vst [vmem:[%s384 + $0x128] sm:$0xff] %v7304
        %8353 = vst [vmem:[%s384 + $0x130] sm:$0xff] %v8121
        %8354 = vst [vmem:[%s384 + $0x138] sm:$0xff] %v8123
        %8355 = vst [vmem:[%s384 + $0x140] sm:$0xff] %v7308
        %8356 = vst [vmem:[%s384 + $0x148] sm:$0xff] %v7310
        %8357 = vst [vmem:[%s384 + $0x150] sm:$0xff] %v8127
        %8358 = vst [vmem:[%s384 + $0x158] sm:$0xff] %v8129
        %8359 = vst [vmem:[%s384 + $0x160] sm:$0xff] %v7312
        %8360 = vst [vmem:[%s384 + $0x168] sm:$0xff] %v7314
        %8361 = vst [vmem:[%s384 + $0x170] sm:$0xff] %v8131
        %8362 = vst [vmem:[%s384 + $0x178] sm:$0xff] %v8133
        %8363 = vst [vmem:[%s384 + $0x180] sm:$0xff] %v7318
        %8364 = vst [vmem:[%s384 + $0x188] sm:$0xff] %v7320
        %8365 = vst [vmem:[%s384 + $0x190] sm:$0xff] %v8137
        %8366 = vst [vmem:[%s384 + $0x198] sm:$0xff] %v8139
        %8367 = vst [vmem:[%s384 + $0x1a0] sm:$0xff] %v7322
        %8368 = vst [vmem:[%s384 + $0x1a8] sm:$0xff] %v7324
        %8369 = vst [vmem:[%s384 + $0x1b0] sm:$0xff] %v8141
        %8370 = vst [vmem:[%s384 + $0x1b8] sm:$0xff] %v8143
        %8371 = vst [vmem:[%s384 + $0x1c0] sm:$0xff] %v7328
        %8372 = vst [vmem:[%s384 + $0x1c8] sm:$0xff] %v7330
        %8373 = vst [vmem:[%s384 + $0x1d0] sm:$0xff] %v8147
        %8374 = vst [vmem:[%s384 + $0x1d8] sm:$0xff] %v8149
        %8375 = vst [vmem:[%s384 + $0x1e0] sm:$0xff] %v7332
        %8376 = vst [vmem:[%s384 + $0x1e8] sm:$0xff] %v7334
        %8377 = vst [vmem:[%s384 + $0x1f0] sm:$0xff] %v8151
        %8378 = vst [vmem:[%s384 + $0x1f8] sm:$0xff] %v8153
        %8379 = vst [vmem:[%s384 + $0x200] sm:$0xff] %v7338
        %8380 = vst [vmem:[%s384 + $0x208] sm:$0xff] %v7340
        %8381 = vst [vmem:[%s384 + $0x210] sm:$0xff] %v8157
        %8382 = vst [vmem:[%s384 + $0x218] sm:$0xff] %v8159
        %8383 = vst [vmem:[%s384 + $0x220] sm:$0xff] %v7342
        %8384 = vst [vmem:[%s384 + $0x228] sm:$0xff] %v7344
        %8385 = vst [vmem:[%s384 + $0x230] sm:$0xff] %v8161
        %8386 = vst [vmem:[%s384 + $0x238] sm:$0xff] %v8163
        %8387 = vst [vmem:[%s384 + $0x240] sm:$0xff] %v7348
        %8388 = vst [vmem:[%s384 + $0x248] sm:$0xff] %v7350
        %8389 = vst [vmem:[%s384 + $0x250] sm:$0xff] %v8167
        %8390 = vst [vmem:[%s384 + $0x258] sm:$0xff] %v8169
        %8391 = vst [vmem:[%s384 + $0x260] sm:$0xff] %v7352
        %8392 = vst [vmem:[%s384 + $0x268] sm:$0xff] %v7354
        %8393 = vst [vmem:[%s384 + $0x270] sm:$0xff] %v8171
        %8394 = vst [vmem:[%s384 + $0x278] sm:$0xff] %v8173
        %8395 = vst [vmem:[%s384 + $0x280] sm:$0xff] %v7358
        %8396 = vst [vmem:[%s384 + $0x288] sm:$0xff] %v7360
        %8397 = vst [vmem:[%s384 + $0x290] sm:$0xff] %v8177
        %8398 = vst [vmem:[%s384 + $0x298] sm:$0xff] %v8179
        %8399 = vst [vmem:[%s384 + $0x2a0] sm:$0xff] %v7362
        %8400 = vst [vmem:[%s384 + $0x2a8] sm:$0xff] %v7364
        %8401 = vst [vmem:[%s384 + $0x2b0] sm:$0xff] %v8181
        %8402 = vst [vmem:[%s384 + $0x2b8] sm:$0xff] %v8183
        %8403 = vst [vmem:[%s384 + $0x2c0] sm:$0xff] %v7368
        %8404 = vst [vmem:[%s384 + $0x2c8] sm:$0xff] %v7370
        %8405 = vst [vmem:[%s384 + $0x2d0] sm:$0xff] %v8187
        %8406 = vst [vmem:[%s384 + $0x2d8] sm:$0xff] %v8189
        %8407 = vst [vmem:[%s384 + $0x2e0] sm:$0xff] %v7372
        %8408 = vst [vmem:[%s384 + $0x2e8] sm:$0xff] %v7374
        %8409 = vst [vmem:[%s384 + $0x2f0] sm:$0xff] %v8191
        %8410 = vst [vmem:[%s384 + $0x2f8] sm:$0xff] %v8193
        %8411 = vst [vmem:[%s384 + $0x300] sm:$0xff] %v7378
        %8412 = vst [vmem:[%s384 + $0x308] sm:$0xff] %v7380
        %8413 = vst [vmem:[%s384 + $0x310] sm:$0xff] %v8197
        %8414 = vst [vmem:[%s384 + $0x318] sm:$0xff] %v8199
        %8415 = vst [vmem:[%s384 + $0x320] sm:$0xff] %v7382
        %8416 = vst [vmem:[%s384 + $0x328] sm:$0xff] %v7384
        %8417 = vst [vmem:[%s384 + $0x330] sm:$0xff] %v8201
        %8418 = vst [vmem:[%s384 + $0x338] sm:$0xff] %v8203
        %8419 = vst [vmem:[%s384 + $0x340] sm:$0xff] %v7388
        %8420 = vst [vmem:[%s384 + $0x348] sm:$0xff] %v7390
        %8421 = vst [vmem:[%s384 + $0x350] sm:$0xff] %v8207
        %8422 = vst [vmem:[%s384 + $0x358] sm:$0xff] %v8209
        %8423 = vst [vmem:[%s384 + $0x360] sm:$0xff] %v7392
        %8424 = vst [vmem:[%s384 + $0x368] sm:$0xff] %v7394
        %8425 = vst [vmem:[%s384 + $0x370] sm:$0xff] %v8211
        %8426 = vst [vmem:[%s384 + $0x378] sm:$0xff] %v8213
        %8427 = vst [vmem:[%s384 + $0x380] sm:$0xff] %v7398
        %8428 = vst [vmem:[%s384 + $0x388] sm:$0xff] %v7400
        %8429 = vst [vmem:[%s384 + $0x390] sm:$0xff] %v8217
        %8430 = vst [vmem:[%s384 + $0x398] sm:$0xff] %v8219
        %8431 = vst [vmem:[%s384 + $0x3a0] sm:$0xff] %v7402
        %8432 = vst [vmem:[%s384 + $0x3a8] sm:$0xff] %v7404
        %8433 = vst [vmem:[%s384 + $0x3b0] sm:$0xff] %v8221
        %8434 = vst [vmem:[%s384 + $0x3b8] sm:$0xff] %v8223
        %8435 = vst [vmem:[%s384 + $0x3c0] sm:$0xff] %v7408
        %8436 = vst [vmem:[%s384 + $0x3c8] sm:$0xff] %v7410
        %8437 = vst [vmem:[%s384 + $0x3d0] sm:$0xff] %v8227
        %8438 = vst [vmem:[%s384 + $0x3d8] sm:$0xff] %v8229
        %8439 = vst [vmem:[%s384 + $0x3e0] sm:$0xff] %v7412
        %8440 = vst [vmem:[%s384 + $0x3e8] sm:$0xff] %v7414
        %8441 = vst [vmem:[%s384 + $0x3f0] sm:$0xff] %v8231
        %8442 = vst [vmem:[%s384 + $0x3f8] sm:$0xff] %v8233
        %8443 = vst [vmem:[%s384 + $0x400] sm:$0xff] %v7418
        %8444 = vst [vmem:[%s384 + $0x408] sm:$0xff] %v7420
        %8445 = vst [vmem:[%s384 + $0x410] sm:$0xff] %v8237
        %8446 = vst [vmem:[%s384 + $0x418] sm:$0xff] %v8239
        %8447 = vst [vmem:[%s384 + $0x420] sm:$0xff] %v7422
        %8448 = vst [vmem:[%s384 + $0x428] sm:$0xff] %v7424
        %8449 = vst [vmem:[%s384 + $0x430] sm:$0xff] %v8241
        %8450 = vst [vmem:[%s384 + $0x438] sm:$0xff] %v8243
        %8451 = vst [vmem:[%s384 + $0x440] sm:$0xff] %v7428
        %8452 = vst [vmem:[%s384 + $0x448] sm:$0xff] %v7430
        %8453 = vst [vmem:[%s384 + $0x450] sm:$0xff] %v8247
        %8454 = vst [vmem:[%s384 + $0x458] sm:$0xff] %v8249
        %8455 = vst [vmem:[%s384 + $0x460] sm:$0xff] %v7432
        %8456 = vst [vmem:[%s384 + $0x468] sm:$0xff] %v7434
        %8457 = vst [vmem:[%s384 + $0x470] sm:$0xff] %v8251
        %8458 = vst [vmem:[%s384 + $0x478] sm:$0xff] %v8253
        %8459 = vst [vmem:[%s384 + $0x480] sm:$0xff] %v7438
        %8460 = vst [vmem:[%s384 + $0x488] sm:$0xff] %v7440
        %8461 = vst [vmem:[%s384 + $0x490] sm:$0xff] %v8257
        %8462 = vst [vmem:[%s384 + $0x498] sm:$0xff] %v8259
        %8463 = vst [vmem:[%s384 + $0x4a0] sm:$0xff] %v7442
        %8464 = vst [vmem:[%s384 + $0x4a8] sm:$0xff] %v7444
        %8465 = vst [vmem:[%s384 + $0x4b0] sm:$0xff] %v8261
        %8466 = vst [vmem:[%s384 + $0x4b8] sm:$0xff] %v8263
        %8467 = vst [vmem:[%s384 + $0x4c0] sm:$0xff] %v7448
        %8468 = vst [vmem:[%s384 + $0x4c8] sm:$0xff] %v7450
        %8469 = vst [vmem:[%s384 + $0x4d0] sm:$0xff] %v8267
        %8470 = vst [vmem:[%s384 + $0x4d8] sm:$0xff] %v8269
        %8471 = vst [vmem:[%s384 + $0x4e0] sm:$0xff] %v7452
        %8472 = vst [vmem:[%s384 + $0x4e8] sm:$0xff] %v7454
        %8473 = vst [vmem:[%s384 + $0x4f0] sm:$0xff] %v8271
        %8474 = vst [vmem:[%s384 + $0x4f8] sm:$0xff] %v8273
        %8475 = vst [vmem:[%s384 + $0x500] sm:$0xff] %v7458
        %8476 = vst [vmem:[%s384 + $0x508] sm:$0xff] %v7460
        %8477 = vst [vmem:[%s384 + $0x510] sm:$0xff] %v8277
        %8478 = vst [vmem:[%s384 + $0x518] sm:$0xff] %v8279
        %8479 = vst [vmem:[%s384 + $0x520] sm:$0xff] %v7462
        %8480 = vst [vmem:[%s384 + $0x528] sm:$0xff] %v7464
        %8481 = vst [vmem:[%s384 + $0x530] sm:$0xff] %v8281
        %8482 = vst [vmem:[%s384 + $0x538] sm:$0xff] %v8283
        %8483 = vst [vmem:[%s384 + $0x540] sm:$0xff] %v7468
        %8484 = vst [vmem:[%s384 + $0x548] sm:$0xff] %v7470
        %8485 = vst [vmem:[%s384 + $0x550] sm:$0xff] %v8287
        %8486 = vst [vmem:[%s384 + $0x558] sm:$0xff] %v8289
        %8487 = vst [vmem:[%s384 + $0x560] sm:$0xff] %v7472
        %8488 = vst [vmem:[%s384 + $0x568] sm:$0xff] %v7474
        %8489 = vst [vmem:[%s384 + $0x570] sm:$0xff] %v8291
        %8490 = vst [vmem:[%s384 + $0x578] sm:$0xff] %v8293
        %8491 = vst [vmem:[%s384 + $0x580] sm:$0xff] %v7478
        %8492 = vst [vmem:[%s384 + $0x588] sm:$0xff] %v7480
        %8493 = vst [vmem:[%s384 + $0x590] sm:$0xff] %v8297
        %8494 = vst [vmem:[%s384 + $0x598] sm:$0xff] %v8299
        %8495 = vst [vmem:[%s384 + $0x5a0] sm:$0xff] %v7482
        %8496 = vst [vmem:[%s384 + $0x5a8] sm:$0xff] %v7484
        %8497 = vst [vmem:[%s384 + $0x5b0] sm:$0xff] %v8301
        %8498 = vst [vmem:[%s384 + $0x5b8] sm:$0xff] %v8303
        %8499 = vst [vmem:[%s384 + $0x5c0] sm:$0xff] %v7488
        %8500 = vst [vmem:[%s384 + $0x5c8] sm:$0xff] %v7490
        %8501 = vst [vmem:[%s384 + $0x5d0] sm:$0xff] %v8307
        %8502 = vst [vmem:[%s384 + $0x5d8] sm:$0xff] %v8309
        %8503 = vst [vmem:[%s384 + $0x5e0] sm:$0xff] %v7492
        %8504 = vst [vmem:[%s384 + $0x5e8] sm:$0xff] %v7494
        %8505 = vst [vmem:[%s384 + $0x5f0] sm:$0xff] %v8311
        %8506 = vst [vmem:[%s384 + $0x5f8] sm:$0xff] %v8313
        %s8507 = sand.u32 %s191, 1
        %s8508 = scalar_lea.sflag [#allocation5], %s8507
        %s8509 = sand.u32 %s191, 1
        %s8510 = smul.addr %s8509, 1536
        %s8511 = scalar_lea.vmem [#allocation13], %s8510
        // Predicated region
        $region73: #{tpu_custom_call.1} parent=43 // pred_check
          %p8512 = pneg %p201
        $region74: #{tpu_custom_call.1} parent=43 // pred_check_branch
          %8514 = sbr.rel (%p8512) target = $region76
        $region75: #{tpu_custom_call.1} parent=43 // pred_region
          %s8515 = smul.u32 %s27, 3
          %s8516 = sadd.s32 %s8515, %s28
          %s8517 = smul.u32 4, %s8516
          %s8519 = ssub.s32 24576, 24576
          %8520 = vsyncadd %s8508, %s8519
          %s8521 = smul.addr %s8517, 128
          %s8522 = scalar_lea.hbm %s6, %s8521
          %s8523 = sshll.u32 %s8511, 4
          %s8524 = int_to_ptr.vmem [resolvable:$true] %s8523
          %8529 = dma.vmem_to_hbm [thread:$0]  %s8524, 24576, %s8522, %s8508, 512, 3072, 32
        $region76: #{tpu_custom_call.1} parent=43 // pred_fallthru
          _
      $region44: #{tpu_custom_call.1} parent=5 // pred_fallthru
        _
      %p8530 = scmp.le.s32.totalorder 2, %s18
      // Predicated region
      $region77: #{tpu_custom_call.1} parent=5 // pred_check
        %p8531 = pneg %p8530
      $region78: #{tpu_custom_call.1} parent=5 // pred_check_branch
        %8533 = sbr.rel (%p8531) target = $region80
      $region79: #{tpu_custom_call.1} parent=5 // pred_region
        %s8534 = ssub.s32 %s18, 2
        // Predicated region
        $region81: #{tpu_custom_call.1} parent=79 // pred_check
          %p8535 = pneg %p207
        $region82: #{tpu_custom_call.1} parent=79 // pred_check_branch
          %8537 = sbr.rel (%p8535) target = $region84
        $region83: #{tpu_custom_call.1} parent=79 // pred_region
          %s8538 = sand.u32 %s192, 1
          %s8539 = scalar_lea.sflag [#allocation5], %s8538
          %s8540 = sand.u32 %s192, 1
          %s8541 = smul.addr %s8540, 1536
          %s8542 = scalar_lea.vmem [#allocation13], %s8541
          %8543 = dma.done %s8539, 24576
        $region84: #{tpu_custom_call.1} parent=79 // pred_fallthru
          _
      $region80: #{tpu_custom_call.1} parent=5 // pred_fallthru
        _
    $region6: #{tpu_custom_call.1} parent=1 // loop_footer
      %s22 = sadd.s32 1, %s18
    $region7: #{tpu_custom_call.1} parent=1 // loop_footer_branch
      %17 = sbr.rel target = $region3
    $region8: #{tpu_custom_call.1} parent=1 // loop_exit
      _
    %8544 = vsyncpa [#allocation4], 1
    %s8545 = scalar_lea.sflag [#allocation4], 1
    %8546 = vsyncpa %s8545, 1
    %8547 = vsyncpa [#allocation7], 1
    %8548 = vsyncpa [#allocation10], 1
    %8549 = vsyncpa [#allocation5], 1
    %s8550 = scalar_lea.sflag [#allocation5], 1
    %8551 = vsyncpa %s8550, 1

</llo_original>
